<compile_context>
chip_gen: v5e
topology: v5e:2x2
jax: 0.10.0
libtpu: 0.0.40
codegen_flags: <defaults>
</compile_context>

<pallas_src>
import jax
import jax.numpy as jnp
from jax import lax
from jax.experimental import pallas as pl
from jax.experimental.pallas import tpu as pltpu


# ----------------------------------------------------------------------------
# Pallas kernel: bidirectional single-layer LSTM + fused post Linear (2H -> H)
# ----------------------------------------------------------------------------
def _seq_bilstm_kernel(x_ref,
                       wif_ref, whf_ref, bf_ref,     # forward dir LSTM weights
                       wib_ref, whb_ref, bb_ref,     # backward dir LSTM weights
                       wpf_ref, wpb_ref, bp_ref,     # post Linear (split halves)
                       o_ref,
                       hf_scr, cf_scr, hb_scr, cb_scr,
                       gif_scr, gib_scr):
    T = x_ref.shape[0]
    H = hf_scr.shape[0]
    tn = hf_scr.shape[1]

    # Zero initial LSTM state (h, c) for both directions.
    hf_scr[...] = jnp.zeros_like(hf_scr)
    cf_scr[...] = jnp.zeros_like(cf_scr)
    hb_scr[...] = jnp.zeros_like(hb_scr)
    cb_scr[...] = jnp.zeros_like(cb_scr)

    wif = wif_ref[...]          # [4H, C]  bf16
    whf = whf_ref[...]          # [4H, H]  bf16
    wib = wib_ref[...]
    whb = whb_ref[...]
    wpf = wpf_ref[...]          # [H, H]   bf16
    wpb = wpb_ref[...]

    # Lane-broadcast the (bias_ih + bias_hh) gate biases once (hoisted out of
    # all loops; no per-step broadcast_in_dim).
    bf_b = jnp.broadcast_to(bf_ref[...], (4 * H, tn))   # [4H, tn] f32
    bb_b = jnp.broadcast_to(bb_ref[...], (4 * H, tn))
    bp_b = jnp.broadcast_to(bp_ref[...], (H, tn))       # [H, tn]  f32

    # ---- Phase 1: input projections for every timestep, both directions ----
    # These matmuls do not depend on the recurrent state, so batch them all
    # up front (MXU pushes pipeline back-to-back) and keep the serial loop
    # body minimal.
    # TODO(synk): for long T switch this and the recurrence to lax.fori_loop
    # to bound code size; T is small here so static unroll is fine.
    for t in range(T):
        x_t = x_ref[t]                                   # [C, tn] bf16
        gif_scr[t] = (jnp.dot(wif, x_t, preferred_element_type=jnp.float32)
                      + bf_b)
        gib_scr[t] = (jnp.dot(wib, x_t, preferred_element_type=jnp.float32)
                      + bb_b)

    # ---- Phase 2: interleaved forward / backward recurrence ---------------
    def cell(gi, h_scr, c_scr, wh):
        # PyTorch LSTM gate order along sublanes: i, f, g, o.
        g = gi + jnp.dot(wh, h_scr[...].astype(wh.dtype),
                         preferred_element_type=jnp.float32)   # [4H, tn] f32
        i_g = jax.nn.sigmoid(g[0 * H:1 * H])
        f_g = jax.nn.sigmoid(g[1 * H:2 * H])
        g_g = jnp.tanh(g[2 * H:3 * H])
        o_g = jax.nn.sigmoid(g[3 * H:4 * H])
        c = f_g * c_scr[...] + i_g * g_g
        h = o_g * jnp.tanh(c)
        c_scr[...] = c
        h_scr[...] = h
        return h

    # Interleave forward (t = k) and backward (t = T-1-k): the two serial
    # chains are independent, so one direction's MXU work overlaps the
    # other's EUP/VPU gate math.  Fused post Linear: each time index gets a
    # single bias-carrying '=' write on first touch and a '+=' on second
    # touch (no output init pass).
    for k in range(T):
        tb = T - 1 - k
        hf = cell(gif_scr[k], hf_scr, cf_scr, whf)
        hb = cell(gib_scr[tb], hb_scr, cb_scr, whb)
        yf = jnp.dot(wpf, hf.astype(wpf.dtype),
                     preferred_element_type=jnp.float32)       # [H, tn]
        yb = jnp.dot(wpb, hb.astype(wpb.dtype),
                     preferred_element_type=jnp.float32)
        if k < tb:            # first touch for both indices
            o_ref[k] = yf + bp_b
            o_ref[tb] = yb + bp_b
        elif k == tb:         # odd T midpoint: both directions, same index
            o_ref[k] = yf + yb + bp_b
        else:                 # second touch for both indices
            o_ref[k] = o_ref[k] + yf
            o_ref[tb] = o_ref[tb] + yb


# ----------------------------------------------------------------------------
# JAX wrapper around pallas_call (RNN + post Linear hot path)
# ----------------------------------------------------------------------------
def bilstm_post_pallas(x_seq, params, tile_n=128):
    """x_seq: [N, T, C] float32  ->  [N, T, H] float32."""
    N, T, C = x_seq.shape
    H = params['whf'].shape[1]

    # Lane-dense tiling of the row dimension: multiples of 128, but don't
    # over-pad tiny inputs.  Sweep 128-512 (weights are reused per tile).
    tile_n = max(128, min(int(tile_n), ((N + 127) // 128) * 128))

    x_t = jnp.transpose(x_seq, (1, 2, 0)).astype(jnp.bfloat16)   # [T, C, N]
    n_pad = (-N) % tile_n
    if n_pad:
        x_t = jnp.pad(x_t, ((0, 0), (0, 0), (0, n_pad)))
    Np = x_t.shape[-1]
    grid = (Np // tile_n,)

    def bf16(a):
        return a.astype(jnp.bfloat16)

    def fixed(shape):
        nd = len(shape)
        return pl.BlockSpec(shape, lambda i, _z=(0,) * nd: _z)

    in_specs = [
        pl.BlockSpec((T, C, tile_n), lambda i: (0, 0, i)),           # x tile
        fixed((4 * H, C)), fixed((4 * H, H)), fixed((4 * H, 1)),     # fwd LSTM
        fixed((4 * H, C)), fixed((4 * H, H)), fixed((4 * H, 1)),     # bwd LSTM
        fixed((H, H)), fixed((H, H)), fixed((H, 1)),                 # post Linear
    ]
    out_specs = pl.BlockSpec((T, H, tile_n), lambda i: (0, 0, i))

    y = pl.pallas_call(
        _seq_bilstm_kernel,
        out_shape=jax.ShapeDtypeStruct((T, H, Np), jnp.float32),
        grid_spec=pltpu.PrefetchScalarGridSpec(
            num_scalar_prefetch=0,
            grid=grid,
            in_specs=in_specs,
            out_specs=out_specs,
            scratch_shapes=[
                pltpu.VMEM((H, tile_n), jnp.float32),           # h fwd
                pltpu.VMEM((H, tile_n), jnp.float32),           # c fwd
                pltpu.VMEM((H, tile_n), jnp.float32),           # h bwd
                pltpu.VMEM((H, tile_n), jnp.float32),           # c bwd
                pltpu.VMEM((T, 4 * H, tile_n), jnp.float32),    # fwd gi (+bias)
                pltpu.VMEM((T, 4 * H, tile_n), jnp.float32),    # bwd gi (+bias)
            ],
        ),
        compiler_params=pltpu.CompilerParams(
            dimension_semantics=("parallel",)),
    )(x_t,
      bf16(params['wif']), bf16(params['whf']), params['bf'],
      bf16(params['wib']), bf16(params['whb']), params['bb'],
      bf16(params['wpf']), bf16(params['wpb']), params['bp'])

    return jnp.transpose(y, (2, 0, 1))[:N]                 # [N, T, H]


# ----------------------------------------------------------------------------
# SeqRNN.forward glue: preprocess_sequence / postprocess_sequence equivalent
# ----------------------------------------------------------------------------
def seq_rnn_forward(x_dict, params, tile_n=128):
    """x_dict: {key: [B, T, C, Hs, Ws]}  ->  {key: [B, T, H, Hs, Ws]}."""
    shapes = {}
    flat = []
    for k, v in x_dict.items():
        B, T, C, Hs, Ws = v.shape
        p = jnp.transpose(v, (0, 3, 4, 1, 2))          # [B, Hs, Ws, T, C]
        shapes[k] = p.shape
        flat.append(p.reshape(-1, T, C))
    x_seq = jnp.concatenate(flat, axis=0)              # [N_total, T, C]

    y_seq = bilstm_post_pallas(x_seq, params, tile_n)  # [N_total, T, H]

    out = {}
    off = 0
    for k, sh in shapes.items():
        B, Hs, Ws, T, _ = sh
        n = B * Hs * Ws
        yk = y_seq[off:off + n].reshape(B, Hs, Ws, T, -1)
        out[k] = jnp.transpose(yk, (0, 3, 4, 1, 2))    # [B, T, H, Hs, Ws]
        off += n
    return out


# ----------------------------------------------------------------------------
# Deterministic parameter init (synthetic, PyTorch LSTM-style shapes)
# ----------------------------------------------------------------------------
def init_params(key, C, H):
    ks = jax.random.split(key, 9)
    s = float(1.0 / (H ** 0.5))
    u = lambda k, shape: jax.random.uniform(k, shape, jnp.float32, -s, s)
    return dict(
        wif=u(ks[0], (4 * H, C)),    # weight_ih_l0
        whf=u(ks[1], (4 * H, H)),    # weight_hh_l0
        bf=u(ks[2], (4 * H, 1)),     # bias_ih_l0 + bias_hh_l0 (combined)
        wib=u(ks[3], (4 * H, C)),    # weight_ih_l0_reverse
        whb=u(ks[4], (4 * H, H)),    # weight_hh_l0_reverse
        bb=u(ks[5], (4 * H, 1)),
        wpf=u(ks[6], (H, H)),        # post.weight[:, :H]
        wpb=u(ks[7], (H, H)),        # post.weight[:, H:]
        bp=u(ks[8], (H, 1)),         # post.bias
    )


# ----------------------------------------------------------------------------
# Pure-JAX reference (bidirectional LSTM + post Linear) for verification.
# Mirrors the kernel's precision policy: bf16 matmul operands, f32 accum/state.
# ----------------------------------------------------------------------------
def bilstm_post_ref(x_seq, params):
    N, T, C = x_seq.shape
    H = params['whf'].shape[1]
    cast = lambda a: a.astype(jnp.bfloat16)

    def run_dir(x_d, wi, wh, b):
        wi_b, wh_b = cast(wi), cast(wh)
        b_row = b[:, 0]

        def step(carry, xt):
            h, c = carry
            g = (jnp.dot(cast(xt), wi_b.T, preferred_element_type=jnp.float32)
                 + jnp.dot(cast(h), wh_b.T, preferred_element_type=jnp.float32)
                 + b_row)
            i_g = jax.nn.sigmoid(g[:, :H])
            f_g = jax.nn.sigmoid(g[:, H:2 * H])
            g_g = jnp.tanh(g[:, 2 * H:3 * H])
            o_g = jax.nn.sigmoid(g[:, 3 * H:])
            c = f_g * c + i_g * g_g
            h = o_g * jnp.tanh(c)
            return (h, c), h

        h0 = jnp.zeros((N, H), jnp.float32)
        _, hs = lax.scan(step, (h0, h0), jnp.swapaxes(x_d, 0, 1))
        return jnp.swapaxes(hs, 0, 1)                  # [N, T, H]

    hf = run_dir(x_seq, params['wif'], params['whf'], params['bf'])
    hb = run_dir(x_seq[:, ::-1], params['wib'], params['whb'],
                 params['bb'])[:, ::-1]
    y = (jnp.dot(cast(hf), cast(params['wpf']).T,
                 preferred_element_type=jnp.float32)
         + jnp.dot(cast(hb), cast(params['wpb']).T,
                   preferred_element_type=jnp.float32)
         + params['bp'][:, 0])
    return y


if __name__ == "__main__":
    key = jax.random.PRNGKey(0)
    kx, kp = jax.random.split(key)

    B, T, C, Hs, Ws = 2, 8, 4, 4, 4
    H = 32

    x = jax.random.normal(kx, (B, T, C, Hs, Ws), jnp.float32)
    params = init_params(kp, C, H)

    out = seq_rnn_forward({"obs": x}, params)
    out = jax.block_until_ready(out)
    y = out["obs"]
    assert y.shape == (B, T, H, Hs, Ws), y.shape

    # Verify against the pure-JAX reference (same bf16/f32 precision policy).
    xp = jnp.transpose(x, (0, 3, 4, 1, 2)).reshape(-1, T, C)
    y_ref = bilstm_post_ref(xp, params)
    y_ref = jnp.transpose(y_ref.reshape(B, Hs, Ws, T, H), (0, 3, 4, 1, 2))
    max_err = float(jnp.max(jnp.abs(y - y_ref)))
    assert jnp.allclose(y, y_ref, atol=5e-3, rtol=5e-3), max_err

    print("KERNEL_OK")
</pallas_src>

<mosaic_0001>
module attributes {stable_mosaic.version = 11 : i64} {
  func.func @_seq_bilstm_kernel(%arg0: i32, %arg1: memref<8x4x128xbf16, #tpu.memory_space<vmem>>, %arg2: memref<128x4xbf16, #tpu.memory_space<vmem>>, %arg3: memref<128x32xbf16, #tpu.memory_space<vmem>>, %arg4: memref<128x1xf32, #tpu.memory_space<vmem>>, %arg5: memref<128x4xbf16, #tpu.memory_space<vmem>>, %arg6: memref<128x32xbf16, #tpu.memory_space<vmem>>, %arg7: memref<128x1xf32, #tpu.memory_space<vmem>>, %arg8: memref<32x32xbf16, #tpu.memory_space<vmem>>, %arg9: memref<32x32xbf16, #tpu.memory_space<vmem>>, %arg10: memref<32x1xf32, #tpu.memory_space<vmem>>, %arg11: memref<8x32x128xf32, #tpu.memory_space<vmem>>, %arg12: memref<32x128xf32, #tpu.memory_space<vmem>>, %arg13: memref<32x128xf32, #tpu.memory_space<vmem>>, %arg14: memref<32x128xf32, #tpu.memory_space<vmem>>, %arg15: memref<32x128xf32, #tpu.memory_space<vmem>>, %arg16: memref<8x128x128xf32, #tpu.memory_space<vmem>>, %arg17: memref<8x128x128xf32, #tpu.memory_space<vmem>>) attributes {dimension_semantics = [#tpu.dimension_semantics<parallel>], iteration_bounds = array<i64: 1>, scalar_prefetch = 0 : i64, scratch_operands = 6 : i64, tpu.core_type = #tpu.core_type<tc>, window_params = [{transform_indices = @transform_0, window_bounds = array<i64: 8, 4, 128>}, {pipeline_mode = #tpu.pipeline_mode<synchronous>, transform_indices = @transform_1, window_bounds = array<i64: 128, 4>}, {pipeline_mode = #tpu.pipeline_mode<synchronous>, transform_indices = @transform_2, window_bounds = array<i64: 128, 32>}, {pipeline_mode = #tpu.pipeline_mode<synchronous>, transform_indices = @transform_3, window_bounds = array<i64: 128, 1>}, {pipeline_mode = #tpu.pipeline_mode<synchronous>, transform_indices = @transform_4, window_bounds = array<i64: 128, 4>}, {pipeline_mode = #tpu.pipeline_mode<synchronous>, transform_indices = @transform_5, window_bounds = array<i64: 128, 32>}, {pipeline_mode = #tpu.pipeline_mode<synchronous>, transform_indices = @transform_6, window_bounds = array<i64: 128, 1>}, {pipeline_mode = #tpu.pipeline_mode<synchronous>, transform_indices = @transform_7, window_bounds = array<i64: 32, 32>}, {pipeline_mode = #tpu.pipeline_mode<synchronous>, transform_indices = @transform_8, window_bounds = array<i64: 32, 32>}, {pipeline_mode = #tpu.pipeline_mode<synchronous>, transform_indices = @transform_9, window_bounds = array<i64: 32, 1>}, {transform_indices = @transform_10, window_bounds = array<i64: 8, 32, 128>}]} {
    %cst = arith.constant 0.000000e+00 : f32
    %0 = vector.broadcast %cst : f32 to vector<32x128xf32>
    %c0 = arith.constant 0 : index
    %c0_0 = arith.constant 0 : index
    %1 = vector.load %arg12[%c0, %c0_0] : memref<32x128xf32, #tpu.memory_space<vmem>>, vector<32x128xf32>
    tpu.vector_store %arg12[%c0, %c0_0], %0 {strides = array<i32>} : memref<32x128xf32, #tpu.memory_space<vmem>>, vector<32x128xf32>,
    %cst_1 = arith.constant 0.000000e+00 : f32
    %2 = vector.broadcast %cst_1 : f32 to vector<32x128xf32>
    %c0_2 = arith.constant 0 : index
    %c0_3 = arith.constant 0 : index
    %3 = vector.load %arg13[%c0_2, %c0_3] : memref<32x128xf32, #tpu.memory_space<vmem>>, vector<32x128xf32>
    tpu.vector_store %arg13[%c0_2, %c0_3], %2 {strides = array<i32>} : memref<32x128xf32, #tpu.memory_space<vmem>>, vector<32x128xf32>,
    %cst_4 = arith.constant 0.000000e+00 : f32
    %4 = vector.broadcast %cst_4 : f32 to vector<32x128xf32>
    %c0_5 = arith.constant 0 : index
    %c0_6 = arith.constant 0 : index
    %5 = vector.load %arg14[%c0_5, %c0_6] : memref<32x128xf32, #tpu.memory_space<vmem>>, vector<32x128xf32>
    tpu.vector_store %arg14[%c0_5, %c0_6], %4 {strides = array<i32>} : memref<32x128xf32, #tpu.memory_space<vmem>>, vector<32x128xf32>,
    %cst_7 = arith.constant 0.000000e+00 : f32
    %6 = vector.broadcast %cst_7 : f32 to vector<32x128xf32>
    %c0_8 = arith.constant 0 : index
    %c0_9 = arith.constant 0 : index
    %7 = vector.load %arg15[%c0_8, %c0_9] : memref<32x128xf32, #tpu.memory_space<vmem>>, vector<32x128xf32>
    tpu.vector_store %arg15[%c0_8, %c0_9], %6 {strides = array<i32>} : memref<32x128xf32, #tpu.memory_space<vmem>>, vector<32x128xf32>,
    %c0_10 = arith.constant 0 : index
    %c0_11 = arith.constant 0 : index
    %8 = vector.load %arg2[%c0_10, %c0_11] : memref<128x4xbf16, #tpu.memory_space<vmem>>, vector<128x4xbf16>
    %c0_12 = arith.constant 0 : index
    %c0_13 = arith.constant 0 : index
    %9 = vector.load %arg3[%c0_12, %c0_13] : memref<128x32xbf16, #tpu.memory_space<vmem>>, vector<128x32xbf16>
    %c0_14 = arith.constant 0 : index
    %c0_15 = arith.constant 0 : index
    %10 = vector.load %arg5[%c0_14, %c0_15] : memref<128x4xbf16, #tpu.memory_space<vmem>>, vector<128x4xbf16>
    %c0_16 = arith.constant 0 : index
    %c0_17 = arith.constant 0 : index
    %11 = vector.load %arg6[%c0_16, %c0_17] : memref<128x32xbf16, #tpu.memory_space<vmem>>, vector<128x32xbf16>
    %c0_18 = arith.constant 0 : index
    %c0_19 = arith.constant 0 : index
    %12 = vector.load %arg8[%c0_18, %c0_19] : memref<32x32xbf16, #tpu.memory_space<vmem>>, vector<32x32xbf16>
    %c0_20 = arith.constant 0 : index
    %c0_21 = arith.constant 0 : index
    %13 = vector.load %arg9[%c0_20, %c0_21] : memref<32x32xbf16, #tpu.memory_space<vmem>>, vector<32x32xbf16>
    %c0_22 = arith.constant 0 : index
    %c0_23 = arith.constant 0 : index
    %14 = vector.load %arg4[%c0_22, %c0_23] : memref<128x1xf32, #tpu.memory_space<vmem>>, vector<128x1xf32>
    %15 = vector.shape_cast %14 : vector<128x1xf32> to vector<128x1xf32>
    %16 = vector.broadcast %15 : vector<128x1xf32> to vector<128x128xf32>
    %c0_24 = arith.constant 0 : index
    %c0_25 = arith.constant 0 : index
    %17 = vector.load %arg7[%c0_24, %c0_25] : memref<128x1xf32, #tpu.memory_space<vmem>>, vector<128x1xf32>
    %18 = vector.shape_cast %17 : vector<128x1xf32> to vector<128x1xf32>
    %19 = vector.broadcast %18 : vector<128x1xf32> to vector<128x128xf32>
    %c0_26 = arith.constant 0 : index
    %c0_27 = arith.constant 0 : index
    %20 = vector.load %arg10[%c0_26, %c0_27] : memref<32x1xf32, #tpu.memory_space<vmem>>, vector<32x1xf32>
    %21 = vector.shape_cast %20 : vector<32x1xf32> to vector<32x1xf32>
    %22 = vector.broadcast %21 : vector<32x1xf32> to vector<32x128xf32>
    %c0_28 = arith.constant 0 : index
    %c0_29 = arith.constant 0 : index
    %c0_30 = arith.constant 0 : index
    %23 = vector.load %arg1[%c0_28, %c0_29, %c0_30] : memref<8x4x128xbf16, #tpu.memory_space<vmem>>, vector<1x4x128xbf16>
    %24 = vector.shape_cast %23 : vector<1x4x128xbf16> to vector<4x128xbf16>
    %cst_31 = arith.constant dense<0.000000e+00> : vector<128x128xf32>
    %25 = tpu.matmul %8, %24, %cst_31 {dimension_numbers = #tpu.dot_dimension_numbers<[1], [0], [0], [1], [0, 0, 1, 1], [], []>} : vector<128x4xbf16>, vector<4x128xbf16>, vector<128x128xf32> -> vector<128x128xf32>
    %26 = arith.addf %25, %16 : vector<128x128xf32>
    %c0_32 = arith.constant 0 : index
    %c0_33 = arith.constant 0 : index
    %c0_34 = arith.constant 0 : index
    %27 = vector.load %arg16[%c0_32, %c0_33, %c0_34] : memref<8x128x128xf32, #tpu.memory_space<vmem>>, vector<1x128x128xf32>
    %28 = vector.shape_cast %27 : vector<1x128x128xf32> to vector<128x128xf32>
    %29 = vector.shape_cast %26 : vector<128x128xf32> to vector<1x128x128xf32>
    tpu.vector_store %arg16[%c0_32, %c0_33, %c0_34], %29 {strides = array<i32>} : memref<8x128x128xf32, #tpu.memory_space<vmem>>, vector<1x128x128xf32>,
    %cst_35 = arith.constant dense<0.000000e+00> : vector<128x128xf32>
    %30 = tpu.matmul %10, %24, %cst_35 {dimension_numbers = #tpu.dot_dimension_numbers<[1], [0], [0], [1], [0, 0, 1, 1], [], []>} : vector<128x4xbf16>, vector<4x128xbf16>, vector<128x128xf32> -> vector<128x128xf32>
    %31 = arith.addf %30, %19 : vector<128x128xf32>
    %c0_36 = arith.constant 0 : index
    %c0_37 = arith.constant 0 : index
    %c0_38 = arith.constant 0 : index
    %32 = vector.load %arg17[%c0_36, %c0_37, %c0_38] : memref<8x128x128xf32, #tpu.memory_space<vmem>>, vector<1x128x128xf32>
    %33 = vector.shape_cast %32 : vector<1x128x128xf32> to vector<128x128xf32>
    %34 = vector.shape_cast %31 : vector<128x128xf32> to vector<1x128x128xf32>
    tpu.vector_store %arg17[%c0_36, %c0_37, %c0_38], %34 {strides = array<i32>} : memref<8x128x128xf32, #tpu.memory_space<vmem>>, vector<1x128x128xf32>,
    %c1 = arith.constant 1 : index
    %c0_39 = arith.constant 0 : index
    %c0_40 = arith.constant 0 : index
    %35 = vector.load %arg1[%c1, %c0_39, %c0_40] : memref<8x4x128xbf16, #tpu.memory_space<vmem>>, vector<1x4x128xbf16>
    %36 = vector.shape_cast %35 : vector<1x4x128xbf16> to vector<4x128xbf16>
    %cst_41 = arith.constant dense<0.000000e+00> : vector<128x128xf32>
    %37 = tpu.matmul %8, %36, %cst_41 {dimension_numbers = #tpu.dot_dimension_numbers<[1], [0], [0], [1], [0, 0, 1, 1], [], []>} : vector<128x4xbf16>, vector<4x128xbf16>, vector<128x128xf32> -> vector<128x128xf32>
    %38 = arith.addf %37, %16 : vector<128x128xf32>
    %c1_42 = arith.constant 1 : index
    %c0_43 = arith.constant 0 : index
    %c0_44 = arith.constant 0 : index
    %39 = vector.load %arg16[%c1_42, %c0_43, %c0_44] : memref<8x128x128xf32, #tpu.memory_space<vmem>>, vector<1x128x128xf32>
    %40 = vector.shape_cast %39 : vector<1x128x128xf32> to vector<128x128xf32>
    %41 = vector.shape_cast %38 : vector<128x128xf32> to vector<1x128x128xf32>
    tpu.vector_store %arg16[%c1_42, %c0_43, %c0_44], %41 {strides = array<i32>} : memref<8x128x128xf32, #tpu.memory_space<vmem>>, vector<1x128x128xf32>,
    %cst_45 = arith.constant dense<0.000000e+00> : vector<128x128xf32>
    %42 = tpu.matmul %10, %36, %cst_45 {dimension_numbers = #tpu.dot_dimension_numbers<[1], [0], [0], [1], [0, 0, 1, 1], [], []>} : vector<128x4xbf16>, vector<4x128xbf16>, vector<128x128xf32> -> vector<128x128xf32>
    %43 = arith.addf %42, %19 : vector<128x128xf32>
    %c1_46 = arith.constant 1 : index
    %c0_47 = arith.constant 0 : index
    %c0_48 = arith.constant 0 : index
    %44 = vector.load %arg17[%c1_46, %c0_47, %c0_48] : memref<8x128x128xf32, #tpu.memory_space<vmem>>, vector<1x128x128xf32>
    %45 = vector.shape_cast %44 : vector<1x128x128xf32> to vector<128x128xf32>
    %46 = vector.shape_cast %43 : vector<128x128xf32> to vector<1x128x128xf32>
    tpu.vector_store %arg17[%c1_46, %c0_47, %c0_48], %46 {strides = array<i32>} : memref<8x128x128xf32, #tpu.memory_space<vmem>>, vector<1x128x128xf32>,
    %c2 = arith.constant 2 : index
    %c0_49 = arith.constant 0 : index
    %c0_50 = arith.constant 0 : index
    %47 = vector.load %arg1[%c2, %c0_49, %c0_50] : memref<8x4x128xbf16, #tpu.memory_space<vmem>>, vector<1x4x128xbf16>
    %48 = vector.shape_cast %47 : vector<1x4x128xbf16> to vector<4x128xbf16>
    %cst_51 = arith.constant dense<0.000000e+00> : vector<128x128xf32>
    %49 = tpu.matmul %8, %48, %cst_51 {dimension_numbers = #tpu.dot_dimension_numbers<[1], [0], [0], [1], [0, 0, 1, 1], [], []>} : vector<128x4xbf16>, vector<4x128xbf16>, vector<128x128xf32> -> vector<128x128xf32>
    %50 = arith.addf %49, %16 : vector<128x128xf32>
    %c2_52 = arith.constant 2 : index
    %c0_53 = arith.constant 0 : index
    %c0_54 = arith.constant 0 : index
    %51 = vector.load %arg16[%c2_52, %c0_53, %c0_54] : memref<8x128x128xf32, #tpu.memory_space<vmem>>, vector<1x128x128xf32>
    %52 = vector.shape_cast %51 : vector<1x128x128xf32> to vector<128x128xf32>
    %53 = vector.shape_cast %50 : vector<128x128xf32> to vector<1x128x128xf32>
    tpu.vector_store %arg16[%c2_52, %c0_53, %c0_54], %53 {strides = array<i32>} : memref<8x128x128xf32, #tpu.memory_space<vmem>>, vector<1x128x128xf32>,
    %cst_55 = arith.constant dense<0.000000e+00> : vector<128x128xf32>
    %54 = tpu.matmul %10, %48, %cst_55 {dimension_numbers = #tpu.dot_dimension_numbers<[1], [0], [0], [1], [0, 0, 1, 1], [], []>} : vector<128x4xbf16>, vector<4x128xbf16>, vector<128x128xf32> -> vector<128x128xf32>
    %55 = arith.addf %54, %19 : vector<128x128xf32>
    %c2_56 = arith.constant 2 : index
    %c0_57 = arith.constant 0 : index
    %c0_58 = arith.constant 0 : index
    %56 = vector.load %arg17[%c2_56, %c0_57, %c0_58] : memref<8x128x128xf32, #tpu.memory_space<vmem>>, vector<1x128x128xf32>
    %57 = vector.shape_cast %56 : vector<1x128x128xf32> to vector<128x128xf32>
    %58 = vector.shape_cast %55 : vector<128x128xf32> to vector<1x128x128xf32>
    tpu.vector_store %arg17[%c2_56, %c0_57, %c0_58], %58 {strides = array<i32>} : memref<8x128x128xf32, #tpu.memory_space<vmem>>, vector<1x128x128xf32>,
    %c3 = arith.constant 3 : index
    %c0_59 = arith.constant 0 : index
    %c0_60 = arith.constant 0 : index
    %59 = vector.load %arg1[%c3, %c0_59, %c0_60] : memref<8x4x128xbf16, #tpu.memory_space<vmem>>, vector<1x4x128xbf16>
    %60 = vector.shape_cast %59 : vector<1x4x128xbf16> to vector<4x128xbf16>
    %cst_61 = arith.constant dense<0.000000e+00> : vector<128x128xf32>
    %61 = tpu.matmul %8, %60, %cst_61 {dimension_numbers = #tpu.dot_dimension_numbers<[1], [0], [0], [1], [0, 0, 1, 1], [], []>} : vector<128x4xbf16>, vector<4x128xbf16>, vector<128x128xf32> -> vector<128x128xf32>
    %62 = arith.addf %61, %16 : vector<128x128xf32>
    %c3_62 = arith.constant 3 : index
    %c0_63 = arith.constant 0 : index
    %c0_64 = arith.constant 0 : index
    %63 = vector.load %arg16[%c3_62, %c0_63, %c0_64] : memref<8x128x128xf32, #tpu.memory_space<vmem>>, vector<1x128x128xf32>
    %64 = vector.shape_cast %63 : vector<1x128x128xf32> to vector<128x128xf32>
    %65 = vector.shape_cast %62 : vector<128x128xf32> to vector<1x128x128xf32>
    tpu.vector_store %arg16[%c3_62, %c0_63, %c0_64], %65 {strides = array<i32>} : memref<8x128x128xf32, #tpu.memory_space<vmem>>, vector<1x128x128xf32>,
    %cst_65 = arith.constant dense<0.000000e+00> : vector<128x128xf32>
    %66 = tpu.matmul %10, %60, %cst_65 {dimension_numbers = #tpu.dot_dimension_numbers<[1], [0], [0], [1], [0, 0, 1, 1], [], []>} : vector<128x4xbf16>, vector<4x128xbf16>, vector<128x128xf32> -> vector<128x128xf32>
    %67 = arith.addf %66, %19 : vector<128x128xf32>
    %c3_66 = arith.constant 3 : index
    %c0_67 = arith.constant 0 : index
    %c0_68 = arith.constant 0 : index
    %68 = vector.load %arg17[%c3_66, %c0_67, %c0_68] : memref<8x128x128xf32, #tpu.memory_space<vmem>>, vector<1x128x128xf32>
    %69 = vector.shape_cast %68 : vector<1x128x128xf32> to vector<128x128xf32>
    %70 = vector.shape_cast %67 : vector<128x128xf32> to vector<1x128x128xf32>
    tpu.vector_store %arg17[%c3_66, %c0_67, %c0_68], %70 {strides = array<i32>} : memref<8x128x128xf32, #tpu.memory_space<vmem>>, vector<1x128x128xf32>,
    %c4 = arith.constant 4 : index
    %c0_69 = arith.constant 0 : index
    %c0_70 = arith.constant 0 : index
    %71 = vector.load %arg1[%c4, %c0_69, %c0_70] : memref<8x4x128xbf16, #tpu.memory_space<vmem>>, vector<1x4x128xbf16>
    %72 = vector.shape_cast %71 : vector<1x4x128xbf16> to vector<4x128xbf16>
    %cst_71 = arith.constant dense<0.000000e+00> : vector<128x128xf32>
    %73 = tpu.matmul %8, %72, %cst_71 {dimension_numbers = #tpu.dot_dimension_numbers<[1], [0], [0], [1], [0, 0, 1, 1], [], []>} : vector<128x4xbf16>, vector<4x128xbf16>, vector<128x128xf32> -> vector<128x128xf32>
    %74 = arith.addf %73, %16 : vector<128x128xf32>
    %c4_72 = arith.constant 4 : index
    %c0_73 = arith.constant 0 : index
    %c0_74 = arith.constant 0 : index
    %75 = vector.load %arg16[%c4_72, %c0_73, %c0_74] : memref<8x128x128xf32, #tpu.memory_space<vmem>>, vector<1x128x128xf32>
    %76 = vector.shape_cast %75 : vector<1x128x128xf32> to vector<128x128xf32>
    %77 = vector.shape_cast %74 : vector<128x128xf32> to vector<1x128x128xf32>
    tpu.vector_store %arg16[%c4_72, %c0_73, %c0_74], %77 {strides = array<i32>} : memref<8x128x128xf32, #tpu.memory_space<vmem>>, vector<1x128x128xf32>,
    %cst_75 = arith.constant dense<0.000000e+00> : vector<128x128xf32>
    %78 = tpu.matmul %10, %72, %cst_75 {dimension_numbers = #tpu.dot_dimension_numbers<[1], [0], [0], [1], [0, 0, 1, 1], [], []>} : vector<128x4xbf16>, vector<4x128xbf16>, vector<128x128xf32> -> vector<128x128xf32>
    %79 = arith.addf %78, %19 : vector<128x128xf32>
    %c4_76 = arith.constant 4 : index
    %c0_77 = arith.constant 0 : index
    %c0_78 = arith.constant 0 : index
    %80 = vector.load %arg17[%c4_76, %c0_77, %c0_78] : memref<8x128x128xf32, #tpu.memory_space<vmem>>, vector<1x128x128xf32>
    %81 = vector.shape_cast %80 : vector<1x128x128xf32> to vector<128x128xf32>
    %82 = vector.shape_cast %79 : vector<128x128xf32> to vector<1x128x128xf32>
    tpu.vector_store %arg17[%c4_76, %c0_77, %c0_78], %82 {strides = array<i32>} : memref<8x128x128xf32, #tpu.memory_space<vmem>>, vector<1x128x128xf32>,
    %c5 = arith.constant 5 : index
    %c0_79 = arith.constant 0 : index
    %c0_80 = arith.constant 0 : index
    %83 = vector.load %arg1[%c5, %c0_79, %c0_80] : memref<8x4x128xbf16, #tpu.memory_space<vmem>>, vector<1x4x128xbf16>
    %84 = vector.shape_cast %83 : vector<1x4x128xbf16> to vector<4x128xbf16>
    %cst_81 = arith.constant dense<0.000000e+00> : vector<128x128xf32>
    %85 = tpu.matmul %8, %84, %cst_81 {dimension_numbers = #tpu.dot_dimension_numbers<[1], [0], [0], [1], [0, 0, 1, 1], [], []>} : vector<128x4xbf16>, vector<4x128xbf16>, vector<128x128xf32> -> vector<128x128xf32>
    %86 = arith.addf %85, %16 : vector<128x128xf32>
    %c5_82 = arith.constant 5 : index
    %c0_83 = arith.constant 0 : index
    %c0_84 = arith.constant 0 : index
    %87 = vector.load %arg16[%c5_82, %c0_83, %c0_84] : memref<8x128x128xf32, #tpu.memory_space<vmem>>, vector<1x128x128xf32>
    %88 = vector.shape_cast %87 : vector<1x128x128xf32> to vector<128x128xf32>
    %89 = vector.shape_cast %86 : vector<128x128xf32> to vector<1x128x128xf32>
    tpu.vector_store %arg16[%c5_82, %c0_83, %c0_84], %89 {strides = array<i32>} : memref<8x128x128xf32, #tpu.memory_space<vmem>>, vector<1x128x128xf32>,
    %cst_85 = arith.constant dense<0.000000e+00> : vector<128x128xf32>
    %90 = tpu.matmul %10, %84, %cst_85 {dimension_numbers = #tpu.dot_dimension_numbers<[1], [0], [0], [1], [0, 0, 1, 1], [], []>} : vector<128x4xbf16>, vector<4x128xbf16>, vector<128x128xf32> -> vector<128x128xf32>
    %91 = arith.addf %90, %19 : vector<128x128xf32>
    %c5_86 = arith.constant 5 : index
    %c0_87 = arith.constant 0 : index
    %c0_88 = arith.constant 0 : index
    %92 = vector.load %arg17[%c5_86, %c0_87, %c0_88] : memref<8x128x128xf32, #tpu.memory_space<vmem>>, vector<1x128x128xf32>
    %93 = vector.shape_cast %92 : vector<1x128x128xf32> to vector<128x128xf32>
    %94 = vector.shape_cast %91 : vector<128x128xf32> to vector<1x128x128xf32>
    tpu.vector_store %arg17[%c5_86, %c0_87, %c0_88], %94 {strides = array<i32>} : memref<8x128x128xf32, #tpu.memory_space<vmem>>, vector<1x128x128xf32>,
    %c6 = arith.constant 6 : index
    %c0_89 = arith.constant 0 : index
    %c0_90 = arith.constant 0 : index
    %95 = vector.load %arg1[%c6, %c0_89, %c0_90] : memref<8x4x128xbf16, #tpu.memory_space<vmem>>, vector<1x4x128xbf16>
    %96 = vector.shape_cast %95 : vector<1x4x128xbf16> to vector<4x128xbf16>
    %cst_91 = arith.constant dense<0.000000e+00> : vector<128x128xf32>
    %97 = tpu.matmul %8, %96, %cst_91 {dimension_numbers = #tpu.dot_dimension_numbers<[1], [0], [0], [1], [0, 0, 1, 1], [], []>} : vector<128x4xbf16>, vector<4x128xbf16>, vector<128x128xf32> -> vector<128x128xf32>
    %98 = arith.addf %97, %16 : vector<128x128xf32>
    %c6_92 = arith.constant 6 : index
    %c0_93 = arith.constant 0 : index
    %c0_94 = arith.constant 0 : index
    %99 = vector.load %arg16[%c6_92, %c0_93, %c0_94] : memref<8x128x128xf32, #tpu.memory_space<vmem>>, vector<1x128x128xf32>
    %100 = vector.shape_cast %99 : vector<1x128x128xf32> to vector<128x128xf32>
    %101 = vector.shape_cast %98 : vector<128x128xf32> to vector<1x128x128xf32>
    tpu.vector_store %arg16[%c6_92, %c0_93, %c0_94], %101 {strides = array<i32>} : memref<8x128x128xf32, #tpu.memory_space<vmem>>, vector<1x128x128xf32>,
    %cst_95 = arith.constant dense<0.000000e+00> : vector<128x128xf32>
    %102 = tpu.matmul %10, %96, %cst_95 {dimension_numbers = #tpu.dot_dimension_numbers<[1], [0], [0], [1], [0, 0, 1, 1], [], []>} : vector<128x4xbf16>, vector<4x128xbf16>, vector<128x128xf32> -> vector<128x128xf32>
    %103 = arith.addf %102, %19 : vector<128x128xf32>
    %c6_96 = arith.constant 6 : index
    %c0_97 = arith.constant 0 : index
    %c0_98 = arith.constant 0 : index
    %104 = vector.load %arg17[%c6_96, %c0_97, %c0_98] : memref<8x128x128xf32, #tpu.memory_space<vmem>>, vector<1x128x128xf32>
    %105 = vector.shape_cast %104 : vector<1x128x128xf32> to vector<128x128xf32>
    %106 = vector.shape_cast %103 : vector<128x128xf32> to vector<1x128x128xf32>
    tpu.vector_store %arg17[%c6_96, %c0_97, %c0_98], %106 {strides = array<i32>} : memref<8x128x128xf32, #tpu.memory_space<vmem>>, vector<1x128x128xf32>,
    %c7 = arith.constant 7 : index
    %c0_99 = arith.constant 0 : index
    %c0_100 = arith.constant 0 : index
    %107 = vector.load %arg1[%c7, %c0_99, %c0_100] : memref<8x4x128xbf16, #tpu.memory_space<vmem>>, vector<1x4x128xbf16>
    %108 = vector.shape_cast %107 : vector<1x4x128xbf16> to vector<4x128xbf16>
    %cst_101 = arith.constant dense<0.000000e+00> : vector<128x128xf32>
    %109 = tpu.matmul %8, %108, %cst_101 {dimension_numbers = #tpu.dot_dimension_numbers<[1], [0], [0], [1], [0, 0, 1, 1], [], []>} : vector<128x4xbf16>, vector<4x128xbf16>, vector<128x128xf32> -> vector<128x128xf32>
    %110 = arith.addf %109, %16 : vector<128x128xf32>
    %c7_102 = arith.constant 7 : index
    %c0_103 = arith.constant 0 : index
    %c0_104 = arith.constant 0 : index
    %111 = vector.load %arg16[%c7_102, %c0_103, %c0_104] : memref<8x128x128xf32, #tpu.memory_space<vmem>>, vector<1x128x128xf32>
    %112 = vector.shape_cast %111 : vector<1x128x128xf32> to vector<128x128xf32>
    %113 = vector.shape_cast %110 : vector<128x128xf32> to vector<1x128x128xf32>
    tpu.vector_store %arg16[%c7_102, %c0_103, %c0_104], %113 {strides = array<i32>} : memref<8x128x128xf32, #tpu.memory_space<vmem>>, vector<1x128x128xf32>,
    %cst_105 = arith.constant dense<0.000000e+00> : vector<128x128xf32>
    %114 = tpu.matmul %10, %108, %cst_105 {dimension_numbers = #tpu.dot_dimension_numbers<[1], [0], [0], [1], [0, 0, 1, 1], [], []>} : vector<128x4xbf16>, vector<4x128xbf16>, vector<128x128xf32> -> vector<128x128xf32>
    %115 = arith.addf %114, %19 : vector<128x128xf32>
    %c7_106 = arith.constant 7 : index
    %c0_107 = arith.constant 0 : index
    %c0_108 = arith.constant 0 : index
    %116 = vector.load %arg17[%c7_106, %c0_107, %c0_108] : memref<8x128x128xf32, #tpu.memory_space<vmem>>, vector<1x128x128xf32>
    %117 = vector.shape_cast %116 : vector<1x128x128xf32> to vector<128x128xf32>
    %118 = vector.shape_cast %115 : vector<128x128xf32> to vector<1x128x128xf32>
    tpu.vector_store %arg17[%c7_106, %c0_107, %c0_108], %118 {strides = array<i32>} : memref<8x128x128xf32, #tpu.memory_space<vmem>>, vector<1x128x128xf32>,
    %c0_109 = arith.constant 0 : index
    %c0_110 = arith.constant 0 : index
    %c0_111 = arith.constant 0 : index
    %119 = vector.load %arg16[%c0_109, %c0_110, %c0_111] : memref<8x128x128xf32, #tpu.memory_space<vmem>>, vector<1x128x128xf32>
    %120 = vector.shape_cast %119 : vector<1x128x128xf32> to vector<128x128xf32>
    %c0_112 = arith.constant 0 : index
    %c0_113 = arith.constant 0 : index
    %121 = vector.load %arg12[%c0_112, %c0_113] : memref<32x128xf32, #tpu.memory_space<vmem>>, vector<32x128xf32>
    %122 = arith.truncf %121 : vector<32x128xf32> to vector<32x128xbf16>
    %cst_114 = arith.constant dense<0.000000e+00> : vector<128x128xf32>
    %123 = tpu.matmul %9, %122, %cst_114 {dimension_numbers = #tpu.dot_dimension_numbers<[1], [0], [0], [1], [0, 0, 1, 1], [], []>} : vector<128x32xbf16>, vector<32x128xbf16>, vector<128x128xf32> -> vector<128x128xf32>
    %124 = arith.addf %120, %123 : vector<128x128xf32>
    %125 = vector.extract_strided_slice %124 {offsets = [0, 0], sizes = [32, 128], strides = [1, 1]} : vector<128x128xf32> to vector<32x128xf32>
    %126 = arith.negf %125 : vector<32x128xf32>
    %127 = math.exp %126 : vector<32x128xf32>
    %cst_115 = arith.constant 1.000000e+00 : f32
    %128 = vector.broadcast %cst_115 : f32 to vector<32x128xf32>
    %129 = arith.addf %128, %127 : vector<32x128xf32>
    %130 = arith.divf %128, %129 : vector<32x128xf32>
    %131 = vector.extract_strided_slice %124 {offsets = [32, 0], sizes = [32, 128], strides = [1, 1]} : vector<128x128xf32> to vector<32x128xf32>
    %132 = arith.negf %131 : vector<32x128xf32>
    %133 = math.exp %132 : vector<32x128xf32>
    %cst_116 = arith.constant 1.000000e+00 : f32
    %134 = vector.broadcast %cst_116 : f32 to vector<32x128xf32>
    %135 = arith.addf %134, %133 : vector<32x128xf32>
    %136 = arith.divf %134, %135 : vector<32x128xf32>
    %137 = vector.extract_strided_slice %124 {offsets = [64, 0], sizes = [32, 128], strides = [1, 1]} : vector<128x128xf32> to vector<32x128xf32>
    %138 = math.tanh %137 : vector<32x128xf32>
    %139 = vector.extract_strided_slice %124 {offsets = [96, 0], sizes = [32, 128], strides = [1, 1]} : vector<128x128xf32> to vector<32x128xf32>
    %140 = arith.negf %139 : vector<32x128xf32>
    %141 = math.exp %140 : vector<32x128xf32>
    %cst_117 = arith.constant 1.000000e+00 : f32
    %142 = vector.broadcast %cst_117 : f32 to vector<32x128xf32>
    %143 = arith.addf %142, %141 : vector<32x128xf32>
    %144 = arith.divf %142, %143 : vector<32x128xf32>
    %c0_118 = arith.constant 0 : index
    %c0_119 = arith.constant 0 : index
    %145 = vector.load %arg13[%c0_118, %c0_119] : memref<32x128xf32, #tpu.memory_space<vmem>>, vector<32x128xf32>
    %146 = arith.mulf %136, %145 : vector<32x128xf32>
    %147 = arith.mulf %130, %138 : vector<32x128xf32>
    %148 = arith.addf %146, %147 : vector<32x128xf32>
    %149 = math.tanh %148 : vector<32x128xf32>
    %150 = arith.mulf %144, %149 : vector<32x128xf32>
    %c0_120 = arith.constant 0 : index
    %c0_121 = arith.constant 0 : index
    %151 = vector.load %arg13[%c0_120, %c0_121] : memref<32x128xf32, #tpu.memory_space<vmem>>, vector<32x128xf32>
    tpu.vector_store %arg13[%c0_120, %c0_121], %148 {strides = array<i32>} : memref<32x128xf32, #tpu.memory_space<vmem>>, vector<32x128xf32>,
    %c0_122 = arith.constant 0 : index
    %c0_123 = arith.constant 0 : index
    %152 = vector.load %arg12[%c0_122, %c0_123] : memref<32x128xf32, #tpu.memory_space<vmem>>, vector<32x128xf32>
    tpu.vector_store %arg12[%c0_122, %c0_123], %150 {strides = array<i32>} : memref<32x128xf32, #tpu.memory_space<vmem>>, vector<32x128xf32>,
    %c7_124 = arith.constant 7 : index
    %c0_125 = arith.constant 0 : index
    %c0_126 = arith.constant 0 : index
    %153 = vector.load %arg17[%c7_124, %c0_125, %c0_126] : memref<8x128x128xf32, #tpu.memory_space<vmem>>, vector<1x128x128xf32>
    %154 = vector.shape_cast %153 : vector<1x128x128xf32> to vector<128x128xf32>
    %c0_127 = arith.constant 0 : index
    %c0_128 = arith.constant 0 : index
    %155 = vector.load %arg14[%c0_127, %c0_128] : memref<32x128xf32, #tpu.memory_space<vmem>>, vector<32x128xf32>
    %156 = arith.truncf %155 : vector<32x128xf32> to vector<32x128xbf16>
    %cst_129 = arith.constant dense<0.000000e+00> : vector<128x128xf32>
    %157 = tpu.matmul %11, %156, %cst_129 {dimension_numbers = #tpu.dot_dimension_numbers<[1], [0], [0], [1], [0, 0, 1, 1], [], []>} : vector<128x32xbf16>, vector<32x128xbf16>, vector<128x128xf32> -> vector<128x128xf32>
    %158 = arith.addf %154, %157 : vector<128x128xf32>
    %159 = vector.extract_strided_slice %158 {offsets = [0, 0], sizes = [32, 128], strides = [1, 1]} : vector<128x128xf32> to vector<32x128xf32>
    %160 = arith.negf %159 : vector<32x128xf32>
    %161 = math.exp %160 : vector<32x128xf32>
    %cst_130 = arith.constant 1.000000e+00 : f32
    %162 = vector.broadcast %cst_130 : f32 to vector<32x128xf32>
    %163 = arith.addf %162, %161 : vector<32x128xf32>
    %164 = arith.divf %162, %163 : vector<32x128xf32>
    %165 = vector.extract_strided_slice %158 {offsets = [32, 0], sizes = [32, 128], strides = [1, 1]} : vector<128x128xf32> to vector<32x128xf32>
    %166 = arith.negf %165 : vector<32x128xf32>
    %167 = math.exp %166 : vector<32x128xf32>
    %cst_131 = arith.constant 1.000000e+00 : f32
    %168 = vector.broadcast %cst_131 : f32 to vector<32x128xf32>
    %169 = arith.addf %168, %167 : vector<32x128xf32>
    %170 = arith.divf %168, %169 : vector<32x128xf32>
    %171 = vector.extract_strided_slice %158 {offsets = [64, 0], sizes = [32, 128], strides = [1, 1]} : vector<128x128xf32> to vector<32x128xf32>
    %172 = math.tanh %171 : vector<32x128xf32>
    %173 = vector.extract_strided_slice %158 {offsets = [96, 0], sizes = [32, 128], strides = [1, 1]} : vector<128x128xf32> to vector<32x128xf32>
    %174 = arith.negf %173 : vector<32x128xf32>
    %175 = math.exp %174 : vector<32x128xf32>
    %cst_132 = arith.constant 1.000000e+00 : f32
    %176 = vector.broadcast %cst_132 : f32 to vector<32x128xf32>
    %177 = arith.addf %176, %175 : vector<32x128xf32>
    %178 = arith.divf %176, %177 : vector<32x128xf32>
    %c0_133 = arith.constant 0 : index
    %c0_134 = arith.constant 0 : index
    %179 = vector.load %arg15[%c0_133, %c0_134] : memref<32x128xf32, #tpu.memory_space<vmem>>, vector<32x128xf32>
    %180 = arith.mulf %170, %179 : vector<32x128xf32>
    %181 = arith.mulf %164, %172 : vector<32x128xf32>
    %182 = arith.addf %180, %181 : vector<32x128xf32>
    %183 = math.tanh %182 : vector<32x128xf32>
    %184 = arith.mulf %178, %183 : vector<32x128xf32>
    %c0_135 = arith.constant 0 : index
    %c0_136 = arith.constant 0 : index
    %185 = vector.load %arg15[%c0_135, %c0_136] : memref<32x128xf32, #tpu.memory_space<vmem>>, vector<32x128xf32>
    tpu.vector_store %arg15[%c0_135, %c0_136], %182 {strides = array<i32>} : memref<32x128xf32, #tpu.memory_space<vmem>>, vector<32x128xf32>,
    %c0_137 = arith.constant 0 : index
    %c0_138 = arith.constant 0 : index
    %186 = vector.load %arg14[%c0_137, %c0_138] : memref<32x128xf32, #tpu.memory_space<vmem>>, vector<32x128xf32>
    tpu.vector_store %arg14[%c0_137, %c0_138], %184 {strides = array<i32>} : memref<32x128xf32, #tpu.memory_space<vmem>>, vector<32x128xf32>,
    %187 = arith.truncf %150 : vector<32x128xf32> to vector<32x128xbf16>
    %cst_139 = arith.constant dense<0.000000e+00> : vector<32x128xf32>
    %188 = tpu.matmul %12, %187, %cst_139 {dimension_numbers = #tpu.dot_dimension_numbers<[1], [0], [0], [1], [0, 0, 1, 1], [], []>} : vector<32x32xbf16>, vector<32x128xbf16>, vector<32x128xf32> -> vector<32x128xf32>
    %189 = arith.truncf %184 : vector<32x128xf32> to vector<32x128xbf16>
    %cst_140 = arith.constant dense<0.000000e+00> : vector<32x128xf32>
    %190 = tpu.matmul %13, %189, %cst_140 {dimension_numbers = #tpu.dot_dimension_numbers<[1], [0], [0], [1], [0, 0, 1, 1], [], []>} : vector<32x32xbf16>, vector<32x128xbf16>, vector<32x128xf32> -> vector<32x128xf32>
    %191 = arith.addf %188, %22 : vector<32x128xf32>
    %c0_141 = arith.constant 0 : index
    %c0_142 = arith.constant 0 : index
    %c0_143 = arith.constant 0 : index
    %192 = vector.load %arg11[%c0_141, %c0_142, %c0_143] : memref<8x32x128xf32, #tpu.memory_space<vmem>>, vector<1x32x128xf32>
    %193 = vector.shape_cast %192 : vector<1x32x128xf32> to vector<32x128xf32>
    %194 = vector.shape_cast %191 : vector<32x128xf32> to vector<1x32x128xf32>
    tpu.vector_store %arg11[%c0_141, %c0_142, %c0_143], %194 {strides = array<i32>} : memref<8x32x128xf32, #tpu.memory_space<vmem>>, vector<1x32x128xf32>,
    %195 = arith.addf %190, %22 : vector<32x128xf32>
    %c7_144 = arith.constant 7 : index
    %c0_145 = arith.constant 0 : index
    %c0_146 = arith.constant 0 : index
    %196 = vector.load %arg11[%c7_144, %c0_145, %c0_146] : memref<8x32x128xf32, #tpu.memory_space<vmem>>, vector<1x32x128xf32>
    %197 = vector.shape_cast %196 : vector<1x32x128xf32> to vector<32x128xf32>
    %198 = vector.shape_cast %195 : vector<32x128xf32> to vector<1x32x128xf32>
    tpu.vector_store %arg11[%c7_144, %c0_145, %c0_146], %198 {strides = array<i32>} : memref<8x32x128xf32, #tpu.memory_space<vmem>>, vector<1x32x128xf32>,
    %c1_147 = arith.constant 1 : index
    %c0_148 = arith.constant 0 : index
    %c0_149 = arith.constant 0 : index
    %199 = vector.load %arg16[%c1_147, %c0_148, %c0_149] : memref<8x128x128xf32, #tpu.memory_space<vmem>>, vector<1x128x128xf32>
    %200 = vector.shape_cast %199 : vector<1x128x128xf32> to vector<128x128xf32>
    %c0_150 = arith.constant 0 : index
    %c0_151 = arith.constant 0 : index
    %201 = vector.load %arg12[%c0_150, %c0_151] : memref<32x128xf32, #tpu.memory_space<vmem>>, vector<32x128xf32>
    %202 = arith.truncf %201 : vector<32x128xf32> to vector<32x128xbf16>
    %cst_152 = arith.constant dense<0.000000e+00> : vector<128x128xf32>
    %203 = tpu.matmul %9, %202, %cst_152 {dimension_numbers = #tpu.dot_dimension_numbers<[1], [0], [0], [1], [0, 0, 1, 1], [], []>} : vector<128x32xbf16>, vector<32x128xbf16>, vector<128x128xf32> -> vector<128x128xf32>
    %204 = arith.addf %200, %203 : vector<128x128xf32>
    %205 = vector.extract_strided_slice %204 {offsets = [0, 0], sizes = [32, 128], strides = [1, 1]} : vector<128x128xf32> to vector<32x128xf32>
    %206 = arith.negf %205 : vector<32x128xf32>
    %207 = math.exp %206 : vector<32x128xf32>
    %cst_153 = arith.constant 1.000000e+00 : f32
    %208 = vector.broadcast %cst_153 : f32 to vector<32x128xf32>
    %209 = arith.addf %208, %207 : vector<32x128xf32>
    %210 = arith.divf %208, %209 : vector<32x128xf32>
    %211 = vector.extract_strided_slice %204 {offsets = [32, 0], sizes = [32, 128], strides = [1, 1]} : vector<128x128xf32> to vector<32x128xf32>
    %212 = arith.negf %211 : vector<32x128xf32>
    %213 = math.exp %212 : vector<32x128xf32>
    %cst_154 = arith.constant 1.000000e+00 : f32
    %214 = vector.broadcast %cst_154 : f32 to vector<32x128xf32>
    %215 = arith.addf %214, %213 : vector<32x128xf32>
    %216 = arith.divf %214, %215 : vector<32x128xf32>
    %217 = vector.extract_strided_slice %204 {offsets = [64, 0], sizes = [32, 128], strides = [1, 1]} : vector<128x128xf32> to vector<32x128xf32>
    %218 = math.tanh %217 : vector<32x128xf32>
    %219 = vector.extract_strided_slice %204 {offsets = [96, 0], sizes = [32, 128], strides = [1, 1]} : vector<128x128xf32> to vector<32x128xf32>
    %220 = arith.negf %219 : vector<32x128xf32>
    %221 = math.exp %220 : vector<32x128xf32>
    %cst_155 = arith.constant 1.000000e+00 : f32
    %222 = vector.broadcast %cst_155 : f32 to vector<32x128xf32>
    %223 = arith.addf %222, %221 : vector<32x128xf32>
    %224 = arith.divf %222, %223 : vector<32x128xf32>
    %c0_156 = arith.constant 0 : index
    %c0_157 = arith.constant 0 : index
    %225 = vector.load %arg13[%c0_156, %c0_157] : memref<32x128xf32, #tpu.memory_space<vmem>>, vector<32x128xf32>
    %226 = arith.mulf %216, %225 : vector<32x128xf32>
    %227 = arith.mulf %210, %218 : vector<32x128xf32>
    %228 = arith.addf %226, %227 : vector<32x128xf32>
    %229 = math.tanh %228 : vector<32x128xf32>
    %230 = arith.mulf %224, %229 : vector<32x128xf32>
    %c0_158 = arith.constant 0 : index
    %c0_159 = arith.constant 0 : index
    %231 = vector.load %arg13[%c0_158, %c0_159] : memref<32x128xf32, #tpu.memory_space<vmem>>, vector<32x128xf32>
    tpu.vector_store %arg13[%c0_158, %c0_159], %228 {strides = array<i32>} : memref<32x128xf32, #tpu.memory_space<vmem>>, vector<32x128xf32>,
    %c0_160 = arith.constant 0 : index
    %c0_161 = arith.constant 0 : index
    %232 = vector.load %arg12[%c0_160, %c0_161] : memref<32x128xf32, #tpu.memory_space<vmem>>, vector<32x128xf32>
    tpu.vector_store %arg12[%c0_160, %c0_161], %230 {strides = array<i32>} : memref<32x128xf32, #tpu.memory_space<vmem>>, vector<32x128xf32>,
    %c6_162 = arith.constant 6 : index
    %c0_163 = arith.constant 0 : index
    %c0_164 = arith.constant 0 : index
    %233 = vector.load %arg17[%c6_162, %c0_163, %c0_164] : memref<8x128x128xf32, #tpu.memory_space<vmem>>, vector<1x128x128xf32>
    %234 = vector.shape_cast %233 : vector<1x128x128xf32> to vector<128x128xf32>
    %c0_165 = arith.constant 0 : index
    %c0_166 = arith.constant 0 : index
    %235 = vector.load %arg14[%c0_165, %c0_166] : memref<32x128xf32, #tpu.memory_space<vmem>>, vector<32x128xf32>
    %236 = arith.truncf %235 : vector<32x128xf32> to vector<32x128xbf16>
    %cst_167 = arith.constant dense<0.000000e+00> : vector<128x128xf32>
    %237 = tpu.matmul %11, %236, %cst_167 {dimension_numbers = #tpu.dot_dimension_numbers<[1], [0], [0], [1], [0, 0, 1, 1], [], []>} : vector<128x32xbf16>, vector<32x128xbf16>, vector<128x128xf32> -> vector<128x128xf32>
    %238 = arith.addf %234, %237 : vector<128x128xf32>
    %239 = vector.extract_strided_slice %238 {offsets = [0, 0], sizes = [32, 128], strides = [1, 1]} : vector<128x128xf32> to vector<32x128xf32>
    %240 = arith.negf %239 : vector<32x128xf32>
    %241 = math.exp %240 : vector<32x128xf32>
    %cst_168 = arith.constant 1.000000e+00 : f32
    %242 = vector.broadcast %cst_168 : f32 to vector<32x128xf32>
    %243 = arith.addf %242, %241 : vector<32x128xf32>
    %244 = arith.divf %242, %243 : vector<32x128xf32>
    %245 = vector.extract_strided_slice %238 {offsets = [32, 0], sizes = [32, 128], strides = [1, 1]} : vector<128x128xf32> to vector<32x128xf32>
    %246 = arith.negf %245 : vector<32x128xf32>
    %247 = math.exp %246 : vector<32x128xf32>
    %cst_169 = arith.constant 1.000000e+00 : f32
    %248 = vector.broadcast %cst_169 : f32 to vector<32x128xf32>
    %249 = arith.addf %248, %247 : vector<32x128xf32>
    %250 = arith.divf %248, %249 : vector<32x128xf32>
    %251 = vector.extract_strided_slice %238 {offsets = [64, 0], sizes = [32, 128], strides = [1, 1]} : vector<128x128xf32> to vector<32x128xf32>
    %252 = math.tanh %251 : vector<32x128xf32>
    %253 = vector.extract_strided_slice %238 {offsets = [96, 0], sizes = [32, 128], strides = [1, 1]} : vector<128x128xf32> to vector<32x128xf32>
    %254 = arith.negf %253 : vector<32x128xf32>
    %255 = math.exp %254 : vector<32x128xf32>
    %cst_170 = arith.constant 1.000000e+00 : f32
    %256 = vector.broadcast %cst_170 : f32 to vector<32x128xf32>
    %257 = arith.addf %256, %255 : vector<32x128xf32>
    %258 = arith.divf %256, %257 : vector<32x128xf32>
    %c0_171 = arith.constant 0 : index
    %c0_172 = arith.constant 0 : index
    %259 = vector.load %arg15[%c0_171, %c0_172] : memref<32x128xf32, #tpu.memory_space<vmem>>, vector<32x128xf32>
    %260 = arith.mulf %250, %259 : vector<32x128xf32>
    %261 = arith.mulf %244, %252 : vector<32x128xf32>
    %262 = arith.addf %260, %261 : vector<32x128xf32>
    %263 = math.tanh %262 : vector<32x128xf32>
    %264 = arith.mulf %258, %263 : vector<32x128xf32>
    %c0_173 = arith.constant 0 : index
    %c0_174 = arith.constant 0 : index
    %265 = vector.load %arg15[%c0_173, %c0_174] : memref<32x128xf32, #tpu.memory_space<vmem>>, vector<32x128xf32>
    tpu.vector_store %arg15[%c0_173, %c0_174], %262 {strides = array<i32>} : memref<32x128xf32, #tpu.memory_space<vmem>>, vector<32x128xf32>,
    %c0_175 = arith.constant 0 : index
    %c0_176 = arith.constant 0 : index
    %266 = vector.load %arg14[%c0_175, %c0_176] : memref<32x128xf32, #tpu.memory_space<vmem>>, vector<32x128xf32>
    tpu.vector_store %arg14[%c0_175, %c0_176], %264 {strides = array<i32>} : memref<32x128xf32, #tpu.memory_space<vmem>>, vector<32x128xf32>,
    %267 = arith.truncf %230 : vector<32x128xf32> to vector<32x128xbf16>
    %cst_177 = arith.constant dense<0.000000e+00> : vector<32x128xf32>
    %268 = tpu.matmul %12, %267, %cst_177 {dimension_numbers = #tpu.dot_dimension_numbers<[1], [0], [0], [1], [0, 0, 1, 1], [], []>} : vector<32x32xbf16>, vector<32x128xbf16>, vector<32x128xf32> -> vector<32x128xf32>
    %269 = arith.truncf %264 : vector<32x128xf32> to vector<32x128xbf16>
    %cst_178 = arith.constant dense<0.000000e+00> : vector<32x128xf32>
    %270 = tpu.matmul %13, %269, %cst_178 {dimension_numbers = #tpu.dot_dimension_numbers<[1], [0], [0], [1], [0, 0, 1, 1], [], []>} : vector<32x32xbf16>, vector<32x128xbf16>, vector<32x128xf32> -> vector<32x128xf32>
    %271 = arith.addf %268, %22 : vector<32x128xf32>
    %c1_179 = arith.constant 1 : index
    %c0_180 = arith.constant 0 : index
    %c0_181 = arith.constant 0 : index
    %272 = vector.load %arg11[%c1_179, %c0_180, %c0_181] : memref<8x32x128xf32, #tpu.memory_space<vmem>>, vector<1x32x128xf32>
    %273 = vector.shape_cast %272 : vector<1x32x128xf32> to vector<32x128xf32>
    %274 = vector.shape_cast %271 : vector<32x128xf32> to vector<1x32x128xf32>
    tpu.vector_store %arg11[%c1_179, %c0_180, %c0_181], %274 {strides = array<i32>} : memref<8x32x128xf32, #tpu.memory_space<vmem>>, vector<1x32x128xf32>,
    %275 = arith.addf %270, %22 : vector<32x128xf32>
    %c6_182 = arith.constant 6 : index
    %c0_183 = arith.constant 0 : index
    %c0_184 = arith.constant 0 : index
    %276 = vector.load %arg11[%c6_182, %c0_183, %c0_184] : memref<8x32x128xf32, #tpu.memory_space<vmem>>, vector<1x32x128xf32>
    %277 = vector.shape_cast %276 : vector<1x32x128xf32> to vector<32x128xf32>
    %278 = vector.shape_cast %275 : vector<32x128xf32> to vector<1x32x128xf32>
    tpu.vector_store %arg11[%c6_182, %c0_183, %c0_184], %278 {strides = array<i32>} : memref<8x32x128xf32, #tpu.memory_space<vmem>>, vector<1x32x128xf32>,
    %c2_185 = arith.constant 2 : index
    %c0_186 = arith.constant 0 : index
    %c0_187 = arith.constant 0 : index
    %279 = vector.load %arg16[%c2_185, %c0_186, %c0_187] : memref<8x128x128xf32, #tpu.memory_space<vmem>>, vector<1x128x128xf32>
    %280 = vector.shape_cast %279 : vector<1x128x128xf32> to vector<128x128xf32>
    %c0_188 = arith.constant 0 : index
    %c0_189 = arith.constant 0 : index
    %281 = vector.load %arg12[%c0_188, %c0_189] : memref<32x128xf32, #tpu.memory_space<vmem>>, vector<32x128xf32>
    %282 = arith.truncf %281 : vector<32x128xf32> to vector<32x128xbf16>
    %cst_190 = arith.constant dense<0.000000e+00> : vector<128x128xf32>
    %283 = tpu.matmul %9, %282, %cst_190 {dimension_numbers = #tpu.dot_dimension_numbers<[1], [0], [0], [1], [0, 0, 1, 1], [], []>} : vector<128x32xbf16>, vector<32x128xbf16>, vector<128x128xf32> -> vector<128x128xf32>
    %284 = arith.addf %280, %283 : vector<128x128xf32>
    %285 = vector.extract_strided_slice %284 {offsets = [0, 0], sizes = [32, 128], strides = [1, 1]} : vector<128x128xf32> to vector<32x128xf32>
    %286 = arith.negf %285 : vector<32x128xf32>
    %287 = math.exp %286 : vector<32x128xf32>
    %cst_191 = arith.constant 1.000000e+00 : f32
    %288 = vector.broadcast %cst_191 : f32 to vector<32x128xf32>
    %289 = arith.addf %288, %287 : vector<32x128xf32>
    %290 = arith.divf %288, %289 : vector<32x128xf32>
    %291 = vector.extract_strided_slice %284 {offsets = [32, 0], sizes = [32, 128], strides = [1, 1]} : vector<128x128xf32> to vector<32x128xf32>
    %292 = arith.negf %291 : vector<32x128xf32>
    %293 = math.exp %292 : vector<32x128xf32>
    %cst_192 = arith.constant 1.000000e+00 : f32
    %294 = vector.broadcast %cst_192 : f32 to vector<32x128xf32>
    %295 = arith.addf %294, %293 : vector<32x128xf32>
    %296 = arith.divf %294, %295 : vector<32x128xf32>
    %297 = vector.extract_strided_slice %284 {offsets = [64, 0], sizes = [32, 128], strides = [1, 1]} : vector<128x128xf32> to vector<32x128xf32>
    %298 = math.tanh %297 : vector<32x128xf32>
    %299 = vector.extract_strided_slice %284 {offsets = [96, 0], sizes = [32, 128], strides = [1, 1]} : vector<128x128xf32> to vector<32x128xf32>
    %300 = arith.negf %299 : vector<32x128xf32>
    %301 = math.exp %300 : vector<32x128xf32>
    %cst_193 = arith.constant 1.000000e+00 : f32
    %302 = vector.broadcast %cst_193 : f32 to vector<32x128xf32>
    %303 = arith.addf %302, %301 : vector<32x128xf32>
    %304 = arith.divf %302, %303 : vector<32x128xf32>
    %c0_194 = arith.constant 0 : index
    %c0_195 = arith.constant 0 : index
    %305 = vector.load %arg13[%c0_194, %c0_195] : memref<32x128xf32, #tpu.memory_space<vmem>>, vector<32x128xf32>
    %306 = arith.mulf %296, %305 : vector<32x128xf32>
    %307 = arith.mulf %290, %298 : vector<32x128xf32>
    %308 = arith.addf %306, %307 : vector<32x128xf32>
    %309 = math.tanh %308 : vector<32x128xf32>
    %310 = arith.mulf %304, %309 : vector<32x128xf32>
    %c0_196 = arith.constant 0 : index
    %c0_197 = arith.constant 0 : index
    %311 = vector.load %arg13[%c0_196, %c0_197] : memref<32x128xf32, #tpu.memory_space<vmem>>, vector<32x128xf32>
    tpu.vector_store %arg13[%c0_196, %c0_197], %308 {strides = array<i32>} : memref<32x128xf32, #tpu.memory_space<vmem>>, vector<32x128xf32>,
    %c0_198 = arith.constant 0 : index
    %c0_199 = arith.constant 0 : index
    %312 = vector.load %arg12[%c0_198, %c0_199] : memref<32x128xf32, #tpu.memory_space<vmem>>, vector<32x128xf32>
    tpu.vector_store %arg12[%c0_198, %c0_199], %310 {strides = array<i32>} : memref<32x128xf32, #tpu.memory_space<vmem>>, vector<32x128xf32>,
    %c5_200 = arith.constant 5 : index
    %c0_201 = arith.constant 0 : index
    %c0_202 = arith.constant 0 : index
    %313 = vector.load %arg17[%c5_200, %c0_201, %c0_202] : memref<8x128x128xf32, #tpu.memory_space<vmem>>, vector<1x128x128xf32>
    %314 = vector.shape_cast %313 : vector<1x128x128xf32> to vector<128x128xf32>
    %c0_203 = arith.constant 0 : index
    %c0_204 = arith.constant 0 : index
    %315 = vector.load %arg14[%c0_203, %c0_204] : memref<32x128xf32, #tpu.memory_space<vmem>>, vector<32x128xf32>
    %316 = arith.truncf %315 : vector<32x128xf32> to vector<32x128xbf16>
    %cst_205 = arith.constant dense<0.000000e+00> : vector<128x128xf32>
    %317 = tpu.matmul %11, %316, %cst_205 {dimension_numbers = #tpu.dot_dimension_numbers<[1], [0], [0], [1], [0, 0, 1, 1], [], []>} : vector<128x32xbf16>, vector<32x128xbf16>, vector<128x128xf32> -> vector<128x128xf32>
    %318 = arith.addf %314, %317 : vector<128x128xf32>
    %319 = vector.extract_strided_slice %318 {offsets = [0, 0], sizes = [32, 128], strides = [1, 1]} : vector<128x128xf32> to vector<32x128xf32>
    %320 = arith.negf %319 : vector<32x128xf32>
    %321 = math.exp %320 : vector<32x128xf32>
    %cst_206 = arith.constant 1.000000e+00 : f32
    %322 = vector.broadcast %cst_206 : f32 to vector<32x128xf32>
    %323 = arith.addf %322, %321 : vector<32x128xf32>
    %324 = arith.divf %322, %323 : vector<32x128xf32>
    %325 = vector.extract_strided_slice %318 {offsets = [32, 0], sizes = [32, 128], strides = [1, 1]} : vector<128x128xf32> to vector<32x128xf32>
    %326 = arith.negf %325 : vector<32x128xf32>
    %327 = math.exp %326 : vector<32x128xf32>
    %cst_207 = arith.constant 1.000000e+00 : f32
    %328 = vector.broadcast %cst_207 : f32 to vector<32x128xf32>
    %329 = arith.addf %328, %327 : vector<32x128xf32>
    %330 = arith.divf %328, %329 : vector<32x128xf32>
    %331 = vector.extract_strided_slice %318 {offsets = [64, 0], sizes = [32, 128], strides = [1, 1]} : vector<128x128xf32> to vector<32x128xf32>
    %332 = math.tanh %331 : vector<32x128xf32>
    %333 = vector.extract_strided_slice %318 {offsets = [96, 0], sizes = [32, 128], strides = [1, 1]} : vector<128x128xf32> to vector<32x128xf32>
    %334 = arith.negf %333 : vector<32x128xf32>
    %335 = math.exp %334 : vector<32x128xf32>
    %cst_208 = arith.constant 1.000000e+00 : f32
    %336 = vector.broadcast %cst_208 : f32 to vector<32x128xf32>
    %337 = arith.addf %336, %335 : vector<32x128xf32>
    %338 = arith.divf %336, %337 : vector<32x128xf32>
    %c0_209 = arith.constant 0 : index
    %c0_210 = arith.constant 0 : index
    %339 = vector.load %arg15[%c0_209, %c0_210] : memref<32x128xf32, #tpu.memory_space<vmem>>, vector<32x128xf32>
    %340 = arith.mulf %330, %339 : vector<32x128xf32>
    %341 = arith.mulf %324, %332 : vector<32x128xf32>
    %342 = arith.addf %340, %341 : vector<32x128xf32>
    %343 = math.tanh %342 : vector<32x128xf32>
    %344 = arith.mulf %338, %343 : vector<32x128xf32>
    %c0_211 = arith.constant 0 : index
    %c0_212 = arith.constant 0 : index
    %345 = vector.load %arg15[%c0_211, %c0_212] : memref<32x128xf32, #tpu.memory_space<vmem>>, vector<32x128xf32>
    tpu.vector_store %arg15[%c0_211, %c0_212], %342 {strides = array<i32>} : memref<32x128xf32, #tpu.memory_space<vmem>>, vector<32x128xf32>,
    %c0_213 = arith.constant 0 : index
    %c0_214 = arith.constant 0 : index
    %346 = vector.load %arg14[%c0_213, %c0_214] : memref<32x128xf32, #tpu.memory_space<vmem>>, vector<32x128xf32>
    tpu.vector_store %arg14[%c0_213, %c0_214], %344 {strides = array<i32>} : memref<32x128xf32, #tpu.memory_space<vmem>>, vector<32x128xf32>,
    %347 = arith.truncf %310 : vector<32x128xf32> to vector<32x128xbf16>
    %cst_215 = arith.constant dense<0.000000e+00> : vector<32x128xf32>
    %348 = tpu.matmul %12, %347, %cst_215 {dimension_numbers = #tpu.dot_dimension_numbers<[1], [0], [0], [1], [0, 0, 1, 1], [], []>} : vector<32x32xbf16>, vector<32x128xbf16>, vector<32x128xf32> -> vector<32x128xf32>
    %349 = arith.truncf %344 : vector<32x128xf32> to vector<32x128xbf16>
    %cst_216 = arith.constant dense<0.000000e+00> : vector<32x128xf32>
    %350 = tpu.matmul %13, %349, %cst_216 {dimension_numbers = #tpu.dot_dimension_numbers<[1], [0], [0], [1], [0, 0, 1, 1], [], []>} : vector<32x32xbf16>, vector<32x128xbf16>, vector<32x128xf32> -> vector<32x128xf32>
    %351 = arith.addf %348, %22 : vector<32x128xf32>
    %c2_217 = arith.constant 2 : index
    %c0_218 = arith.constant 0 : index
    %c0_219 = arith.constant 0 : index
    %352 = vector.load %arg11[%c2_217, %c0_218, %c0_219] : memref<8x32x128xf32, #tpu.memory_space<vmem>>, vector<1x32x128xf32>
    %353 = vector.shape_cast %352 : vector<1x32x128xf32> to vector<32x128xf32>
    %354 = vector.shape_cast %351 : vector<32x128xf32> to vector<1x32x128xf32>
    tpu.vector_store %arg11[%c2_217, %c0_218, %c0_219], %354 {strides = array<i32>} : memref<8x32x128xf32, #tpu.memory_space<vmem>>, vector<1x32x128xf32>,
    %355 = arith.addf %350, %22 : vector<32x128xf32>
    %c5_220 = arith.constant 5 : index
    %c0_221 = arith.constant 0 : index
    %c0_222 = arith.constant 0 : index
    %356 = vector.load %arg11[%c5_220, %c0_221, %c0_222] : memref<8x32x128xf32, #tpu.memory_space<vmem>>, vector<1x32x128xf32>
    %357 = vector.shape_cast %356 : vector<1x32x128xf32> to vector<32x128xf32>
    %358 = vector.shape_cast %355 : vector<32x128xf32> to vector<1x32x128xf32>
    tpu.vector_store %arg11[%c5_220, %c0_221, %c0_222], %358 {strides = array<i32>} : memref<8x32x128xf32, #tpu.memory_space<vmem>>, vector<1x32x128xf32>,
    %c3_223 = arith.constant 3 : index
    %c0_224 = arith.constant 0 : index
    %c0_225 = arith.constant 0 : index
    %359 = vector.load %arg16[%c3_223, %c0_224, %c0_225] : memref<8x128x128xf32, #tpu.memory_space<vmem>>, vector<1x128x128xf32>
    %360 = vector.shape_cast %359 : vector<1x128x128xf32> to vector<128x128xf32>
    %c0_226 = arith.constant 0 : index
    %c0_227 = arith.constant 0 : index
    %361 = vector.load %arg12[%c0_226, %c0_227] : memref<32x128xf32, #tpu.memory_space<vmem>>, vector<32x128xf32>
    %362 = arith.truncf %361 : vector<32x128xf32> to vector<32x128xbf16>
    %cst_228 = arith.constant dense<0.000000e+00> : vector<128x128xf32>
    %363 = tpu.matmul %9, %362, %cst_228 {dimension_numbers = #tpu.dot_dimension_numbers<[1], [0], [0], [1], [0, 0, 1, 1], [], []>} : vector<128x32xbf16>, vector<32x128xbf16>, vector<128x128xf32> -> vector<128x128xf32>
    %364 = arith.addf %360, %363 : vector<128x128xf32>
    %365 = vector.extract_strided_slice %364 {offsets = [0, 0], sizes = [32, 128], strides = [1, 1]} : vector<128x128xf32> to vector<32x128xf32>
    %366 = arith.negf %365 : vector<32x128xf32>
    %367 = math.exp %366 : vector<32x128xf32>
    %cst_229 = arith.constant 1.000000e+00 : f32
    %368 = vector.broadcast %cst_229 : f32 to vector<32x128xf32>
    %369 = arith.addf %368, %367 : vector<32x128xf32>
    %370 = arith.divf %368, %369 : vector<32x128xf32>
    %371 = vector.extract_strided_slice %364 {offsets = [32, 0], sizes = [32, 128], strides = [1, 1]} : vector<128x128xf32> to vector<32x128xf32>
    %372 = arith.negf %371 : vector<32x128xf32>
    %373 = math.exp %372 : vector<32x128xf32>
    %cst_230 = arith.constant 1.000000e+00 : f32
    %374 = vector.broadcast %cst_230 : f32 to vector<32x128xf32>
    %375 = arith.addf %374, %373 : vector<32x128xf32>
    %376 = arith.divf %374, %375 : vector<32x128xf32>
    %377 = vector.extract_strided_slice %364 {offsets = [64, 0], sizes = [32, 128], strides = [1, 1]} : vector<128x128xf32> to vector<32x128xf32>
    %378 = math.tanh %377 : vector<32x128xf32>
    %379 = vector.extract_strided_slice %364 {offsets = [96, 0], sizes = [32, 128], strides = [1, 1]} : vector<128x128xf32> to vector<32x128xf32>
    %380 = arith.negf %379 : vector<32x128xf32>
    %381 = math.exp %380 : vector<32x128xf32>
    %cst_231 = arith.constant 1.000000e+00 : f32
    %382 = vector.broadcast %cst_231 : f32 to vector<32x128xf32>
    %383 = arith.addf %382, %381 : vector<32x128xf32>
    %384 = arith.divf %382, %383 : vector<32x128xf32>
    %c0_232 = arith.constant 0 : index
    %c0_233 = arith.constant 0 : index
    %385 = vector.load %arg13[%c0_232, %c0_233] : memref<32x128xf32, #tpu.memory_space<vmem>>, vector<32x128xf32>
    %386 = arith.mulf %376, %385 : vector<32x128xf32>
    %387 = arith.mulf %370, %378 : vector<32x128xf32>
    %388 = arith.addf %386, %387 : vector<32x128xf32>
    %389 = math.tanh %388 : vector<32x128xf32>
    %390 = arith.mulf %384, %389 : vector<32x128xf32>
    %c0_234 = arith.constant 0 : index
    %c0_235 = arith.constant 0 : index
    %391 = vector.load %arg13[%c0_234, %c0_235] : memref<32x128xf32, #tpu.memory_space<vmem>>, vector<32x128xf32>
    tpu.vector_store %arg13[%c0_234, %c0_235], %388 {strides = array<i32>} : memref<32x128xf32, #tpu.memory_space<vmem>>, vector<32x128xf32>,
    %c0_236 = arith.constant 0 : index
    %c0_237 = arith.constant 0 : index
    %392 = vector.load %arg12[%c0_236, %c0_237] : memref<32x128xf32, #tpu.memory_space<vmem>>, vector<32x128xf32>
    tpu.vector_store %arg12[%c0_236, %c0_237], %390 {strides = array<i32>} : memref<32x128xf32, #tpu.memory_space<vmem>>, vector<32x128xf32>,
    %c4_238 = arith.constant 4 : index
    %c0_239 = arith.constant 0 : index
    %c0_240 = arith.constant 0 : index
    %393 = vector.load %arg17[%c4_238, %c0_239, %c0_240] : memref<8x128x128xf32, #tpu.memory_space<vmem>>, vector<1x128x128xf32>
    %394 = vector.shape_cast %393 : vector<1x128x128xf32> to vector<128x128xf32>
    %c0_241 = arith.constant 0 : index
    %c0_242 = arith.constant 0 : index
    %395 = vector.load %arg14[%c0_241, %c0_242] : memref<32x128xf32, #tpu.memory_space<vmem>>, vector<32x128xf32>
    %396 = arith.truncf %395 : vector<32x128xf32> to vector<32x128xbf16>
    %cst_243 = arith.constant dense<0.000000e+00> : vector<128x128xf32>
    %397 = tpu.matmul %11, %396, %cst_243 {dimension_numbers = #tpu.dot_dimension_numbers<[1], [0], [0], [1], [0, 0, 1, 1], [], []>} : vector<128x32xbf16>, vector<32x128xbf16>, vector<128x128xf32> -> vector<128x128xf32>
    %398 = arith.addf %394, %397 : vector<128x128xf32>
    %399 = vector.extract_strided_slice %398 {offsets = [0, 0], sizes = [32, 128], strides = [1, 1]} : vector<128x128xf32> to vector<32x128xf32>
    %400 = arith.negf %399 : vector<32x128xf32>
    %401 = math.exp %400 : vector<32x128xf32>
    %cst_244 = arith.constant 1.000000e+00 : f32
    %402 = vector.broadcast %cst_244 : f32 to vector<32x128xf32>
    %403 = arith.addf %402, %401 : vector<32x128xf32>
    %404 = arith.divf %402, %403 : vector<32x128xf32>
    %405 = vector.extract_strided_slice %398 {offsets = [32, 0], sizes = [32, 128], strides = [1, 1]} : vector<128x128xf32> to vector<32x128xf32>
    %406 = arith.negf %405 : vector<32x128xf32>
    %407 = math.exp %406 : vector<32x128xf32>
    %cst_245 = arith.constant 1.000000e+00 : f32
    %408 = vector.broadcast %cst_245 : f32 to vector<32x128xf32>
    %409 = arith.addf %408, %407 : vector<32x128xf32>
    %410 = arith.divf %408, %409 : vector<32x128xf32>
    %411 = vector.extract_strided_slice %398 {offsets = [64, 0], sizes = [32, 128], strides = [1, 1]} : vector<128x128xf32> to vector<32x128xf32>
    %412 = math.tanh %411 : vector<32x128xf32>
    %413 = vector.extract_strided_slice %398 {offsets = [96, 0], sizes = [32, 128], strides = [1, 1]} : vector<128x128xf32> to vector<32x128xf32>
    %414 = arith.negf %413 : vector<32x128xf32>
    %415 = math.exp %414 : vector<32x128xf32>
    %cst_246 = arith.constant 1.000000e+00 : f32
    %416 = vector.broadcast %cst_246 : f32 to vector<32x128xf32>
    %417 = arith.addf %416, %415 : vector<32x128xf32>
    %418 = arith.divf %416, %417 : vector<32x128xf32>
    %c0_247 = arith.constant 0 : index
    %c0_248 = arith.constant 0 : index
    %419 = vector.load %arg15[%c0_247, %c0_248] : memref<32x128xf32, #tpu.memory_space<vmem>>, vector<32x128xf32>
    %420 = arith.mulf %410, %419 : vector<32x128xf32>
    %421 = arith.mulf %404, %412 : vector<32x128xf32>
    %422 = arith.addf %420, %421 : vector<32x128xf32>
    %423 = math.tanh %422 : vector<32x128xf32>
    %424 = arith.mulf %418, %423 : vector<32x128xf32>
    %c0_249 = arith.constant 0 : index
    %c0_250 = arith.constant 0 : index
    %425 = vector.load %arg15[%c0_249, %c0_250] : memref<32x128xf32, #tpu.memory_space<vmem>>, vector<32x128xf32>
    tpu.vector_store %arg15[%c0_249, %c0_250], %422 {strides = array<i32>} : memref<32x128xf32, #tpu.memory_space<vmem>>, vector<32x128xf32>,
    %c0_251 = arith.constant 0 : index
    %c0_252 = arith.constant 0 : index
    %426 = vector.load %arg14[%c0_251, %c0_252] : memref<32x128xf32, #tpu.memory_space<vmem>>, vector<32x128xf32>
    tpu.vector_store %arg14[%c0_251, %c0_252], %424 {strides = array<i32>} : memref<32x128xf32, #tpu.memory_space<vmem>>, vector<32x128xf32>,
    %427 = arith.truncf %390 : vector<32x128xf32> to vector<32x128xbf16>
    %cst_253 = arith.constant dense<0.000000e+00> : vector<32x128xf32>
    %428 = tpu.matmul %12, %427, %cst_253 {dimension_numbers = #tpu.dot_dimension_numbers<[1], [0], [0], [1], [0, 0, 1, 1], [], []>} : vector<32x32xbf16>, vector<32x128xbf16>, vector<32x128xf32> -> vector<32x128xf32>
    %429 = arith.truncf %424 : vector<32x128xf32> to vector<32x128xbf16>
    %cst_254 = arith.constant dense<0.000000e+00> : vector<32x128xf32>
    %430 = tpu.matmul %13, %429, %cst_254 {dimension_numbers = #tpu.dot_dimension_numbers<[1], [0], [0], [1], [0, 0, 1, 1], [], []>} : vector<32x32xbf16>, vector<32x128xbf16>, vector<32x128xf32> -> vector<32x128xf32>
    %431 = arith.addf %428, %22 : vector<32x128xf32>
    %c3_255 = arith.constant 3 : index
    %c0_256 = arith.constant 0 : index
    %c0_257 = arith.constant 0 : index
    %432 = vector.load %arg11[%c3_255, %c0_256, %c0_257] : memref<8x32x128xf32, #tpu.memory_space<vmem>>, vector<1x32x128xf32>
    %433 = vector.shape_cast %432 : vector<1x32x128xf32> to vector<32x128xf32>
    %434 = vector.shape_cast %431 : vector<32x128xf32> to vector<1x32x128xf32>
    tpu.vector_store %arg11[%c3_255, %c0_256, %c0_257], %434 {strides = array<i32>} : memref<8x32x128xf32, #tpu.memory_space<vmem>>, vector<1x32x128xf32>,
    %435 = arith.addf %430, %22 : vector<32x128xf32>
    %c4_258 = arith.constant 4 : index
    %c0_259 = arith.constant 0 : index
    %c0_260 = arith.constant 0 : index
    %436 = vector.load %arg11[%c4_258, %c0_259, %c0_260] : memref<8x32x128xf32, #tpu.memory_space<vmem>>, vector<1x32x128xf32>
    %437 = vector.shape_cast %436 : vector<1x32x128xf32> to vector<32x128xf32>
    %438 = vector.shape_cast %435 : vector<32x128xf32> to vector<1x32x128xf32>
    tpu.vector_store %arg11[%c4_258, %c0_259, %c0_260], %438 {strides = array<i32>} : memref<8x32x128xf32, #tpu.memory_space<vmem>>, vector<1x32x128xf32>,
    %c4_261 = arith.constant 4 : index
    %c0_262 = arith.constant 0 : index
    %c0_263 = arith.constant 0 : index
    %439 = vector.load %arg16[%c4_261, %c0_262, %c0_263] : memref<8x128x128xf32, #tpu.memory_space<vmem>>, vector<1x128x128xf32>
    %440 = vector.shape_cast %439 : vector<1x128x128xf32> to vector<128x128xf32>
    %c0_264 = arith.constant 0 : index
    %c0_265 = arith.constant 0 : index
    %441 = vector.load %arg12[%c0_264, %c0_265] : memref<32x128xf32, #tpu.memory_space<vmem>>, vector<32x128xf32>
    %442 = arith.truncf %441 : vector<32x128xf32> to vector<32x128xbf16>
    %cst_266 = arith.constant dense<0.000000e+00> : vector<128x128xf32>
    %443 = tpu.matmul %9, %442, %cst_266 {dimension_numbers = #tpu.dot_dimension_numbers<[1], [0], [0], [1], [0, 0, 1, 1], [], []>} : vector<128x32xbf16>, vector<32x128xbf16>, vector<128x128xf32> -> vector<128x128xf32>
    %444 = arith.addf %440, %443 : vector<128x128xf32>
    %445 = vector.extract_strided_slice %444 {offsets = [0, 0], sizes = [32, 128], strides = [1, 1]} : vector<128x128xf32> to vector<32x128xf32>
    %446 = arith.negf %445 : vector<32x128xf32>
    %447 = math.exp %446 : vector<32x128xf32>
    %cst_267 = arith.constant 1.000000e+00 : f32
    %448 = vector.broadcast %cst_267 : f32 to vector<32x128xf32>
    %449 = arith.addf %448, %447 : vector<32x128xf32>
    %450 = arith.divf %448, %449 : vector<32x128xf32>
    %451 = vector.extract_strided_slice %444 {offsets = [32, 0], sizes = [32, 128], strides = [1, 1]} : vector<128x128xf32> to vector<32x128xf32>
    %452 = arith.negf %451 : vector<32x128xf32>
    %453 = math.exp %452 : vector<32x128xf32>
    %cst_268 = arith.constant 1.000000e+00 : f32
    %454 = vector.broadcast %cst_268 : f32 to vector<32x128xf32>
    %455 = arith.addf %454, %453 : vector<32x128xf32>
    %456 = arith.divf %454, %455 : vector<32x128xf32>
    %457 = vector.extract_strided_slice %444 {offsets = [64, 0], sizes = [32, 128], strides = [1, 1]} : vector<128x128xf32> to vector<32x128xf32>
    %458 = math.tanh %457 : vector<32x128xf32>
    %459 = vector.extract_strided_slice %444 {offsets = [96, 0], sizes = [32, 128], strides = [1, 1]} : vector<128x128xf32> to vector<32x128xf32>
    %460 = arith.negf %459 : vector<32x128xf32>
    %461 = math.exp %460 : vector<32x128xf32>
    %cst_269 = arith.constant 1.000000e+00 : f32
    %462 = vector.broadcast %cst_269 : f32 to vector<32x128xf32>
    %463 = arith.addf %462, %461 : vector<32x128xf32>
    %464 = arith.divf %462, %463 : vector<32x128xf32>
    %c0_270 = arith.constant 0 : index
    %c0_271 = arith.constant 0 : index
    %465 = vector.load %arg13[%c0_270, %c0_271] : memref<32x128xf32, #tpu.memory_space<vmem>>, vector<32x128xf32>
    %466 = arith.mulf %456, %465 : vector<32x128xf32>
    %467 = arith.mulf %450, %458 : vector<32x128xf32>
    %468 = arith.addf %466, %467 : vector<32x128xf32>
    %469 = math.tanh %468 : vector<32x128xf32>
    %470 = arith.mulf %464, %469 : vector<32x128xf32>
    %c0_272 = arith.constant 0 : index
    %c0_273 = arith.constant 0 : index
    %471 = vector.load %arg13[%c0_272, %c0_273] : memref<32x128xf32, #tpu.memory_space<vmem>>, vector<32x128xf32>
    tpu.vector_store %arg13[%c0_272, %c0_273], %468 {strides = array<i32>} : memref<32x128xf32, #tpu.memory_space<vmem>>, vector<32x128xf32>,
    %c0_274 = arith.constant 0 : index
    %c0_275 = arith.constant 0 : index
    %472 = vector.load %arg12[%c0_274, %c0_275] : memref<32x128xf32, #tpu.memory_space<vmem>>, vector<32x128xf32>
    tpu.vector_store %arg12[%c0_274, %c0_275], %470 {strides = array<i32>} : memref<32x128xf32, #tpu.memory_space<vmem>>, vector<32x128xf32>,
    %c3_276 = arith.constant 3 : index
    %c0_277 = arith.constant 0 : index
    %c0_278 = arith.constant 0 : index
    %473 = vector.load %arg17[%c3_276, %c0_277, %c0_278] : memref<8x128x128xf32, #tpu.memory_space<vmem>>, vector<1x128x128xf32>
    %474 = vector.shape_cast %473 : vector<1x128x128xf32> to vector<128x128xf32>
    %c0_279 = arith.constant 0 : index
    %c0_280 = arith.constant 0 : index
    %475 = vector.load %arg14[%c0_279, %c0_280] : memref<32x128xf32, #tpu.memory_space<vmem>>, vector<32x128xf32>
    %476 = arith.truncf %475 : vector<32x128xf32> to vector<32x128xbf16>
    %cst_281 = arith.constant dense<0.000000e+00> : vector<128x128xf32>
    %477 = tpu.matmul %11, %476, %cst_281 {dimension_numbers = #tpu.dot_dimension_numbers<[1], [0], [0], [1], [0, 0, 1, 1], [], []>} : vector<128x32xbf16>, vector<32x128xbf16>, vector<128x128xf32> -> vector<128x128xf32>
    %478 = arith.addf %474, %477 : vector<128x128xf32>
    %479 = vector.extract_strided_slice %478 {offsets = [0, 0], sizes = [32, 128], strides = [1, 1]} : vector<128x128xf32> to vector<32x128xf32>
    %480 = arith.negf %479 : vector<32x128xf32>
    %481 = math.exp %480 : vector<32x128xf32>
    %cst_282 = arith.constant 1.000000e+00 : f32
    %482 = vector.broadcast %cst_282 : f32 to vector<32x128xf32>
    %483 = arith.addf %482, %481 : vector<32x128xf32>
    %484 = arith.divf %482, %483 : vector<32x128xf32>
    %485 = vector.extract_strided_slice %478 {offsets = [32, 0], sizes = [32, 128], strides = [1, 1]} : vector<128x128xf32> to vector<32x128xf32>
    %486 = arith.negf %485 : vector<32x128xf32>
    %487 = math.exp %486 : vector<32x128xf32>
    %cst_283 = arith.constant 1.000000e+00 : f32
    %488 = vector.broadcast %cst_283 : f32 to vector<32x128xf32>
    %489 = arith.addf %488, %487 : vector<32x128xf32>
    %490 = arith.divf %488, %489 : vector<32x128xf32>
    %491 = vector.extract_strided_slice %478 {offsets = [64, 0], sizes = [32, 128], strides = [1, 1]} : vector<128x128xf32> to vector<32x128xf32>
    %492 = math.tanh %491 : vector<32x128xf32>
    %493 = vector.extract_strided_slice %478 {offsets = [96, 0], sizes = [32, 128], strides = [1, 1]} : vector<128x128xf32> to vector<32x128xf32>
    %494 = arith.negf %493 : vector<32x128xf32>
    %495 = math.exp %494 : vector<32x128xf32>
    %cst_284 = arith.constant 1.000000e+00 : f32
    %496 = vector.broadcast %cst_284 : f32 to vector<32x128xf32>
    %497 = arith.addf %496, %495 : vector<32x128xf32>
    %498 = arith.divf %496, %497 : vector<32x128xf32>
    %c0_285 = arith.constant 0 : index
    %c0_286 = arith.constant 0 : index
    %499 = vector.load %arg15[%c0_285, %c0_286] : memref<32x128xf32, #tpu.memory_space<vmem>>, vector<32x128xf32>
    %500 = arith.mulf %490, %499 : vector<32x128xf32>
    %501 = arith.mulf %484, %492 : vector<32x128xf32>
    %502 = arith.addf %500, %501 : vector<32x128xf32>
    %503 = math.tanh %502 : vector<32x128xf32>
    %504 = arith.mulf %498, %503 : vector<32x128xf32>
    %c0_287 = arith.constant 0 : index
    %c0_288 = arith.constant 0 : index
    %505 = vector.load %arg15[%c0_287, %c0_288] : memref<32x128xf32, #tpu.memory_space<vmem>>, vector<32x128xf32>
    tpu.vector_store %arg15[%c0_287, %c0_288], %502 {strides = array<i32>} : memref<32x128xf32, #tpu.memory_space<vmem>>, vector<32x128xf32>,
    %c0_289 = arith.constant 0 : index
    %c0_290 = arith.constant 0 : index
    %506 = vector.load %arg14[%c0_289, %c0_290] : memref<32x128xf32, #tpu.memory_space<vmem>>, vector<32x128xf32>
    tpu.vector_store %arg14[%c0_289, %c0_290], %504 {strides = array<i32>} : memref<32x128xf32, #tpu.memory_space<vmem>>, vector<32x128xf32>,
    %507 = arith.truncf %470 : vector<32x128xf32> to vector<32x128xbf16>
    %cst_291 = arith.constant dense<0.000000e+00> : vector<32x128xf32>
    %508 = tpu.matmul %12, %507, %cst_291 {dimension_numbers = #tpu.dot_dimension_numbers<[1], [0], [0], [1], [0, 0, 1, 1], [], []>} : vector<32x32xbf16>, vector<32x128xbf16>, vector<32x128xf32> -> vector<32x128xf32>
    %509 = arith.truncf %504 : vector<32x128xf32> to vector<32x128xbf16>
    %cst_292 = arith.constant dense<0.000000e+00> : vector<32x128xf32>
    %510 = tpu.matmul %13, %509, %cst_292 {dimension_numbers = #tpu.dot_dimension_numbers<[1], [0], [0], [1], [0, 0, 1, 1], [], []>} : vector<32x32xbf16>, vector<32x128xbf16>, vector<32x128xf32> -> vector<32x128xf32>
    %c4_293 = arith.constant 4 : index
    %c0_294 = arith.constant 0 : index
    %c0_295 = arith.constant 0 : index
    %511 = vector.load %arg11[%c4_293, %c0_294, %c0_295] : memref<8x32x128xf32, #tpu.memory_space<vmem>>, vector<1x32x128xf32>
    %512 = vector.shape_cast %511 : vector<1x32x128xf32> to vector<32x128xf32>
    %513 = arith.addf %512, %508 : vector<32x128xf32>
    %c4_296 = arith.constant 4 : index
    %c0_297 = arith.constant 0 : index
    %c0_298 = arith.constant 0 : index
    %514 = vector.load %arg11[%c4_296, %c0_297, %c0_298] : memref<8x32x128xf32, #tpu.memory_space<vmem>>, vector<1x32x128xf32>
    %515 = vector.shape_cast %514 : vector<1x32x128xf32> to vector<32x128xf32>
    %516 = vector.shape_cast %513 : vector<32x128xf32> to vector<1x32x128xf32>
    tpu.vector_store %arg11[%c4_296, %c0_297, %c0_298], %516 {strides = array<i32>} : memref<8x32x128xf32, #tpu.memory_space<vmem>>, vector<1x32x128xf32>,
    %c3_299 = arith.constant 3 : index
    %c0_300 = arith.constant 0 : index
    %c0_301 = arith.constant 0 : index
    %517 = vector.load %arg11[%c3_299, %c0_300, %c0_301] : memref<8x32x128xf32, #tpu.memory_space<vmem>>, vector<1x32x128xf32>
    %518 = vector.shape_cast %517 : vector<1x32x128xf32> to vector<32x128xf32>
    %519 = arith.addf %518, %510 : vector<32x128xf32>
    %c3_302 = arith.constant 3 : index
    %c0_303 = arith.constant 0 : index
    %c0_304 = arith.constant 0 : index
    %520 = vector.load %arg11[%c3_302, %c0_303, %c0_304] : memref<8x32x128xf32, #tpu.memory_space<vmem>>, vector<1x32x128xf32>
    %521 = vector.shape_cast %520 : vector<1x32x128xf32> to vector<32x128xf32>
    %522 = vector.shape_cast %519 : vector<32x128xf32> to vector<1x32x128xf32>
    tpu.vector_store %arg11[%c3_302, %c0_303, %c0_304], %522 {strides = array<i32>} : memref<8x32x128xf32, #tpu.memory_space<vmem>>, vector<1x32x128xf32>,
    %c5_305 = arith.constant 5 : index
    %c0_306 = arith.constant 0 : index
    %c0_307 = arith.constant 0 : index
    %523 = vector.load %arg16[%c5_305, %c0_306, %c0_307] : memref<8x128x128xf32, #tpu.memory_space<vmem>>, vector<1x128x128xf32>
    %524 = vector.shape_cast %523 : vector<1x128x128xf32> to vector<128x128xf32>
    %c0_308 = arith.constant 0 : index
    %c0_309 = arith.constant 0 : index
    %525 = vector.load %arg12[%c0_308, %c0_309] : memref<32x128xf32, #tpu.memory_space<vmem>>, vector<32x128xf32>
    %526 = arith.truncf %525 : vector<32x128xf32> to vector<32x128xbf16>
    %cst_310 = arith.constant dense<0.000000e+00> : vector<128x128xf32>
    %527 = tpu.matmul %9, %526, %cst_310 {dimension_numbers = #tpu.dot_dimension_numbers<[1], [0], [0], [1], [0, 0, 1, 1], [], []>} : vector<128x32xbf16>, vector<32x128xbf16>, vector<128x128xf32> -> vector<128x128xf32>
    %528 = arith.addf %524, %527 : vector<128x128xf32>
    %529 = vector.extract_strided_slice %528 {offsets = [0, 0], sizes = [32, 128], strides = [1, 1]} : vector<128x128xf32> to vector<32x128xf32>
    %530 = arith.negf %529 : vector<32x128xf32>
    %531 = math.exp %530 : vector<32x128xf32>
    %cst_311 = arith.constant 1.000000e+00 : f32
    %532 = vector.broadcast %cst_311 : f32 to vector<32x128xf32>
    %533 = arith.addf %532, %531 : vector<32x128xf32>
    %534 = arith.divf %532, %533 : vector<32x128xf32>
    %535 = vector.extract_strided_slice %528 {offsets = [32, 0], sizes = [32, 128], strides = [1, 1]} : vector<128x128xf32> to vector<32x128xf32>
    %536 = arith.negf %535 : vector<32x128xf32>
    %537 = math.exp %536 : vector<32x128xf32>
    %cst_312 = arith.constant 1.000000e+00 : f32
    %538 = vector.broadcast %cst_312 : f32 to vector<32x128xf32>
    %539 = arith.addf %538, %537 : vector<32x128xf32>
    %540 = arith.divf %538, %539 : vector<32x128xf32>
    %541 = vector.extract_strided_slice %528 {offsets = [64, 0], sizes = [32, 128], strides = [1, 1]} : vector<128x128xf32> to vector<32x128xf32>
    %542 = math.tanh %541 : vector<32x128xf32>
    %543 = vector.extract_strided_slice %528 {offsets = [96, 0], sizes = [32, 128], strides = [1, 1]} : vector<128x128xf32> to vector<32x128xf32>
    %544 = arith.negf %543 : vector<32x128xf32>
    %545 = math.exp %544 : vector<32x128xf32>
    %cst_313 = arith.constant 1.000000e+00 : f32
    %546 = vector.broadcast %cst_313 : f32 to vector<32x128xf32>
    %547 = arith.addf %546, %545 : vector<32x128xf32>
    %548 = arith.divf %546, %547 : vector<32x128xf32>
    %c0_314 = arith.constant 0 : index
    %c0_315 = arith.constant 0 : index
    %549 = vector.load %arg13[%c0_314, %c0_315] : memref<32x128xf32, #tpu.memory_space<vmem>>, vector<32x128xf32>
    %550 = arith.mulf %540, %549 : vector<32x128xf32>
    %551 = arith.mulf %534, %542 : vector<32x128xf32>
    %552 = arith.addf %550, %551 : vector<32x128xf32>
    %553 = math.tanh %552 : vector<32x128xf32>
    %554 = arith.mulf %548, %553 : vector<32x128xf32>
    %c0_316 = arith.constant 0 : index
    %c0_317 = arith.constant 0 : index
    %555 = vector.load %arg13[%c0_316, %c0_317] : memref<32x128xf32, #tpu.memory_space<vmem>>, vector<32x128xf32>
    tpu.vector_store %arg13[%c0_316, %c0_317], %552 {strides = array<i32>} : memref<32x128xf32, #tpu.memory_space<vmem>>, vector<32x128xf32>,
    %c0_318 = arith.constant 0 : index
    %c0_319 = arith.constant 0 : index
    %556 = vector.load %arg12[%c0_318, %c0_319] : memref<32x128xf32, #tpu.memory_space<vmem>>, vector<32x128xf32>
    tpu.vector_store %arg12[%c0_318, %c0_319], %554 {strides = array<i32>} : memref<32x128xf32, #tpu.memory_space<vmem>>, vector<32x128xf32>,
    %c2_320 = arith.constant 2 : index
    %c0_321 = arith.constant 0 : index
    %c0_322 = arith.constant 0 : index
    %557 = vector.load %arg17[%c2_320, %c0_321, %c0_322] : memref<8x128x128xf32, #tpu.memory_space<vmem>>, vector<1x128x128xf32>
    %558 = vector.shape_cast %557 : vector<1x128x128xf32> to vector<128x128xf32>
    %c0_323 = arith.constant 0 : index
    %c0_324 = arith.constant 0 : index
    %559 = vector.load %arg14[%c0_323, %c0_324] : memref<32x128xf32, #tpu.memory_space<vmem>>, vector<32x128xf32>
    %560 = arith.truncf %559 : vector<32x128xf32> to vector<32x128xbf16>
    %cst_325 = arith.constant dense<0.000000e+00> : vector<128x128xf32>
    %561 = tpu.matmul %11, %560, %cst_325 {dimension_numbers = #tpu.dot_dimension_numbers<[1], [0], [0], [1], [0, 0, 1, 1], [], []>} : vector<128x32xbf16>, vector<32x128xbf16>, vector<128x128xf32> -> vector<128x128xf32>
    %562 = arith.addf %558, %561 : vector<128x128xf32>
    %563 = vector.extract_strided_slice %562 {offsets = [0, 0], sizes = [32, 128], strides = [1, 1]} : vector<128x128xf32> to vector<32x128xf32>
    %564 = arith.negf %563 : vector<32x128xf32>
    %565 = math.exp %564 : vector<32x128xf32>
    %cst_326 = arith.constant 1.000000e+00 : f32
    %566 = vector.broadcast %cst_326 : f32 to vector<32x128xf32>
    %567 = arith.addf %566, %565 : vector<32x128xf32>
    %568 = arith.divf %566, %567 : vector<32x128xf32>
    %569 = vector.extract_strided_slice %562 {offsets = [32, 0], sizes = [32, 128], strides = [1, 1]} : vector<128x128xf32> to vector<32x128xf32>
    %570 = arith.negf %569 : vector<32x128xf32>
    %571 = math.exp %570 : vector<32x128xf32>
    %cst_327 = arith.constant 1.000000e+00 : f32
    %572 = vector.broadcast %cst_327 : f32 to vector<32x128xf32>
    %573 = arith.addf %572, %571 : vector<32x128xf32>
    %574 = arith.divf %572, %573 : vector<32x128xf32>
    %575 = vector.extract_strided_slice %562 {offsets = [64, 0], sizes = [32, 128], strides = [1, 1]} : vector<128x128xf32> to vector<32x128xf32>
    %576 = math.tanh %575 : vector<32x128xf32>
    %577 = vector.extract_strided_slice %562 {offsets = [96, 0], sizes = [32, 128], strides = [1, 1]} : vector<128x128xf32> to vector<32x128xf32>
    %578 = arith.negf %577 : vector<32x128xf32>
    %579 = math.exp %578 : vector<32x128xf32>
    %cst_328 = arith.constant 1.000000e+00 : f32
    %580 = vector.broadcast %cst_328 : f32 to vector<32x128xf32>
    %581 = arith.addf %580, %579 : vector<32x128xf32>
    %582 = arith.divf %580, %581 : vector<32x128xf32>
    %c0_329 = arith.constant 0 : index
    %c0_330 = arith.constant 0 : index
    %583 = vector.load %arg15[%c0_329, %c0_330] : memref<32x128xf32, #tpu.memory_space<vmem>>, vector<32x128xf32>
    %584 = arith.mulf %574, %583 : vector<32x128xf32>
    %585 = arith.mulf %568, %576 : vector<32x128xf32>
    %586 = arith.addf %584, %585 : vector<32x128xf32>
    %587 = math.tanh %586 : vector<32x128xf32>
    %588 = arith.mulf %582, %587 : vector<32x128xf32>
    %c0_331 = arith.constant 0 : index
    %c0_332 = arith.constant 0 : index
    %589 = vector.load %arg15[%c0_331, %c0_332] : memref<32x128xf32, #tpu.memory_space<vmem>>, vector<32x128xf32>
    tpu.vector_store %arg15[%c0_331, %c0_332], %586 {strides = array<i32>} : memref<32x128xf32, #tpu.memory_space<vmem>>, vector<32x128xf32>,
    %c0_333 = arith.constant 0 : index
    %c0_334 = arith.constant 0 : index
    %590 = vector.load %arg14[%c0_333, %c0_334] : memref<32x128xf32, #tpu.memory_space<vmem>>, vector<32x128xf32>
    tpu.vector_store %arg14[%c0_333, %c0_334], %588 {strides = array<i32>} : memref<32x128xf32, #tpu.memory_space<vmem>>, vector<32x128xf32>,
    %591 = arith.truncf %554 : vector<32x128xf32> to vector<32x128xbf16>
    %cst_335 = arith.constant dense<0.000000e+00> : vector<32x128xf32>
    %592 = tpu.matmul %12, %591, %cst_335 {dimension_numbers = #tpu.dot_dimension_numbers<[1], [0], [0], [1], [0, 0, 1, 1], [], []>} : vector<32x32xbf16>, vector<32x128xbf16>, vector<32x128xf32> -> vector<32x128xf32>
    %593 = arith.truncf %588 : vector<32x128xf32> to vector<32x128xbf16>
    %cst_336 = arith.constant dense<0.000000e+00> : vector<32x128xf32>
    %594 = tpu.matmul %13, %593, %cst_336 {dimension_numbers = #tpu.dot_dimension_numbers<[1], [0], [0], [1], [0, 0, 1, 1], [], []>} : vector<32x32xbf16>, vector<32x128xbf16>, vector<32x128xf32> -> vector<32x128xf32>
    %c5_337 = arith.constant 5 : index
    %c0_338 = arith.constant 0 : index
    %c0_339 = arith.constant 0 : index
    %595 = vector.load %arg11[%c5_337, %c0_338, %c0_339] : memref<8x32x128xf32, #tpu.memory_space<vmem>>, vector<1x32x128xf32>
    %596 = vector.shape_cast %595 : vector<1x32x128xf32> to vector<32x128xf32>
    %597 = arith.addf %596, %592 : vector<32x128xf32>
    %c5_340 = arith.constant 5 : index
    %c0_341 = arith.constant 0 : index
    %c0_342 = arith.constant 0 : index
    %598 = vector.load %arg11[%c5_340, %c0_341, %c0_342] : memref<8x32x128xf32, #tpu.memory_space<vmem>>, vector<1x32x128xf32>
    %599 = vector.shape_cast %598 : vector<1x32x128xf32> to vector<32x128xf32>
    %600 = vector.shape_cast %597 : vector<32x128xf32> to vector<1x32x128xf32>
    tpu.vector_store %arg11[%c5_340, %c0_341, %c0_342], %600 {strides = array<i32>} : memref<8x32x128xf32, #tpu.memory_space<vmem>>, vector<1x32x128xf32>,
    %c2_343 = arith.constant 2 : index
    %c0_344 = arith.constant 0 : index
    %c0_345 = arith.constant 0 : index
    %601 = vector.load %arg11[%c2_343, %c0_344, %c0_345] : memref<8x32x128xf32, #tpu.memory_space<vmem>>, vector<1x32x128xf32>
    %602 = vector.shape_cast %601 : vector<1x32x128xf32> to vector<32x128xf32>
    %603 = arith.addf %602, %594 : vector<32x128xf32>
    %c2_346 = arith.constant 2 : index
    %c0_347 = arith.constant 0 : index
    %c0_348 = arith.constant 0 : index
    %604 = vector.load %arg11[%c2_346, %c0_347, %c0_348] : memref<8x32x128xf32, #tpu.memory_space<vmem>>, vector<1x32x128xf32>
    %605 = vector.shape_cast %604 : vector<1x32x128xf32> to vector<32x128xf32>
    %606 = vector.shape_cast %603 : vector<32x128xf32> to vector<1x32x128xf32>
    tpu.vector_store %arg11[%c2_346, %c0_347, %c0_348], %606 {strides = array<i32>} : memref<8x32x128xf32, #tpu.memory_space<vmem>>, vector<1x32x128xf32>,
    %c6_349 = arith.constant 6 : index
    %c0_350 = arith.constant 0 : index
    %c0_351 = arith.constant 0 : index
    %607 = vector.load %arg16[%c6_349, %c0_350, %c0_351] : memref<8x128x128xf32, #tpu.memory_space<vmem>>, vector<1x128x128xf32>
    %608 = vector.shape_cast %607 : vector<1x128x128xf32> to vector<128x128xf32>
    %c0_352 = arith.constant 0 : index
    %c0_353 = arith.constant 0 : index
    %609 = vector.load %arg12[%c0_352, %c0_353] : memref<32x128xf32, #tpu.memory_space<vmem>>, vector<32x128xf32>
    %610 = arith.truncf %609 : vector<32x128xf32> to vector<32x128xbf16>
    %cst_354 = arith.constant dense<0.000000e+00> : vector<128x128xf32>
    %611 = tpu.matmul %9, %610, %cst_354 {dimension_numbers = #tpu.dot_dimension_numbers<[1], [0], [0], [1], [0, 0, 1, 1], [], []>} : vector<128x32xbf16>, vector<32x128xbf16>, vector<128x128xf32> -> vector<128x128xf32>
    %612 = arith.addf %608, %611 : vector<128x128xf32>
    %613 = vector.extract_strided_slice %612 {offsets = [0, 0], sizes = [32, 128], strides = [1, 1]} : vector<128x128xf32> to vector<32x128xf32>
    %614 = arith.negf %613 : vector<32x128xf32>
    %615 = math.exp %614 : vector<32x128xf32>
    %cst_355 = arith.constant 1.000000e+00 : f32
    %616 = vector.broadcast %cst_355 : f32 to vector<32x128xf32>
    %617 = arith.addf %616, %615 : vector<32x128xf32>
    %618 = arith.divf %616, %617 : vector<32x128xf32>
    %619 = vector.extract_strided_slice %612 {offsets = [32, 0], sizes = [32, 128], strides = [1, 1]} : vector<128x128xf32> to vector<32x128xf32>
    %620 = arith.negf %619 : vector<32x128xf32>
    %621 = math.exp %620 : vector<32x128xf32>
    %cst_356 = arith.constant 1.000000e+00 : f32
    %622 = vector.broadcast %cst_356 : f32 to vector<32x128xf32>
    %623 = arith.addf %622, %621 : vector<32x128xf32>
    %624 = arith.divf %622, %623 : vector<32x128xf32>
    %625 = vector.extract_strided_slice %612 {offsets = [64, 0], sizes = [32, 128], strides = [1, 1]} : vector<128x128xf32> to vector<32x128xf32>
    %626 = math.tanh %625 : vector<32x128xf32>
    %627 = vector.extract_strided_slice %612 {offsets = [96, 0], sizes = [32, 128], strides = [1, 1]} : vector<128x128xf32> to vector<32x128xf32>
    %628 = arith.negf %627 : vector<32x128xf32>
    %629 = math.exp %628 : vector<32x128xf32>
    %cst_357 = arith.constant 1.000000e+00 : f32
    %630 = vector.broadcast %cst_357 : f32 to vector<32x128xf32>
    %631 = arith.addf %630, %629 : vector<32x128xf32>
    %632 = arith.divf %630, %631 : vector<32x128xf32>
    %c0_358 = arith.constant 0 : index
    %c0_359 = arith.constant 0 : index
    %633 = vector.load %arg13[%c0_358, %c0_359] : memref<32x128xf32, #tpu.memory_space<vmem>>, vector<32x128xf32>
    %634 = arith.mulf %624, %633 : vector<32x128xf32>
    %635 = arith.mulf %618, %626 : vector<32x128xf32>
    %636 = arith.addf %634, %635 : vector<32x128xf32>
    %637 = math.tanh %636 : vector<32x128xf32>
    %638 = arith.mulf %632, %637 : vector<32x128xf32>
    %c0_360 = arith.constant 0 : index
    %c0_361 = arith.constant 0 : index
    %639 = vector.load %arg13[%c0_360, %c0_361] : memref<32x128xf32, #tpu.memory_space<vmem>>, vector<32x128xf32>
    tpu.vector_store %arg13[%c0_360, %c0_361], %636 {strides = array<i32>} : memref<32x128xf32, #tpu.memory_space<vmem>>, vector<32x128xf32>,
    %c0_362 = arith.constant 0 : index
    %c0_363 = arith.constant 0 : index
    %640 = vector.load %arg12[%c0_362, %c0_363] : memref<32x128xf32, #tpu.memory_space<vmem>>, vector<32x128xf32>
    tpu.vector_store %arg12[%c0_362, %c0_363], %638 {strides = array<i32>} : memref<32x128xf32, #tpu.memory_space<vmem>>, vector<32x128xf32>,
    %c1_364 = arith.constant 1 : index
    %c0_365 = arith.constant 0 : index
    %c0_366 = arith.constant 0 : index
    %641 = vector.load %arg17[%c1_364, %c0_365, %c0_366] : memref<8x128x128xf32, #tpu.memory_space<vmem>>, vector<1x128x128xf32>
    %642 = vector.shape_cast %641 : vector<1x128x128xf32> to vector<128x128xf32>
    %c0_367 = arith.constant 0 : index
    %c0_368 = arith.constant 0 : index
    %643 = vector.load %arg14[%c0_367, %c0_368] : memref<32x128xf32, #tpu.memory_space<vmem>>, vector<32x128xf32>
    %644 = arith.truncf %643 : vector<32x128xf32> to vector<32x128xbf16>
    %cst_369 = arith.constant dense<0.000000e+00> : vector<128x128xf32>
    %645 = tpu.matmul %11, %644, %cst_369 {dimension_numbers = #tpu.dot_dimension_numbers<[1], [0], [0], [1], [0, 0, 1, 1], [], []>} : vector<128x32xbf16>, vector<32x128xbf16>, vector<128x128xf32> -> vector<128x128xf32>
    %646 = arith.addf %642, %645 : vector<128x128xf32>
    %647 = vector.extract_strided_slice %646 {offsets = [0, 0], sizes = [32, 128], strides = [1, 1]} : vector<128x128xf32> to vector<32x128xf32>
    %648 = arith.negf %647 : vector<32x128xf32>
    %649 = math.exp %648 : vector<32x128xf32>
    %cst_370 = arith.constant 1.000000e+00 : f32
    %650 = vector.broadcast %cst_370 : f32 to vector<32x128xf32>
    %651 = arith.addf %650, %649 : vector<32x128xf32>
    %652 = arith.divf %650, %651 : vector<32x128xf32>
    %653 = vector.extract_strided_slice %646 {offsets = [32, 0], sizes = [32, 128], strides = [1, 1]} : vector<128x128xf32> to vector<32x128xf32>
    %654 = arith.negf %653 : vector<32x128xf32>
    %655 = math.exp %654 : vector<32x128xf32>
    %cst_371 = arith.constant 1.000000e+00 : f32
    %656 = vector.broadcast %cst_371 : f32 to vector<32x128xf32>
    %657 = arith.addf %656, %655 : vector<32x128xf32>
    %658 = arith.divf %656, %657 : vector<32x128xf32>
    %659 = vector.extract_strided_slice %646 {offsets = [64, 0], sizes = [32, 128], strides = [1, 1]} : vector<128x128xf32> to vector<32x128xf32>
    %660 = math.tanh %659 : vector<32x128xf32>
    %661 = vector.extract_strided_slice %646 {offsets = [96, 0], sizes = [32, 128], strides = [1, 1]} : vector<128x128xf32> to vector<32x128xf32>
    %662 = arith.negf %661 : vector<32x128xf32>
    %663 = math.exp %662 : vector<32x128xf32>
    %cst_372 = arith.constant 1.000000e+00 : f32
    %664 = vector.broadcast %cst_372 : f32 to vector<32x128xf32>
    %665 = arith.addf %664, %663 : vector<32x128xf32>
    %666 = arith.divf %664, %665 : vector<32x128xf32>
    %c0_373 = arith.constant 0 : index
    %c0_374 = arith.constant 0 : index
    %667 = vector.load %arg15[%c0_373, %c0_374] : memref<32x128xf32, #tpu.memory_space<vmem>>, vector<32x128xf32>
    %668 = arith.mulf %658, %667 : vector<32x128xf32>
    %669 = arith.mulf %652, %660 : vector<32x128xf32>
    %670 = arith.addf %668, %669 : vector<32x128xf32>
    %671 = math.tanh %670 : vector<32x128xf32>
    %672 = arith.mulf %666, %671 : vector<32x128xf32>
    %c0_375 = arith.constant 0 : index
    %c0_376 = arith.constant 0 : index
    %673 = vector.load %arg15[%c0_375, %c0_376] : memref<32x128xf32, #tpu.memory_space<vmem>>, vector<32x128xf32>
    tpu.vector_store %arg15[%c0_375, %c0_376], %670 {strides = array<i32>} : memref<32x128xf32, #tpu.memory_space<vmem>>, vector<32x128xf32>,
    %c0_377 = arith.constant 0 : index
    %c0_378 = arith.constant 0 : index
    %674 = vector.load %arg14[%c0_377, %c0_378] : memref<32x128xf32, #tpu.memory_space<vmem>>, vector<32x128xf32>
    tpu.vector_store %arg14[%c0_377, %c0_378], %672 {strides = array<i32>} : memref<32x128xf32, #tpu.memory_space<vmem>>, vector<32x128xf32>,
    %675 = arith.truncf %638 : vector<32x128xf32> to vector<32x128xbf16>
    %cst_379 = arith.constant dense<0.000000e+00> : vector<32x128xf32>
    %676 = tpu.matmul %12, %675, %cst_379 {dimension_numbers = #tpu.dot_dimension_numbers<[1], [0], [0], [1], [0, 0, 1, 1], [], []>} : vector<32x32xbf16>, vector<32x128xbf16>, vector<32x128xf32> -> vector<32x128xf32>
    %677 = arith.truncf %672 : vector<32x128xf32> to vector<32x128xbf16>
    %cst_380 = arith.constant dense<0.000000e+00> : vector<32x128xf32>
    %678 = tpu.matmul %13, %677, %cst_380 {dimension_numbers = #tpu.dot_dimension_numbers<[1], [0], [0], [1], [0, 0, 1, 1], [], []>} : vector<32x32xbf16>, vector<32x128xbf16>, vector<32x128xf32> -> vector<32x128xf32>
    %c6_381 = arith.constant 6 : index
    %c0_382 = arith.constant 0 : index
    %c0_383 = arith.constant 0 : index
    %679 = vector.load %arg11[%c6_381, %c0_382, %c0_383] : memref<8x32x128xf32, #tpu.memory_space<vmem>>, vector<1x32x128xf32>
    %680 = vector.shape_cast %679 : vector<1x32x128xf32> to vector<32x128xf32>
    %681 = arith.addf %680, %676 : vector<32x128xf32>
    %c6_384 = arith.constant 6 : index
    %c0_385 = arith.constant 0 : index
    %c0_386 = arith.constant 0 : index
    %682 = vector.load %arg11[%c6_384, %c0_385, %c0_386] : memref<8x32x128xf32, #tpu.memory_space<vmem>>, vector<1x32x128xf32>
    %683 = vector.shape_cast %682 : vector<1x32x128xf32> to vector<32x128xf32>
    %684 = vector.shape_cast %681 : vector<32x128xf32> to vector<1x32x128xf32>
    tpu.vector_store %arg11[%c6_384, %c0_385, %c0_386], %684 {strides = array<i32>} : memref<8x32x128xf32, #tpu.memory_space<vmem>>, vector<1x32x128xf32>,
    %c1_387 = arith.constant 1 : index
    %c0_388 = arith.constant 0 : index
    %c0_389 = arith.constant 0 : index
    %685 = vector.load %arg11[%c1_387, %c0_388, %c0_389] : memref<8x32x128xf32, #tpu.memory_space<vmem>>, vector<1x32x128xf32>
    %686 = vector.shape_cast %685 : vector<1x32x128xf32> to vector<32x128xf32>
    %687 = arith.addf %686, %678 : vector<32x128xf32>
    %c1_390 = arith.constant 1 : index
    %c0_391 = arith.constant 0 : index
    %c0_392 = arith.constant 0 : index
    %688 = vector.load %arg11[%c1_390, %c0_391, %c0_392] : memref<8x32x128xf32, #tpu.memory_space<vmem>>, vector<1x32x128xf32>
    %689 = vector.shape_cast %688 : vector<1x32x128xf32> to vector<32x128xf32>
    %690 = vector.shape_cast %687 : vector<32x128xf32> to vector<1x32x128xf32>
    tpu.vector_store %arg11[%c1_390, %c0_391, %c0_392], %690 {strides = array<i32>} : memref<8x32x128xf32, #tpu.memory_space<vmem>>, vector<1x32x128xf32>,
    %c7_393 = arith.constant 7 : index
    %c0_394 = arith.constant 0 : index
    %c0_395 = arith.constant 0 : index
    %691 = vector.load %arg16[%c7_393, %c0_394, %c0_395] : memref<8x128x128xf32, #tpu.memory_space<vmem>>, vector<1x128x128xf32>
    %692 = vector.shape_cast %691 : vector<1x128x128xf32> to vector<128x128xf32>
    %c0_396 = arith.constant 0 : index
    %c0_397 = arith.constant 0 : index
    %693 = vector.load %arg12[%c0_396, %c0_397] : memref<32x128xf32, #tpu.memory_space<vmem>>, vector<32x128xf32>
    %694 = arith.truncf %693 : vector<32x128xf32> to vector<32x128xbf16>
    %cst_398 = arith.constant dense<0.000000e+00> : vector<128x128xf32>
    %695 = tpu.matmul %9, %694, %cst_398 {dimension_numbers = #tpu.dot_dimension_numbers<[1], [0], [0], [1], [0, 0, 1, 1], [], []>} : vector<128x32xbf16>, vector<32x128xbf16>, vector<128x128xf32> -> vector<128x128xf32>
    %696 = arith.addf %692, %695 : vector<128x128xf32>
    %697 = vector.extract_strided_slice %696 {offsets = [0, 0], sizes = [32, 128], strides = [1, 1]} : vector<128x128xf32> to vector<32x128xf32>
    %698 = arith.negf %697 : vector<32x128xf32>
    %699 = math.exp %698 : vector<32x128xf32>
    %cst_399 = arith.constant 1.000000e+00 : f32
    %700 = vector.broadcast %cst_399 : f32 to vector<32x128xf32>
    %701 = arith.addf %700, %699 : vector<32x128xf32>
    %702 = arith.divf %700, %701 : vector<32x128xf32>
    %703 = vector.extract_strided_slice %696 {offsets = [32, 0], sizes = [32, 128], strides = [1, 1]} : vector<128x128xf32> to vector<32x128xf32>
    %704 = arith.negf %703 : vector<32x128xf32>
    %705 = math.exp %704 : vector<32x128xf32>
    %cst_400 = arith.constant 1.000000e+00 : f32
    %706 = vector.broadcast %cst_400 : f32 to vector<32x128xf32>
    %707 = arith.addf %706, %705 : vector<32x128xf32>
    %708 = arith.divf %706, %707 : vector<32x128xf32>
    %709 = vector.extract_strided_slice %696 {offsets = [64, 0], sizes = [32, 128], strides = [1, 1]} : vector<128x128xf32> to vector<32x128xf32>
    %710 = math.tanh %709 : vector<32x128xf32>
    %711 = vector.extract_strided_slice %696 {offsets = [96, 0], sizes = [32, 128], strides = [1, 1]} : vector<128x128xf32> to vector<32x128xf32>
    %712 = arith.negf %711 : vector<32x128xf32>
    %713 = math.exp %712 : vector<32x128xf32>
    %cst_401 = arith.constant 1.000000e+00 : f32
    %714 = vector.broadcast %cst_401 : f32 to vector<32x128xf32>
    %715 = arith.addf %714, %713 : vector<32x128xf32>
    %716 = arith.divf %714, %715 : vector<32x128xf32>
    %c0_402 = arith.constant 0 : index
    %c0_403 = arith.constant 0 : index
    %717 = vector.load %arg13[%c0_402, %c0_403] : memref<32x128xf32, #tpu.memory_space<vmem>>, vector<32x128xf32>
    %718 = arith.mulf %708, %717 : vector<32x128xf32>
    %719 = arith.mulf %702, %710 : vector<32x128xf32>
    %720 = arith.addf %718, %719 : vector<32x128xf32>
    %721 = math.tanh %720 : vector<32x128xf32>
    %722 = arith.mulf %716, %721 : vector<32x128xf32>
    %c0_404 = arith.constant 0 : index
    %c0_405 = arith.constant 0 : index
    %723 = vector.load %arg13[%c0_404, %c0_405] : memref<32x128xf32, #tpu.memory_space<vmem>>, vector<32x128xf32>
    tpu.vector_store %arg13[%c0_404, %c0_405], %720 {strides = array<i32>} : memref<32x128xf32, #tpu.memory_space<vmem>>, vector<32x128xf32>,
    %c0_406 = arith.constant 0 : index
    %c0_407 = arith.constant 0 : index
    %724 = vector.load %arg12[%c0_406, %c0_407] : memref<32x128xf32, #tpu.memory_space<vmem>>, vector<32x128xf32>
    tpu.vector_store %arg12[%c0_406, %c0_407], %722 {strides = array<i32>} : memref<32x128xf32, #tpu.memory_space<vmem>>, vector<32x128xf32>,
    %c0_408 = arith.constant 0 : index
    %c0_409 = arith.constant 0 : index
    %c0_410 = arith.constant 0 : index
    %725 = vector.load %arg17[%c0_408, %c0_409, %c0_410] : memref<8x128x128xf32, #tpu.memory_space<vmem>>, vector<1x128x128xf32>
    %726 = vector.shape_cast %725 : vector<1x128x128xf32> to vector<128x128xf32>
    %c0_411 = arith.constant 0 : index
    %c0_412 = arith.constant 0 : index
    %727 = vector.load %arg14[%c0_411, %c0_412] : memref<32x128xf32, #tpu.memory_space<vmem>>, vector<32x128xf32>
    %728 = arith.truncf %727 : vector<32x128xf32> to vector<32x128xbf16>
    %cst_413 = arith.constant dense<0.000000e+00> : vector<128x128xf32>
    %729 = tpu.matmul %11, %728, %cst_413 {dimension_numbers = #tpu.dot_dimension_numbers<[1], [0], [0], [1], [0, 0, 1, 1], [], []>} : vector<128x32xbf16>, vector<32x128xbf16>, vector<128x128xf32> -> vector<128x128xf32>
    %730 = arith.addf %726, %729 : vector<128x128xf32>
    %731 = vector.extract_strided_slice %730 {offsets = [0, 0], sizes = [32, 128], strides = [1, 1]} : vector<128x128xf32> to vector<32x128xf32>
    %732 = arith.negf %731 : vector<32x128xf32>
    %733 = math.exp %732 : vector<32x128xf32>
    %cst_414 = arith.constant 1.000000e+00 : f32
    %734 = vector.broadcast %cst_414 : f32 to vector<32x128xf32>
    %735 = arith.addf %734, %733 : vector<32x128xf32>
    %736 = arith.divf %734, %735 : vector<32x128xf32>
    %737 = vector.extract_strided_slice %730 {offsets = [32, 0], sizes = [32, 128], strides = [1, 1]} : vector<128x128xf32> to vector<32x128xf32>
    %738 = arith.negf %737 : vector<32x128xf32>
    %739 = math.exp %738 : vector<32x128xf32>
    %cst_415 = arith.constant 1.000000e+00 : f32
    %740 = vector.broadcast %cst_415 : f32 to vector<32x128xf32>
    %741 = arith.addf %740, %739 : vector<32x128xf32>
    %742 = arith.divf %740, %741 : vector<32x128xf32>
    %743 = vector.extract_strided_slice %730 {offsets = [64, 0], sizes = [32, 128], strides = [1, 1]} : vector<128x128xf32> to vector<32x128xf32>
    %744 = math.tanh %743 : vector<32x128xf32>
    %745 = vector.extract_strided_slice %730 {offsets = [96, 0], sizes = [32, 128], strides = [1, 1]} : vector<128x128xf32> to vector<32x128xf32>
    %746 = arith.negf %745 : vector<32x128xf32>
    %747 = math.exp %746 : vector<32x128xf32>
    %cst_416 = arith.constant 1.000000e+00 : f32
    %748 = vector.broadcast %cst_416 : f32 to vector<32x128xf32>
    %749 = arith.addf %748, %747 : vector<32x128xf32>
    %750 = arith.divf %748, %749 : vector<32x128xf32>
    %c0_417 = arith.constant 0 : index
    %c0_418 = arith.constant 0 : index
    %751 = vector.load %arg15[%c0_417, %c0_418] : memref<32x128xf32, #tpu.memory_space<vmem>>, vector<32x128xf32>
    %752 = arith.mulf %742, %751 : vector<32x128xf32>
    %753 = arith.mulf %736, %744 : vector<32x128xf32>
    %754 = arith.addf %752, %753 : vector<32x128xf32>
    %755 = math.tanh %754 : vector<32x128xf32>
    %756 = arith.mulf %750, %755 : vector<32x128xf32>
    %c0_419 = arith.constant 0 : index
    %c0_420 = arith.constant 0 : index
    %757 = vector.load %arg15[%c0_419, %c0_420] : memref<32x128xf32, #tpu.memory_space<vmem>>, vector<32x128xf32>
    tpu.vector_store %arg15[%c0_419, %c0_420], %754 {strides = array<i32>} : memref<32x128xf32, #tpu.memory_space<vmem>>, vector<32x128xf32>,
    %c0_421 = arith.constant 0 : index
    %c0_422 = arith.constant 0 : index
    %758 = vector.load %arg14[%c0_421, %c0_422] : memref<32x128xf32, #tpu.memory_space<vmem>>, vector<32x128xf32>
    tpu.vector_store %arg14[%c0_421, %c0_422], %756 {strides = array<i32>} : memref<32x128xf32, #tpu.memory_space<vmem>>, vector<32x128xf32>,
    %759 = arith.truncf %722 : vector<32x128xf32> to vector<32x128xbf16>
    %cst_423 = arith.constant dense<0.000000e+00> : vector<32x128xf32>
    %760 = tpu.matmul %12, %759, %cst_423 {dimension_numbers = #tpu.dot_dimension_numbers<[1], [0], [0], [1], [0, 0, 1, 1], [], []>} : vector<32x32xbf16>, vector<32x128xbf16>, vector<32x128xf32> -> vector<32x128xf32>
    %761 = arith.truncf %756 : vector<32x128xf32> to vector<32x128xbf16>
    %cst_424 = arith.constant dense<0.000000e+00> : vector<32x128xf32>
    %762 = tpu.matmul %13, %761, %cst_424 {dimension_numbers = #tpu.dot_dimension_numbers<[1], [0], [0], [1], [0, 0, 1, 1], [], []>} : vector<32x32xbf16>, vector<32x128xbf16>, vector<32x128xf32> -> vector<32x128xf32>
    %c7_425 = arith.constant 7 : index
    %c0_426 = arith.constant 0 : index
    %c0_427 = arith.constant 0 : index
    %763 = vector.load %arg11[%c7_425, %c0_426, %c0_427] : memref<8x32x128xf32, #tpu.memory_space<vmem>>, vector<1x32x128xf32>
    %764 = vector.shape_cast %763 : vector<1x32x128xf32> to vector<32x128xf32>
    %765 = arith.addf %764, %760 : vector<32x128xf32>
    %c7_428 = arith.constant 7 : index
    %c0_429 = arith.constant 0 : index
    %c0_430 = arith.constant 0 : index
    %766 = vector.load %arg11[%c7_428, %c0_429, %c0_430] : memref<8x32x128xf32, #tpu.memory_space<vmem>>, vector<1x32x128xf32>
    %767 = vector.shape_cast %766 : vector<1x32x128xf32> to vector<32x128xf32>
    %768 = vector.shape_cast %765 : vector<32x128xf32> to vector<1x32x128xf32>
    tpu.vector_store %arg11[%c7_428, %c0_429, %c0_430], %768 {strides = array<i32>} : memref<8x32x128xf32, #tpu.memory_space<vmem>>, vector<1x32x128xf32>,
    %c0_431 = arith.constant 0 : index
    %c0_432 = arith.constant 0 : index
    %c0_433 = arith.constant 0 : index
    %769 = vector.load %arg11[%c0_431, %c0_432, %c0_433] : memref<8x32x128xf32, #tpu.memory_space<vmem>>, vector<1x32x128xf32>
    %770 = vector.shape_cast %769 : vector<1x32x128xf32> to vector<32x128xf32>
    %771 = arith.addf %770, %762 : vector<32x128xf32>
    %c0_434 = arith.constant 0 : index
    %c0_435 = arith.constant 0 : index
    %c0_436 = arith.constant 0 : index
    %772 = vector.load %arg11[%c0_434, %c0_435, %c0_436] : memref<8x32x128xf32, #tpu.memory_space<vmem>>, vector<1x32x128xf32>
    %773 = vector.shape_cast %772 : vector<1x32x128xf32> to vector<32x128xf32>
    %774 = vector.shape_cast %771 : vector<32x128xf32> to vector<1x32x128xf32>
    tpu.vector_store %arg11[%c0_434, %c0_435, %c0_436], %774 {strides = array<i32>} : memref<8x32x128xf32, #tpu.memory_space<vmem>>, vector<1x32x128xf32>,
    return
  }
  func.func @transform_0(%arg0: i32) -> (i32, i32, i32) {
    %c0_i32 = arith.constant 0 : i32
    %c0_i32_0 = arith.constant 0 : i32
    %c0_i32_1 = arith.constant 0 : i32
    return %c0_i32, %c0_i32_0, %arg0 : i32, i32, i32
  }
  func.func @transform_1(%arg0: i32) -> (i32, i32) {
    %c0_i32 = arith.constant 0 : i32
    %c0_i32_0 = arith.constant 0 : i32
    %c0_i32_1 = arith.constant 0 : i32
    return %c0_i32, %c0_i32_0 : i32, i32
  }
  func.func @transform_2(%arg0: i32) -> (i32, i32) {
    %c0_i32 = arith.constant 0 : i32
    %c0_i32_0 = arith.constant 0 : i32
    %c0_i32_1 = arith.constant 0 : i32
    return %c0_i32, %c0_i32_0 : i32, i32
  }
  func.func @transform_3(%arg0: i32) -> (i32, i32) {
    %c0_i32 = arith.constant 0 : i32
    %c0_i32_0 = arith.constant 0 : i32
    %c0_i32_1 = arith.constant 0 : i32
    return %c0_i32, %c0_i32_0 : i32, i32
  }
  func.func @transform_4(%arg0: i32) -> (i32, i32) {
    %c0_i32 = arith.constant 0 : i32
    %c0_i32_0 = arith.constant 0 : i32
    %c0_i32_1 = arith.constant 0 : i32
    return %c0_i32, %c0_i32_0 : i32, i32
  }
  func.func @transform_5(%arg0: i32) -> (i32, i32) {
    %c0_i32 = arith.constant 0 : i32
    %c0_i32_0 = arith.constant 0 : i32
    %c0_i32_1 = arith.constant 0 : i32
    return %c0_i32, %c0_i32_0 : i32, i32
  }
  func.func @transform_6(%arg0: i32) -> (i32, i32) {
    %c0_i32 = arith.constant 0 : i32
    %c0_i32_0 = arith.constant 0 : i32
    %c0_i32_1 = arith.constant 0 : i32
    return %c0_i32, %c0_i32_0 : i32, i32
  }
  func.func @transform_7(%arg0: i32) -> (i32, i32) {
    %c0_i32 = arith.constant 0 : i32
    %c0_i32_0 = arith.constant 0 : i32
    %c0_i32_1 = arith.constant 0 : i32
    return %c0_i32, %c0_i32_0 : i32, i32
  }
  func.func @transform_8(%arg0: i32) -> (i32, i32) {
    %c0_i32 = arith.constant 0 : i32
    %c0_i32_0 = arith.constant 0 : i32
    %c0_i32_1 = arith.constant 0 : i32
    return %c0_i32, %c0_i32_0 : i32, i32
  }
  func.func @transform_9(%arg0: i32) -> (i32, i32) {
    %c0_i32 = arith.constant 0 : i32
    %c0_i32_0 = arith.constant 0 : i32
    %c0_i32_1 = arith.constant 0 : i32
    return %c0_i32, %c0_i32_0 : i32, i32
  }
  func.func @transform_10(%arg0: i32) -> (i32, i32, i32) {
    %c0_i32 = arith.constant 0 : i32
    %c0_i32_0 = arith.constant 0 : i32
    %c0_i32_1 = arith.constant 0 : i32
    return %c0_i32, %c0_i32_0, %arg0 : i32, i32, i32
  }
}

</mosaic_0001>

<llo_original>
// kernel: tpu_custom_call.1
$region0: #{tpu_custom_call.1}
  #allocation0 [shape = 'u32[]', space=smem, size = 0x4, offset = 0x4, fixed_abs, tag = 'smem constant byte address 0x4 - core index']
  #allocation1 [shape = 'u32[72,128]{1,0:T(1,128)}', space=vmem, size = 0x9000, scoped, tag = 'internal scratch']
  #allocation2 [shape = 'f32[32,128]{1,0:T(8,128)}', space=vmem, size = 0x4000, scoped, tag = 'scratch operand']
  #allocation3 [shape = 'f32[32,128]{1,0:T(8,128)}', space=vmem, size = 0x4000, scoped, tag = 'scratch operand']
  #allocation4 [shape = 'f32[32,128]{1,0:T(8,128)}', space=vmem, size = 0x4000, scoped, tag = 'scratch operand']
  #allocation5 [shape = 'f32[32,128]{1,0:T(8,128)}', space=vmem, size = 0x4000, scoped, tag = 'scratch operand']
  #allocation6 [shape = 'f32[8,128,128]{2,1,0:T(8,128)}', space=vmem, size = 0x80000, scoped, tag = 'scratch operand']
  #allocation7 [shape = 'f32[8,128,128]{2,1,0:T(8,128)}', space=vmem, size = 0x80000, scoped, tag = 'scratch operand']
  %s0 = inlined_call_operand.vmem [shape: bf16[8,4,128], index: 0, kind: input, shape index: {}]
  %s1 = inlined_call_operand.vmem [shape: bf16[128,4], index: 1, kind: input, shape index: {}]
  %s2 = inlined_call_operand.vmem [shape: bf16[128,32], index: 2, kind: input, shape index: {}]
  %s3 = inlined_call_operand.vmem [shape: f32[128,1], index: 3, kind: input, shape index: {}]
  %s4 = inlined_call_operand.vmem [shape: bf16[128,4], index: 4, kind: input, shape index: {}]
  %s5 = inlined_call_operand.vmem [shape: bf16[128,32], index: 5, kind: input, shape index: {}]
  %s6 = inlined_call_operand.vmem [shape: f32[128,1], index: 6, kind: input, shape index: {}]
  %s7 = inlined_call_operand.vmem [shape: bf16[32,32], index: 7, kind: input, shape index: {}]
  %s8 = inlined_call_operand.vmem [shape: bf16[32,32], index: 8, kind: input, shape index: {}]
  %s9 = inlined_call_operand.vmem [shape: f32[32,1], index: 9, kind: input, shape index: {}]
  %s10 = inlined_call_operand.hbm [shape: f32[8,32,128], index: 10, kind: output, shape index: {}]
  %s11 = sld [smem:[#allocation0]]
  $region50: #{tpu_custom_call.1} parent=0
    _
  %s13 = ssub.s32 1, %s11
  %s14 = scalar_select 0, %s13, %s11
  $region1: #{tpu_custom_call.1} parent=0
    #allocation8 [shape = 'u8[131072]{0}', space=vmem, size = 0x20000, scoped, tag = 'output window, operand 0, single buffered']
    #allocation9 [shape = 's32[1]{0}', space=sflag, size = 0x4, scoped, tag = 'scoped memory for tpu_custom_call.1']
    %15 = vsyncpa [#allocation9], 0
    // Predicated region
    $region2: #{tpu_custom_call.1} parent=1 // pred_check
      _
    $region3: #{tpu_custom_call.1} parent=1 // pred_check_branch
      %17 = sbr.rel (0) target = $region5
    $region4: #{tpu_custom_call.1} parent=1 // pred_region
      _
    $region5: #{tpu_custom_call.1} parent=1 // pred_fallthru
      _
    // Predicated region
    $region6: #{tpu_custom_call.1} parent=1 // pred_check
      _
    $region7: #{tpu_custom_call.1} parent=1 // pred_check_branch
      %19 = sbr.rel (0) target = $region9
    $region8: #{tpu_custom_call.1} parent=1 // pred_region
      _
    $region9: #{tpu_custom_call.1} parent=1 // pred_fallthru
      _
    // Predicated region
    $region10: #{tpu_custom_call.1} parent=1 // pred_check
      _
    $region11: #{tpu_custom_call.1} parent=1 // pred_check_branch
      %21 = sbr.rel (0) target = $region13
    $region12: #{tpu_custom_call.1} parent=1 // pred_region
      _
    $region13: #{tpu_custom_call.1} parent=1 // pred_fallthru
      _
    // Predicated region
    $region14: #{tpu_custom_call.1} parent=1 // pred_check
      _
    $region15: #{tpu_custom_call.1} parent=1 // pred_check_branch
      %23 = sbr.rel (0) target = $region17
    $region16: #{tpu_custom_call.1} parent=1 // pred_region
      _
    $region17: #{tpu_custom_call.1} parent=1 // pred_fallthru
      _
    // Predicated region
    $region18: #{tpu_custom_call.1} parent=1 // pred_check
      _
    $region19: #{tpu_custom_call.1} parent=1 // pred_check_branch
      %25 = sbr.rel (0) target = $region21
    $region20: #{tpu_custom_call.1} parent=1 // pred_region
      _
    $region21: #{tpu_custom_call.1} parent=1 // pred_fallthru
      _
    // Predicated region
    $region22: #{tpu_custom_call.1} parent=1 // pred_check
      _
    $region23: #{tpu_custom_call.1} parent=1 // pred_check_branch
      %27 = sbr.rel (0) target = $region25
    $region24: #{tpu_custom_call.1} parent=1 // pred_region
      _
    $region25: #{tpu_custom_call.1} parent=1 // pred_fallthru
      _
    // Predicated region
    $region26: #{tpu_custom_call.1} parent=1 // pred_check
      _
    $region27: #{tpu_custom_call.1} parent=1 // pred_check_branch
      %29 = sbr.rel (0) target = $region29
    $region28: #{tpu_custom_call.1} parent=1 // pred_region
      _
    $region29: #{tpu_custom_call.1} parent=1 // pred_fallthru
      _
    // Predicated region
    $region30: #{tpu_custom_call.1} parent=1 // pred_check
      _
    $region31: #{tpu_custom_call.1} parent=1 // pred_check_branch
      %31 = sbr.rel (0) target = $region33
    $region32: #{tpu_custom_call.1} parent=1 // pred_region
      _
    $region33: #{tpu_custom_call.1} parent=1 // pred_fallthru
      _
    // Predicated region
    $region34: #{tpu_custom_call.1} parent=1 // pred_check
      _
    $region35: #{tpu_custom_call.1} parent=1 // pred_check_branch
      %33 = sbr.rel (0) target = $region37
    $region36: #{tpu_custom_call.1} parent=1 // pred_region
      _
    $region37: #{tpu_custom_call.1} parent=1 // pred_fallthru
      _
    // Predicated region
    $region38: #{tpu_custom_call.1} parent=1 // pred_check
      _
    $region39: #{tpu_custom_call.1} parent=1 // pred_check_branch
      %35 = sbr.rel (0) target = $region41
    $region40: #{tpu_custom_call.1} parent=1 // pred_region
      _
    $region41: #{tpu_custom_call.1} parent=1 // pred_fallthru
      _
    %37 = vst [vmem:[#allocation2] sm:$0xff] 0.0
    %38 = vst [vmem:[#allocation2 + $0x8] sm:$0xff] 0.0
    %39 = vst [vmem:[#allocation2 + $0x10] sm:$0xff] 0.0
    %40 = vst [vmem:[#allocation2 + $0x18] sm:$0xff] 0.0
    %41 = vst [vmem:[#allocation3] sm:$0xff] 0.0
    %42 = vst [vmem:[#allocation3 + $0x8] sm:$0xff] 0.0
    %43 = vst [vmem:[#allocation3 + $0x10] sm:$0xff] 0.0
    %44 = vst [vmem:[#allocation3 + $0x18] sm:$0xff] 0.0
    %45 = vst [vmem:[#allocation4] sm:$0xff] 0.0
    %46 = vst [vmem:[#allocation4 + $0x8] sm:$0xff] 0.0
    %47 = vst [vmem:[#allocation4 + $0x10] sm:$0xff] 0.0
    %48 = vst [vmem:[#allocation4 + $0x18] sm:$0xff] 0.0
    %49 = vst [vmem:[#allocation5] sm:$0xff] 0.0
    %50 = vst [vmem:[#allocation5 + $0x8] sm:$0xff] 0.0
    %51 = vst [vmem:[#allocation5 + $0x10] sm:$0xff] 0.0
    %52 = vst [vmem:[#allocation5 + $0x18] sm:$0xff] 0.0
    %v53 = vld [vmem:[%s1] sm:$0xf]
    %v54 = vld [vmem:[%s1 + $0x4] sm:$0xf]
    %v55 = vld [vmem:[%s1 + $0x8] sm:$0xf]
    %v56 = vld [vmem:[%s1 + $0xc] sm:$0xf]
    %v57 = vld [vmem:[%s1 + $0x10] sm:$0xf]
    %v58 = vld [vmem:[%s1 + $0x14] sm:$0xf]
    %v59 = vld [vmem:[%s1 + $0x18] sm:$0xf]
    %v60 = vld [vmem:[%s1 + $0x1c] sm:$0xf]
    %v61 = vld [vmem:[%s1 + $0x20] sm:$0xf]
    %v62 = vld [vmem:[%s1 + $0x24] sm:$0xf]
    %v63 = vld [vmem:[%s1 + $0x28] sm:$0xf]
    %v64 = vld [vmem:[%s1 + $0x2c] sm:$0xf]
    %v65 = vld [vmem:[%s1 + $0x30] sm:$0xf]
    %v66 = vld [vmem:[%s1 + $0x34] sm:$0xf]
    %v67 = vld [vmem:[%s1 + $0x38] sm:$0xf]
    %v68 = vld [vmem:[%s1 + $0x3c] sm:$0xf]
    %v69 = vld [vmem:[%s2] sm:$0xf]
    %v70 = vld [vmem:[%s2 + $0x4] sm:$0xf]
    %v71 = vld [vmem:[%s2 + $0x8] sm:$0xf]
    %v72 = vld [vmem:[%s2 + $0xc] sm:$0xf]
    %v73 = vld [vmem:[%s2 + $0x10] sm:$0xf]
    %v74 = vld [vmem:[%s2 + $0x14] sm:$0xf]
    %v75 = vld [vmem:[%s2 + $0x18] sm:$0xf]
    %v76 = vld [vmem:[%s2 + $0x1c] sm:$0xf]
    %v77 = vld [vmem:[%s2 + $0x20] sm:$0xf]
    %v78 = vld [vmem:[%s2 + $0x24] sm:$0xf]
    %v79 = vld [vmem:[%s2 + $0x28] sm:$0xf]
    %v80 = vld [vmem:[%s2 + $0x2c] sm:$0xf]
    %v81 = vld [vmem:[%s2 + $0x30] sm:$0xf]
    %v82 = vld [vmem:[%s2 + $0x34] sm:$0xf]
    %v83 = vld [vmem:[%s2 + $0x38] sm:$0xf]
    %v84 = vld [vmem:[%s2 + $0x3c] sm:$0xf]
    %v85 = vld [vmem:[%s4] sm:$0xf]
    %v86 = vld [vmem:[%s4 + $0x4] sm:$0xf]
    %v87 = vld [vmem:[%s4 + $0x8] sm:$0xf]
    %v88 = vld [vmem:[%s4 + $0xc] sm:$0xf]
    %v89 = vld [vmem:[%s4 + $0x10] sm:$0xf]
    %v90 = vld [vmem:[%s4 + $0x14] sm:$0xf]
    %v91 = vld [vmem:[%s4 + $0x18] sm:$0xf]
    %v92 = vld [vmem:[%s4 + $0x1c] sm:$0xf]
    %v93 = vld [vmem:[%s4 + $0x20] sm:$0xf]
    %v94 = vld [vmem:[%s4 + $0x24] sm:$0xf]
    %v95 = vld [vmem:[%s4 + $0x28] sm:$0xf]
    %v96 = vld [vmem:[%s4 + $0x2c] sm:$0xf]
    %v97 = vld [vmem:[%s4 + $0x30] sm:$0xf]
    %v98 = vld [vmem:[%s4 + $0x34] sm:$0xf]
    %v99 = vld [vmem:[%s4 + $0x38] sm:$0xf]
    %v100 = vld [vmem:[%s4 + $0x3c] sm:$0xf]
    %v101 = vld [vmem:[%s5] sm:$0xf]
    %v102 = vld [vmem:[%s5 + $0x4] sm:$0xf]
    %v103 = vld [vmem:[%s5 + $0x8] sm:$0xf]
    %v104 = vld [vmem:[%s5 + $0xc] sm:$0xf]
    %v105 = vld [vmem:[%s5 + $0x10] sm:$0xf]
    %v106 = vld [vmem:[%s5 + $0x14] sm:$0xf]
    %v107 = vld [vmem:[%s5 + $0x18] sm:$0xf]
    %v108 = vld [vmem:[%s5 + $0x1c] sm:$0xf]
    %v109 = vld [vmem:[%s5 + $0x20] sm:$0xf]
    %v110 = vld [vmem:[%s5 + $0x24] sm:$0xf]
    %v111 = vld [vmem:[%s5 + $0x28] sm:$0xf]
    %v112 = vld [vmem:[%s5 + $0x2c] sm:$0xf]
    %v113 = vld [vmem:[%s5 + $0x30] sm:$0xf]
    %v114 = vld [vmem:[%s5 + $0x34] sm:$0xf]
    %v115 = vld [vmem:[%s5 + $0x38] sm:$0xf]
    %v116 = vld [vmem:[%s5 + $0x3c] sm:$0xf]
    %v117 = vld [vmem:[%s7] sm:$0xf]
    %v118 = vld [vmem:[%s7 + $0x4] sm:$0xf]
    %v119 = vld [vmem:[%s7 + $0x8] sm:$0xf]
    %v120 = vld [vmem:[%s7 + $0xc] sm:$0xf]
    %v121 = vld [vmem:[%s8] sm:$0xf]
    %v122 = vld [vmem:[%s8 + $0x4] sm:$0xf]
    %v123 = vld [vmem:[%s8 + $0x8] sm:$0xf]
    %v124 = vld [vmem:[%s8 + $0xc] sm:$0xf]
    %v125 = vld [vmem:[%s3] sm:$0xff]
    %v126 = vld [vmem:[%s3 + $0x8] sm:$0xff]
    %v127 = vld [vmem:[%s3 + $0x10] sm:$0xff]
    %v128 = vld [vmem:[%s3 + $0x18] sm:$0xff]
    %v129 = vld [vmem:[%s3 + $0x20] sm:$0xff]
    %v130 = vld [vmem:[%s3 + $0x28] sm:$0xff]
    %v131 = vld [vmem:[%s3 + $0x30] sm:$0xff]
    %v132 = vld [vmem:[%s3 + $0x38] sm:$0xff]
    %v133 = vld [vmem:[%s3 + $0x40] sm:$0xff]
    %v134 = vld [vmem:[%s3 + $0x48] sm:$0xff]
    %v135 = vld [vmem:[%s3 + $0x50] sm:$0xff]
    %v136 = vld [vmem:[%s3 + $0x58] sm:$0xff]
    %v137 = vld [vmem:[%s3 + $0x60] sm:$0xff]
    %v138 = vld [vmem:[%s3 + $0x68] sm:$0xff]
    %v139 = vld [vmem:[%s3 + $0x70] sm:$0xff]
    %v140 = vld [vmem:[%s3 + $0x78] sm:$0xff]
    %142 = vset.pattern.permute.xlu0 0
    %143 = vperm.xlu0 %142, %v125
    %v144 = vpop.permute.xlu0 %143
    %147 = vset.pattern.permute.xlu0 0
    %148 = vperm.xlu0 %147, %v126
    %v149 = vpop.permute.xlu0 %148
    %152 = vset.pattern.permute.xlu0 0
    %153 = vperm.xlu0 %152, %v127
    %v154 = vpop.permute.xlu0 %153
    %157 = vset.pattern.permute.xlu0 0
    %158 = vperm.xlu0 %157, %v128
    %v159 = vpop.permute.xlu0 %158
    %162 = vset.pattern.permute.xlu0 0
    %163 = vperm.xlu0 %162, %v129
    %v164 = vpop.permute.xlu0 %163
    %167 = vset.pattern.permute.xlu0 0
    %168 = vperm.xlu0 %167, %v130
    %v169 = vpop.permute.xlu0 %168
    %172 = vset.pattern.permute.xlu0 0
    %173 = vperm.xlu0 %172, %v131
    %v174 = vpop.permute.xlu0 %173
    %177 = vset.pattern.permute.xlu0 0
    %178 = vperm.xlu0 %177, %v132
    %v179 = vpop.permute.xlu0 %178
    %182 = vset.pattern.permute.xlu0 0
    %183 = vperm.xlu0 %182, %v133
    %v184 = vpop.permute.xlu0 %183
    %187 = vset.pattern.permute.xlu0 0
    %188 = vperm.xlu0 %187, %v134
    %v189 = vpop.permute.xlu0 %188
    %192 = vset.pattern.permute.xlu0 0
    %193 = vperm.xlu0 %192, %v135
    %v194 = vpop.permute.xlu0 %193
    %197 = vset.pattern.permute.xlu0 0
    %198 = vperm.xlu0 %197, %v136
    %v199 = vpop.permute.xlu0 %198
    %202 = vset.pattern.permute.xlu0 0
    %203 = vperm.xlu0 %202, %v137
    %v204 = vpop.permute.xlu0 %203
    %207 = vset.pattern.permute.xlu0 0
    %208 = vperm.xlu0 %207, %v138
    %v209 = vpop.permute.xlu0 %208
    %212 = vset.pattern.permute.xlu0 0
    %213 = vperm.xlu0 %212, %v139
    %v214 = vpop.permute.xlu0 %213
    %217 = vset.pattern.permute.xlu0 0
    %218 = vperm.xlu0 %217, %v140
    %v219 = vpop.permute.xlu0 %218
    %v221 = vld [vmem:[%s6] sm:$0xff]
    %v222 = vld [vmem:[%s6 + $0x8] sm:$0xff]
    %v223 = vld [vmem:[%s6 + $0x10] sm:$0xff]
    %v224 = vld [vmem:[%s6 + $0x18] sm:$0xff]
    %v225 = vld [vmem:[%s6 + $0x20] sm:$0xff]
    %v226 = vld [vmem:[%s6 + $0x28] sm:$0xff]
    %v227 = vld [vmem:[%s6 + $0x30] sm:$0xff]
    %v228 = vld [vmem:[%s6 + $0x38] sm:$0xff]
    %v229 = vld [vmem:[%s6 + $0x40] sm:$0xff]
    %v230 = vld [vmem:[%s6 + $0x48] sm:$0xff]
    %v231 = vld [vmem:[%s6 + $0x50] sm:$0xff]
    %v232 = vld [vmem:[%s6 + $0x58] sm:$0xff]
    %v233 = vld [vmem:[%s6 + $0x60] sm:$0xff]
    %v234 = vld [vmem:[%s6 + $0x68] sm:$0xff]
    %v235 = vld [vmem:[%s6 + $0x70] sm:$0xff]
    %v236 = vld [vmem:[%s6 + $0x78] sm:$0xff]
    %238 = vset.pattern.permute.xlu0 0
    %239 = vperm.xlu0 %238, %v221
    %v240 = vpop.permute.xlu0 %239
    %243 = vset.pattern.permute.xlu0 0
    %244 = vperm.xlu0 %243, %v222
    %v245 = vpop.permute.xlu0 %244
    %248 = vset.pattern.permute.xlu0 0
    %249 = vperm.xlu0 %248, %v223
    %v250 = vpop.permute.xlu0 %249
    %253 = vset.pattern.permute.xlu0 0
    %254 = vperm.xlu0 %253, %v224
    %v255 = vpop.permute.xlu0 %254
    %258 = vset.pattern.permute.xlu0 0
    %259 = vperm.xlu0 %258, %v225
    %v260 = vpop.permute.xlu0 %259
    %263 = vset.pattern.permute.xlu0 0
    %264 = vperm.xlu0 %263, %v226
    %v265 = vpop.permute.xlu0 %264
    %268 = vset.pattern.permute.xlu0 0
    %269 = vperm.xlu0 %268, %v227
    %v270 = vpop.permute.xlu0 %269
    %273 = vset.pattern.permute.xlu0 0
    %274 = vperm.xlu0 %273, %v228
    %v275 = vpop.permute.xlu0 %274
    %278 = vset.pattern.permute.xlu0 0
    %279 = vperm.xlu0 %278, %v229
    %v280 = vpop.permute.xlu0 %279
    %283 = vset.pattern.permute.xlu0 0
    %284 = vperm.xlu0 %283, %v230
    %v285 = vpop.permute.xlu0 %284
    %288 = vset.pattern.permute.xlu0 0
    %289 = vperm.xlu0 %288, %v231
    %v290 = vpop.permute.xlu0 %289
    %293 = vset.pattern.permute.xlu0 0
    %294 = vperm.xlu0 %293, %v232
    %v295 = vpop.permute.xlu0 %294
    %298 = vset.pattern.permute.xlu0 0
    %299 = vperm.xlu0 %298, %v233
    %v300 = vpop.permute.xlu0 %299
    %303 = vset.pattern.permute.xlu0 0
    %304 = vperm.xlu0 %303, %v234
    %v305 = vpop.permute.xlu0 %304
    %308 = vset.pattern.permute.xlu0 0
    %309 = vperm.xlu0 %308, %v235
    %v310 = vpop.permute.xlu0 %309
    %313 = vset.pattern.permute.xlu0 0
    %314 = vperm.xlu0 %313, %v236
    %v315 = vpop.permute.xlu0 %314
    %v317 = vld [vmem:[%s9] sm:$0xff]
    %v318 = vld [vmem:[%s9 + $0x8] sm:$0xff]
    %v319 = vld [vmem:[%s9 + $0x10] sm:$0xff]
    %v320 = vld [vmem:[%s9 + $0x18] sm:$0xff]
    %322 = vset.pattern.permute.xlu0 0
    %323 = vperm.xlu0 %322, %v317
    %v324 = vpop.permute.xlu0 %323
    %327 = vset.pattern.permute.xlu0 0
    %328 = vperm.xlu0 %327, %v318
    %v329 = vpop.permute.xlu0 %328
    %332 = vset.pattern.permute.xlu0 0
    %333 = vperm.xlu0 %332, %v319
    %v334 = vpop.permute.xlu0 %333
    %337 = vset.pattern.permute.xlu0 0
    %338 = vperm.xlu0 %337, %v320
    %v339 = vpop.permute.xlu0 %338
    %v341 = vld [vmem:[%s0] sm:$0x3]
    %v358 = vunpack.c.l.b16 %v53
    %v359 = vunpack.c.l.b16 %v54
    %v360 = vunpack.c.l.b16 %v55
    %v361 = vunpack.c.l.b16 %v56
    %v362 = vunpack.c.l.b16 %v57
    %v363 = vunpack.c.l.b16 %v58
    %v364 = vunpack.c.l.b16 %v59
    %v365 = vunpack.c.l.b16 %v60
    %v366 = vunpack.c.l.b16 %v61
    %v367 = vunpack.c.l.b16 %v62
    %v368 = vunpack.c.l.b16 %v63
    %v369 = vunpack.c.l.b16 %v64
    %v370 = vunpack.c.l.b16 %v65
    %v371 = vunpack.c.l.b16 %v66
    %v372 = vunpack.c.l.b16 %v67
    %v373 = vunpack.c.l.b16 %v68
    %v374 = vpack.c.b16 %v359, %v358
    %v375 = vpack.c.b16 %v361, %v360
    %v376 = vpack.c.b16 %v363, %v362
    %v377 = vpack.c.b16 %v365, %v364
    %v378 = vpack.c.b16 %v367, %v366
    %v379 = vpack.c.b16 %v369, %v368
    %v380 = vpack.c.b16 %v371, %v370
    %v381 = vpack.c.b16 %v373, %v372
    %vm382 = vcmask 31744
    %v384 = vsel %vm382, %v374, 0
    %v387 = vsel %vm382, %v375, 0
    %v390 = vsel %vm382, %v376, 0
    %v393 = vsel %vm382, %v377, 0
    %v396 = vsel %vm382, %v378, 0
    %v399 = vsel %vm382, %v379, 0
    %v402 = vsel %vm382, %v380, 0
    %v405 = vsel %vm382, %v381, 0
    %vm407 = vcmask 1041408
    %v409 = vsel %vm407, %v341, 0
    %411 = vmatpush.bf16.msra.mxu0 0
    %412 = vmatpush.bf16.msra.mxu0 0
    %413 = vmatpush.bf16.msra.mxu0 0
    %414 = vmatpush.bf16.msra.mxu0 0
    %415 = vmatpush.bf16.msra.mxu0 0
    %416 = vmatpush.bf16.msra.mxu0 0
    %417 = vmatpush.bf16.msra.mxu0 0
    %418 = vmatpush.bf16.msra.mxu0 %v409
    %419 = vmatmul.bf16.gmra.mxu0 %v384
    %v420 = vpop.f32.mrf.mxu0
    %v421 = vadd.f32 %v144, %v420
    %v422 = vpop.f32.mrf.mxu0
    %v423 = vadd.f32 %v149, %v422
    %424 = vmatmul.bf16.gmra.mxu0 %v387
    %v425 = vpop.f32.mrf.mxu0
    %v426 = vadd.f32 %v154, %v425
    %v427 = vpop.f32.mrf.mxu0
    %v428 = vadd.f32 %v159, %v427
    %429 = vmatmul.bf16.gmra.mxu0 %v390
    %v430 = vpop.f32.mrf.mxu0
    %v431 = vadd.f32 %v164, %v430
    %v432 = vpop.f32.mrf.mxu0
    %v433 = vadd.f32 %v169, %v432
    %434 = vmatmul.bf16.gmra.mxu0 %v393
    %v435 = vpop.f32.mrf.mxu0
    %v436 = vadd.f32 %v174, %v435
    %v437 = vpop.f32.mrf.mxu0
    %v438 = vadd.f32 %v179, %v437
    %439 = vmatmul.bf16.gmra.mxu0 %v396
    %v440 = vpop.f32.mrf.mxu0
    %v441 = vadd.f32 %v184, %v440
    %v442 = vpop.f32.mrf.mxu0
    %v443 = vadd.f32 %v189, %v442
    %444 = vmatmul.bf16.gmra.mxu0 %v399
    %v445 = vpop.f32.mrf.mxu0
    %v446 = vadd.f32 %v194, %v445
    %v447 = vpop.f32.mrf.mxu0
    %v448 = vadd.f32 %v199, %v447
    %449 = vmatmul.bf16.gmra.mxu0 %v402
    %v450 = vpop.f32.mrf.mxu0
    %v451 = vadd.f32 %v204, %v450
    %v452 = vpop.f32.mrf.mxu0
    %v453 = vadd.f32 %v209, %v452
    %454 = vmatmul.bf16.gmra.mxu0 %v405
    %v455 = vpop.f32.mrf.mxu0
    %v456 = vadd.f32 %v214, %v455
    %v457 = vpop.f32.mrf.mxu0
    %v458 = vadd.f32 %v219, %v457
    %459 = vdwg.mxu0
    %460 = vst [vmem:[#allocation6] sm:$0xff] %v421
    %461 = vst [vmem:[#allocation6 + $0x8] sm:$0xff] %v423
    %462 = vst [vmem:[#allocation6 + $0x10] sm:$0xff] %v426
    %463 = vst [vmem:[#allocation6 + $0x18] sm:$0xff] %v428
    %464 = vst [vmem:[#allocation6 + $0x20] sm:$0xff] %v431
    %465 = vst [vmem:[#allocation6 + $0x28] sm:$0xff] %v433
    %466 = vst [vmem:[#allocation6 + $0x30] sm:$0xff] %v436
    %467 = vst [vmem:[#allocation6 + $0x38] sm:$0xff] %v438
    %468 = vst [vmem:[#allocation6 + $0x40] sm:$0xff] %v441
    %469 = vst [vmem:[#allocation6 + $0x48] sm:$0xff] %v443
    %470 = vst [vmem:[#allocation6 + $0x50] sm:$0xff] %v446
    %471 = vst [vmem:[#allocation6 + $0x58] sm:$0xff] %v448
    %472 = vst [vmem:[#allocation6 + $0x60] sm:$0xff] %v451
    %473 = vst [vmem:[#allocation6 + $0x68] sm:$0xff] %v453
    %474 = vst [vmem:[#allocation6 + $0x70] sm:$0xff] %v456
    %475 = vst [vmem:[#allocation6 + $0x78] sm:$0xff] %v458
    %v492 = vunpack.c.l.b16 %v85
    %v493 = vunpack.c.l.b16 %v86
    %v494 = vunpack.c.l.b16 %v87
    %v495 = vunpack.c.l.b16 %v88
    %v496 = vunpack.c.l.b16 %v89
    %v497 = vunpack.c.l.b16 %v90
    %v498 = vunpack.c.l.b16 %v91
    %v499 = vunpack.c.l.b16 %v92
    %v500 = vunpack.c.l.b16 %v93
    %v501 = vunpack.c.l.b16 %v94
    %v502 = vunpack.c.l.b16 %v95
    %v503 = vunpack.c.l.b16 %v96
    %v504 = vunpack.c.l.b16 %v97
    %v505 = vunpack.c.l.b16 %v98
    %v506 = vunpack.c.l.b16 %v99
    %v507 = vunpack.c.l.b16 %v100
    %v508 = vpack.c.b16 %v493, %v492
    %v509 = vpack.c.b16 %v495, %v494
    %v510 = vpack.c.b16 %v497, %v496
    %v511 = vpack.c.b16 %v499, %v498
    %v512 = vpack.c.b16 %v501, %v500
    %v513 = vpack.c.b16 %v503, %v502
    %v514 = vpack.c.b16 %v505, %v504
    %v515 = vpack.c.b16 %v507, %v506
    %v517 = vsel %vm382, %v508, 0
    %v520 = vsel %vm382, %v509, 0
    %v523 = vsel %vm382, %v510, 0
    %v526 = vsel %vm382, %v511, 0
    %v529 = vsel %vm382, %v512, 0
    %v532 = vsel %vm382, %v513, 0
    %v535 = vsel %vm382, %v514, 0
    %v538 = vsel %vm382, %v515, 0
    %540 = vmatpush.bf16.msra.mxu0 0
    %541 = vmatpush.bf16.msra.mxu0 0
    %542 = vmatpush.bf16.msra.mxu0 0
    %543 = vmatpush.bf16.msra.mxu0 0
    %544 = vmatpush.bf16.msra.mxu0 0
    %545 = vmatpush.bf16.msra.mxu0 0
    %546 = vmatpush.bf16.msra.mxu0 0
    %547 = vmatpush.bf16.msra.mxu0 %v409
    %548 = vmatmul.bf16.gmra.mxu0 %v517
    %v549 = vpop.f32.mrf.mxu0
    %v550 = vadd.f32 %v240, %v549
    %v551 = vpop.f32.mrf.mxu0
    %v552 = vadd.f32 %v245, %v551
    %553 = vmatmul.bf16.gmra.mxu0 %v520
    %v554 = vpop.f32.mrf.mxu0
    %v555 = vadd.f32 %v250, %v554
    %v556 = vpop.f32.mrf.mxu0
    %v557 = vadd.f32 %v255, %v556
    %558 = vmatmul.bf16.gmra.mxu0 %v523
    %v559 = vpop.f32.mrf.mxu0
    %v560 = vadd.f32 %v260, %v559
    %v561 = vpop.f32.mrf.mxu0
    %v562 = vadd.f32 %v265, %v561
    %563 = vmatmul.bf16.gmra.mxu0 %v526
    %v564 = vpop.f32.mrf.mxu0
    %v565 = vadd.f32 %v270, %v564
    %v566 = vpop.f32.mrf.mxu0
    %v567 = vadd.f32 %v275, %v566
    %568 = vmatmul.bf16.gmra.mxu0 %v529
    %v569 = vpop.f32.mrf.mxu0
    %v570 = vadd.f32 %v280, %v569
    %v571 = vpop.f32.mrf.mxu0
    %v572 = vadd.f32 %v285, %v571
    %573 = vmatmul.bf16.gmra.mxu0 %v532
    %v574 = vpop.f32.mrf.mxu0
    %v575 = vadd.f32 %v290, %v574
    %v576 = vpop.f32.mrf.mxu0
    %v577 = vadd.f32 %v295, %v576
    %578 = vmatmul.bf16.gmra.mxu0 %v535
    %v579 = vpop.f32.mrf.mxu0
    %v580 = vadd.f32 %v300, %v579
    %v581 = vpop.f32.mrf.mxu0
    %v582 = vadd.f32 %v305, %v581
    %583 = vmatmul.bf16.gmra.mxu0 %v538
    %v584 = vpop.f32.mrf.mxu0
    %v585 = vadd.f32 %v310, %v584
    %v586 = vpop.f32.mrf.mxu0
    %v587 = vadd.f32 %v315, %v586
    %588 = vdwg.mxu0
    %589 = vst [vmem:[#allocation7] sm:$0xff] %v550
    %590 = vst [vmem:[#allocation7 + $0x8] sm:$0xff] %v552
    %591 = vst [vmem:[#allocation7 + $0x10] sm:$0xff] %v555
    %592 = vst [vmem:[#allocation7 + $0x18] sm:$0xff] %v557
    %593 = vst [vmem:[#allocation7 + $0x20] sm:$0xff] %v560
    %594 = vst [vmem:[#allocation7 + $0x28] sm:$0xff] %v562
    %595 = vst [vmem:[#allocation7 + $0x30] sm:$0xff] %v565
    %596 = vst [vmem:[#allocation7 + $0x38] sm:$0xff] %v567
    %597 = vst [vmem:[#allocation7 + $0x40] sm:$0xff] %v570
    %598 = vst [vmem:[#allocation7 + $0x48] sm:$0xff] %v572
    %599 = vst [vmem:[#allocation7 + $0x50] sm:$0xff] %v575
    %600 = vst [vmem:[#allocation7 + $0x58] sm:$0xff] %v577
    %601 = vst [vmem:[#allocation7 + $0x60] sm:$0xff] %v580
    %602 = vst [vmem:[#allocation7 + $0x68] sm:$0xff] %v582
    %603 = vst [vmem:[#allocation7 + $0x70] sm:$0xff] %v585
    %604 = vst [vmem:[#allocation7 + $0x78] sm:$0xff] %v587
    %s605 = scalar_lea.vmem %s0, 2
    %v606 = vld [vmem:[%s605] sm:$0x3]
    %v608 = vsel %vm407, %v606, 0
    %610 = vmatpush.bf16.msra.mxu0 0
    %611 = vmatpush.bf16.msra.mxu0 0
    %612 = vmatpush.bf16.msra.mxu0 0
    %613 = vmatpush.bf16.msra.mxu0 0
    %614 = vmatpush.bf16.msra.mxu0 0
    %615 = vmatpush.bf16.msra.mxu0 0
    %616 = vmatpush.bf16.msra.mxu0 0
    %617 = vmatpush.bf16.msra.mxu0 %v608
    %618 = vmatmul.bf16.gmra.mxu0 %v384
    %v619 = vpop.f32.mrf.mxu0
    %v620 = vadd.f32 %v144, %v619
    %v621 = vpop.f32.mrf.mxu0
    %v622 = vadd.f32 %v149, %v621
    %623 = vmatmul.bf16.gmra.mxu0 %v387
    %v624 = vpop.f32.mrf.mxu0
    %v625 = vadd.f32 %v154, %v624
    %v626 = vpop.f32.mrf.mxu0
    %v627 = vadd.f32 %v159, %v626
    %628 = vmatmul.bf16.gmra.mxu0 %v390
    %v629 = vpop.f32.mrf.mxu0
    %v630 = vadd.f32 %v164, %v629
    %v631 = vpop.f32.mrf.mxu0
    %v632 = vadd.f32 %v169, %v631
    %633 = vmatmul.bf16.gmra.mxu0 %v393
    %v634 = vpop.f32.mrf.mxu0
    %v635 = vadd.f32 %v174, %v634
    %v636 = vpop.f32.mrf.mxu0
    %v637 = vadd.f32 %v179, %v636
    %638 = vmatmul.bf16.gmra.mxu0 %v396
    %v639 = vpop.f32.mrf.mxu0
    %v640 = vadd.f32 %v184, %v639
    %v641 = vpop.f32.mrf.mxu0
    %v642 = vadd.f32 %v189, %v641
    %643 = vmatmul.bf16.gmra.mxu0 %v399
    %v644 = vpop.f32.mrf.mxu0
    %v645 = vadd.f32 %v194, %v644
    %v646 = vpop.f32.mrf.mxu0
    %v647 = vadd.f32 %v199, %v646
    %648 = vmatmul.bf16.gmra.mxu0 %v402
    %v649 = vpop.f32.mrf.mxu0
    %v650 = vadd.f32 %v204, %v649
    %v651 = vpop.f32.mrf.mxu0
    %v652 = vadd.f32 %v209, %v651
    %653 = vmatmul.bf16.gmra.mxu0 %v405
    %v654 = vpop.f32.mrf.mxu0
    %v655 = vadd.f32 %v214, %v654
    %v656 = vpop.f32.mrf.mxu0
    %v657 = vadd.f32 %v219, %v656
    %658 = vdwg.mxu0
    %s659 = scalar_lea.vmem [#allocation6], 128
    %660 = vst [vmem:[%s659] sm:$0xff] %v620
    %661 = vst [vmem:[%s659 + $0x8] sm:$0xff] %v622
    %662 = vst [vmem:[%s659 + $0x10] sm:$0xff] %v625
    %663 = vst [vmem:[%s659 + $0x18] sm:$0xff] %v627
    %664 = vst [vmem:[%s659 + $0x20] sm:$0xff] %v630
    %665 = vst [vmem:[%s659 + $0x28] sm:$0xff] %v632
    %666 = vst [vmem:[%s659 + $0x30] sm:$0xff] %v635
    %667 = vst [vmem:[%s659 + $0x38] sm:$0xff] %v637
    %668 = vst [vmem:[%s659 + $0x40] sm:$0xff] %v640
    %669 = vst [vmem:[%s659 + $0x48] sm:$0xff] %v642
    %670 = vst [vmem:[%s659 + $0x50] sm:$0xff] %v645
    %671 = vst [vmem:[%s659 + $0x58] sm:$0xff] %v647
    %672 = vst [vmem:[%s659 + $0x60] sm:$0xff] %v650
    %673 = vst [vmem:[%s659 + $0x68] sm:$0xff] %v652
    %674 = vst [vmem:[%s659 + $0x70] sm:$0xff] %v655
    %675 = vst [vmem:[%s659 + $0x78] sm:$0xff] %v657
    %676 = vmatpush.bf16.msra.mxu0 0
    %677 = vmatpush.bf16.msra.mxu0 0
    %678 = vmatpush.bf16.msra.mxu0 0
    %679 = vmatpush.bf16.msra.mxu0 0
    %680 = vmatpush.bf16.msra.mxu0 0
    %681 = vmatpush.bf16.msra.mxu0 0
    %682 = vmatpush.bf16.msra.mxu0 0
    %683 = vmatpush.bf16.msra.mxu0 %v608
    %684 = vmatmul.bf16.gmra.mxu0 %v517
    %v685 = vpop.f32.mrf.mxu0
    %v686 = vadd.f32 %v240, %v685
    %v687 = vpop.f32.mrf.mxu0
    %v688 = vadd.f32 %v245, %v687
    %689 = vmatmul.bf16.gmra.mxu0 %v520
    %v690 = vpop.f32.mrf.mxu0
    %v691 = vadd.f32 %v250, %v690
    %v692 = vpop.f32.mrf.mxu0
    %v693 = vadd.f32 %v255, %v692
    %694 = vmatmul.bf16.gmra.mxu0 %v523
    %v695 = vpop.f32.mrf.mxu0
    %v696 = vadd.f32 %v260, %v695
    %v697 = vpop.f32.mrf.mxu0
    %v698 = vadd.f32 %v265, %v697
    %699 = vmatmul.bf16.gmra.mxu0 %v526
    %v700 = vpop.f32.mrf.mxu0
    %v701 = vadd.f32 %v270, %v700
    %v702 = vpop.f32.mrf.mxu0
    %v703 = vadd.f32 %v275, %v702
    %704 = vmatmul.bf16.gmra.mxu0 %v529
    %v705 = vpop.f32.mrf.mxu0
    %v706 = vadd.f32 %v280, %v705
    %v707 = vpop.f32.mrf.mxu0
    %v708 = vadd.f32 %v285, %v707
    %709 = vmatmul.bf16.gmra.mxu0 %v532
    %v710 = vpop.f32.mrf.mxu0
    %v711 = vadd.f32 %v290, %v710
    %v712 = vpop.f32.mrf.mxu0
    %v713 = vadd.f32 %v295, %v712
    %714 = vmatmul.bf16.gmra.mxu0 %v535
    %v715 = vpop.f32.mrf.mxu0
    %v716 = vadd.f32 %v300, %v715
    %v717 = vpop.f32.mrf.mxu0
    %v718 = vadd.f32 %v305, %v717
    %719 = vmatmul.bf16.gmra.mxu0 %v538
    %v720 = vpop.f32.mrf.mxu0
    %v721 = vadd.f32 %v310, %v720
    %v722 = vpop.f32.mrf.mxu0
    %v723 = vadd.f32 %v315, %v722
    %724 = vdwg.mxu0
    %s725 = scalar_lea.vmem [#allocation7], 128
    %726 = vst [vmem:[%s725] sm:$0xff] %v686
    %727 = vst [vmem:[%s725 + $0x8] sm:$0xff] %v688
    %728 = vst [vmem:[%s725 + $0x10] sm:$0xff] %v691
    %729 = vst [vmem:[%s725 + $0x18] sm:$0xff] %v693
    %730 = vst [vmem:[%s725 + $0x20] sm:$0xff] %v696
    %731 = vst [vmem:[%s725 + $0x28] sm:$0xff] %v698
    %732 = vst [vmem:[%s725 + $0x30] sm:$0xff] %v701
    %733 = vst [vmem:[%s725 + $0x38] sm:$0xff] %v703
    %734 = vst [vmem:[%s725 + $0x40] sm:$0xff] %v706
    %735 = vst [vmem:[%s725 + $0x48] sm:$0xff] %v708
    %736 = vst [vmem:[%s725 + $0x50] sm:$0xff] %v711
    %737 = vst [vmem:[%s725 + $0x58] sm:$0xff] %v713
    %738 = vst [vmem:[%s725 + $0x60] sm:$0xff] %v716
    %739 = vst [vmem:[%s725 + $0x68] sm:$0xff] %v718
    %740 = vst [vmem:[%s725 + $0x70] sm:$0xff] %v721
    %741 = vst [vmem:[%s725 + $0x78] sm:$0xff] %v723
    %s742 = scalar_lea.vmem %s0, 4
    %v743 = vld [vmem:[%s742] sm:$0x3]
    %v745 = vsel %vm407, %v743, 0
    %747 = vmatpush.bf16.msra.mxu0 0
    %748 = vmatpush.bf16.msra.mxu0 0
    %749 = vmatpush.bf16.msra.mxu0 0
    %750 = vmatpush.bf16.msra.mxu0 0
    %751 = vmatpush.bf16.msra.mxu0 0
    %752 = vmatpush.bf16.msra.mxu0 0
    %753 = vmatpush.bf16.msra.mxu0 0
    %754 = vmatpush.bf16.msra.mxu0 %v745
    %755 = vmatmul.bf16.gmra.mxu0 %v384
    %v756 = vpop.f32.mrf.mxu0
    %v757 = vadd.f32 %v144, %v756
    %v758 = vpop.f32.mrf.mxu0
    %v759 = vadd.f32 %v149, %v758
    %760 = vmatmul.bf16.gmra.mxu0 %v387
    %v761 = vpop.f32.mrf.mxu0
    %v762 = vadd.f32 %v154, %v761
    %v763 = vpop.f32.mrf.mxu0
    %v764 = vadd.f32 %v159, %v763
    %765 = vmatmul.bf16.gmra.mxu0 %v390
    %v766 = vpop.f32.mrf.mxu0
    %v767 = vadd.f32 %v164, %v766
    %v768 = vpop.f32.mrf.mxu0
    %v769 = vadd.f32 %v169, %v768
    %770 = vmatmul.bf16.gmra.mxu0 %v393
    %v771 = vpop.f32.mrf.mxu0
    %v772 = vadd.f32 %v174, %v771
    %v773 = vpop.f32.mrf.mxu0
    %v774 = vadd.f32 %v179, %v773
    %775 = vmatmul.bf16.gmra.mxu0 %v396
    %v776 = vpop.f32.mrf.mxu0
    %v777 = vadd.f32 %v184, %v776
    %v778 = vpop.f32.mrf.mxu0
    %v779 = vadd.f32 %v189, %v778
    %780 = vmatmul.bf16.gmra.mxu0 %v399
    %v781 = vpop.f32.mrf.mxu0
    %v782 = vadd.f32 %v194, %v781
    %v783 = vpop.f32.mrf.mxu0
    %v784 = vadd.f32 %v199, %v783
    %785 = vmatmul.bf16.gmra.mxu0 %v402
    %v786 = vpop.f32.mrf.mxu0
    %v787 = vadd.f32 %v204, %v786
    %v788 = vpop.f32.mrf.mxu0
    %v789 = vadd.f32 %v209, %v788
    %790 = vmatmul.bf16.gmra.mxu0 %v405
    %v791 = vpop.f32.mrf.mxu0
    %v792 = vadd.f32 %v214, %v791
    %v793 = vpop.f32.mrf.mxu0
    %v794 = vadd.f32 %v219, %v793
    %795 = vdwg.mxu0
    %s796 = scalar_lea.vmem [#allocation6], 256
    %797 = vst [vmem:[%s796] sm:$0xff] %v757
    %798 = vst [vmem:[%s796 + $0x8] sm:$0xff] %v759
    %799 = vst [vmem:[%s796 + $0x10] sm:$0xff] %v762
    %800 = vst [vmem:[%s796 + $0x18] sm:$0xff] %v764
    %801 = vst [vmem:[%s796 + $0x20] sm:$0xff] %v767
    %802 = vst [vmem:[%s796 + $0x28] sm:$0xff] %v769
    %803 = vst [vmem:[%s796 + $0x30] sm:$0xff] %v772
    %804 = vst [vmem:[%s796 + $0x38] sm:$0xff] %v774
    %805 = vst [vmem:[%s796 + $0x40] sm:$0xff] %v777
    %806 = vst [vmem:[%s796 + $0x48] sm:$0xff] %v779
    %807 = vst [vmem:[%s796 + $0x50] sm:$0xff] %v782
    %808 = vst [vmem:[%s796 + $0x58] sm:$0xff] %v784
    %809 = vst [vmem:[%s796 + $0x60] sm:$0xff] %v787
    %810 = vst [vmem:[%s796 + $0x68] sm:$0xff] %v789
    %811 = vst [vmem:[%s796 + $0x70] sm:$0xff] %v792
    %812 = vst [vmem:[%s796 + $0x78] sm:$0xff] %v794
    %813 = vmatpush.bf16.msra.mxu0 0
    %814 = vmatpush.bf16.msra.mxu0 0
    %815 = vmatpush.bf16.msra.mxu0 0
    %816 = vmatpush.bf16.msra.mxu0 0
    %817 = vmatpush.bf16.msra.mxu0 0
    %818 = vmatpush.bf16.msra.mxu0 0
    %819 = vmatpush.bf16.msra.mxu0 0
    %820 = vmatpush.bf16.msra.mxu0 %v745
    %821 = vmatmul.bf16.gmra.mxu0 %v517
    %v822 = vpop.f32.mrf.mxu0
    %v823 = vadd.f32 %v240, %v822
    %v824 = vpop.f32.mrf.mxu0
    %v825 = vadd.f32 %v245, %v824
    %826 = vmatmul.bf16.gmra.mxu0 %v520
    %v827 = vpop.f32.mrf.mxu0
    %v828 = vadd.f32 %v250, %v827
    %v829 = vpop.f32.mrf.mxu0
    %v830 = vadd.f32 %v255, %v829
    %831 = vmatmul.bf16.gmra.mxu0 %v523
    %v832 = vpop.f32.mrf.mxu0
    %v833 = vadd.f32 %v260, %v832
    %v834 = vpop.f32.mrf.mxu0
    %v835 = vadd.f32 %v265, %v834
    %836 = vmatmul.bf16.gmra.mxu0 %v526
    %v837 = vpop.f32.mrf.mxu0
    %v838 = vadd.f32 %v270, %v837
    %v839 = vpop.f32.mrf.mxu0
    %v840 = vadd.f32 %v275, %v839
    %841 = vmatmul.bf16.gmra.mxu0 %v529
    %v842 = vpop.f32.mrf.mxu0
    %v843 = vadd.f32 %v280, %v842
    %v844 = vpop.f32.mrf.mxu0
    %v845 = vadd.f32 %v285, %v844
    %846 = vmatmul.bf16.gmra.mxu0 %v532
    %v847 = vpop.f32.mrf.mxu0
    %v848 = vadd.f32 %v290, %v847
    %v849 = vpop.f32.mrf.mxu0
    %v850 = vadd.f32 %v295, %v849
    %851 = vmatmul.bf16.gmra.mxu0 %v535
    %v852 = vpop.f32.mrf.mxu0
    %v853 = vadd.f32 %v300, %v852
    %v854 = vpop.f32.mrf.mxu0
    %v855 = vadd.f32 %v305, %v854
    %856 = vmatmul.bf16.gmra.mxu0 %v538
    %v857 = vpop.f32.mrf.mxu0
    %v858 = vadd.f32 %v310, %v857
    %v859 = vpop.f32.mrf.mxu0
    %v860 = vadd.f32 %v315, %v859
    %861 = vdwg.mxu0
    %s862 = scalar_lea.vmem [#allocation7], 256
    %863 = vst [vmem:[%s862] sm:$0xff] %v823
    %864 = vst [vmem:[%s862 + $0x8] sm:$0xff] %v825
    %865 = vst [vmem:[%s862 + $0x10] sm:$0xff] %v828
    %866 = vst [vmem:[%s862 + $0x18] sm:$0xff] %v830
    %867 = vst [vmem:[%s862 + $0x20] sm:$0xff] %v833
    %868 = vst [vmem:[%s862 + $0x28] sm:$0xff] %v835
    %869 = vst [vmem:[%s862 + $0x30] sm:$0xff] %v838
    %870 = vst [vmem:[%s862 + $0x38] sm:$0xff] %v840
    %871 = vst [vmem:[%s862 + $0x40] sm:$0xff] %v843
    %872 = vst [vmem:[%s862 + $0x48] sm:$0xff] %v845
    %873 = vst [vmem:[%s862 + $0x50] sm:$0xff] %v848
    %874 = vst [vmem:[%s862 + $0x58] sm:$0xff] %v850
    %875 = vst [vmem:[%s862 + $0x60] sm:$0xff] %v853
    %876 = vst [vmem:[%s862 + $0x68] sm:$0xff] %v855
    %877 = vst [vmem:[%s862 + $0x70] sm:$0xff] %v858
    %878 = vst [vmem:[%s862 + $0x78] sm:$0xff] %v860
    %s879 = scalar_lea.vmem %s0, 6
    %v880 = vld [vmem:[%s879] sm:$0x3]
    %v882 = vsel %vm407, %v880, 0
    %884 = vmatpush.bf16.msra.mxu0 0
    %885 = vmatpush.bf16.msra.mxu0 0
    %886 = vmatpush.bf16.msra.mxu0 0
    %887 = vmatpush.bf16.msra.mxu0 0
    %888 = vmatpush.bf16.msra.mxu0 0
    %889 = vmatpush.bf16.msra.mxu0 0
    %890 = vmatpush.bf16.msra.mxu0 0
    %891 = vmatpush.bf16.msra.mxu0 %v882
    %892 = vmatmul.bf16.gmra.mxu0 %v384
    %v893 = vpop.f32.mrf.mxu0
    %v894 = vadd.f32 %v144, %v893
    %v895 = vpop.f32.mrf.mxu0
    %v896 = vadd.f32 %v149, %v895
    %897 = vmatmul.bf16.gmra.mxu0 %v387
    %v898 = vpop.f32.mrf.mxu0
    %v899 = vadd.f32 %v154, %v898
    %v900 = vpop.f32.mrf.mxu0
    %v901 = vadd.f32 %v159, %v900
    %902 = vmatmul.bf16.gmra.mxu0 %v390
    %v903 = vpop.f32.mrf.mxu0
    %v904 = vadd.f32 %v164, %v903
    %v905 = vpop.f32.mrf.mxu0
    %v906 = vadd.f32 %v169, %v905
    %907 = vmatmul.bf16.gmra.mxu0 %v393
    %v908 = vpop.f32.mrf.mxu0
    %v909 = vadd.f32 %v174, %v908
    %v910 = vpop.f32.mrf.mxu0
    %v911 = vadd.f32 %v179, %v910
    %912 = vmatmul.bf16.gmra.mxu0 %v396
    %v913 = vpop.f32.mrf.mxu0
    %v914 = vadd.f32 %v184, %v913
    %v915 = vpop.f32.mrf.mxu0
    %v916 = vadd.f32 %v189, %v915
    %917 = vmatmul.bf16.gmra.mxu0 %v399
    %v918 = vpop.f32.mrf.mxu0
    %v919 = vadd.f32 %v194, %v918
    %v920 = vpop.f32.mrf.mxu0
    %v921 = vadd.f32 %v199, %v920
    %922 = vmatmul.bf16.gmra.mxu0 %v402
    %v923 = vpop.f32.mrf.mxu0
    %v924 = vadd.f32 %v204, %v923
    %v925 = vpop.f32.mrf.mxu0
    %v926 = vadd.f32 %v209, %v925
    %927 = vmatmul.bf16.gmra.mxu0 %v405
    %v928 = vpop.f32.mrf.mxu0
    %v929 = vadd.f32 %v214, %v928
    %v930 = vpop.f32.mrf.mxu0
    %v931 = vadd.f32 %v219, %v930
    %932 = vdwg.mxu0
    %s933 = scalar_lea.vmem [#allocation6], 384
    %934 = vst [vmem:[%s933] sm:$0xff] %v894
    %935 = vst [vmem:[%s933 + $0x8] sm:$0xff] %v896
    %936 = vst [vmem:[%s933 + $0x10] sm:$0xff] %v899
    %937 = vst [vmem:[%s933 + $0x18] sm:$0xff] %v901
    %938 = vst [vmem:[%s933 + $0x20] sm:$0xff] %v904
    %939 = vst [vmem:[%s933 + $0x28] sm:$0xff] %v906
    %940 = vst [vmem:[%s933 + $0x30] sm:$0xff] %v909
    %941 = vst [vmem:[%s933 + $0x38] sm:$0xff] %v911
    %942 = vst [vmem:[%s933 + $0x40] sm:$0xff] %v914
    %943 = vst [vmem:[%s933 + $0x48] sm:$0xff] %v916
    %944 = vst [vmem:[%s933 + $0x50] sm:$0xff] %v919
    %945 = vst [vmem:[%s933 + $0x58] sm:$0xff] %v921
    %946 = vst [vmem:[%s933 + $0x60] sm:$0xff] %v924
    %947 = vst [vmem:[%s933 + $0x68] sm:$0xff] %v926
    %948 = vst [vmem:[%s933 + $0x70] sm:$0xff] %v929
    %949 = vst [vmem:[%s933 + $0x78] sm:$0xff] %v931
    %950 = vmatpush.bf16.msra.mxu0 0
    %951 = vmatpush.bf16.msra.mxu0 0
    %952 = vmatpush.bf16.msra.mxu0 0
    %953 = vmatpush.bf16.msra.mxu0 0
    %954 = vmatpush.bf16.msra.mxu0 0
    %955 = vmatpush.bf16.msra.mxu0 0
    %956 = vmatpush.bf16.msra.mxu0 0
    %957 = vmatpush.bf16.msra.mxu0 %v882
    %958 = vmatmul.bf16.gmra.mxu0 %v517
    %v959 = vpop.f32.mrf.mxu0
    %v960 = vadd.f32 %v240, %v959
    %v961 = vpop.f32.mrf.mxu0
    %v962 = vadd.f32 %v245, %v961
    %963 = vmatmul.bf16.gmra.mxu0 %v520
    %v964 = vpop.f32.mrf.mxu0
    %v965 = vadd.f32 %v250, %v964
    %v966 = vpop.f32.mrf.mxu0
    %v967 = vadd.f32 %v255, %v966
    %968 = vmatmul.bf16.gmra.mxu0 %v523
    %v969 = vpop.f32.mrf.mxu0
    %v970 = vadd.f32 %v260, %v969
    %v971 = vpop.f32.mrf.mxu0
    %v972 = vadd.f32 %v265, %v971
    %973 = vmatmul.bf16.gmra.mxu0 %v526
    %v974 = vpop.f32.mrf.mxu0
    %v975 = vadd.f32 %v270, %v974
    %v976 = vpop.f32.mrf.mxu0
    %v977 = vadd.f32 %v275, %v976
    %978 = vmatmul.bf16.gmra.mxu0 %v529
    %v979 = vpop.f32.mrf.mxu0
    %v980 = vadd.f32 %v280, %v979
    %v981 = vpop.f32.mrf.mxu0
    %v982 = vadd.f32 %v285, %v981
    %983 = vmatmul.bf16.gmra.mxu0 %v532
    %v984 = vpop.f32.mrf.mxu0
    %v985 = vadd.f32 %v290, %v984
    %v986 = vpop.f32.mrf.mxu0
    %v987 = vadd.f32 %v295, %v986
    %988 = vmatmul.bf16.gmra.mxu0 %v535
    %v989 = vpop.f32.mrf.mxu0
    %v990 = vadd.f32 %v300, %v989
    %v991 = vpop.f32.mrf.mxu0
    %v992 = vadd.f32 %v305, %v991
    %993 = vmatmul.bf16.gmra.mxu0 %v538
    %v994 = vpop.f32.mrf.mxu0
    %v995 = vadd.f32 %v310, %v994
    %v996 = vpop.f32.mrf.mxu0
    %v997 = vadd.f32 %v315, %v996
    %998 = vdwg.mxu0
    %s999 = scalar_lea.vmem [#allocation7], 384
    %1000 = vst [vmem:[%s999] sm:$0xff] %v960
    %1001 = vst [vmem:[%s999 + $0x8] sm:$0xff] %v962
    %1002 = vst [vmem:[%s999 + $0x10] sm:$0xff] %v965
    %1003 = vst [vmem:[%s999 + $0x18] sm:$0xff] %v967
    %1004 = vst [vmem:[%s999 + $0x20] sm:$0xff] %v970
    %1005 = vst [vmem:[%s999 + $0x28] sm:$0xff] %v972
    %1006 = vst [vmem:[%s999 + $0x30] sm:$0xff] %v975
    %1007 = vst [vmem:[%s999 + $0x38] sm:$0xff] %v977
    %1008 = vst [vmem:[%s999 + $0x40] sm:$0xff] %v980
    %1009 = vst [vmem:[%s999 + $0x48] sm:$0xff] %v982
    %1010 = vst [vmem:[%s999 + $0x50] sm:$0xff] %v985
    %1011 = vst [vmem:[%s999 + $0x58] sm:$0xff] %v987
    %1012 = vst [vmem:[%s999 + $0x60] sm:$0xff] %v990
    %1013 = vst [vmem:[%s999 + $0x68] sm:$0xff] %v992
    %1014 = vst [vmem:[%s999 + $0x70] sm:$0xff] %v995
    %1015 = vst [vmem:[%s999 + $0x78] sm:$0xff] %v997
    %s1016 = scalar_lea.vmem %s0, 8
    %v1017 = vld [vmem:[%s1016] sm:$0x3]
    %v1019 = vsel %vm407, %v1017, 0
    %1021 = vmatpush.bf16.msra.mxu0 0
    %1022 = vmatpush.bf16.msra.mxu0 0
    %1023 = vmatpush.bf16.msra.mxu0 0
    %1024 = vmatpush.bf16.msra.mxu0 0
    %1025 = vmatpush.bf16.msra.mxu0 0
    %1026 = vmatpush.bf16.msra.mxu0 0
    %1027 = vmatpush.bf16.msra.mxu0 0
    %1028 = vmatpush.bf16.msra.mxu0 %v1019
    %1029 = vmatmul.bf16.gmra.mxu0 %v384
    %v1030 = vpop.f32.mrf.mxu0
    %v1031 = vadd.f32 %v144, %v1030
    %v1032 = vpop.f32.mrf.mxu0
    %v1033 = vadd.f32 %v149, %v1032
    %1034 = vmatmul.bf16.gmra.mxu0 %v387
    %v1035 = vpop.f32.mrf.mxu0
    %v1036 = vadd.f32 %v154, %v1035
    %v1037 = vpop.f32.mrf.mxu0
    %v1038 = vadd.f32 %v159, %v1037
    %1039 = vmatmul.bf16.gmra.mxu0 %v390
    %v1040 = vpop.f32.mrf.mxu0
    %v1041 = vadd.f32 %v164, %v1040
    %v1042 = vpop.f32.mrf.mxu0
    %v1043 = vadd.f32 %v169, %v1042
    %1044 = vmatmul.bf16.gmra.mxu0 %v393
    %v1045 = vpop.f32.mrf.mxu0
    %v1046 = vadd.f32 %v174, %v1045
    %v1047 = vpop.f32.mrf.mxu0
    %v1048 = vadd.f32 %v179, %v1047
    %1049 = vmatmul.bf16.gmra.mxu0 %v396
    %v1050 = vpop.f32.mrf.mxu0
    %v1051 = vadd.f32 %v184, %v1050
    %v1052 = vpop.f32.mrf.mxu0
    %v1053 = vadd.f32 %v189, %v1052
    %1054 = vmatmul.bf16.gmra.mxu0 %v399
    %v1055 = vpop.f32.mrf.mxu0
    %v1056 = vadd.f32 %v194, %v1055
    %v1057 = vpop.f32.mrf.mxu0
    %v1058 = vadd.f32 %v199, %v1057
    %1059 = vmatmul.bf16.gmra.mxu0 %v402
    %v1060 = vpop.f32.mrf.mxu0
    %v1061 = vadd.f32 %v204, %v1060
    %v1062 = vpop.f32.mrf.mxu0
    %v1063 = vadd.f32 %v209, %v1062
    %1064 = vmatmul.bf16.gmra.mxu0 %v405
    %v1065 = vpop.f32.mrf.mxu0
    %v1066 = vadd.f32 %v214, %v1065
    %v1067 = vpop.f32.mrf.mxu0
    %v1068 = vadd.f32 %v219, %v1067
    %1069 = vdwg.mxu0
    %s1070 = scalar_lea.vmem [#allocation6], 512
    %1071 = vst [vmem:[%s1070] sm:$0xff] %v1031
    %1072 = vst [vmem:[%s1070 + $0x8] sm:$0xff] %v1033
    %1073 = vst [vmem:[%s1070 + $0x10] sm:$0xff] %v1036
    %1074 = vst [vmem:[%s1070 + $0x18] sm:$0xff] %v1038
    %1075 = vst [vmem:[%s1070 + $0x20] sm:$0xff] %v1041
    %1076 = vst [vmem:[%s1070 + $0x28] sm:$0xff] %v1043
    %1077 = vst [vmem:[%s1070 + $0x30] sm:$0xff] %v1046
    %1078 = vst [vmem:[%s1070 + $0x38] sm:$0xff] %v1048
    %1079 = vst [vmem:[%s1070 + $0x40] sm:$0xff] %v1051
    %1080 = vst [vmem:[%s1070 + $0x48] sm:$0xff] %v1053
    %1081 = vst [vmem:[%s1070 + $0x50] sm:$0xff] %v1056
    %1082 = vst [vmem:[%s1070 + $0x58] sm:$0xff] %v1058
    %1083 = vst [vmem:[%s1070 + $0x60] sm:$0xff] %v1061
    %1084 = vst [vmem:[%s1070 + $0x68] sm:$0xff] %v1063
    %1085 = vst [vmem:[%s1070 + $0x70] sm:$0xff] %v1066
    %1086 = vst [vmem:[%s1070 + $0x78] sm:$0xff] %v1068
    %1087 = vmatpush.bf16.msra.mxu0 0
    %1088 = vmatpush.bf16.msra.mxu0 0
    %1089 = vmatpush.bf16.msra.mxu0 0
    %1090 = vmatpush.bf16.msra.mxu0 0
    %1091 = vmatpush.bf16.msra.mxu0 0
    %1092 = vmatpush.bf16.msra.mxu0 0
    %1093 = vmatpush.bf16.msra.mxu0 0
    %1094 = vmatpush.bf16.msra.mxu0 %v1019
    %1095 = vmatmul.bf16.gmra.mxu0 %v517
    %v1096 = vpop.f32.mrf.mxu0
    %v1097 = vadd.f32 %v240, %v1096
    %v1098 = vpop.f32.mrf.mxu0
    %v1099 = vadd.f32 %v245, %v1098
    %1100 = vmatmul.bf16.gmra.mxu0 %v520
    %v1101 = vpop.f32.mrf.mxu0
    %v1102 = vadd.f32 %v250, %v1101
    %v1103 = vpop.f32.mrf.mxu0
    %v1104 = vadd.f32 %v255, %v1103
    %1105 = vmatmul.bf16.gmra.mxu0 %v523
    %v1106 = vpop.f32.mrf.mxu0
    %v1107 = vadd.f32 %v260, %v1106
    %v1108 = vpop.f32.mrf.mxu0
    %v1109 = vadd.f32 %v265, %v1108
    %1110 = vmatmul.bf16.gmra.mxu0 %v526
    %v1111 = vpop.f32.mrf.mxu0
    %v1112 = vadd.f32 %v270, %v1111
    %v1113 = vpop.f32.mrf.mxu0
    %v1114 = vadd.f32 %v275, %v1113
    %1115 = vmatmul.bf16.gmra.mxu0 %v529
    %v1116 = vpop.f32.mrf.mxu0
    %v1117 = vadd.f32 %v280, %v1116
    %v1118 = vpop.f32.mrf.mxu0
    %v1119 = vadd.f32 %v285, %v1118
    %1120 = vmatmul.bf16.gmra.mxu0 %v532
    %v1121 = vpop.f32.mrf.mxu0
    %v1122 = vadd.f32 %v290, %v1121
    %v1123 = vpop.f32.mrf.mxu0
    %v1124 = vadd.f32 %v295, %v1123
    %1125 = vmatmul.bf16.gmra.mxu0 %v535
    %v1126 = vpop.f32.mrf.mxu0
    %v1127 = vadd.f32 %v300, %v1126
    %v1128 = vpop.f32.mrf.mxu0
    %v1129 = vadd.f32 %v305, %v1128
    %1130 = vmatmul.bf16.gmra.mxu0 %v538
    %v1131 = vpop.f32.mrf.mxu0
    %v1132 = vadd.f32 %v310, %v1131
    %v1133 = vpop.f32.mrf.mxu0
    %v1134 = vadd.f32 %v315, %v1133
    %1135 = vdwg.mxu0
    %s1136 = scalar_lea.vmem [#allocation7], 512
    %1137 = vst [vmem:[%s1136] sm:$0xff] %v1097
    %1138 = vst [vmem:[%s1136 + $0x8] sm:$0xff] %v1099
    %1139 = vst [vmem:[%s1136 + $0x10] sm:$0xff] %v1102
    %1140 = vst [vmem:[%s1136 + $0x18] sm:$0xff] %v1104
    %1141 = vst [vmem:[%s1136 + $0x20] sm:$0xff] %v1107
    %1142 = vst [vmem:[%s1136 + $0x28] sm:$0xff] %v1109
    %1143 = vst [vmem:[%s1136 + $0x30] sm:$0xff] %v1112
    %1144 = vst [vmem:[%s1136 + $0x38] sm:$0xff] %v1114
    %1145 = vst [vmem:[%s1136 + $0x40] sm:$0xff] %v1117
    %1146 = vst [vmem:[%s1136 + $0x48] sm:$0xff] %v1119
    %1147 = vst [vmem:[%s1136 + $0x50] sm:$0xff] %v1122
    %1148 = vst [vmem:[%s1136 + $0x58] sm:$0xff] %v1124
    %1149 = vst [vmem:[%s1136 + $0x60] sm:$0xff] %v1127
    %1150 = vst [vmem:[%s1136 + $0x68] sm:$0xff] %v1129
    %1151 = vst [vmem:[%s1136 + $0x70] sm:$0xff] %v1132
    %1152 = vst [vmem:[%s1136 + $0x78] sm:$0xff] %v1134
    %s1153 = scalar_lea.vmem %s0, 10
    %v1154 = vld [vmem:[%s1153] sm:$0x3]
    %v1156 = vsel %vm407, %v1154, 0
    %1158 = vmatpush.bf16.msra.mxu0 0
    %1159 = vmatpush.bf16.msra.mxu0 0
    %1160 = vmatpush.bf16.msra.mxu0 0
    %1161 = vmatpush.bf16.msra.mxu0 0
    %1162 = vmatpush.bf16.msra.mxu0 0
    %1163 = vmatpush.bf16.msra.mxu0 0
    %1164 = vmatpush.bf16.msra.mxu0 0
    %1165 = vmatpush.bf16.msra.mxu0 %v1156
    %1166 = vmatmul.bf16.gmra.mxu0 %v384
    %v1167 = vpop.f32.mrf.mxu0
    %v1168 = vadd.f32 %v144, %v1167
    %v1169 = vpop.f32.mrf.mxu0
    %v1170 = vadd.f32 %v149, %v1169
    %1171 = vmatmul.bf16.gmra.mxu0 %v387
    %v1172 = vpop.f32.mrf.mxu0
    %v1173 = vadd.f32 %v154, %v1172
    %v1174 = vpop.f32.mrf.mxu0
    %v1175 = vadd.f32 %v159, %v1174
    %1176 = vmatmul.bf16.gmra.mxu0 %v390
    %v1177 = vpop.f32.mrf.mxu0
    %v1178 = vadd.f32 %v164, %v1177
    %v1179 = vpop.f32.mrf.mxu0
    %v1180 = vadd.f32 %v169, %v1179
    %1181 = vmatmul.bf16.gmra.mxu0 %v393
    %v1182 = vpop.f32.mrf.mxu0
    %v1183 = vadd.f32 %v174, %v1182
    %v1184 = vpop.f32.mrf.mxu0
    %v1185 = vadd.f32 %v179, %v1184
    %1186 = vmatmul.bf16.gmra.mxu0 %v396
    %v1187 = vpop.f32.mrf.mxu0
    %v1188 = vadd.f32 %v184, %v1187
    %v1189 = vpop.f32.mrf.mxu0
    %v1190 = vadd.f32 %v189, %v1189
    %1191 = vmatmul.bf16.gmra.mxu0 %v399
    %v1192 = vpop.f32.mrf.mxu0
    %v1193 = vadd.f32 %v194, %v1192
    %v1194 = vpop.f32.mrf.mxu0
    %v1195 = vadd.f32 %v199, %v1194
    %1196 = vmatmul.bf16.gmra.mxu0 %v402
    %v1197 = vpop.f32.mrf.mxu0
    %v1198 = vadd.f32 %v204, %v1197
    %v1199 = vpop.f32.mrf.mxu0
    %v1200 = vadd.f32 %v209, %v1199
    %1201 = vmatmul.bf16.gmra.mxu0 %v405
    %v1202 = vpop.f32.mrf.mxu0
    %v1203 = vadd.f32 %v214, %v1202
    %v1204 = vpop.f32.mrf.mxu0
    %v1205 = vadd.f32 %v219, %v1204
    %1206 = vdwg.mxu0
    %s1207 = scalar_lea.vmem [#allocation6], 640
    %1208 = vst [vmem:[%s1207] sm:$0xff] %v1168
    %1209 = vst [vmem:[%s1207 + $0x8] sm:$0xff] %v1170
    %1210 = vst [vmem:[%s1207 + $0x10] sm:$0xff] %v1173
    %1211 = vst [vmem:[%s1207 + $0x18] sm:$0xff] %v1175
    %1212 = vst [vmem:[%s1207 + $0x20] sm:$0xff] %v1178
    %1213 = vst [vmem:[%s1207 + $0x28] sm:$0xff] %v1180
    %1214 = vst [vmem:[%s1207 + $0x30] sm:$0xff] %v1183
    %1215 = vst [vmem:[%s1207 + $0x38] sm:$0xff] %v1185
    %1216 = vst [vmem:[%s1207 + $0x40] sm:$0xff] %v1188
    %1217 = vst [vmem:[%s1207 + $0x48] sm:$0xff] %v1190
    %1218 = vst [vmem:[%s1207 + $0x50] sm:$0xff] %v1193
    %1219 = vst [vmem:[%s1207 + $0x58] sm:$0xff] %v1195
    %1220 = vst [vmem:[%s1207 + $0x60] sm:$0xff] %v1198
    %1221 = vst [vmem:[%s1207 + $0x68] sm:$0xff] %v1200
    %1222 = vst [vmem:[%s1207 + $0x70] sm:$0xff] %v1203
    %1223 = vst [vmem:[%s1207 + $0x78] sm:$0xff] %v1205
    %1224 = vmatpush.bf16.msra.mxu0 0
    %1225 = vmatpush.bf16.msra.mxu0 0
    %1226 = vmatpush.bf16.msra.mxu0 0
    %1227 = vmatpush.bf16.msra.mxu0 0
    %1228 = vmatpush.bf16.msra.mxu0 0
    %1229 = vmatpush.bf16.msra.mxu0 0
    %1230 = vmatpush.bf16.msra.mxu0 0
    %1231 = vmatpush.bf16.msra.mxu0 %v1156
    %1232 = vmatmul.bf16.gmra.mxu0 %v517
    %v1233 = vpop.f32.mrf.mxu0
    %v1234 = vadd.f32 %v240, %v1233
    %v1235 = vpop.f32.mrf.mxu0
    %v1236 = vadd.f32 %v245, %v1235
    %1237 = vmatmul.bf16.gmra.mxu0 %v520
    %v1238 = vpop.f32.mrf.mxu0
    %v1239 = vadd.f32 %v250, %v1238
    %v1240 = vpop.f32.mrf.mxu0
    %v1241 = vadd.f32 %v255, %v1240
    %1242 = vmatmul.bf16.gmra.mxu0 %v523
    %v1243 = vpop.f32.mrf.mxu0
    %v1244 = vadd.f32 %v260, %v1243
    %v1245 = vpop.f32.mrf.mxu0
    %v1246 = vadd.f32 %v265, %v1245
    %1247 = vmatmul.bf16.gmra.mxu0 %v526
    %v1248 = vpop.f32.mrf.mxu0
    %v1249 = vadd.f32 %v270, %v1248
    %v1250 = vpop.f32.mrf.mxu0
    %v1251 = vadd.f32 %v275, %v1250
    %1252 = vmatmul.bf16.gmra.mxu0 %v529
    %v1253 = vpop.f32.mrf.mxu0
    %v1254 = vadd.f32 %v280, %v1253
    %v1255 = vpop.f32.mrf.mxu0
    %v1256 = vadd.f32 %v285, %v1255
    %1257 = vmatmul.bf16.gmra.mxu0 %v532
    %v1258 = vpop.f32.mrf.mxu0
    %v1259 = vadd.f32 %v290, %v1258
    %v1260 = vpop.f32.mrf.mxu0
    %v1261 = vadd.f32 %v295, %v1260
    %1262 = vmatmul.bf16.gmra.mxu0 %v535
    %v1263 = vpop.f32.mrf.mxu0
    %v1264 = vadd.f32 %v300, %v1263
    %v1265 = vpop.f32.mrf.mxu0
    %v1266 = vadd.f32 %v305, %v1265
    %1267 = vmatmul.bf16.gmra.mxu0 %v538
    %v1268 = vpop.f32.mrf.mxu0
    %v1269 = vadd.f32 %v310, %v1268
    %v1270 = vpop.f32.mrf.mxu0
    %v1271 = vadd.f32 %v315, %v1270
    %1272 = vdwg.mxu0
    %s1273 = scalar_lea.vmem [#allocation7], 640
    %1274 = vst [vmem:[%s1273] sm:$0xff] %v1234
    %1275 = vst [vmem:[%s1273 + $0x8] sm:$0xff] %v1236
    %1276 = vst [vmem:[%s1273 + $0x10] sm:$0xff] %v1239
    %1277 = vst [vmem:[%s1273 + $0x18] sm:$0xff] %v1241
    %1278 = vst [vmem:[%s1273 + $0x20] sm:$0xff] %v1244
    %1279 = vst [vmem:[%s1273 + $0x28] sm:$0xff] %v1246
    %1280 = vst [vmem:[%s1273 + $0x30] sm:$0xff] %v1249
    %1281 = vst [vmem:[%s1273 + $0x38] sm:$0xff] %v1251
    %1282 = vst [vmem:[%s1273 + $0x40] sm:$0xff] %v1254
    %1283 = vst [vmem:[%s1273 + $0x48] sm:$0xff] %v1256
    %1284 = vst [vmem:[%s1273 + $0x50] sm:$0xff] %v1259
    %1285 = vst [vmem:[%s1273 + $0x58] sm:$0xff] %v1261
    %1286 = vst [vmem:[%s1273 + $0x60] sm:$0xff] %v1264
    %1287 = vst [vmem:[%s1273 + $0x68] sm:$0xff] %v1266
    %1288 = vst [vmem:[%s1273 + $0x70] sm:$0xff] %v1269
    %1289 = vst [vmem:[%s1273 + $0x78] sm:$0xff] %v1271
    %s1290 = scalar_lea.vmem %s0, 12
    %v1291 = vld [vmem:[%s1290] sm:$0x3]
    %v1293 = vsel %vm407, %v1291, 0
    %1295 = vmatpush.bf16.msra.mxu0 0
    %1296 = vmatpush.bf16.msra.mxu0 0
    %1297 = vmatpush.bf16.msra.mxu0 0
    %1298 = vmatpush.bf16.msra.mxu0 0
    %1299 = vmatpush.bf16.msra.mxu0 0
    %1300 = vmatpush.bf16.msra.mxu0 0
    %1301 = vmatpush.bf16.msra.mxu0 0
    %1302 = vmatpush.bf16.msra.mxu0 %v1293
    %1303 = vmatmul.bf16.gmra.mxu0 %v384
    %v1304 = vpop.f32.mrf.mxu0
    %v1305 = vadd.f32 %v144, %v1304
    %v1306 = vpop.f32.mrf.mxu0
    %v1307 = vadd.f32 %v149, %v1306
    %1308 = vmatmul.bf16.gmra.mxu0 %v387
    %v1309 = vpop.f32.mrf.mxu0
    %v1310 = vadd.f32 %v154, %v1309
    %v1311 = vpop.f32.mrf.mxu0
    %v1312 = vadd.f32 %v159, %v1311
    %1313 = vmatmul.bf16.gmra.mxu0 %v390
    %v1314 = vpop.f32.mrf.mxu0
    %v1315 = vadd.f32 %v164, %v1314
    %v1316 = vpop.f32.mrf.mxu0
    %v1317 = vadd.f32 %v169, %v1316
    %1318 = vmatmul.bf16.gmra.mxu0 %v393
    %v1319 = vpop.f32.mrf.mxu0
    %v1320 = vadd.f32 %v174, %v1319
    %v1321 = vpop.f32.mrf.mxu0
    %v1322 = vadd.f32 %v179, %v1321
    %1323 = vmatmul.bf16.gmra.mxu0 %v396
    %v1324 = vpop.f32.mrf.mxu0
    %v1325 = vadd.f32 %v184, %v1324
    %v1326 = vpop.f32.mrf.mxu0
    %v1327 = vadd.f32 %v189, %v1326
    %1328 = vmatmul.bf16.gmra.mxu0 %v399
    %v1329 = vpop.f32.mrf.mxu0
    %v1330 = vadd.f32 %v194, %v1329
    %v1331 = vpop.f32.mrf.mxu0
    %v1332 = vadd.f32 %v199, %v1331
    %1333 = vmatmul.bf16.gmra.mxu0 %v402
    %v1334 = vpop.f32.mrf.mxu0
    %v1335 = vadd.f32 %v204, %v1334
    %v1336 = vpop.f32.mrf.mxu0
    %v1337 = vadd.f32 %v209, %v1336
    %1338 = vmatmul.bf16.gmra.mxu0 %v405
    %v1339 = vpop.f32.mrf.mxu0
    %v1340 = vadd.f32 %v214, %v1339
    %v1341 = vpop.f32.mrf.mxu0
    %v1342 = vadd.f32 %v219, %v1341
    %1343 = vdwg.mxu0
    %s1344 = scalar_lea.vmem [#allocation6], 768
    %1345 = vst [vmem:[%s1344] sm:$0xff] %v1305
    %1346 = vst [vmem:[%s1344 + $0x8] sm:$0xff] %v1307
    %1347 = vst [vmem:[%s1344 + $0x10] sm:$0xff] %v1310
    %1348 = vst [vmem:[%s1344 + $0x18] sm:$0xff] %v1312
    %1349 = vst [vmem:[%s1344 + $0x20] sm:$0xff] %v1315
    %1350 = vst [vmem:[%s1344 + $0x28] sm:$0xff] %v1317
    %1351 = vst [vmem:[%s1344 + $0x30] sm:$0xff] %v1320
    %1352 = vst [vmem:[%s1344 + $0x38] sm:$0xff] %v1322
    %1353 = vst [vmem:[%s1344 + $0x40] sm:$0xff] %v1325
    %1354 = vst [vmem:[%s1344 + $0x48] sm:$0xff] %v1327
    %1355 = vst [vmem:[%s1344 + $0x50] sm:$0xff] %v1330
    %1356 = vst [vmem:[%s1344 + $0x58] sm:$0xff] %v1332
    %1357 = vst [vmem:[%s1344 + $0x60] sm:$0xff] %v1335
    %1358 = vst [vmem:[%s1344 + $0x68] sm:$0xff] %v1337
    %1359 = vst [vmem:[%s1344 + $0x70] sm:$0xff] %v1340
    %1360 = vst [vmem:[%s1344 + $0x78] sm:$0xff] %v1342
    %1361 = vmatpush.bf16.msra.mxu0 0
    %1362 = vmatpush.bf16.msra.mxu0 0
    %1363 = vmatpush.bf16.msra.mxu0 0
    %1364 = vmatpush.bf16.msra.mxu0 0
    %1365 = vmatpush.bf16.msra.mxu0 0
    %1366 = vmatpush.bf16.msra.mxu0 0
    %1367 = vmatpush.bf16.msra.mxu0 0
    %1368 = vmatpush.bf16.msra.mxu0 %v1293
    %1369 = vmatmul.bf16.gmra.mxu0 %v517
    %v1370 = vpop.f32.mrf.mxu0
    %v1371 = vadd.f32 %v240, %v1370
    %v1372 = vpop.f32.mrf.mxu0
    %v1373 = vadd.f32 %v245, %v1372
    %1374 = vmatmul.bf16.gmra.mxu0 %v520
    %v1375 = vpop.f32.mrf.mxu0
    %v1376 = vadd.f32 %v250, %v1375
    %v1377 = vpop.f32.mrf.mxu0
    %v1378 = vadd.f32 %v255, %v1377
    %1379 = vmatmul.bf16.gmra.mxu0 %v523
    %v1380 = vpop.f32.mrf.mxu0
    %v1381 = vadd.f32 %v260, %v1380
    %v1382 = vpop.f32.mrf.mxu0
    %v1383 = vadd.f32 %v265, %v1382
    %1384 = vmatmul.bf16.gmra.mxu0 %v526
    %v1385 = vpop.f32.mrf.mxu0
    %v1386 = vadd.f32 %v270, %v1385
    %v1387 = vpop.f32.mrf.mxu0
    %v1388 = vadd.f32 %v275, %v1387
    %1389 = vmatmul.bf16.gmra.mxu0 %v529
    %v1390 = vpop.f32.mrf.mxu0
    %v1391 = vadd.f32 %v280, %v1390
    %v1392 = vpop.f32.mrf.mxu0
    %v1393 = vadd.f32 %v285, %v1392
    %1394 = vmatmul.bf16.gmra.mxu0 %v532
    %v1395 = vpop.f32.mrf.mxu0
    %v1396 = vadd.f32 %v290, %v1395
    %v1397 = vpop.f32.mrf.mxu0
    %v1398 = vadd.f32 %v295, %v1397
    %1399 = vmatmul.bf16.gmra.mxu0 %v535
    %v1400 = vpop.f32.mrf.mxu0
    %v1401 = vadd.f32 %v300, %v1400
    %v1402 = vpop.f32.mrf.mxu0
    %v1403 = vadd.f32 %v305, %v1402
    %1404 = vmatmul.bf16.gmra.mxu0 %v538
    %v1405 = vpop.f32.mrf.mxu0
    %v1406 = vadd.f32 %v310, %v1405
    %v1407 = vpop.f32.mrf.mxu0
    %v1408 = vadd.f32 %v315, %v1407
    %1409 = vdwg.mxu0
    %s1410 = scalar_lea.vmem [#allocation7], 768
    %1411 = vst [vmem:[%s1410] sm:$0xff] %v1371
    %1412 = vst [vmem:[%s1410 + $0x8] sm:$0xff] %v1373
    %1413 = vst [vmem:[%s1410 + $0x10] sm:$0xff] %v1376
    %1414 = vst [vmem:[%s1410 + $0x18] sm:$0xff] %v1378
    %1415 = vst [vmem:[%s1410 + $0x20] sm:$0xff] %v1381
    %1416 = vst [vmem:[%s1410 + $0x28] sm:$0xff] %v1383
    %1417 = vst [vmem:[%s1410 + $0x30] sm:$0xff] %v1386
    %1418 = vst [vmem:[%s1410 + $0x38] sm:$0xff] %v1388
    %1419 = vst [vmem:[%s1410 + $0x40] sm:$0xff] %v1391
    %1420 = vst [vmem:[%s1410 + $0x48] sm:$0xff] %v1393
    %1421 = vst [vmem:[%s1410 + $0x50] sm:$0xff] %v1396
    %1422 = vst [vmem:[%s1410 + $0x58] sm:$0xff] %v1398
    %1423 = vst [vmem:[%s1410 + $0x60] sm:$0xff] %v1401
    %1424 = vst [vmem:[%s1410 + $0x68] sm:$0xff] %v1403
    %1425 = vst [vmem:[%s1410 + $0x70] sm:$0xff] %v1406
    %1426 = vst [vmem:[%s1410 + $0x78] sm:$0xff] %v1408
    %s1427 = scalar_lea.vmem %s0, 14
    %v1428 = vld [vmem:[%s1427] sm:$0x3]
    %v1430 = vsel %vm407, %v1428, 0
    %1432 = vmatpush.bf16.msra.mxu0 0
    %1433 = vmatpush.bf16.msra.mxu0 0
    %1434 = vmatpush.bf16.msra.mxu0 0
    %1435 = vmatpush.bf16.msra.mxu0 0
    %1436 = vmatpush.bf16.msra.mxu0 0
    %1437 = vmatpush.bf16.msra.mxu0 0
    %1438 = vmatpush.bf16.msra.mxu0 0
    %1439 = vmatpush.bf16.msra.mxu0 %v1430
    %1440 = vmatmul.bf16.gmra.mxu0 %v384
    %v1441 = vpop.f32.mrf.mxu0
    %v1442 = vadd.f32 %v144, %v1441
    %v1443 = vpop.f32.mrf.mxu0
    %v1444 = vadd.f32 %v149, %v1443
    %1445 = vmatmul.bf16.gmra.mxu0 %v387
    %v1446 = vpop.f32.mrf.mxu0
    %v1447 = vadd.f32 %v154, %v1446
    %v1448 = vpop.f32.mrf.mxu0
    %v1449 = vadd.f32 %v159, %v1448
    %1450 = vmatmul.bf16.gmra.mxu0 %v390
    %v1451 = vpop.f32.mrf.mxu0
    %v1452 = vadd.f32 %v164, %v1451
    %v1453 = vpop.f32.mrf.mxu0
    %v1454 = vadd.f32 %v169, %v1453
    %1455 = vmatmul.bf16.gmra.mxu0 %v393
    %v1456 = vpop.f32.mrf.mxu0
    %v1457 = vadd.f32 %v174, %v1456
    %v1458 = vpop.f32.mrf.mxu0
    %v1459 = vadd.f32 %v179, %v1458
    %1460 = vmatmul.bf16.gmra.mxu0 %v396
    %v1461 = vpop.f32.mrf.mxu0
    %v1462 = vadd.f32 %v184, %v1461
    %v1463 = vpop.f32.mrf.mxu0
    %v1464 = vadd.f32 %v189, %v1463
    %1465 = vmatmul.bf16.gmra.mxu0 %v399
    %v1466 = vpop.f32.mrf.mxu0
    %v1467 = vadd.f32 %v194, %v1466
    %v1468 = vpop.f32.mrf.mxu0
    %v1469 = vadd.f32 %v199, %v1468
    %1470 = vmatmul.bf16.gmra.mxu0 %v402
    %v1471 = vpop.f32.mrf.mxu0
    %v1472 = vadd.f32 %v204, %v1471
    %v1473 = vpop.f32.mrf.mxu0
    %v1474 = vadd.f32 %v209, %v1473
    %1475 = vmatmul.bf16.gmra.mxu0 %v405
    %v1476 = vpop.f32.mrf.mxu0
    %v1477 = vadd.f32 %v214, %v1476
    %v1478 = vpop.f32.mrf.mxu0
    %v1479 = vadd.f32 %v219, %v1478
    %1480 = vdwg.mxu0
    %s1481 = scalar_lea.vmem [#allocation6], 896
    %1482 = vst [vmem:[%s1481] sm:$0xff] %v1442
    %1483 = vst [vmem:[%s1481 + $0x8] sm:$0xff] %v1444
    %1484 = vst [vmem:[%s1481 + $0x10] sm:$0xff] %v1447
    %1485 = vst [vmem:[%s1481 + $0x18] sm:$0xff] %v1449
    %1486 = vst [vmem:[%s1481 + $0x20] sm:$0xff] %v1452
    %1487 = vst [vmem:[%s1481 + $0x28] sm:$0xff] %v1454
    %1488 = vst [vmem:[%s1481 + $0x30] sm:$0xff] %v1457
    %1489 = vst [vmem:[%s1481 + $0x38] sm:$0xff] %v1459
    %1490 = vst [vmem:[%s1481 + $0x40] sm:$0xff] %v1462
    %1491 = vst [vmem:[%s1481 + $0x48] sm:$0xff] %v1464
    %1492 = vst [vmem:[%s1481 + $0x50] sm:$0xff] %v1467
    %1493 = vst [vmem:[%s1481 + $0x58] sm:$0xff] %v1469
    %1494 = vst [vmem:[%s1481 + $0x60] sm:$0xff] %v1472
    %1495 = vst [vmem:[%s1481 + $0x68] sm:$0xff] %v1474
    %1496 = vst [vmem:[%s1481 + $0x70] sm:$0xff] %v1477
    %1497 = vst [vmem:[%s1481 + $0x78] sm:$0xff] %v1479
    %1498 = vmatpush.bf16.msra.mxu0 0
    %1499 = vmatpush.bf16.msra.mxu0 0
    %1500 = vmatpush.bf16.msra.mxu0 0
    %1501 = vmatpush.bf16.msra.mxu0 0
    %1502 = vmatpush.bf16.msra.mxu0 0
    %1503 = vmatpush.bf16.msra.mxu0 0
    %1504 = vmatpush.bf16.msra.mxu0 0
    %1505 = vmatpush.bf16.msra.mxu0 %v1430
    %1506 = vmatmul.bf16.gmra.mxu0 %v517
    %v1507 = vpop.f32.mrf.mxu0
    %v1508 = vadd.f32 %v240, %v1507
    %v1509 = vpop.f32.mrf.mxu0
    %v1510 = vadd.f32 %v245, %v1509
    %1511 = vmatmul.bf16.gmra.mxu0 %v520
    %v1512 = vpop.f32.mrf.mxu0
    %v1513 = vadd.f32 %v250, %v1512
    %v1514 = vpop.f32.mrf.mxu0
    %v1515 = vadd.f32 %v255, %v1514
    %1516 = vmatmul.bf16.gmra.mxu0 %v523
    %v1517 = vpop.f32.mrf.mxu0
    %v1518 = vadd.f32 %v260, %v1517
    %v1519 = vpop.f32.mrf.mxu0
    %v1520 = vadd.f32 %v265, %v1519
    %1521 = vmatmul.bf16.gmra.mxu0 %v526
    %v1522 = vpop.f32.mrf.mxu0
    %v1523 = vadd.f32 %v270, %v1522
    %v1524 = vpop.f32.mrf.mxu0
    %v1525 = vadd.f32 %v275, %v1524
    %1526 = vmatmul.bf16.gmra.mxu0 %v529
    %v1527 = vpop.f32.mrf.mxu0
    %v1528 = vadd.f32 %v280, %v1527
    %v1529 = vpop.f32.mrf.mxu0
    %v1530 = vadd.f32 %v285, %v1529
    %1531 = vmatmul.bf16.gmra.mxu0 %v532
    %v1532 = vpop.f32.mrf.mxu0
    %v1533 = vadd.f32 %v290, %v1532
    %v1534 = vpop.f32.mrf.mxu0
    %v1535 = vadd.f32 %v295, %v1534
    %1536 = vmatmul.bf16.gmra.mxu0 %v535
    %v1537 = vpop.f32.mrf.mxu0
    %v1538 = vadd.f32 %v300, %v1537
    %v1539 = vpop.f32.mrf.mxu0
    %v1540 = vadd.f32 %v305, %v1539
    %1541 = vmatmul.bf16.gmra.mxu0 %v538
    %v1542 = vpop.f32.mrf.mxu0
    %v1543 = vadd.f32 %v310, %v1542
    %v1544 = vpop.f32.mrf.mxu0
    %v1545 = vadd.f32 %v315, %v1544
    %1546 = vdwg.mxu0
    %s1547 = scalar_lea.vmem [#allocation7], 896
    %1548 = vst [vmem:[%s1547] sm:$0xff] %v1508
    %1549 = vst [vmem:[%s1547 + $0x8] sm:$0xff] %v1510
    %1550 = vst [vmem:[%s1547 + $0x10] sm:$0xff] %v1513
    %1551 = vst [vmem:[%s1547 + $0x18] sm:$0xff] %v1515
    %1552 = vst [vmem:[%s1547 + $0x20] sm:$0xff] %v1518
    %1553 = vst [vmem:[%s1547 + $0x28] sm:$0xff] %v1520
    %1554 = vst [vmem:[%s1547 + $0x30] sm:$0xff] %v1523
    %1555 = vst [vmem:[%s1547 + $0x38] sm:$0xff] %v1525
    %1556 = vst [vmem:[%s1547 + $0x40] sm:$0xff] %v1528
    %1557 = vst [vmem:[%s1547 + $0x48] sm:$0xff] %v1530
    %1558 = vst [vmem:[%s1547 + $0x50] sm:$0xff] %v1533
    %1559 = vst [vmem:[%s1547 + $0x58] sm:$0xff] %v1535
    %1560 = vst [vmem:[%s1547 + $0x60] sm:$0xff] %v1538
    %1561 = vst [vmem:[%s1547 + $0x68] sm:$0xff] %v1540
    %1562 = vst [vmem:[%s1547 + $0x70] sm:$0xff] %v1543
    %1563 = vst [vmem:[%s1547 + $0x78] sm:$0xff] %v1545
    %v1564 = vld [vmem:[#allocation6] sm:$0xff]
    %v1565 = vld [vmem:[#allocation6 + $0x8] sm:$0xff]
    %v1566 = vld [vmem:[#allocation6 + $0x10] sm:$0xff]
    %v1567 = vld [vmem:[#allocation6 + $0x18] sm:$0xff]
    %v1568 = vld [vmem:[#allocation6 + $0x20] sm:$0xff]
    %v1569 = vld [vmem:[#allocation6 + $0x28] sm:$0xff]
    %v1570 = vld [vmem:[#allocation6 + $0x30] sm:$0xff]
    %v1571 = vld [vmem:[#allocation6 + $0x38] sm:$0xff]
    %v1572 = vld [vmem:[#allocation6 + $0x40] sm:$0xff]
    %v1573 = vld [vmem:[#allocation6 + $0x48] sm:$0xff]
    %v1574 = vld [vmem:[#allocation6 + $0x50] sm:$0xff]
    %v1575 = vld [vmem:[#allocation6 + $0x58] sm:$0xff]
    %v1576 = vld [vmem:[#allocation6 + $0x60] sm:$0xff]
    %v1577 = vld [vmem:[#allocation6 + $0x68] sm:$0xff]
    %v1578 = vld [vmem:[#allocation6 + $0x70] sm:$0xff]
    %v1579 = vld [vmem:[#allocation6 + $0x78] sm:$0xff]
    %v1580 = vld [vmem:[#allocation2] sm:$0xff]
    %v1581 = vld [vmem:[#allocation2 + $0x8] sm:$0xff]
    %v1582 = vld [vmem:[#allocation2 + $0x10] sm:$0xff]
    %v1583 = vld [vmem:[#allocation2 + $0x18] sm:$0xff]
    %v1584 = vpack.c.bf16 %v1581, %v1580
    %v1585 = vpack.c.bf16 %v1583, %v1582
    %v1602 = vunpack.c.l.b16 %v69
    %v1603 = vunpack.c.l.b16 %v70
    %v1604 = vunpack.c.l.b16 %v71
    %v1605 = vunpack.c.l.b16 %v72
    %v1606 = vunpack.c.l.b16 %v73
    %v1607 = vunpack.c.l.b16 %v74
    %v1608 = vunpack.c.l.b16 %v75
    %v1609 = vunpack.c.l.b16 %v76
    %v1610 = vunpack.c.l.b16 %v77
    %v1611 = vunpack.c.l.b16 %v78
    %v1612 = vunpack.c.l.b16 %v79
    %v1613 = vunpack.c.l.b16 %v80
    %v1614 = vunpack.c.l.b16 %v81
    %v1615 = vunpack.c.l.b16 %v82
    %v1616 = vunpack.c.l.b16 %v83
    %v1617 = vunpack.c.l.b16 %v84
    %v1618 = vpack.c.b16 %v1603, %v1602
    %v1619 = vpack.c.b16 %v1605, %v1604
    %v1620 = vpack.c.b16 %v1607, %v1606
    %v1621 = vpack.c.b16 %v1609, %v1608
    %v1622 = vpack.c.b16 %v1611, %v1610
    %v1623 = vpack.c.b16 %v1613, %v1612
    %v1624 = vpack.c.b16 %v1615, %v1614
    %v1625 = vpack.c.b16 %v1617, %v1616
    %vm1626 = vcmask 261120
    %v1628 = vsel %vm1626, %v1618, 0
    %v1631 = vsel %vm1626, %v1619, 0
    %v1634 = vsel %vm1626, %v1620, 0
    %v1637 = vsel %vm1626, %v1621, 0
    %v1640 = vsel %vm1626, %v1622, 0
    %v1643 = vsel %vm1626, %v1623, 0
    %v1646 = vsel %vm1626, %v1624, 0
    %v1649 = vsel %vm1626, %v1625, 0
    %1651 = vmatpush.bf16.msra.mxu0 0
    %1652 = vmatpush.bf16.msra.mxu0 0
    %1653 = vmatpush.bf16.msra.mxu0 0
    %1654 = vmatpush.bf16.msra.mxu0 0
    %1655 = vmatpush.bf16.msra.mxu0 0
    %1656 = vmatpush.bf16.msra.mxu0 0
    %1657 = vmatpush.bf16.msra.mxu0 %v1585
    %1658 = vmatpush.bf16.msra.mxu0 %v1584
    %1659 = vmatmul.bf16.gmra.mxu0 %v1628
    %v1660 = vpop.f32.mrf.mxu0
    %v1661 = vadd.f32 0.0, %v1660
    %v1662 = vpop.f32.mrf.mxu0
    %v1663 = vadd.f32 0.0, %v1662
    %1664 = vmatmul.bf16.gmra.mxu0 %v1631
    %v1665 = vpop.f32.mrf.mxu0
    %v1666 = vadd.f32 0.0, %v1665
    %v1667 = vpop.f32.mrf.mxu0
    %v1668 = vadd.f32 0.0, %v1667
    %1669 = vmatmul.bf16.gmra.mxu0 %v1634
    %v1670 = vpop.f32.mrf.mxu0
    %v1671 = vadd.f32 0.0, %v1670
    %v1672 = vpop.f32.mrf.mxu0
    %v1673 = vadd.f32 0.0, %v1672
    %1674 = vmatmul.bf16.gmra.mxu0 %v1637
    %v1675 = vpop.f32.mrf.mxu0
    %v1676 = vadd.f32 0.0, %v1675
    %v1677 = vpop.f32.mrf.mxu0
    %v1678 = vadd.f32 0.0, %v1677
    %1679 = vmatmul.bf16.gmra.mxu0 %v1640
    %v1680 = vpop.f32.mrf.mxu0
    %v1681 = vadd.f32 0.0, %v1680
    %v1682 = vpop.f32.mrf.mxu0
    %v1683 = vadd.f32 0.0, %v1682
    %1684 = vmatmul.bf16.gmra.mxu0 %v1643
    %v1685 = vpop.f32.mrf.mxu0
    %v1686 = vadd.f32 0.0, %v1685
    %v1687 = vpop.f32.mrf.mxu0
    %v1688 = vadd.f32 0.0, %v1687
    %1689 = vmatmul.bf16.gmra.mxu0 %v1646
    %v1690 = vpop.f32.mrf.mxu0
    %v1691 = vadd.f32 0.0, %v1690
    %v1692 = vpop.f32.mrf.mxu0
    %v1693 = vadd.f32 0.0, %v1692
    %1694 = vmatmul.bf16.gmra.mxu0 %v1649
    %v1695 = vpop.f32.mrf.mxu0
    %v1696 = vadd.f32 0.0, %v1695
    %v1697 = vpop.f32.mrf.mxu0
    %v1698 = vadd.f32 0.0, %v1697
    %1699 = vdwg.mxu0
    %v1700 = vadd.f32 %v1564, %v1661
    %v1701 = vadd.f32 %v1565, %v1663
    %v1702 = vadd.f32 %v1566, %v1666
    %v1703 = vadd.f32 %v1567, %v1668
    %v1704 = vadd.f32 %v1568, %v1671
    %v1705 = vadd.f32 %v1569, %v1673
    %v1706 = vadd.f32 %v1570, %v1676
    %v1707 = vadd.f32 %v1571, %v1678
    %v1708 = vadd.f32 %v1572, %v1681
    %v1709 = vadd.f32 %v1573, %v1683
    %v1710 = vadd.f32 %v1574, %v1686
    %v1711 = vadd.f32 %v1575, %v1688
    %v1712 = vadd.f32 %v1576, %v1691
    %v1713 = vadd.f32 %v1577, %v1693
    %v1714 = vadd.f32 %v1578, %v1696
    %v1715 = vadd.f32 %v1579, %v1698
    %v1716 = vxor.u32 %v1700, 2147483648
    %v1717 = vxor.u32 %v1701, 2147483648
    %v1718 = vxor.u32 %v1702, 2147483648
    %v1719 = vxor.u32 %v1703, 2147483648
    %v1720 = vmul.f32 %v1716, 1.442695
    %v1721 = vpow.pop %v1720
    %v1722 = vmul.f32 %v1717, 1.442695
    %v1723 = vpow.pop %v1722
    %v1724 = vmul.f32 %v1718, 1.442695
    %v1725 = vpow.pop %v1724
    %v1726 = vmul.f32 %v1719, 1.442695
    %v1727 = vpow.pop %v1726
    %v1728 = vadd.f32 %v1721, 1.0
    %v1729 = vadd.f32 %v1723, 1.0
    %v1730 = vadd.f32 %v1725, 1.0
    %v1731 = vadd.f32 %v1727, 1.0
    %v1732 = vrcp.pop %v1728
    %v1733 = vmul.f32 %v1728, %v1732
    %v1734 = vsub.f32 1.0, %v1733
    %v1735 = vmul.f32 %v1732, %v1734
    %v1736 = vadd.f32 %v1732, %v1735
    %vm1737 = vweird.f32 %v1728
    %vm1738 = vweird.f32 %v1732
    %vm1739 = vmor %vm1737, %vm1738
    %v1740 = vsel %vm1739, %v1732, %v1736
    %v1741 = vand.u32 2147483647, %v1728
    %vm1742 = vcmp.eq.f32.partialorder %v1741, 8.507059e+37
    %v1743 = vand.u32 %v1728, 2147483648
    %v1744 = vor.u32 1.1754944e-38, %v1743
    %v1745 = vsel %vm1742, %v1744, %v1740
    %v1746 = vmul.f32 1.0, %v1745
    %v1747 = vrcp.pop %v1729
    %v1748 = vmul.f32 %v1729, %v1747
    %v1749 = vsub.f32 1.0, %v1748
    %v1750 = vmul.f32 %v1747, %v1749
    %v1751 = vadd.f32 %v1747, %v1750
    %vm1752 = vweird.f32 %v1729
    %vm1753 = vweird.f32 %v1747
    %vm1754 = vmor %vm1752, %vm1753
    %v1755 = vsel %vm1754, %v1747, %v1751
    %v1756 = vand.u32 2147483647, %v1729
    %vm1757 = vcmp.eq.f32.partialorder %v1756, 8.507059e+37
    %v1758 = vand.u32 %v1729, 2147483648
    %v1759 = vor.u32 1.1754944e-38, %v1758
    %v1760 = vsel %vm1757, %v1759, %v1755
    %v1761 = vmul.f32 1.0, %v1760
    %v1762 = vrcp.pop %v1730
    %v1763 = vmul.f32 %v1730, %v1762
    %v1764 = vsub.f32 1.0, %v1763
    %v1765 = vmul.f32 %v1762, %v1764
    %v1766 = vadd.f32 %v1762, %v1765
    %vm1767 = vweird.f32 %v1730
    %vm1768 = vweird.f32 %v1762
    %vm1769 = vmor %vm1767, %vm1768
    %v1770 = vsel %vm1769, %v1762, %v1766
    %v1771 = vand.u32 2147483647, %v1730
    %vm1772 = vcmp.eq.f32.partialorder %v1771, 8.507059e+37
    %v1773 = vand.u32 %v1730, 2147483648
    %v1774 = vor.u32 1.1754944e-38, %v1773
    %v1775 = vsel %vm1772, %v1774, %v1770
    %v1776 = vmul.f32 1.0, %v1775
    %v1777 = vrcp.pop %v1731
    %v1778 = vmul.f32 %v1731, %v1777
    %v1779 = vsub.f32 1.0, %v1778
    %v1780 = vmul.f32 %v1777, %v1779
    %v1781 = vadd.f32 %v1777, %v1780
    %vm1782 = vweird.f32 %v1731
    %vm1783 = vweird.f32 %v1777
    %vm1784 = vmor %vm1782, %vm1783
    %v1785 = vsel %vm1784, %v1777, %v1781
    %v1786 = vand.u32 2147483647, %v1731
    %vm1787 = vcmp.eq.f32.partialorder %v1786, 8.507059e+37
    %v1788 = vand.u32 %v1731, 2147483648
    %v1789 = vor.u32 1.1754944e-38, %v1788
    %v1790 = vsel %vm1787, %v1789, %v1785
    %v1791 = vmul.f32 1.0, %v1790
    %v1792 = vxor.u32 %v1704, 2147483648
    %v1793 = vxor.u32 %v1705, 2147483648
    %v1794 = vxor.u32 %v1706, 2147483648
    %v1795 = vxor.u32 %v1707, 2147483648
    %v1796 = vmul.f32 %v1792, 1.442695
    %v1797 = vpow.pop %v1796
    %v1798 = vmul.f32 %v1793, 1.442695
    %v1799 = vpow.pop %v1798
    %v1800 = vmul.f32 %v1794, 1.442695
    %v1801 = vpow.pop %v1800
    %v1802 = vmul.f32 %v1795, 1.442695
    %v1803 = vpow.pop %v1802
    %v1804 = vadd.f32 %v1797, 1.0
    %v1805 = vadd.f32 %v1799, 1.0
    %v1806 = vadd.f32 %v1801, 1.0
    %v1807 = vadd.f32 %v1803, 1.0
    %v1808 = vrcp.pop %v1804
    %v1809 = vmul.f32 %v1804, %v1808
    %v1810 = vsub.f32 1.0, %v1809
    %v1811 = vmul.f32 %v1808, %v1810
    %v1812 = vadd.f32 %v1808, %v1811
    %vm1813 = vweird.f32 %v1804
    %vm1814 = vweird.f32 %v1808
    %vm1815 = vmor %vm1813, %vm1814
    %v1816 = vsel %vm1815, %v1808, %v1812
    %v1817 = vand.u32 2147483647, %v1804
    %vm1818 = vcmp.eq.f32.partialorder %v1817, 8.507059e+37
    %v1819 = vand.u32 %v1804, 2147483648
    %v1820 = vor.u32 1.1754944e-38, %v1819
    %v1821 = vsel %vm1818, %v1820, %v1816
    %v1822 = vmul.f32 1.0, %v1821
    %v1823 = vrcp.pop %v1805
    %v1824 = vmul.f32 %v1805, %v1823
    %v1825 = vsub.f32 1.0, %v1824
    %v1826 = vmul.f32 %v1823, %v1825
    %v1827 = vadd.f32 %v1823, %v1826
    %vm1828 = vweird.f32 %v1805
    %vm1829 = vweird.f32 %v1823
    %vm1830 = vmor %vm1828, %vm1829
    %v1831 = vsel %vm1830, %v1823, %v1827
    %v1832 = vand.u32 2147483647, %v1805
    %vm1833 = vcmp.eq.f32.partialorder %v1832, 8.507059e+37
    %v1834 = vand.u32 %v1805, 2147483648
    %v1835 = vor.u32 1.1754944e-38, %v1834
    %v1836 = vsel %vm1833, %v1835, %v1831
    %v1837 = vmul.f32 1.0, %v1836
    %v1838 = vrcp.pop %v1806
    %v1839 = vmul.f32 %v1806, %v1838
    %v1840 = vsub.f32 1.0, %v1839
    %v1841 = vmul.f32 %v1838, %v1840
    %v1842 = vadd.f32 %v1838, %v1841
    %vm1843 = vweird.f32 %v1806
    %vm1844 = vweird.f32 %v1838
    %vm1845 = vmor %vm1843, %vm1844
    %v1846 = vsel %vm1845, %v1838, %v1842
    %v1847 = vand.u32 2147483647, %v1806
    %vm1848 = vcmp.eq.f32.partialorder %v1847, 8.507059e+37
    %v1849 = vand.u32 %v1806, 2147483648
    %v1850 = vor.u32 1.1754944e-38, %v1849
    %v1851 = vsel %vm1848, %v1850, %v1846
    %v1852 = vmul.f32 1.0, %v1851
    %v1853 = vrcp.pop %v1807
    %v1854 = vmul.f32 %v1807, %v1853
    %v1855 = vsub.f32 1.0, %v1854
    %v1856 = vmul.f32 %v1853, %v1855
    %v1857 = vadd.f32 %v1853, %v1856
    %vm1858 = vweird.f32 %v1807
    %vm1859 = vweird.f32 %v1853
    %vm1860 = vmor %vm1858, %vm1859
    %v1861 = vsel %vm1860, %v1853, %v1857
    %v1862 = vand.u32 2147483647, %v1807
    %vm1863 = vcmp.eq.f32.partialorder %v1862, 8.507059e+37
    %v1864 = vand.u32 %v1807, 2147483648
    %v1865 = vor.u32 1.1754944e-38, %v1864
    %v1866 = vsel %vm1863, %v1865, %v1861
    %v1867 = vmul.f32 1.0, %v1866
    %v1868 = vtanh.pop %v1708
    %v1869 = vtanh.pop %v1709
    %v1870 = vtanh.pop %v1710
    %v1871 = vtanh.pop %v1711
    %v1872 = vxor.u32 %v1712, 2147483648
    %v1873 = vxor.u32 %v1713, 2147483648
    %v1874 = vxor.u32 %v1714, 2147483648
    %v1875 = vxor.u32 %v1715, 2147483648
    %v1876 = vmul.f32 %v1872, 1.442695
    %v1877 = vpow.pop %v1876
    %v1878 = vmul.f32 %v1873, 1.442695
    %v1879 = vpow.pop %v1878
    %v1880 = vmul.f32 %v1874, 1.442695
    %v1881 = vpow.pop %v1880
    %v1882 = vmul.f32 %v1875, 1.442695
    %v1883 = vpow.pop %v1882
    %v1884 = vadd.f32 %v1877, 1.0
    %v1885 = vadd.f32 %v1879, 1.0
    %v1886 = vadd.f32 %v1881, 1.0
    %v1887 = vadd.f32 %v1883, 1.0
    %v1888 = vrcp.pop %v1884
    %v1889 = vmul.f32 %v1884, %v1888
    %v1890 = vsub.f32 1.0, %v1889
    %v1891 = vmul.f32 %v1888, %v1890
    %v1892 = vadd.f32 %v1888, %v1891
    %vm1893 = vweird.f32 %v1884
    %vm1894 = vweird.f32 %v1888
    %vm1895 = vmor %vm1893, %vm1894
    %v1896 = vsel %vm1895, %v1888, %v1892
    %v1897 = vand.u32 2147483647, %v1884
    %vm1898 = vcmp.eq.f32.partialorder %v1897, 8.507059e+37
    %v1899 = vand.u32 %v1884, 2147483648
    %v1900 = vor.u32 1.1754944e-38, %v1899
    %v1901 = vsel %vm1898, %v1900, %v1896
    %v1902 = vmul.f32 1.0, %v1901
    %v1903 = vrcp.pop %v1885
    %v1904 = vmul.f32 %v1885, %v1903
    %v1905 = vsub.f32 1.0, %v1904
    %v1906 = vmul.f32 %v1903, %v1905
    %v1907 = vadd.f32 %v1903, %v1906
    %vm1908 = vweird.f32 %v1885
    %vm1909 = vweird.f32 %v1903
    %vm1910 = vmor %vm1908, %vm1909
    %v1911 = vsel %vm1910, %v1903, %v1907
    %v1912 = vand.u32 2147483647, %v1885
    %vm1913 = vcmp.eq.f32.partialorder %v1912, 8.507059e+37
    %v1914 = vand.u32 %v1885, 2147483648
    %v1915 = vor.u32 1.1754944e-38, %v1914
    %v1916 = vsel %vm1913, %v1915, %v1911
    %v1917 = vmul.f32 1.0, %v1916
    %v1918 = vrcp.pop %v1886
    %v1919 = vmul.f32 %v1886, %v1918
    %v1920 = vsub.f32 1.0, %v1919
    %v1921 = vmul.f32 %v1918, %v1920
    %v1922 = vadd.f32 %v1918, %v1921
    %vm1923 = vweird.f32 %v1886
    %vm1924 = vweird.f32 %v1918
    %vm1925 = vmor %vm1923, %vm1924
    %v1926 = vsel %vm1925, %v1918, %v1922
    %v1927 = vand.u32 2147483647, %v1886
    %vm1928 = vcmp.eq.f32.partialorder %v1927, 8.507059e+37
    %v1929 = vand.u32 %v1886, 2147483648
    %v1930 = vor.u32 1.1754944e-38, %v1929
    %v1931 = vsel %vm1928, %v1930, %v1926
    %v1932 = vmul.f32 1.0, %v1931
    %v1933 = vrcp.pop %v1887
    %v1934 = vmul.f32 %v1887, %v1933
    %v1935 = vsub.f32 1.0, %v1934
    %v1936 = vmul.f32 %v1933, %v1935
    %v1937 = vadd.f32 %v1933, %v1936
    %vm1938 = vweird.f32 %v1887
    %vm1939 = vweird.f32 %v1933
    %vm1940 = vmor %vm1938, %vm1939
    %v1941 = vsel %vm1940, %v1933, %v1937
    %v1942 = vand.u32 2147483647, %v1887
    %vm1943 = vcmp.eq.f32.partialorder %v1942, 8.507059e+37
    %v1944 = vand.u32 %v1887, 2147483648
    %v1945 = vor.u32 1.1754944e-38, %v1944
    %v1946 = vsel %vm1943, %v1945, %v1941
    %v1947 = vmul.f32 1.0, %v1946
    %v1948 = vld [vmem:[#allocation3] sm:$0xff]
    %v1949 = vld [vmem:[#allocation3 + $0x8] sm:$0xff]
    %v1950 = vld [vmem:[#allocation3 + $0x10] sm:$0xff]
    %v1951 = vld [vmem:[#allocation3 + $0x18] sm:$0xff]
    %v1952 = vmul.f32 %v1822, %v1948
    %v1953 = vmul.f32 %v1837, %v1949
    %v1954 = vmul.f32 %v1852, %v1950
    %v1955 = vmul.f32 %v1867, %v1951
    %v1956 = vmul.f32 %v1746, %v1868
    %v1957 = vmul.f32 %v1761, %v1869
    %v1958 = vmul.f32 %v1776, %v1870
    %v1959 = vmul.f32 %v1791, %v1871
    %v1960 = vadd.f32 %v1952, %v1956
    %v1961 = vadd.f32 %v1953, %v1957
    %v1962 = vadd.f32 %v1954, %v1958
    %v1963 = vadd.f32 %v1955, %v1959
    %v1964 = vtanh.pop %v1960
    %v1965 = vtanh.pop %v1961
    %v1966 = vtanh.pop %v1962
    %v1967 = vtanh.pop %v1963
    %v1968 = vmul.f32 %v1902, %v1964
    %v1969 = vmul.f32 %v1917, %v1965
    %v1970 = vmul.f32 %v1932, %v1966
    %v1971 = vmul.f32 %v1947, %v1967
    %1972 = vst [vmem:[#allocation3] sm:$0xff] %v1960
    %1973 = vst [vmem:[#allocation3 + $0x8] sm:$0xff] %v1961
    %1974 = vst [vmem:[#allocation3 + $0x10] sm:$0xff] %v1962
    %1975 = vst [vmem:[#allocation3 + $0x18] sm:$0xff] %v1963
    %1976 = vst [vmem:[#allocation2] sm:$0xff] %v1968
    %1977 = vst [vmem:[#allocation2 + $0x8] sm:$0xff] %v1969
    %1978 = vst [vmem:[#allocation2 + $0x10] sm:$0xff] %v1970
    %1979 = vst [vmem:[#allocation2 + $0x18] sm:$0xff] %v1971
    %v1980 = vld [vmem:[%s1547] sm:$0xff]
    %v1981 = vld [vmem:[%s1547 + $0x8] sm:$0xff]
    %v1982 = vld [vmem:[%s1547 + $0x10] sm:$0xff]
    %v1983 = vld [vmem:[%s1547 + $0x18] sm:$0xff]
    %v1984 = vld [vmem:[%s1547 + $0x20] sm:$0xff]
    %v1985 = vld [vmem:[%s1547 + $0x28] sm:$0xff]
    %v1986 = vld [vmem:[%s1547 + $0x30] sm:$0xff]
    %v1987 = vld [vmem:[%s1547 + $0x38] sm:$0xff]
    %v1988 = vld [vmem:[%s1547 + $0x40] sm:$0xff]
    %v1989 = vld [vmem:[%s1547 + $0x48] sm:$0xff]
    %v1990 = vld [vmem:[%s1547 + $0x50] sm:$0xff]
    %v1991 = vld [vmem:[%s1547 + $0x58] sm:$0xff]
    %v1992 = vld [vmem:[%s1547 + $0x60] sm:$0xff]
    %v1993 = vld [vmem:[%s1547 + $0x68] sm:$0xff]
    %v1994 = vld [vmem:[%s1547 + $0x70] sm:$0xff]
    %v1995 = vld [vmem:[%s1547 + $0x78] sm:$0xff]
    %v1996 = vld [vmem:[#allocation4] sm:$0xff]
    %v1997 = vld [vmem:[#allocation4 + $0x8] sm:$0xff]
    %v1998 = vld [vmem:[#allocation4 + $0x10] sm:$0xff]
    %v1999 = vld [vmem:[#allocation4 + $0x18] sm:$0xff]
    %v2000 = vpack.c.bf16 %v1997, %v1996
    %v2001 = vpack.c.bf16 %v1999, %v1998
    %v2018 = vunpack.c.l.b16 %v101
    %v2019 = vunpack.c.l.b16 %v102
    %v2020 = vunpack.c.l.b16 %v103
    %v2021 = vunpack.c.l.b16 %v104
    %v2022 = vunpack.c.l.b16 %v105
    %v2023 = vunpack.c.l.b16 %v106
    %v2024 = vunpack.c.l.b16 %v107
    %v2025 = vunpack.c.l.b16 %v108
    %v2026 = vunpack.c.l.b16 %v109
    %v2027 = vunpack.c.l.b16 %v110
    %v2028 = vunpack.c.l.b16 %v111
    %v2029 = vunpack.c.l.b16 %v112
    %v2030 = vunpack.c.l.b16 %v113
    %v2031 = vunpack.c.l.b16 %v114
    %v2032 = vunpack.c.l.b16 %v115
    %v2033 = vunpack.c.l.b16 %v116
    %v2034 = vpack.c.b16 %v2019, %v2018
    %v2035 = vpack.c.b16 %v2021, %v2020
    %v2036 = vpack.c.b16 %v2023, %v2022
    %v2037 = vpack.c.b16 %v2025, %v2024
    %v2038 = vpack.c.b16 %v2027, %v2026
    %v2039 = vpack.c.b16 %v2029, %v2028
    %v2040 = vpack.c.b16 %v2031, %v2030
    %v2041 = vpack.c.b16 %v2033, %v2032
    %v2043 = vsel %vm1626, %v2034, 0
    %v2046 = vsel %vm1626, %v2035, 0
    %v2049 = vsel %vm1626, %v2036, 0
    %v2052 = vsel %vm1626, %v2037, 0
    %v2055 = vsel %vm1626, %v2038, 0
    %v2058 = vsel %vm1626, %v2039, 0
    %v2061 = vsel %vm1626, %v2040, 0
    %v2064 = vsel %vm1626, %v2041, 0
    %2066 = vmatpush.bf16.msra.mxu0 0
    %2067 = vmatpush.bf16.msra.mxu0 0
    %2068 = vmatpush.bf16.msra.mxu0 0
    %2069 = vmatpush.bf16.msra.mxu0 0
    %2070 = vmatpush.bf16.msra.mxu0 0
    %2071 = vmatpush.bf16.msra.mxu0 0
    %2072 = vmatpush.bf16.msra.mxu0 %v2001
    %2073 = vmatpush.bf16.msra.mxu0 %v2000
    %2074 = vmatmul.bf16.gmra.mxu0 %v2043
    %v2075 = vpop.f32.mrf.mxu0
    %v2076 = vadd.f32 0.0, %v2075
    %v2077 = vpop.f32.mrf.mxu0
    %v2078 = vadd.f32 0.0, %v2077
    %2079 = vmatmul.bf16.gmra.mxu0 %v2046
    %v2080 = vpop.f32.mrf.mxu0
    %v2081 = vadd.f32 0.0, %v2080
    %v2082 = vpop.f32.mrf.mxu0
    %v2083 = vadd.f32 0.0, %v2082
    %2084 = vmatmul.bf16.gmra.mxu0 %v2049
    %v2085 = vpop.f32.mrf.mxu0
    %v2086 = vadd.f32 0.0, %v2085
    %v2087 = vpop.f32.mrf.mxu0
    %v2088 = vadd.f32 0.0, %v2087
    %2089 = vmatmul.bf16.gmra.mxu0 %v2052
    %v2090 = vpop.f32.mrf.mxu0
    %v2091 = vadd.f32 0.0, %v2090
    %v2092 = vpop.f32.mrf.mxu0
    %v2093 = vadd.f32 0.0, %v2092
    %2094 = vmatmul.bf16.gmra.mxu0 %v2055
    %v2095 = vpop.f32.mrf.mxu0
    %v2096 = vadd.f32 0.0, %v2095
    %v2097 = vpop.f32.mrf.mxu0
    %v2098 = vadd.f32 0.0, %v2097
    %2099 = vmatmul.bf16.gmra.mxu0 %v2058
    %v2100 = vpop.f32.mrf.mxu0
    %v2101 = vadd.f32 0.0, %v2100
    %v2102 = vpop.f32.mrf.mxu0
    %v2103 = vadd.f32 0.0, %v2102
    %2104 = vmatmul.bf16.gmra.mxu0 %v2061
    %v2105 = vpop.f32.mrf.mxu0
    %v2106 = vadd.f32 0.0, %v2105
    %v2107 = vpop.f32.mrf.mxu0
    %v2108 = vadd.f32 0.0, %v2107
    %2109 = vmatmul.bf16.gmra.mxu0 %v2064
    %v2110 = vpop.f32.mrf.mxu0
    %v2111 = vadd.f32 0.0, %v2110
    %v2112 = vpop.f32.mrf.mxu0
    %v2113 = vadd.f32 0.0, %v2112
    %2114 = vdwg.mxu0
    %v2115 = vadd.f32 %v1980, %v2076
    %v2116 = vadd.f32 %v1981, %v2078
    %v2117 = vadd.f32 %v1982, %v2081
    %v2118 = vadd.f32 %v1983, %v2083
    %v2119 = vadd.f32 %v1984, %v2086
    %v2120 = vadd.f32 %v1985, %v2088
    %v2121 = vadd.f32 %v1986, %v2091
    %v2122 = vadd.f32 %v1987, %v2093
    %v2123 = vadd.f32 %v1988, %v2096
    %v2124 = vadd.f32 %v1989, %v2098
    %v2125 = vadd.f32 %v1990, %v2101
    %v2126 = vadd.f32 %v1991, %v2103
    %v2127 = vadd.f32 %v1992, %v2106
    %v2128 = vadd.f32 %v1993, %v2108
    %v2129 = vadd.f32 %v1994, %v2111
    %v2130 = vadd.f32 %v1995, %v2113
    %v2131 = vxor.u32 %v2115, 2147483648
    %v2132 = vxor.u32 %v2116, 2147483648
    %v2133 = vxor.u32 %v2117, 2147483648
    %v2134 = vxor.u32 %v2118, 2147483648
    %v2135 = vmul.f32 %v2131, 1.442695
    %v2136 = vpow.pop %v2135
    %v2137 = vmul.f32 %v2132, 1.442695
    %v2138 = vpow.pop %v2137
    %v2139 = vmul.f32 %v2133, 1.442695
    %v2140 = vpow.pop %v2139
    %v2141 = vmul.f32 %v2134, 1.442695
    %v2142 = vpow.pop %v2141
    %v2143 = vadd.f32 %v2136, 1.0
    %v2144 = vadd.f32 %v2138, 1.0
    %v2145 = vadd.f32 %v2140, 1.0
    %v2146 = vadd.f32 %v2142, 1.0
    %v2147 = vrcp.pop %v2143
    %v2148 = vmul.f32 %v2143, %v2147
    %v2149 = vsub.f32 1.0, %v2148
    %v2150 = vmul.f32 %v2147, %v2149
    %v2151 = vadd.f32 %v2147, %v2150
    %vm2152 = vweird.f32 %v2143
    %vm2153 = vweird.f32 %v2147
    %vm2154 = vmor %vm2152, %vm2153
    %v2155 = vsel %vm2154, %v2147, %v2151
    %v2156 = vand.u32 2147483647, %v2143
    %vm2157 = vcmp.eq.f32.partialorder %v2156, 8.507059e+37
    %v2158 = vand.u32 %v2143, 2147483648
    %v2159 = vor.u32 1.1754944e-38, %v2158
    %v2160 = vsel %vm2157, %v2159, %v2155
    %v2161 = vmul.f32 1.0, %v2160
    %v2162 = vrcp.pop %v2144
    %v2163 = vmul.f32 %v2144, %v2162
    %v2164 = vsub.f32 1.0, %v2163
    %v2165 = vmul.f32 %v2162, %v2164
    %v2166 = vadd.f32 %v2162, %v2165
    %vm2167 = vweird.f32 %v2144
    %vm2168 = vweird.f32 %v2162
    %vm2169 = vmor %vm2167, %vm2168
    %v2170 = vsel %vm2169, %v2162, %v2166
    %v2171 = vand.u32 2147483647, %v2144
    %vm2172 = vcmp.eq.f32.partialorder %v2171, 8.507059e+37
    %v2173 = vand.u32 %v2144, 2147483648
    %v2174 = vor.u32 1.1754944e-38, %v2173
    %v2175 = vsel %vm2172, %v2174, %v2170
    %v2176 = vmul.f32 1.0, %v2175
    %v2177 = vrcp.pop %v2145
    %v2178 = vmul.f32 %v2145, %v2177
    %v2179 = vsub.f32 1.0, %v2178
    %v2180 = vmul.f32 %v2177, %v2179
    %v2181 = vadd.f32 %v2177, %v2180
    %vm2182 = vweird.f32 %v2145
    %vm2183 = vweird.f32 %v2177
    %vm2184 = vmor %vm2182, %vm2183
    %v2185 = vsel %vm2184, %v2177, %v2181
    %v2186 = vand.u32 2147483647, %v2145
    %vm2187 = vcmp.eq.f32.partialorder %v2186, 8.507059e+37
    %v2188 = vand.u32 %v2145, 2147483648
    %v2189 = vor.u32 1.1754944e-38, %v2188
    %v2190 = vsel %vm2187, %v2189, %v2185
    %v2191 = vmul.f32 1.0, %v2190
    %v2192 = vrcp.pop %v2146
    %v2193 = vmul.f32 %v2146, %v2192
    %v2194 = vsub.f32 1.0, %v2193
    %v2195 = vmul.f32 %v2192, %v2194
    %v2196 = vadd.f32 %v2192, %v2195
    %vm2197 = vweird.f32 %v2146
    %vm2198 = vweird.f32 %v2192
    %vm2199 = vmor %vm2197, %vm2198
    %v2200 = vsel %vm2199, %v2192, %v2196
    %v2201 = vand.u32 2147483647, %v2146
    %vm2202 = vcmp.eq.f32.partialorder %v2201, 8.507059e+37
    %v2203 = vand.u32 %v2146, 2147483648
    %v2204 = vor.u32 1.1754944e-38, %v2203
    %v2205 = vsel %vm2202, %v2204, %v2200
    %v2206 = vmul.f32 1.0, %v2205
    %v2207 = vxor.u32 %v2119, 2147483648
    %v2208 = vxor.u32 %v2120, 2147483648
    %v2209 = vxor.u32 %v2121, 2147483648
    %v2210 = vxor.u32 %v2122, 2147483648
    %v2211 = vmul.f32 %v2207, 1.442695
    %v2212 = vpow.pop %v2211
    %v2213 = vmul.f32 %v2208, 1.442695
    %v2214 = vpow.pop %v2213
    %v2215 = vmul.f32 %v2209, 1.442695
    %v2216 = vpow.pop %v2215
    %v2217 = vmul.f32 %v2210, 1.442695
    %v2218 = vpow.pop %v2217
    %v2219 = vadd.f32 %v2212, 1.0
    %v2220 = vadd.f32 %v2214, 1.0
    %v2221 = vadd.f32 %v2216, 1.0
    %v2222 = vadd.f32 %v2218, 1.0
    %v2223 = vrcp.pop %v2219
    %v2224 = vmul.f32 %v2219, %v2223
    %v2225 = vsub.f32 1.0, %v2224
    %v2226 = vmul.f32 %v2223, %v2225
    %v2227 = vadd.f32 %v2223, %v2226
    %vm2228 = vweird.f32 %v2219
    %vm2229 = vweird.f32 %v2223
    %vm2230 = vmor %vm2228, %vm2229
    %v2231 = vsel %vm2230, %v2223, %v2227
    %v2232 = vand.u32 2147483647, %v2219
    %vm2233 = vcmp.eq.f32.partialorder %v2232, 8.507059e+37
    %v2234 = vand.u32 %v2219, 2147483648
    %v2235 = vor.u32 1.1754944e-38, %v2234
    %v2236 = vsel %vm2233, %v2235, %v2231
    %v2237 = vmul.f32 1.0, %v2236
    %v2238 = vrcp.pop %v2220
    %v2239 = vmul.f32 %v2220, %v2238
    %v2240 = vsub.f32 1.0, %v2239
    %v2241 = vmul.f32 %v2238, %v2240
    %v2242 = vadd.f32 %v2238, %v2241
    %vm2243 = vweird.f32 %v2220
    %vm2244 = vweird.f32 %v2238
    %vm2245 = vmor %vm2243, %vm2244
    %v2246 = vsel %vm2245, %v2238, %v2242
    %v2247 = vand.u32 2147483647, %v2220
    %vm2248 = vcmp.eq.f32.partialorder %v2247, 8.507059e+37
    %v2249 = vand.u32 %v2220, 2147483648
    %v2250 = vor.u32 1.1754944e-38, %v2249
    %v2251 = vsel %vm2248, %v2250, %v2246
    %v2252 = vmul.f32 1.0, %v2251
    %v2253 = vrcp.pop %v2221
    %v2254 = vmul.f32 %v2221, %v2253
    %v2255 = vsub.f32 1.0, %v2254
    %v2256 = vmul.f32 %v2253, %v2255
    %v2257 = vadd.f32 %v2253, %v2256
    %vm2258 = vweird.f32 %v2221
    %vm2259 = vweird.f32 %v2253
    %vm2260 = vmor %vm2258, %vm2259
    %v2261 = vsel %vm2260, %v2253, %v2257
    %v2262 = vand.u32 2147483647, %v2221
    %vm2263 = vcmp.eq.f32.partialorder %v2262, 8.507059e+37
    %v2264 = vand.u32 %v2221, 2147483648
    %v2265 = vor.u32 1.1754944e-38, %v2264
    %v2266 = vsel %vm2263, %v2265, %v2261
    %v2267 = vmul.f32 1.0, %v2266
    %v2268 = vrcp.pop %v2222
    %v2269 = vmul.f32 %v2222, %v2268
    %v2270 = vsub.f32 1.0, %v2269
    %v2271 = vmul.f32 %v2268, %v2270
    %v2272 = vadd.f32 %v2268, %v2271
    %vm2273 = vweird.f32 %v2222
    %vm2274 = vweird.f32 %v2268
    %vm2275 = vmor %vm2273, %vm2274
    %v2276 = vsel %vm2275, %v2268, %v2272
    %v2277 = vand.u32 2147483647, %v2222
    %vm2278 = vcmp.eq.f32.partialorder %v2277, 8.507059e+37
    %v2279 = vand.u32 %v2222, 2147483648
    %v2280 = vor.u32 1.1754944e-38, %v2279
    %v2281 = vsel %vm2278, %v2280, %v2276
    %v2282 = vmul.f32 1.0, %v2281
    %v2283 = vtanh.pop %v2123
    %v2284 = vtanh.pop %v2124
    %v2285 = vtanh.pop %v2125
    %v2286 = vtanh.pop %v2126
    %v2287 = vxor.u32 %v2127, 2147483648
    %v2288 = vxor.u32 %v2128, 2147483648
    %v2289 = vxor.u32 %v2129, 2147483648
    %v2290 = vxor.u32 %v2130, 2147483648
    %v2291 = vmul.f32 %v2287, 1.442695
    %v2292 = vpow.pop %v2291
    %v2293 = vmul.f32 %v2288, 1.442695
    %v2294 = vpow.pop %v2293
    %v2295 = vmul.f32 %v2289, 1.442695
    %v2296 = vpow.pop %v2295
    %v2297 = vmul.f32 %v2290, 1.442695
    %v2298 = vpow.pop %v2297
    %v2299 = vadd.f32 %v2292, 1.0
    %v2300 = vadd.f32 %v2294, 1.0
    %v2301 = vadd.f32 %v2296, 1.0
    %v2302 = vadd.f32 %v2298, 1.0
    %v2303 = vrcp.pop %v2299
    %v2304 = vmul.f32 %v2299, %v2303
    %v2305 = vsub.f32 1.0, %v2304
    %v2306 = vmul.f32 %v2303, %v2305
    %v2307 = vadd.f32 %v2303, %v2306
    %vm2308 = vweird.f32 %v2299
    %vm2309 = vweird.f32 %v2303
    %vm2310 = vmor %vm2308, %vm2309
    %v2311 = vsel %vm2310, %v2303, %v2307
    %v2312 = vand.u32 2147483647, %v2299
    %vm2313 = vcmp.eq.f32.partialorder %v2312, 8.507059e+37
    %v2314 = vand.u32 %v2299, 2147483648
    %v2315 = vor.u32 1.1754944e-38, %v2314
    %v2316 = vsel %vm2313, %v2315, %v2311
    %v2317 = vmul.f32 1.0, %v2316
    %v2318 = vrcp.pop %v2300
    %v2319 = vmul.f32 %v2300, %v2318
    %v2320 = vsub.f32 1.0, %v2319
    %v2321 = vmul.f32 %v2318, %v2320
    %v2322 = vadd.f32 %v2318, %v2321
    %vm2323 = vweird.f32 %v2300
    %vm2324 = vweird.f32 %v2318
    %vm2325 = vmor %vm2323, %vm2324
    %v2326 = vsel %vm2325, %v2318, %v2322
    %v2327 = vand.u32 2147483647, %v2300
    %vm2328 = vcmp.eq.f32.partialorder %v2327, 8.507059e+37
    %v2329 = vand.u32 %v2300, 2147483648
    %v2330 = vor.u32 1.1754944e-38, %v2329
    %v2331 = vsel %vm2328, %v2330, %v2326
    %v2332 = vmul.f32 1.0, %v2331
    %v2333 = vrcp.pop %v2301
    %v2334 = vmul.f32 %v2301, %v2333
    %v2335 = vsub.f32 1.0, %v2334
    %v2336 = vmul.f32 %v2333, %v2335
    %v2337 = vadd.f32 %v2333, %v2336
    %vm2338 = vweird.f32 %v2301
    %vm2339 = vweird.f32 %v2333
    %vm2340 = vmor %vm2338, %vm2339
    %v2341 = vsel %vm2340, %v2333, %v2337
    %v2342 = vand.u32 2147483647, %v2301
    %vm2343 = vcmp.eq.f32.partialorder %v2342, 8.507059e+37
    %v2344 = vand.u32 %v2301, 2147483648
    %v2345 = vor.u32 1.1754944e-38, %v2344
    %v2346 = vsel %vm2343, %v2345, %v2341
    %v2347 = vmul.f32 1.0, %v2346
    %v2348 = vrcp.pop %v2302
    %v2349 = vmul.f32 %v2302, %v2348
    %v2350 = vsub.f32 1.0, %v2349
    %v2351 = vmul.f32 %v2348, %v2350
    %v2352 = vadd.f32 %v2348, %v2351
    %vm2353 = vweird.f32 %v2302
    %vm2354 = vweird.f32 %v2348
    %vm2355 = vmor %vm2353, %vm2354
    %v2356 = vsel %vm2355, %v2348, %v2352
    %v2357 = vand.u32 2147483647, %v2302
    %vm2358 = vcmp.eq.f32.partialorder %v2357, 8.507059e+37
    %v2359 = vand.u32 %v2302, 2147483648
    %v2360 = vor.u32 1.1754944e-38, %v2359
    %v2361 = vsel %vm2358, %v2360, %v2356
    %v2362 = vmul.f32 1.0, %v2361
    %v2363 = vld [vmem:[#allocation5] sm:$0xff]
    %v2364 = vld [vmem:[#allocation5 + $0x8] sm:$0xff]
    %v2365 = vld [vmem:[#allocation5 + $0x10] sm:$0xff]
    %v2366 = vld [vmem:[#allocation5 + $0x18] sm:$0xff]
    %v2367 = vmul.f32 %v2237, %v2363
    %v2368 = vmul.f32 %v2252, %v2364
    %v2369 = vmul.f32 %v2267, %v2365
    %v2370 = vmul.f32 %v2282, %v2366
    %v2371 = vmul.f32 %v2161, %v2283
    %v2372 = vmul.f32 %v2176, %v2284
    %v2373 = vmul.f32 %v2191, %v2285
    %v2374 = vmul.f32 %v2206, %v2286
    %v2375 = vadd.f32 %v2367, %v2371
    %v2376 = vadd.f32 %v2368, %v2372
    %v2377 = vadd.f32 %v2369, %v2373
    %v2378 = vadd.f32 %v2370, %v2374
    %v2379 = vtanh.pop %v2375
    %v2380 = vtanh.pop %v2376
    %v2381 = vtanh.pop %v2377
    %v2382 = vtanh.pop %v2378
    %v2383 = vmul.f32 %v2317, %v2379
    %v2384 = vmul.f32 %v2332, %v2380
    %v2385 = vmul.f32 %v2347, %v2381
    %v2386 = vmul.f32 %v2362, %v2382
    %2387 = vst [vmem:[#allocation5] sm:$0xff] %v2375
    %2388 = vst [vmem:[#allocation5 + $0x8] sm:$0xff] %v2376
    %2389 = vst [vmem:[#allocation5 + $0x10] sm:$0xff] %v2377
    %2390 = vst [vmem:[#allocation5 + $0x18] sm:$0xff] %v2378
    %2391 = vst [vmem:[#allocation4] sm:$0xff] %v2383
    %2392 = vst [vmem:[#allocation4 + $0x8] sm:$0xff] %v2384
    %2393 = vst [vmem:[#allocation4 + $0x10] sm:$0xff] %v2385
    %2394 = vst [vmem:[#allocation4 + $0x18] sm:$0xff] %v2386
    %v2395 = vpack.c.bf16 %v1969, %v1968
    %v2396 = vpack.c.bf16 %v1971, %v1970
    %v2397 = vpack.c.bf16 %v2384, %v2383
    %v2398 = vpack.c.bf16 %v2386, %v2385
    %v2403 = vunpack.c.l.b16 %v117
    %v2404 = vunpack.c.l.b16 %v118
    %v2405 = vunpack.c.l.b16 %v119
    %v2406 = vunpack.c.l.b16 %v120
    %v2407 = vpack.c.b16 %v2404, %v2403
    %v2408 = vpack.c.b16 %v2406, %v2405
    %v2410 = vsel %vm1626, %v2407, 0
    %v2413 = vsel %vm1626, %v2408, 0
    %2415 = vmatpush.bf16.msra.mxu0 0
    %2416 = vmatpush.bf16.msra.mxu0 0
    %2417 = vmatpush.bf16.msra.mxu0 0
    %2418 = vmatpush.bf16.msra.mxu0 0
    %2419 = vmatpush.bf16.msra.mxu0 0
    %2420 = vmatpush.bf16.msra.mxu0 0
    %2421 = vmatpush.bf16.msra.mxu0 %v2396
    %2422 = vmatpush.bf16.msra.mxu0 %v2395
    %2423 = vmatmul.bf16.gmra.mxu0 %v2410
    %v2424 = vpop.f32.mrf.mxu0
    %v2425 = vadd.f32 %v324, %v2424
    %v2426 = vpop.f32.mrf.mxu0
    %v2427 = vadd.f32 %v329, %v2426
    %2428 = vmatmul.bf16.gmra.mxu0 %v2413
    %v2429 = vpop.f32.mrf.mxu0
    %v2430 = vadd.f32 %v334, %v2429
    %v2431 = vpop.f32.mrf.mxu0
    %v2432 = vadd.f32 %v339, %v2431
    %2433 = vdwg.mxu0
    %2434 = vst [vmem:[#allocation8] sm:$0xff] %v2425
    %2435 = vst [vmem:[#allocation8 + $0x8] sm:$0xff] %v2427
    %2436 = vst [vmem:[#allocation8 + $0x10] sm:$0xff] %v2430
    %2437 = vst [vmem:[#allocation8 + $0x18] sm:$0xff] %v2432
    %v2442 = vunpack.c.l.b16 %v121
    %v2443 = vunpack.c.l.b16 %v122
    %v2444 = vunpack.c.l.b16 %v123
    %v2445 = vunpack.c.l.b16 %v124
    %v2446 = vpack.c.b16 %v2443, %v2442
    %v2447 = vpack.c.b16 %v2445, %v2444
    %v2449 = vsel %vm1626, %v2446, 0
    %v2452 = vsel %vm1626, %v2447, 0
    %2454 = vmatpush.bf16.msra.mxu0 0
    %2455 = vmatpush.bf16.msra.mxu0 0
    %2456 = vmatpush.bf16.msra.mxu0 0
    %2457 = vmatpush.bf16.msra.mxu0 0
    %2458 = vmatpush.bf16.msra.mxu0 0
    %2459 = vmatpush.bf16.msra.mxu0 0
    %2460 = vmatpush.bf16.msra.mxu0 %v2398
    %2461 = vmatpush.bf16.msra.mxu0 %v2397
    %2462 = vmatmul.bf16.gmra.mxu0 %v2449
    %v2463 = vpop.f32.mrf.mxu0
    %v2464 = vadd.f32 %v324, %v2463
    %v2465 = vpop.f32.mrf.mxu0
    %v2466 = vadd.f32 %v329, %v2465
    %2467 = vmatmul.bf16.gmra.mxu0 %v2452
    %v2468 = vpop.f32.mrf.mxu0
    %v2469 = vadd.f32 %v334, %v2468
    %v2470 = vpop.f32.mrf.mxu0
    %v2471 = vadd.f32 %v339, %v2470
    %2472 = vdwg.mxu0
    %s2473 = scalar_lea.vmem [#allocation8], 224
    %2474 = vst [vmem:[%s2473] sm:$0xff] %v2464
    %2475 = vst [vmem:[%s2473 + $0x8] sm:$0xff] %v2466
    %2476 = vst [vmem:[%s2473 + $0x10] sm:$0xff] %v2469
    %2477 = vst [vmem:[%s2473 + $0x18] sm:$0xff] %v2471
    %v2478 = vld [vmem:[%s659] sm:$0xff]
    %v2479 = vld [vmem:[%s659 + $0x8] sm:$0xff]
    %v2480 = vld [vmem:[%s659 + $0x10] sm:$0xff]
    %v2481 = vld [vmem:[%s659 + $0x18] sm:$0xff]
    %v2482 = vld [vmem:[%s659 + $0x20] sm:$0xff]
    %v2483 = vld [vmem:[%s659 + $0x28] sm:$0xff]
    %v2484 = vld [vmem:[%s659 + $0x30] sm:$0xff]
    %v2485 = vld [vmem:[%s659 + $0x38] sm:$0xff]
    %v2486 = vld [vmem:[%s659 + $0x40] sm:$0xff]
    %v2487 = vld [vmem:[%s659 + $0x48] sm:$0xff]
    %v2488 = vld [vmem:[%s659 + $0x50] sm:$0xff]
    %v2489 = vld [vmem:[%s659 + $0x58] sm:$0xff]
    %v2490 = vld [vmem:[%s659 + $0x60] sm:$0xff]
    %v2491 = vld [vmem:[%s659 + $0x68] sm:$0xff]
    %v2492 = vld [vmem:[%s659 + $0x70] sm:$0xff]
    %v2493 = vld [vmem:[%s659 + $0x78] sm:$0xff]
    %v2494 = vld [vmem:[#allocation2] sm:$0xff]
    %v2495 = vld [vmem:[#allocation2 + $0x8] sm:$0xff]
    %v2496 = vld [vmem:[#allocation2 + $0x10] sm:$0xff]
    %v2497 = vld [vmem:[#allocation2 + $0x18] sm:$0xff]
    %v2498 = vpack.c.bf16 %v2495, %v2494
    %v2499 = vpack.c.bf16 %v2497, %v2496
    %2500 = vmatpush.bf16.msra.mxu0 0
    %2501 = vmatpush.bf16.msra.mxu0 0
    %2502 = vmatpush.bf16.msra.mxu0 0
    %2503 = vmatpush.bf16.msra.mxu0 0
    %2504 = vmatpush.bf16.msra.mxu0 0
    %2505 = vmatpush.bf16.msra.mxu0 0
    %2506 = vmatpush.bf16.msra.mxu0 %v2499
    %2507 = vmatpush.bf16.msra.mxu0 %v2498
    %2508 = vmatmul.bf16.gmra.mxu0 %v1628
    %v2509 = vpop.f32.mrf.mxu0
    %v2510 = vadd.f32 0.0, %v2509
    %v2511 = vpop.f32.mrf.mxu0
    %v2512 = vadd.f32 0.0, %v2511
    %2513 = vmatmul.bf16.gmra.mxu0 %v1631
    %v2514 = vpop.f32.mrf.mxu0
    %v2515 = vadd.f32 0.0, %v2514
    %v2516 = vpop.f32.mrf.mxu0
    %v2517 = vadd.f32 0.0, %v2516
    %2518 = vmatmul.bf16.gmra.mxu0 %v1634
    %v2519 = vpop.f32.mrf.mxu0
    %v2520 = vadd.f32 0.0, %v2519
    %v2521 = vpop.f32.mrf.mxu0
    %v2522 = vadd.f32 0.0, %v2521
    %2523 = vmatmul.bf16.gmra.mxu0 %v1637
    %v2524 = vpop.f32.mrf.mxu0
    %v2525 = vadd.f32 0.0, %v2524
    %v2526 = vpop.f32.mrf.mxu0
    %v2527 = vadd.f32 0.0, %v2526
    %2528 = vmatmul.bf16.gmra.mxu0 %v1640
    %v2529 = vpop.f32.mrf.mxu0
    %v2530 = vadd.f32 0.0, %v2529
    %v2531 = vpop.f32.mrf.mxu0
    %v2532 = vadd.f32 0.0, %v2531
    %2533 = vmatmul.bf16.gmra.mxu0 %v1643
    %v2534 = vpop.f32.mrf.mxu0
    %v2535 = vadd.f32 0.0, %v2534
    %v2536 = vpop.f32.mrf.mxu0
    %v2537 = vadd.f32 0.0, %v2536
    %2538 = vmatmul.bf16.gmra.mxu0 %v1646
    %v2539 = vpop.f32.mrf.mxu0
    %v2540 = vadd.f32 0.0, %v2539
    %v2541 = vpop.f32.mrf.mxu0
    %v2542 = vadd.f32 0.0, %v2541
    %2543 = vmatmul.bf16.gmra.mxu0 %v1649
    %v2544 = vpop.f32.mrf.mxu0
    %v2545 = vadd.f32 0.0, %v2544
    %v2546 = vpop.f32.mrf.mxu0
    %v2547 = vadd.f32 0.0, %v2546
    %2548 = vdwg.mxu0
    %v2549 = vadd.f32 %v2478, %v2510
    %v2550 = vadd.f32 %v2479, %v2512
    %v2551 = vadd.f32 %v2480, %v2515
    %v2552 = vadd.f32 %v2481, %v2517
    %v2553 = vadd.f32 %v2482, %v2520
    %v2554 = vadd.f32 %v2483, %v2522
    %v2555 = vadd.f32 %v2484, %v2525
    %v2556 = vadd.f32 %v2485, %v2527
    %v2557 = vadd.f32 %v2486, %v2530
    %v2558 = vadd.f32 %v2487, %v2532
    %v2559 = vadd.f32 %v2488, %v2535
    %v2560 = vadd.f32 %v2489, %v2537
    %v2561 = vadd.f32 %v2490, %v2540
    %v2562 = vadd.f32 %v2491, %v2542
    %v2563 = vadd.f32 %v2492, %v2545
    %v2564 = vadd.f32 %v2493, %v2547
    %v2565 = vxor.u32 %v2549, 2147483648
    %v2566 = vxor.u32 %v2550, 2147483648
    %v2567 = vxor.u32 %v2551, 2147483648
    %v2568 = vxor.u32 %v2552, 2147483648
    %v2569 = vmul.f32 %v2565, 1.442695
    %v2570 = vpow.pop %v2569
    %v2571 = vmul.f32 %v2566, 1.442695
    %v2572 = vpow.pop %v2571
    %v2573 = vmul.f32 %v2567, 1.442695
    %v2574 = vpow.pop %v2573
    %v2575 = vmul.f32 %v2568, 1.442695
    %v2576 = vpow.pop %v2575
    %v2577 = vadd.f32 %v2570, 1.0
    %v2578 = vadd.f32 %v2572, 1.0
    %v2579 = vadd.f32 %v2574, 1.0
    %v2580 = vadd.f32 %v2576, 1.0
    %v2581 = vrcp.pop %v2577
    %v2582 = vmul.f32 %v2577, %v2581
    %v2583 = vsub.f32 1.0, %v2582
    %v2584 = vmul.f32 %v2581, %v2583
    %v2585 = vadd.f32 %v2581, %v2584
    %vm2586 = vweird.f32 %v2577
    %vm2587 = vweird.f32 %v2581
    %vm2588 = vmor %vm2586, %vm2587
    %v2589 = vsel %vm2588, %v2581, %v2585
    %v2590 = vand.u32 2147483647, %v2577
    %vm2591 = vcmp.eq.f32.partialorder %v2590, 8.507059e+37
    %v2592 = vand.u32 %v2577, 2147483648
    %v2593 = vor.u32 1.1754944e-38, %v2592
    %v2594 = vsel %vm2591, %v2593, %v2589
    %v2595 = vmul.f32 1.0, %v2594
    %v2596 = vrcp.pop %v2578
    %v2597 = vmul.f32 %v2578, %v2596
    %v2598 = vsub.f32 1.0, %v2597
    %v2599 = vmul.f32 %v2596, %v2598
    %v2600 = vadd.f32 %v2596, %v2599
    %vm2601 = vweird.f32 %v2578
    %vm2602 = vweird.f32 %v2596
    %vm2603 = vmor %vm2601, %vm2602
    %v2604 = vsel %vm2603, %v2596, %v2600
    %v2605 = vand.u32 2147483647, %v2578
    %vm2606 = vcmp.eq.f32.partialorder %v2605, 8.507059e+37
    %v2607 = vand.u32 %v2578, 2147483648
    %v2608 = vor.u32 1.1754944e-38, %v2607
    %v2609 = vsel %vm2606, %v2608, %v2604
    %v2610 = vmul.f32 1.0, %v2609
    %v2611 = vrcp.pop %v2579
    %v2612 = vmul.f32 %v2579, %v2611
    %v2613 = vsub.f32 1.0, %v2612
    %v2614 = vmul.f32 %v2611, %v2613
    %v2615 = vadd.f32 %v2611, %v2614
    %vm2616 = vweird.f32 %v2579
    %vm2617 = vweird.f32 %v2611
    %vm2618 = vmor %vm2616, %vm2617
    %v2619 = vsel %vm2618, %v2611, %v2615
    %v2620 = vand.u32 2147483647, %v2579
    %vm2621 = vcmp.eq.f32.partialorder %v2620, 8.507059e+37
    %v2622 = vand.u32 %v2579, 2147483648
    %v2623 = vor.u32 1.1754944e-38, %v2622
    %v2624 = vsel %vm2621, %v2623, %v2619
    %v2625 = vmul.f32 1.0, %v2624
    %v2626 = vrcp.pop %v2580
    %v2627 = vmul.f32 %v2580, %v2626
    %v2628 = vsub.f32 1.0, %v2627
    %v2629 = vmul.f32 %v2626, %v2628
    %v2630 = vadd.f32 %v2626, %v2629
    %vm2631 = vweird.f32 %v2580
    %vm2632 = vweird.f32 %v2626
    %vm2633 = vmor %vm2631, %vm2632
    %v2634 = vsel %vm2633, %v2626, %v2630
    %v2635 = vand.u32 2147483647, %v2580
    %vm2636 = vcmp.eq.f32.partialorder %v2635, 8.507059e+37
    %v2637 = vand.u32 %v2580, 2147483648
    %v2638 = vor.u32 1.1754944e-38, %v2637
    %v2639 = vsel %vm2636, %v2638, %v2634
    %v2640 = vmul.f32 1.0, %v2639
    %v2641 = vxor.u32 %v2553, 2147483648
    %v2642 = vxor.u32 %v2554, 2147483648
    %v2643 = vxor.u32 %v2555, 2147483648
    %v2644 = vxor.u32 %v2556, 2147483648
    %v2645 = vmul.f32 %v2641, 1.442695
    %v2646 = vpow.pop %v2645
    %v2647 = vmul.f32 %v2642, 1.442695
    %v2648 = vpow.pop %v2647
    %v2649 = vmul.f32 %v2643, 1.442695
    %v2650 = vpow.pop %v2649
    %v2651 = vmul.f32 %v2644, 1.442695
    %v2652 = vpow.pop %v2651
    %v2653 = vadd.f32 %v2646, 1.0
    %v2654 = vadd.f32 %v2648, 1.0
    %v2655 = vadd.f32 %v2650, 1.0
    %v2656 = vadd.f32 %v2652, 1.0
    %v2657 = vrcp.pop %v2653
    %v2658 = vmul.f32 %v2653, %v2657
    %v2659 = vsub.f32 1.0, %v2658
    %v2660 = vmul.f32 %v2657, %v2659
    %v2661 = vadd.f32 %v2657, %v2660
    %vm2662 = vweird.f32 %v2653
    %vm2663 = vweird.f32 %v2657
    %vm2664 = vmor %vm2662, %vm2663
    %v2665 = vsel %vm2664, %v2657, %v2661
    %v2666 = vand.u32 2147483647, %v2653
    %vm2667 = vcmp.eq.f32.partialorder %v2666, 8.507059e+37
    %v2668 = vand.u32 %v2653, 2147483648
    %v2669 = vor.u32 1.1754944e-38, %v2668
    %v2670 = vsel %vm2667, %v2669, %v2665
    %v2671 = vmul.f32 1.0, %v2670
    %v2672 = vrcp.pop %v2654
    %v2673 = vmul.f32 %v2654, %v2672
    %v2674 = vsub.f32 1.0, %v2673
    %v2675 = vmul.f32 %v2672, %v2674
    %v2676 = vadd.f32 %v2672, %v2675
    %vm2677 = vweird.f32 %v2654
    %vm2678 = vweird.f32 %v2672
    %vm2679 = vmor %vm2677, %vm2678
    %v2680 = vsel %vm2679, %v2672, %v2676
    %v2681 = vand.u32 2147483647, %v2654
    %vm2682 = vcmp.eq.f32.partialorder %v2681, 8.507059e+37
    %v2683 = vand.u32 %v2654, 2147483648
    %v2684 = vor.u32 1.1754944e-38, %v2683
    %v2685 = vsel %vm2682, %v2684, %v2680
    %v2686 = vmul.f32 1.0, %v2685
    %v2687 = vrcp.pop %v2655
    %v2688 = vmul.f32 %v2655, %v2687
    %v2689 = vsub.f32 1.0, %v2688
    %v2690 = vmul.f32 %v2687, %v2689
    %v2691 = vadd.f32 %v2687, %v2690
    %vm2692 = vweird.f32 %v2655
    %vm2693 = vweird.f32 %v2687
    %vm2694 = vmor %vm2692, %vm2693
    %v2695 = vsel %vm2694, %v2687, %v2691
    %v2696 = vand.u32 2147483647, %v2655
    %vm2697 = vcmp.eq.f32.partialorder %v2696, 8.507059e+37
    %v2698 = vand.u32 %v2655, 2147483648
    %v2699 = vor.u32 1.1754944e-38, %v2698
    %v2700 = vsel %vm2697, %v2699, %v2695
    %v2701 = vmul.f32 1.0, %v2700
    %v2702 = vrcp.pop %v2656
    %v2703 = vmul.f32 %v2656, %v2702
    %v2704 = vsub.f32 1.0, %v2703
    %v2705 = vmul.f32 %v2702, %v2704
    %v2706 = vadd.f32 %v2702, %v2705
    %vm2707 = vweird.f32 %v2656
    %vm2708 = vweird.f32 %v2702
    %vm2709 = vmor %vm2707, %vm2708
    %v2710 = vsel %vm2709, %v2702, %v2706
    %v2711 = vand.u32 2147483647, %v2656
    %vm2712 = vcmp.eq.f32.partialorder %v2711, 8.507059e+37
    %v2713 = vand.u32 %v2656, 2147483648
    %v2714 = vor.u32 1.1754944e-38, %v2713
    %v2715 = vsel %vm2712, %v2714, %v2710
    %v2716 = vmul.f32 1.0, %v2715
    %v2717 = vtanh.pop %v2557
    %v2718 = vtanh.pop %v2558
    %v2719 = vtanh.pop %v2559
    %v2720 = vtanh.pop %v2560
    %v2721 = vxor.u32 %v2561, 2147483648
    %v2722 = vxor.u32 %v2562, 2147483648
    %v2723 = vxor.u32 %v2563, 2147483648
    %v2724 = vxor.u32 %v2564, 2147483648
    %v2725 = vmul.f32 %v2721, 1.442695
    %v2726 = vpow.pop %v2725
    %v2727 = vmul.f32 %v2722, 1.442695
    %v2728 = vpow.pop %v2727
    %v2729 = vmul.f32 %v2723, 1.442695
    %v2730 = vpow.pop %v2729
    %v2731 = vmul.f32 %v2724, 1.442695
    %v2732 = vpow.pop %v2731
    %v2733 = vadd.f32 %v2726, 1.0
    %v2734 = vadd.f32 %v2728, 1.0
    %v2735 = vadd.f32 %v2730, 1.0
    %v2736 = vadd.f32 %v2732, 1.0
    %v2737 = vrcp.pop %v2733
    %v2738 = vmul.f32 %v2733, %v2737
    %v2739 = vsub.f32 1.0, %v2738
    %v2740 = vmul.f32 %v2737, %v2739
    %v2741 = vadd.f32 %v2737, %v2740
    %vm2742 = vweird.f32 %v2733
    %vm2743 = vweird.f32 %v2737
    %vm2744 = vmor %vm2742, %vm2743
    %v2745 = vsel %vm2744, %v2737, %v2741
    %v2746 = vand.u32 2147483647, %v2733
    %vm2747 = vcmp.eq.f32.partialorder %v2746, 8.507059e+37
    %v2748 = vand.u32 %v2733, 2147483648
    %v2749 = vor.u32 1.1754944e-38, %v2748
    %v2750 = vsel %vm2747, %v2749, %v2745
    %v2751 = vmul.f32 1.0, %v2750
    %v2752 = vrcp.pop %v2734
    %v2753 = vmul.f32 %v2734, %v2752
    %v2754 = vsub.f32 1.0, %v2753
    %v2755 = vmul.f32 %v2752, %v2754
    %v2756 = vadd.f32 %v2752, %v2755
    %vm2757 = vweird.f32 %v2734
    %vm2758 = vweird.f32 %v2752
    %vm2759 = vmor %vm2757, %vm2758
    %v2760 = vsel %vm2759, %v2752, %v2756
    %v2761 = vand.u32 2147483647, %v2734
    %vm2762 = vcmp.eq.f32.partialorder %v2761, 8.507059e+37
    %v2763 = vand.u32 %v2734, 2147483648
    %v2764 = vor.u32 1.1754944e-38, %v2763
    %v2765 = vsel %vm2762, %v2764, %v2760
    %v2766 = vmul.f32 1.0, %v2765
    %v2767 = vrcp.pop %v2735
    %v2768 = vmul.f32 %v2735, %v2767
    %v2769 = vsub.f32 1.0, %v2768
    %v2770 = vmul.f32 %v2767, %v2769
    %v2771 = vadd.f32 %v2767, %v2770
    %vm2772 = vweird.f32 %v2735
    %vm2773 = vweird.f32 %v2767
    %vm2774 = vmor %vm2772, %vm2773
    %v2775 = vsel %vm2774, %v2767, %v2771
    %v2776 = vand.u32 2147483647, %v2735
    %vm2777 = vcmp.eq.f32.partialorder %v2776, 8.507059e+37
    %v2778 = vand.u32 %v2735, 2147483648
    %v2779 = vor.u32 1.1754944e-38, %v2778
    %v2780 = vsel %vm2777, %v2779, %v2775
    %v2781 = vmul.f32 1.0, %v2780
    %v2782 = vrcp.pop %v2736
    %v2783 = vmul.f32 %v2736, %v2782
    %v2784 = vsub.f32 1.0, %v2783
    %v2785 = vmul.f32 %v2782, %v2784
    %v2786 = vadd.f32 %v2782, %v2785
    %vm2787 = vweird.f32 %v2736
    %vm2788 = vweird.f32 %v2782
    %vm2789 = vmor %vm2787, %vm2788
    %v2790 = vsel %vm2789, %v2782, %v2786
    %v2791 = vand.u32 2147483647, %v2736
    %vm2792 = vcmp.eq.f32.partialorder %v2791, 8.507059e+37
    %v2793 = vand.u32 %v2736, 2147483648
    %v2794 = vor.u32 1.1754944e-38, %v2793
    %v2795 = vsel %vm2792, %v2794, %v2790
    %v2796 = vmul.f32 1.0, %v2795
    %v2797 = vld [vmem:[#allocation3] sm:$0xff]
    %v2798 = vld [vmem:[#allocation3 + $0x8] sm:$0xff]
    %v2799 = vld [vmem:[#allocation3 + $0x10] sm:$0xff]
    %v2800 = vld [vmem:[#allocation3 + $0x18] sm:$0xff]
    %v2801 = vmul.f32 %v2671, %v2797
    %v2802 = vmul.f32 %v2686, %v2798
    %v2803 = vmul.f32 %v2701, %v2799
    %v2804 = vmul.f32 %v2716, %v2800
    %v2805 = vmul.f32 %v2595, %v2717
    %v2806 = vmul.f32 %v2610, %v2718
    %v2807 = vmul.f32 %v2625, %v2719
    %v2808 = vmul.f32 %v2640, %v2720
    %v2809 = vadd.f32 %v2801, %v2805
    %v2810 = vadd.f32 %v2802, %v2806
    %v2811 = vadd.f32 %v2803, %v2807
    %v2812 = vadd.f32 %v2804, %v2808
    %v2813 = vtanh.pop %v2809
    %v2814 = vtanh.pop %v2810
    %v2815 = vtanh.pop %v2811
    %v2816 = vtanh.pop %v2812
    %v2817 = vmul.f32 %v2751, %v2813
    %v2818 = vmul.f32 %v2766, %v2814
    %v2819 = vmul.f32 %v2781, %v2815
    %v2820 = vmul.f32 %v2796, %v2816
    %2821 = vst [vmem:[#allocation3] sm:$0xff] %v2809
    %2822 = vst [vmem:[#allocation3 + $0x8] sm:$0xff] %v2810
    %2823 = vst [vmem:[#allocation3 + $0x10] sm:$0xff] %v2811
    %2824 = vst [vmem:[#allocation3 + $0x18] sm:$0xff] %v2812
    %2825 = vst [vmem:[#allocation2] sm:$0xff] %v2817
    %2826 = vst [vmem:[#allocation2 + $0x8] sm:$0xff] %v2818
    %2827 = vst [vmem:[#allocation2 + $0x10] sm:$0xff] %v2819
    %2828 = vst [vmem:[#allocation2 + $0x18] sm:$0xff] %v2820
    %v2829 = vld [vmem:[%s1410] sm:$0xff]
    %v2830 = vld [vmem:[%s1410 + $0x8] sm:$0xff]
    %v2831 = vld [vmem:[%s1410 + $0x10] sm:$0xff]
    %v2832 = vld [vmem:[%s1410 + $0x18] sm:$0xff]
    %v2833 = vld [vmem:[%s1410 + $0x20] sm:$0xff]
    %v2834 = vld [vmem:[%s1410 + $0x28] sm:$0xff]
    %v2835 = vld [vmem:[%s1410 + $0x30] sm:$0xff]
    %v2836 = vld [vmem:[%s1410 + $0x38] sm:$0xff]
    %v2837 = vld [vmem:[%s1410 + $0x40] sm:$0xff]
    %v2838 = vld [vmem:[%s1410 + $0x48] sm:$0xff]
    %v2839 = vld [vmem:[%s1410 + $0x50] sm:$0xff]
    %v2840 = vld [vmem:[%s1410 + $0x58] sm:$0xff]
    %v2841 = vld [vmem:[%s1410 + $0x60] sm:$0xff]
    %v2842 = vld [vmem:[%s1410 + $0x68] sm:$0xff]
    %v2843 = vld [vmem:[%s1410 + $0x70] sm:$0xff]
    %v2844 = vld [vmem:[%s1410 + $0x78] sm:$0xff]
    %v2845 = vld [vmem:[#allocation4] sm:$0xff]
    %v2846 = vld [vmem:[#allocation4 + $0x8] sm:$0xff]
    %v2847 = vld [vmem:[#allocation4 + $0x10] sm:$0xff]
    %v2848 = vld [vmem:[#allocation4 + $0x18] sm:$0xff]
    %v2849 = vpack.c.bf16 %v2846, %v2845
    %v2850 = vpack.c.bf16 %v2848, %v2847
    %2851 = vmatpush.bf16.msra.mxu0 0
    %2852 = vmatpush.bf16.msra.mxu0 0
    %2853 = vmatpush.bf16.msra.mxu0 0
    %2854 = vmatpush.bf16.msra.mxu0 0
    %2855 = vmatpush.bf16.msra.mxu0 0
    %2856 = vmatpush.bf16.msra.mxu0 0
    %2857 = vmatpush.bf16.msra.mxu0 %v2850
    %2858 = vmatpush.bf16.msra.mxu0 %v2849
    %2859 = vmatmul.bf16.gmra.mxu0 %v2043
    %v2860 = vpop.f32.mrf.mxu0
    %v2861 = vadd.f32 0.0, %v2860
    %v2862 = vpop.f32.mrf.mxu0
    %v2863 = vadd.f32 0.0, %v2862
    %2864 = vmatmul.bf16.gmra.mxu0 %v2046
    %v2865 = vpop.f32.mrf.mxu0
    %v2866 = vadd.f32 0.0, %v2865
    %v2867 = vpop.f32.mrf.mxu0
    %v2868 = vadd.f32 0.0, %v2867
    %2869 = vmatmul.bf16.gmra.mxu0 %v2049
    %v2870 = vpop.f32.mrf.mxu0
    %v2871 = vadd.f32 0.0, %v2870
    %v2872 = vpop.f32.mrf.mxu0
    %v2873 = vadd.f32 0.0, %v2872
    %2874 = vmatmul.bf16.gmra.mxu0 %v2052
    %v2875 = vpop.f32.mrf.mxu0
    %v2876 = vadd.f32 0.0, %v2875
    %v2877 = vpop.f32.mrf.mxu0
    %v2878 = vadd.f32 0.0, %v2877
    %2879 = vmatmul.bf16.gmra.mxu0 %v2055
    %v2880 = vpop.f32.mrf.mxu0
    %v2881 = vadd.f32 0.0, %v2880
    %v2882 = vpop.f32.mrf.mxu0
    %v2883 = vadd.f32 0.0, %v2882
    %2884 = vmatmul.bf16.gmra.mxu0 %v2058
    %v2885 = vpop.f32.mrf.mxu0
    %v2886 = vadd.f32 0.0, %v2885
    %v2887 = vpop.f32.mrf.mxu0
    %v2888 = vadd.f32 0.0, %v2887
    %2889 = vmatmul.bf16.gmra.mxu0 %v2061
    %v2890 = vpop.f32.mrf.mxu0
    %v2891 = vadd.f32 0.0, %v2890
    %v2892 = vpop.f32.mrf.mxu0
    %v2893 = vadd.f32 0.0, %v2892
    %2894 = vmatmul.bf16.gmra.mxu0 %v2064
    %v2895 = vpop.f32.mrf.mxu0
    %v2896 = vadd.f32 0.0, %v2895
    %v2897 = vpop.f32.mrf.mxu0
    %v2898 = vadd.f32 0.0, %v2897
    %2899 = vdwg.mxu0
    %v2900 = vadd.f32 %v2829, %v2861
    %v2901 = vadd.f32 %v2830, %v2863
    %v2902 = vadd.f32 %v2831, %v2866
    %v2903 = vadd.f32 %v2832, %v2868
    %v2904 = vadd.f32 %v2833, %v2871
    %v2905 = vadd.f32 %v2834, %v2873
    %v2906 = vadd.f32 %v2835, %v2876
    %v2907 = vadd.f32 %v2836, %v2878
    %v2908 = vadd.f32 %v2837, %v2881
    %v2909 = vadd.f32 %v2838, %v2883
    %v2910 = vadd.f32 %v2839, %v2886
    %v2911 = vadd.f32 %v2840, %v2888
    %v2912 = vadd.f32 %v2841, %v2891
    %v2913 = vadd.f32 %v2842, %v2893
    %v2914 = vadd.f32 %v2843, %v2896
    %v2915 = vadd.f32 %v2844, %v2898
    %v2916 = vxor.u32 %v2900, 2147483648
    %v2917 = vxor.u32 %v2901, 2147483648
    %v2918 = vxor.u32 %v2902, 2147483648
    %v2919 = vxor.u32 %v2903, 2147483648
    %v2920 = vmul.f32 %v2916, 1.442695
    %v2921 = vpow.pop %v2920
    %v2922 = vmul.f32 %v2917, 1.442695
    %v2923 = vpow.pop %v2922
    %v2924 = vmul.f32 %v2918, 1.442695
    %v2925 = vpow.pop %v2924
    %v2926 = vmul.f32 %v2919, 1.442695
    %v2927 = vpow.pop %v2926
    %v2928 = vadd.f32 %v2921, 1.0
    %v2929 = vadd.f32 %v2923, 1.0
    %v2930 = vadd.f32 %v2925, 1.0
    %v2931 = vadd.f32 %v2927, 1.0
    %v2932 = vrcp.pop %v2928
    %v2933 = vmul.f32 %v2928, %v2932
    %v2934 = vsub.f32 1.0, %v2933
    %v2935 = vmul.f32 %v2932, %v2934
    %v2936 = vadd.f32 %v2932, %v2935
    %vm2937 = vweird.f32 %v2928
    %vm2938 = vweird.f32 %v2932
    %vm2939 = vmor %vm2937, %vm2938
    %v2940 = vsel %vm2939, %v2932, %v2936
    %v2941 = vand.u32 2147483647, %v2928
    %vm2942 = vcmp.eq.f32.partialorder %v2941, 8.507059e+37
    %v2943 = vand.u32 %v2928, 2147483648
    %v2944 = vor.u32 1.1754944e-38, %v2943
    %v2945 = vsel %vm2942, %v2944, %v2940
    %v2946 = vmul.f32 1.0, %v2945
    %v2947 = vrcp.pop %v2929
    %v2948 = vmul.f32 %v2929, %v2947
    %v2949 = vsub.f32 1.0, %v2948
    %v2950 = vmul.f32 %v2947, %v2949
    %v2951 = vadd.f32 %v2947, %v2950
    %vm2952 = vweird.f32 %v2929
    %vm2953 = vweird.f32 %v2947
    %vm2954 = vmor %vm2952, %vm2953
    %v2955 = vsel %vm2954, %v2947, %v2951
    %v2956 = vand.u32 2147483647, %v2929
    %vm2957 = vcmp.eq.f32.partialorder %v2956, 8.507059e+37
    %v2958 = vand.u32 %v2929, 2147483648
    %v2959 = vor.u32 1.1754944e-38, %v2958
    %v2960 = vsel %vm2957, %v2959, %v2955
    %v2961 = vmul.f32 1.0, %v2960
    %v2962 = vrcp.pop %v2930
    %v2963 = vmul.f32 %v2930, %v2962
    %v2964 = vsub.f32 1.0, %v2963
    %v2965 = vmul.f32 %v2962, %v2964
    %v2966 = vadd.f32 %v2962, %v2965
    %vm2967 = vweird.f32 %v2930
    %vm2968 = vweird.f32 %v2962
    %vm2969 = vmor %vm2967, %vm2968
    %v2970 = vsel %vm2969, %v2962, %v2966
    %v2971 = vand.u32 2147483647, %v2930
    %vm2972 = vcmp.eq.f32.partialorder %v2971, 8.507059e+37
    %v2973 = vand.u32 %v2930, 2147483648
    %v2974 = vor.u32 1.1754944e-38, %v2973
    %v2975 = vsel %vm2972, %v2974, %v2970
    %v2976 = vmul.f32 1.0, %v2975
    %v2977 = vrcp.pop %v2931
    %v2978 = vmul.f32 %v2931, %v2977
    %v2979 = vsub.f32 1.0, %v2978
    %v2980 = vmul.f32 %v2977, %v2979
    %v2981 = vadd.f32 %v2977, %v2980
    %vm2982 = vweird.f32 %v2931
    %vm2983 = vweird.f32 %v2977
    %vm2984 = vmor %vm2982, %vm2983
    %v2985 = vsel %vm2984, %v2977, %v2981
    %v2986 = vand.u32 2147483647, %v2931
    %vm2987 = vcmp.eq.f32.partialorder %v2986, 8.507059e+37
    %v2988 = vand.u32 %v2931, 2147483648
    %v2989 = vor.u32 1.1754944e-38, %v2988
    %v2990 = vsel %vm2987, %v2989, %v2985
    %v2991 = vmul.f32 1.0, %v2990
    %v2992 = vxor.u32 %v2904, 2147483648
    %v2993 = vxor.u32 %v2905, 2147483648
    %v2994 = vxor.u32 %v2906, 2147483648
    %v2995 = vxor.u32 %v2907, 2147483648
    %v2996 = vmul.f32 %v2992, 1.442695
    %v2997 = vpow.pop %v2996
    %v2998 = vmul.f32 %v2993, 1.442695
    %v2999 = vpow.pop %v2998
    %v3000 = vmul.f32 %v2994, 1.442695
    %v3001 = vpow.pop %v3000
    %v3002 = vmul.f32 %v2995, 1.442695
    %v3003 = vpow.pop %v3002
    %v3004 = vadd.f32 %v2997, 1.0
    %v3005 = vadd.f32 %v2999, 1.0
    %v3006 = vadd.f32 %v3001, 1.0
    %v3007 = vadd.f32 %v3003, 1.0
    %v3008 = vrcp.pop %v3004
    %v3009 = vmul.f32 %v3004, %v3008
    %v3010 = vsub.f32 1.0, %v3009
    %v3011 = vmul.f32 %v3008, %v3010
    %v3012 = vadd.f32 %v3008, %v3011
    %vm3013 = vweird.f32 %v3004
    %vm3014 = vweird.f32 %v3008
    %vm3015 = vmor %vm3013, %vm3014
    %v3016 = vsel %vm3015, %v3008, %v3012
    %v3017 = vand.u32 2147483647, %v3004
    %vm3018 = vcmp.eq.f32.partialorder %v3017, 8.507059e+37
    %v3019 = vand.u32 %v3004, 2147483648
    %v3020 = vor.u32 1.1754944e-38, %v3019
    %v3021 = vsel %vm3018, %v3020, %v3016
    %v3022 = vmul.f32 1.0, %v3021
    %v3023 = vrcp.pop %v3005
    %v3024 = vmul.f32 %v3005, %v3023
    %v3025 = vsub.f32 1.0, %v3024
    %v3026 = vmul.f32 %v3023, %v3025
    %v3027 = vadd.f32 %v3023, %v3026
    %vm3028 = vweird.f32 %v3005
    %vm3029 = vweird.f32 %v3023
    %vm3030 = vmor %vm3028, %vm3029
    %v3031 = vsel %vm3030, %v3023, %v3027
    %v3032 = vand.u32 2147483647, %v3005
    %vm3033 = vcmp.eq.f32.partialorder %v3032, 8.507059e+37
    %v3034 = vand.u32 %v3005, 2147483648
    %v3035 = vor.u32 1.1754944e-38, %v3034
    %v3036 = vsel %vm3033, %v3035, %v3031
    %v3037 = vmul.f32 1.0, %v3036
    %v3038 = vrcp.pop %v3006
    %v3039 = vmul.f32 %v3006, %v3038
    %v3040 = vsub.f32 1.0, %v3039
    %v3041 = vmul.f32 %v3038, %v3040
    %v3042 = vadd.f32 %v3038, %v3041
    %vm3043 = vweird.f32 %v3006
    %vm3044 = vweird.f32 %v3038
    %vm3045 = vmor %vm3043, %vm3044
    %v3046 = vsel %vm3045, %v3038, %v3042
    %v3047 = vand.u32 2147483647, %v3006
    %vm3048 = vcmp.eq.f32.partialorder %v3047, 8.507059e+37
    %v3049 = vand.u32 %v3006, 2147483648
    %v3050 = vor.u32 1.1754944e-38, %v3049
    %v3051 = vsel %vm3048, %v3050, %v3046
    %v3052 = vmul.f32 1.0, %v3051
    %v3053 = vrcp.pop %v3007
    %v3054 = vmul.f32 %v3007, %v3053
    %v3055 = vsub.f32 1.0, %v3054
    %v3056 = vmul.f32 %v3053, %v3055
    %v3057 = vadd.f32 %v3053, %v3056
    %vm3058 = vweird.f32 %v3007
    %vm3059 = vweird.f32 %v3053
    %vm3060 = vmor %vm3058, %vm3059
    %v3061 = vsel %vm3060, %v3053, %v3057
    %v3062 = vand.u32 2147483647, %v3007
    %vm3063 = vcmp.eq.f32.partialorder %v3062, 8.507059e+37
    %v3064 = vand.u32 %v3007, 2147483648
    %v3065 = vor.u32 1.1754944e-38, %v3064
    %v3066 = vsel %vm3063, %v3065, %v3061
    %v3067 = vmul.f32 1.0, %v3066
    %v3068 = vtanh.pop %v2908
    %v3069 = vtanh.pop %v2909
    %v3070 = vtanh.pop %v2910
    %v3071 = vtanh.pop %v2911
    %v3072 = vxor.u32 %v2912, 2147483648
    %v3073 = vxor.u32 %v2913, 2147483648
    %v3074 = vxor.u32 %v2914, 2147483648
    %v3075 = vxor.u32 %v2915, 2147483648
    %v3076 = vmul.f32 %v3072, 1.442695
    %v3077 = vpow.pop %v3076
    %v3078 = vmul.f32 %v3073, 1.442695
    %v3079 = vpow.pop %v3078
    %v3080 = vmul.f32 %v3074, 1.442695
    %v3081 = vpow.pop %v3080
    %v3082 = vmul.f32 %v3075, 1.442695
    %v3083 = vpow.pop %v3082
    %v3084 = vadd.f32 %v3077, 1.0
    %v3085 = vadd.f32 %v3079, 1.0
    %v3086 = vadd.f32 %v3081, 1.0
    %v3087 = vadd.f32 %v3083, 1.0
    %v3088 = vrcp.pop %v3084
    %v3089 = vmul.f32 %v3084, %v3088
    %v3090 = vsub.f32 1.0, %v3089
    %v3091 = vmul.f32 %v3088, %v3090
    %v3092 = vadd.f32 %v3088, %v3091
    %vm3093 = vweird.f32 %v3084
    %vm3094 = vweird.f32 %v3088
    %vm3095 = vmor %vm3093, %vm3094
    %v3096 = vsel %vm3095, %v3088, %v3092
    %v3097 = vand.u32 2147483647, %v3084
    %vm3098 = vcmp.eq.f32.partialorder %v3097, 8.507059e+37
    %v3099 = vand.u32 %v3084, 2147483648
    %v3100 = vor.u32 1.1754944e-38, %v3099
    %v3101 = vsel %vm3098, %v3100, %v3096
    %v3102 = vmul.f32 1.0, %v3101
    %v3103 = vrcp.pop %v3085
    %v3104 = vmul.f32 %v3085, %v3103
    %v3105 = vsub.f32 1.0, %v3104
    %v3106 = vmul.f32 %v3103, %v3105
    %v3107 = vadd.f32 %v3103, %v3106
    %vm3108 = vweird.f32 %v3085
    %vm3109 = vweird.f32 %v3103
    %vm3110 = vmor %vm3108, %vm3109
    %v3111 = vsel %vm3110, %v3103, %v3107
    %v3112 = vand.u32 2147483647, %v3085
    %vm3113 = vcmp.eq.f32.partialorder %v3112, 8.507059e+37
    %v3114 = vand.u32 %v3085, 2147483648
    %v3115 = vor.u32 1.1754944e-38, %v3114
    %v3116 = vsel %vm3113, %v3115, %v3111
    %v3117 = vmul.f32 1.0, %v3116
    %v3118 = vrcp.pop %v3086
    %v3119 = vmul.f32 %v3086, %v3118
    %v3120 = vsub.f32 1.0, %v3119
    %v3121 = vmul.f32 %v3118, %v3120
    %v3122 = vadd.f32 %v3118, %v3121
    %vm3123 = vweird.f32 %v3086
    %vm3124 = vweird.f32 %v3118
    %vm3125 = vmor %vm3123, %vm3124
    %v3126 = vsel %vm3125, %v3118, %v3122
    %v3127 = vand.u32 2147483647, %v3086
    %vm3128 = vcmp.eq.f32.partialorder %v3127, 8.507059e+37
    %v3129 = vand.u32 %v3086, 2147483648
    %v3130 = vor.u32 1.1754944e-38, %v3129
    %v3131 = vsel %vm3128, %v3130, %v3126
    %v3132 = vmul.f32 1.0, %v3131
    %v3133 = vrcp.pop %v3087
    %v3134 = vmul.f32 %v3087, %v3133
    %v3135 = vsub.f32 1.0, %v3134
    %v3136 = vmul.f32 %v3133, %v3135
    %v3137 = vadd.f32 %v3133, %v3136
    %vm3138 = vweird.f32 %v3087
    %vm3139 = vweird.f32 %v3133
    %vm3140 = vmor %vm3138, %vm3139
    %v3141 = vsel %vm3140, %v3133, %v3137
    %v3142 = vand.u32 2147483647, %v3087
    %vm3143 = vcmp.eq.f32.partialorder %v3142, 8.507059e+37
    %v3144 = vand.u32 %v3087, 2147483648
    %v3145 = vor.u32 1.1754944e-38, %v3144
    %v3146 = vsel %vm3143, %v3145, %v3141
    %v3147 = vmul.f32 1.0, %v3146
    %v3148 = vld [vmem:[#allocation5] sm:$0xff]
    %v3149 = vld [vmem:[#allocation5 + $0x8] sm:$0xff]
    %v3150 = vld [vmem:[#allocation5 + $0x10] sm:$0xff]
    %v3151 = vld [vmem:[#allocation5 + $0x18] sm:$0xff]
    %v3152 = vmul.f32 %v3022, %v3148
    %v3153 = vmul.f32 %v3037, %v3149
    %v3154 = vmul.f32 %v3052, %v3150
    %v3155 = vmul.f32 %v3067, %v3151
    %v3156 = vmul.f32 %v2946, %v3068
    %v3157 = vmul.f32 %v2961, %v3069
    %v3158 = vmul.f32 %v2976, %v3070
    %v3159 = vmul.f32 %v2991, %v3071
    %v3160 = vadd.f32 %v3152, %v3156
    %v3161 = vadd.f32 %v3153, %v3157
    %v3162 = vadd.f32 %v3154, %v3158
    %v3163 = vadd.f32 %v3155, %v3159
    %v3164 = vtanh.pop %v3160
    %v3165 = vtanh.pop %v3161
    %v3166 = vtanh.pop %v3162
    %v3167 = vtanh.pop %v3163
    %v3168 = vmul.f32 %v3102, %v3164
    %v3169 = vmul.f32 %v3117, %v3165
    %v3170 = vmul.f32 %v3132, %v3166
    %v3171 = vmul.f32 %v3147, %v3167
    %3172 = vst [vmem:[#allocation5] sm:$0xff] %v3160
    %3173 = vst [vmem:[#allocation5 + $0x8] sm:$0xff] %v3161
    %3174 = vst [vmem:[#allocation5 + $0x10] sm:$0xff] %v3162
    %3175 = vst [vmem:[#allocation5 + $0x18] sm:$0xff] %v3163
    %3176 = vst [vmem:[#allocation4] sm:$0xff] %v3168
    %3177 = vst [vmem:[#allocation4 + $0x8] sm:$0xff] %v3169
    %3178 = vst [vmem:[#allocation4 + $0x10] sm:$0xff] %v3170
    %3179 = vst [vmem:[#allocation4 + $0x18] sm:$0xff] %v3171
    %v3180 = vpack.c.bf16 %v2818, %v2817
    %v3181 = vpack.c.bf16 %v2820, %v2819
    %v3182 = vpack.c.bf16 %v3169, %v3168
    %v3183 = vpack.c.bf16 %v3171, %v3170
    %3184 = vmatpush.bf16.msra.mxu0 0
    %3185 = vmatpush.bf16.msra.mxu0 0
    %3186 = vmatpush.bf16.msra.mxu0 0
    %3187 = vmatpush.bf16.msra.mxu0 0
    %3188 = vmatpush.bf16.msra.mxu0 0
    %3189 = vmatpush.bf16.msra.mxu0 0
    %3190 = vmatpush.bf16.msra.mxu0 %v3181
    %3191 = vmatpush.bf16.msra.mxu0 %v3180
    %3192 = vmatmul.bf16.gmra.mxu0 %v2410
    %v3193 = vpop.f32.mrf.mxu0
    %v3194 = vadd.f32 %v324, %v3193
    %v3195 = vpop.f32.mrf.mxu0
    %v3196 = vadd.f32 %v329, %v3195
    %3197 = vmatmul.bf16.gmra.mxu0 %v2413
    %v3198 = vpop.f32.mrf.mxu0
    %v3199 = vadd.f32 %v334, %v3198
    %v3200 = vpop.f32.mrf.mxu0
    %v3201 = vadd.f32 %v339, %v3200
    %3202 = vdwg.mxu0
    %s3203 = scalar_lea.vmem [#allocation8], 32
    %3204 = vst [vmem:[%s3203] sm:$0xff] %v3194
    %3205 = vst [vmem:[%s3203 + $0x8] sm:$0xff] %v3196
    %3206 = vst [vmem:[%s3203 + $0x10] sm:$0xff] %v3199
    %3207 = vst [vmem:[%s3203 + $0x18] sm:$0xff] %v3201
    %3208 = vmatpush.bf16.msra.mxu0 0
    %3209 = vmatpush.bf16.msra.mxu0 0
    %3210 = vmatpush.bf16.msra.mxu0 0
    %3211 = vmatpush.bf16.msra.mxu0 0
    %3212 = vmatpush.bf16.msra.mxu0 0
    %3213 = vmatpush.bf16.msra.mxu0 0
    %3214 = vmatpush.bf16.msra.mxu0 %v3183
    %3215 = vmatpush.bf16.msra.mxu0 %v3182
    %3216 = vmatmul.bf16.gmra.mxu0 %v2449
    %v3217 = vpop.f32.mrf.mxu0
    %v3218 = vadd.f32 %v324, %v3217
    %v3219 = vpop.f32.mrf.mxu0
    %v3220 = vadd.f32 %v329, %v3219
    %3221 = vmatmul.bf16.gmra.mxu0 %v2452
    %v3222 = vpop.f32.mrf.mxu0
    %v3223 = vadd.f32 %v334, %v3222
    %v3224 = vpop.f32.mrf.mxu0
    %v3225 = vadd.f32 %v339, %v3224
    %3226 = vdwg.mxu0
    %s3227 = scalar_lea.vmem [#allocation8], 192
    %3228 = vst [vmem:[%s3227] sm:$0xff] %v3218
    %3229 = vst [vmem:[%s3227 + $0x8] sm:$0xff] %v3220
    %3230 = vst [vmem:[%s3227 + $0x10] sm:$0xff] %v3223
    %3231 = vst [vmem:[%s3227 + $0x18] sm:$0xff] %v3225
    %v3232 = vld [vmem:[%s796] sm:$0xff]
    %v3233 = vld [vmem:[%s796 + $0x8] sm:$0xff]
    %v3234 = vld [vmem:[%s796 + $0x10] sm:$0xff]
    %v3235 = vld [vmem:[%s796 + $0x18] sm:$0xff]
    %v3236 = vld [vmem:[%s796 + $0x20] sm:$0xff]
    %v3237 = vld [vmem:[%s796 + $0x28] sm:$0xff]
    %v3238 = vld [vmem:[%s796 + $0x30] sm:$0xff]
    %v3239 = vld [vmem:[%s796 + $0x38] sm:$0xff]
    %v3240 = vld [vmem:[%s796 + $0x40] sm:$0xff]
    %v3241 = vld [vmem:[%s796 + $0x48] sm:$0xff]
    %v3242 = vld [vmem:[%s796 + $0x50] sm:$0xff]
    %v3243 = vld [vmem:[%s796 + $0x58] sm:$0xff]
    %v3244 = vld [vmem:[%s796 + $0x60] sm:$0xff]
    %v3245 = vld [vmem:[%s796 + $0x68] sm:$0xff]
    %v3246 = vld [vmem:[%s796 + $0x70] sm:$0xff]
    %v3247 = vld [vmem:[%s796 + $0x78] sm:$0xff]
    %v3248 = vld [vmem:[#allocation2] sm:$0xff]
    %v3249 = vld [vmem:[#allocation2 + $0x8] sm:$0xff]
    %v3250 = vld [vmem:[#allocation2 + $0x10] sm:$0xff]
    %v3251 = vld [vmem:[#allocation2 + $0x18] sm:$0xff]
    %v3252 = vpack.c.bf16 %v3249, %v3248
    %v3253 = vpack.c.bf16 %v3251, %v3250
    %3254 = vmatpush.bf16.msra.mxu0 0
    %3255 = vmatpush.bf16.msra.mxu0 0
    %3256 = vmatpush.bf16.msra.mxu0 0
    %3257 = vmatpush.bf16.msra.mxu0 0
    %3258 = vmatpush.bf16.msra.mxu0 0
    %3259 = vmatpush.bf16.msra.mxu0 0
    %3260 = vmatpush.bf16.msra.mxu0 %v3253
    %3261 = vmatpush.bf16.msra.mxu0 %v3252
    %3262 = vmatmul.bf16.gmra.mxu0 %v1628
    %v3263 = vpop.f32.mrf.mxu0
    %v3264 = vadd.f32 0.0, %v3263
    %v3265 = vpop.f32.mrf.mxu0
    %v3266 = vadd.f32 0.0, %v3265
    %3267 = vmatmul.bf16.gmra.mxu0 %v1631
    %v3268 = vpop.f32.mrf.mxu0
    %v3269 = vadd.f32 0.0, %v3268
    %v3270 = vpop.f32.mrf.mxu0
    %v3271 = vadd.f32 0.0, %v3270
    %3272 = vmatmul.bf16.gmra.mxu0 %v1634
    %v3273 = vpop.f32.mrf.mxu0
    %v3274 = vadd.f32 0.0, %v3273
    %v3275 = vpop.f32.mrf.mxu0
    %v3276 = vadd.f32 0.0, %v3275
    %3277 = vmatmul.bf16.gmra.mxu0 %v1637
    %v3278 = vpop.f32.mrf.mxu0
    %v3279 = vadd.f32 0.0, %v3278
    %v3280 = vpop.f32.mrf.mxu0
    %v3281 = vadd.f32 0.0, %v3280
    %3282 = vmatmul.bf16.gmra.mxu0 %v1640
    %v3283 = vpop.f32.mrf.mxu0
    %v3284 = vadd.f32 0.0, %v3283
    %v3285 = vpop.f32.mrf.mxu0
    %v3286 = vadd.f32 0.0, %v3285
    %3287 = vmatmul.bf16.gmra.mxu0 %v1643
    %v3288 = vpop.f32.mrf.mxu0
    %v3289 = vadd.f32 0.0, %v3288
    %v3290 = vpop.f32.mrf.mxu0
    %v3291 = vadd.f32 0.0, %v3290
    %3292 = vmatmul.bf16.gmra.mxu0 %v1646
    %v3293 = vpop.f32.mrf.mxu0
    %v3294 = vadd.f32 0.0, %v3293
    %v3295 = vpop.f32.mrf.mxu0
    %v3296 = vadd.f32 0.0, %v3295
    %3297 = vmatmul.bf16.gmra.mxu0 %v1649
    %v3298 = vpop.f32.mrf.mxu0
    %v3299 = vadd.f32 0.0, %v3298
    %v3300 = vpop.f32.mrf.mxu0
    %v3301 = vadd.f32 0.0, %v3300
    %3302 = vdwg.mxu0
    %v3303 = vadd.f32 %v3232, %v3264
    %v3304 = vadd.f32 %v3233, %v3266
    %v3305 = vadd.f32 %v3234, %v3269
    %v3306 = vadd.f32 %v3235, %v3271
    %v3307 = vadd.f32 %v3236, %v3274
    %v3308 = vadd.f32 %v3237, %v3276
    %v3309 = vadd.f32 %v3238, %v3279
    %v3310 = vadd.f32 %v3239, %v3281
    %v3311 = vadd.f32 %v3240, %v3284
    %v3312 = vadd.f32 %v3241, %v3286
    %v3313 = vadd.f32 %v3242, %v3289
    %v3314 = vadd.f32 %v3243, %v3291
    %v3315 = vadd.f32 %v3244, %v3294
    %v3316 = vadd.f32 %v3245, %v3296
    %v3317 = vadd.f32 %v3246, %v3299
    %v3318 = vadd.f32 %v3247, %v3301
    %v3319 = vxor.u32 %v3303, 2147483648
    %v3320 = vxor.u32 %v3304, 2147483648
    %v3321 = vxor.u32 %v3305, 2147483648
    %v3322 = vxor.u32 %v3306, 2147483648
    %v3323 = vmul.f32 %v3319, 1.442695
    %v3324 = vpow.pop %v3323
    %v3325 = vmul.f32 %v3320, 1.442695
    %v3326 = vpow.pop %v3325
    %v3327 = vmul.f32 %v3321, 1.442695
    %v3328 = vpow.pop %v3327
    %v3329 = vmul.f32 %v3322, 1.442695
    %v3330 = vpow.pop %v3329
    %v3331 = vadd.f32 %v3324, 1.0
    %v3332 = vadd.f32 %v3326, 1.0
    %v3333 = vadd.f32 %v3328, 1.0
    %v3334 = vadd.f32 %v3330, 1.0
    %v3335 = vrcp.pop %v3331
    %v3336 = vmul.f32 %v3331, %v3335
    %v3337 = vsub.f32 1.0, %v3336
    %v3338 = vmul.f32 %v3335, %v3337
    %v3339 = vadd.f32 %v3335, %v3338
    %vm3340 = vweird.f32 %v3331
    %vm3341 = vweird.f32 %v3335
    %vm3342 = vmor %vm3340, %vm3341
    %v3343 = vsel %vm3342, %v3335, %v3339
    %v3344 = vand.u32 2147483647, %v3331
    %vm3345 = vcmp.eq.f32.partialorder %v3344, 8.507059e+37
    %v3346 = vand.u32 %v3331, 2147483648
    %v3347 = vor.u32 1.1754944e-38, %v3346
    %v3348 = vsel %vm3345, %v3347, %v3343
    %v3349 = vmul.f32 1.0, %v3348
    %v3350 = vrcp.pop %v3332
    %v3351 = vmul.f32 %v3332, %v3350
    %v3352 = vsub.f32 1.0, %v3351
    %v3353 = vmul.f32 %v3350, %v3352
    %v3354 = vadd.f32 %v3350, %v3353
    %vm3355 = vweird.f32 %v3332
    %vm3356 = vweird.f32 %v3350
    %vm3357 = vmor %vm3355, %vm3356
    %v3358 = vsel %vm3357, %v3350, %v3354
    %v3359 = vand.u32 2147483647, %v3332
    %vm3360 = vcmp.eq.f32.partialorder %v3359, 8.507059e+37
    %v3361 = vand.u32 %v3332, 2147483648
    %v3362 = vor.u32 1.1754944e-38, %v3361
    %v3363 = vsel %vm3360, %v3362, %v3358
    %v3364 = vmul.f32 1.0, %v3363
    %v3365 = vrcp.pop %v3333
    %v3366 = vmul.f32 %v3333, %v3365
    %v3367 = vsub.f32 1.0, %v3366
    %v3368 = vmul.f32 %v3365, %v3367
    %v3369 = vadd.f32 %v3365, %v3368
    %vm3370 = vweird.f32 %v3333
    %vm3371 = vweird.f32 %v3365
    %vm3372 = vmor %vm3370, %vm3371
    %v3373 = vsel %vm3372, %v3365, %v3369
    %v3374 = vand.u32 2147483647, %v3333
    %vm3375 = vcmp.eq.f32.partialorder %v3374, 8.507059e+37
    %v3376 = vand.u32 %v3333, 2147483648
    %v3377 = vor.u32 1.1754944e-38, %v3376
    %v3378 = vsel %vm3375, %v3377, %v3373
    %v3379 = vmul.f32 1.0, %v3378
    %v3380 = vrcp.pop %v3334
    %v3381 = vmul.f32 %v3334, %v3380
    %v3382 = vsub.f32 1.0, %v3381
    %v3383 = vmul.f32 %v3380, %v3382
    %v3384 = vadd.f32 %v3380, %v3383
    %vm3385 = vweird.f32 %v3334
    %vm3386 = vweird.f32 %v3380
    %vm3387 = vmor %vm3385, %vm3386
    %v3388 = vsel %vm3387, %v3380, %v3384
    %v3389 = vand.u32 2147483647, %v3334
    %vm3390 = vcmp.eq.f32.partialorder %v3389, 8.507059e+37
    %v3391 = vand.u32 %v3334, 2147483648
    %v3392 = vor.u32 1.1754944e-38, %v3391
    %v3393 = vsel %vm3390, %v3392, %v3388
    %v3394 = vmul.f32 1.0, %v3393
    %v3395 = vxor.u32 %v3307, 2147483648
    %v3396 = vxor.u32 %v3308, 2147483648
    %v3397 = vxor.u32 %v3309, 2147483648
    %v3398 = vxor.u32 %v3310, 2147483648
    %v3399 = vmul.f32 %v3395, 1.442695
    %v3400 = vpow.pop %v3399
    %v3401 = vmul.f32 %v3396, 1.442695
    %v3402 = vpow.pop %v3401
    %v3403 = vmul.f32 %v3397, 1.442695
    %v3404 = vpow.pop %v3403
    %v3405 = vmul.f32 %v3398, 1.442695
    %v3406 = vpow.pop %v3405
    %v3407 = vadd.f32 %v3400, 1.0
    %v3408 = vadd.f32 %v3402, 1.0
    %v3409 = vadd.f32 %v3404, 1.0
    %v3410 = vadd.f32 %v3406, 1.0
    %v3411 = vrcp.pop %v3407
    %v3412 = vmul.f32 %v3407, %v3411
    %v3413 = vsub.f32 1.0, %v3412
    %v3414 = vmul.f32 %v3411, %v3413
    %v3415 = vadd.f32 %v3411, %v3414
    %vm3416 = vweird.f32 %v3407
    %vm3417 = vweird.f32 %v3411
    %vm3418 = vmor %vm3416, %vm3417
    %v3419 = vsel %vm3418, %v3411, %v3415
    %v3420 = vand.u32 2147483647, %v3407
    %vm3421 = vcmp.eq.f32.partialorder %v3420, 8.507059e+37
    %v3422 = vand.u32 %v3407, 2147483648
    %v3423 = vor.u32 1.1754944e-38, %v3422
    %v3424 = vsel %vm3421, %v3423, %v3419
    %v3425 = vmul.f32 1.0, %v3424
    %v3426 = vrcp.pop %v3408
    %v3427 = vmul.f32 %v3408, %v3426
    %v3428 = vsub.f32 1.0, %v3427
    %v3429 = vmul.f32 %v3426, %v3428
    %v3430 = vadd.f32 %v3426, %v3429
    %vm3431 = vweird.f32 %v3408
    %vm3432 = vweird.f32 %v3426
    %vm3433 = vmor %vm3431, %vm3432
    %v3434 = vsel %vm3433, %v3426, %v3430
    %v3435 = vand.u32 2147483647, %v3408
    %vm3436 = vcmp.eq.f32.partialorder %v3435, 8.507059e+37
    %v3437 = vand.u32 %v3408, 2147483648
    %v3438 = vor.u32 1.1754944e-38, %v3437
    %v3439 = vsel %vm3436, %v3438, %v3434
    %v3440 = vmul.f32 1.0, %v3439
    %v3441 = vrcp.pop %v3409
    %v3442 = vmul.f32 %v3409, %v3441
    %v3443 = vsub.f32 1.0, %v3442
    %v3444 = vmul.f32 %v3441, %v3443
    %v3445 = vadd.f32 %v3441, %v3444
    %vm3446 = vweird.f32 %v3409
    %vm3447 = vweird.f32 %v3441
    %vm3448 = vmor %vm3446, %vm3447
    %v3449 = vsel %vm3448, %v3441, %v3445
    %v3450 = vand.u32 2147483647, %v3409
    %vm3451 = vcmp.eq.f32.partialorder %v3450, 8.507059e+37
    %v3452 = vand.u32 %v3409, 2147483648
    %v3453 = vor.u32 1.1754944e-38, %v3452
    %v3454 = vsel %vm3451, %v3453, %v3449
    %v3455 = vmul.f32 1.0, %v3454
    %v3456 = vrcp.pop %v3410
    %v3457 = vmul.f32 %v3410, %v3456
    %v3458 = vsub.f32 1.0, %v3457
    %v3459 = vmul.f32 %v3456, %v3458
    %v3460 = vadd.f32 %v3456, %v3459
    %vm3461 = vweird.f32 %v3410
    %vm3462 = vweird.f32 %v3456
    %vm3463 = vmor %vm3461, %vm3462
    %v3464 = vsel %vm3463, %v3456, %v3460
    %v3465 = vand.u32 2147483647, %v3410
    %vm3466 = vcmp.eq.f32.partialorder %v3465, 8.507059e+37
    %v3467 = vand.u32 %v3410, 2147483648
    %v3468 = vor.u32 1.1754944e-38, %v3467
    %v3469 = vsel %vm3466, %v3468, %v3464
    %v3470 = vmul.f32 1.0, %v3469
    %v3471 = vtanh.pop %v3311
    %v3472 = vtanh.pop %v3312
    %v3473 = vtanh.pop %v3313
    %v3474 = vtanh.pop %v3314
    %v3475 = vxor.u32 %v3315, 2147483648
    %v3476 = vxor.u32 %v3316, 2147483648
    %v3477 = vxor.u32 %v3317, 2147483648
    %v3478 = vxor.u32 %v3318, 2147483648
    %v3479 = vmul.f32 %v3475, 1.442695
    %v3480 = vpow.pop %v3479
    %v3481 = vmul.f32 %v3476, 1.442695
    %v3482 = vpow.pop %v3481
    %v3483 = vmul.f32 %v3477, 1.442695
    %v3484 = vpow.pop %v3483
    %v3485 = vmul.f32 %v3478, 1.442695
    %v3486 = vpow.pop %v3485
    %v3487 = vadd.f32 %v3480, 1.0
    %v3488 = vadd.f32 %v3482, 1.0
    %v3489 = vadd.f32 %v3484, 1.0
    %v3490 = vadd.f32 %v3486, 1.0
    %v3491 = vrcp.pop %v3487
    %v3492 = vmul.f32 %v3487, %v3491
    %v3493 = vsub.f32 1.0, %v3492
    %v3494 = vmul.f32 %v3491, %v3493
    %v3495 = vadd.f32 %v3491, %v3494
    %vm3496 = vweird.f32 %v3487
    %vm3497 = vweird.f32 %v3491
    %vm3498 = vmor %vm3496, %vm3497
    %v3499 = vsel %vm3498, %v3491, %v3495
    %v3500 = vand.u32 2147483647, %v3487
    %vm3501 = vcmp.eq.f32.partialorder %v3500, 8.507059e+37
    %v3502 = vand.u32 %v3487, 2147483648
    %v3503 = vor.u32 1.1754944e-38, %v3502
    %v3504 = vsel %vm3501, %v3503, %v3499
    %v3505 = vmul.f32 1.0, %v3504
    %v3506 = vrcp.pop %v3488
    %v3507 = vmul.f32 %v3488, %v3506
    %v3508 = vsub.f32 1.0, %v3507
    %v3509 = vmul.f32 %v3506, %v3508
    %v3510 = vadd.f32 %v3506, %v3509
    %vm3511 = vweird.f32 %v3488
    %vm3512 = vweird.f32 %v3506
    %vm3513 = vmor %vm3511, %vm3512
    %v3514 = vsel %vm3513, %v3506, %v3510
    %v3515 = vand.u32 2147483647, %v3488
    %vm3516 = vcmp.eq.f32.partialorder %v3515, 8.507059e+37
    %v3517 = vand.u32 %v3488, 2147483648
    %v3518 = vor.u32 1.1754944e-38, %v3517
    %v3519 = vsel %vm3516, %v3518, %v3514
    %v3520 = vmul.f32 1.0, %v3519
    %v3521 = vrcp.pop %v3489
    %v3522 = vmul.f32 %v3489, %v3521
    %v3523 = vsub.f32 1.0, %v3522
    %v3524 = vmul.f32 %v3521, %v3523
    %v3525 = vadd.f32 %v3521, %v3524
    %vm3526 = vweird.f32 %v3489
    %vm3527 = vweird.f32 %v3521
    %vm3528 = vmor %vm3526, %vm3527
    %v3529 = vsel %vm3528, %v3521, %v3525
    %v3530 = vand.u32 2147483647, %v3489
    %vm3531 = vcmp.eq.f32.partialorder %v3530, 8.507059e+37
    %v3532 = vand.u32 %v3489, 2147483648
    %v3533 = vor.u32 1.1754944e-38, %v3532
    %v3534 = vsel %vm3531, %v3533, %v3529
    %v3535 = vmul.f32 1.0, %v3534
    %v3536 = vrcp.pop %v3490
    %v3537 = vmul.f32 %v3490, %v3536
    %v3538 = vsub.f32 1.0, %v3537
    %v3539 = vmul.f32 %v3536, %v3538
    %v3540 = vadd.f32 %v3536, %v3539
    %vm3541 = vweird.f32 %v3490
    %vm3542 = vweird.f32 %v3536
    %vm3543 = vmor %vm3541, %vm3542
    %v3544 = vsel %vm3543, %v3536, %v3540
    %v3545 = vand.u32 2147483647, %v3490
    %vm3546 = vcmp.eq.f32.partialorder %v3545, 8.507059e+37
    %v3547 = vand.u32 %v3490, 2147483648
    %v3548 = vor.u32 1.1754944e-38, %v3547
    %v3549 = vsel %vm3546, %v3548, %v3544
    %v3550 = vmul.f32 1.0, %v3549
    %v3551 = vld [vmem:[#allocation3] sm:$0xff]
    %v3552 = vld [vmem:[#allocation3 + $0x8] sm:$0xff]
    %v3553 = vld [vmem:[#allocation3 + $0x10] sm:$0xff]
    %v3554 = vld [vmem:[#allocation3 + $0x18] sm:$0xff]
    %v3555 = vmul.f32 %v3425, %v3551
    %v3556 = vmul.f32 %v3440, %v3552
    %v3557 = vmul.f32 %v3455, %v3553
    %v3558 = vmul.f32 %v3470, %v3554
    %v3559 = vmul.f32 %v3349, %v3471
    %v3560 = vmul.f32 %v3364, %v3472
    %v3561 = vmul.f32 %v3379, %v3473
    %v3562 = vmul.f32 %v3394, %v3474
    %v3563 = vadd.f32 %v3555, %v3559
    %v3564 = vadd.f32 %v3556, %v3560
    %v3565 = vadd.f32 %v3557, %v3561
    %v3566 = vadd.f32 %v3558, %v3562
    %v3567 = vtanh.pop %v3563
    %v3568 = vtanh.pop %v3564
    %v3569 = vtanh.pop %v3565
    %v3570 = vtanh.pop %v3566
    %v3571 = vmul.f32 %v3505, %v3567
    %v3572 = vmul.f32 %v3520, %v3568
    %v3573 = vmul.f32 %v3535, %v3569
    %v3574 = vmul.f32 %v3550, %v3570
    %3575 = vst [vmem:[#allocation3] sm:$0xff] %v3563
    %3576 = vst [vmem:[#allocation3 + $0x8] sm:$0xff] %v3564
    %3577 = vst [vmem:[#allocation3 + $0x10] sm:$0xff] %v3565
    %3578 = vst [vmem:[#allocation3 + $0x18] sm:$0xff] %v3566
    %3579 = vst [vmem:[#allocation2] sm:$0xff] %v3571
    %3580 = vst [vmem:[#allocation2 + $0x8] sm:$0xff] %v3572
    %3581 = vst [vmem:[#allocation2 + $0x10] sm:$0xff] %v3573
    %3582 = vst [vmem:[#allocation2 + $0x18] sm:$0xff] %v3574
    %v3583 = vld [vmem:[%s1273] sm:$0xff]
    %v3584 = vld [vmem:[%s1273 + $0x8] sm:$0xff]
    %v3585 = vld [vmem:[%s1273 + $0x10] sm:$0xff]
    %v3586 = vld [vmem:[%s1273 + $0x18] sm:$0xff]
    %v3587 = vld [vmem:[%s1273 + $0x20] sm:$0xff]
    %v3588 = vld [vmem:[%s1273 + $0x28] sm:$0xff]
    %v3589 = vld [vmem:[%s1273 + $0x30] sm:$0xff]
    %v3590 = vld [vmem:[%s1273 + $0x38] sm:$0xff]
    %v3591 = vld [vmem:[%s1273 + $0x40] sm:$0xff]
    %v3592 = vld [vmem:[%s1273 + $0x48] sm:$0xff]
    %v3593 = vld [vmem:[%s1273 + $0x50] sm:$0xff]
    %v3594 = vld [vmem:[%s1273 + $0x58] sm:$0xff]
    %v3595 = vld [vmem:[%s1273 + $0x60] sm:$0xff]
    %v3596 = vld [vmem:[%s1273 + $0x68] sm:$0xff]
    %v3597 = vld [vmem:[%s1273 + $0x70] sm:$0xff]
    %v3598 = vld [vmem:[%s1273 + $0x78] sm:$0xff]
    %v3599 = vld [vmem:[#allocation4] sm:$0xff]
    %v3600 = vld [vmem:[#allocation4 + $0x8] sm:$0xff]
    %v3601 = vld [vmem:[#allocation4 + $0x10] sm:$0xff]
    %v3602 = vld [vmem:[#allocation4 + $0x18] sm:$0xff]
    %v3603 = vpack.c.bf16 %v3600, %v3599
    %v3604 = vpack.c.bf16 %v3602, %v3601
    %3605 = vmatpush.bf16.msra.mxu0 0
    %3606 = vmatpush.bf16.msra.mxu0 0
    %3607 = vmatpush.bf16.msra.mxu0 0
    %3608 = vmatpush.bf16.msra.mxu0 0
    %3609 = vmatpush.bf16.msra.mxu0 0
    %3610 = vmatpush.bf16.msra.mxu0 0
    %3611 = vmatpush.bf16.msra.mxu0 %v3604
    %3612 = vmatpush.bf16.msra.mxu0 %v3603
    %3613 = vmatmul.bf16.gmra.mxu0 %v2043
    %v3614 = vpop.f32.mrf.mxu0
    %v3615 = vadd.f32 0.0, %v3614
    %v3616 = vpop.f32.mrf.mxu0
    %v3617 = vadd.f32 0.0, %v3616
    %3618 = vmatmul.bf16.gmra.mxu0 %v2046
    %v3619 = vpop.f32.mrf.mxu0
    %v3620 = vadd.f32 0.0, %v3619
    %v3621 = vpop.f32.mrf.mxu0
    %v3622 = vadd.f32 0.0, %v3621
    %3623 = vmatmul.bf16.gmra.mxu0 %v2049
    %v3624 = vpop.f32.mrf.mxu0
    %v3625 = vadd.f32 0.0, %v3624
    %v3626 = vpop.f32.mrf.mxu0
    %v3627 = vadd.f32 0.0, %v3626
    %3628 = vmatmul.bf16.gmra.mxu0 %v2052
    %v3629 = vpop.f32.mrf.mxu0
    %v3630 = vadd.f32 0.0, %v3629
    %v3631 = vpop.f32.mrf.mxu0
    %v3632 = vadd.f32 0.0, %v3631
    %3633 = vmatmul.bf16.gmra.mxu0 %v2055
    %v3634 = vpop.f32.mrf.mxu0
    %v3635 = vadd.f32 0.0, %v3634
    %v3636 = vpop.f32.mrf.mxu0
    %v3637 = vadd.f32 0.0, %v3636
    %3638 = vmatmul.bf16.gmra.mxu0 %v2058
    %v3639 = vpop.f32.mrf.mxu0
    %v3640 = vadd.f32 0.0, %v3639
    %v3641 = vpop.f32.mrf.mxu0
    %v3642 = vadd.f32 0.0, %v3641
    %3643 = vmatmul.bf16.gmra.mxu0 %v2061
    %v3644 = vpop.f32.mrf.mxu0
    %v3645 = vadd.f32 0.0, %v3644
    %v3646 = vpop.f32.mrf.mxu0
    %v3647 = vadd.f32 0.0, %v3646
    %3648 = vmatmul.bf16.gmra.mxu0 %v2064
    %v3649 = vpop.f32.mrf.mxu0
    %v3650 = vadd.f32 0.0, %v3649
    %v3651 = vpop.f32.mrf.mxu0
    %v3652 = vadd.f32 0.0, %v3651
    %3653 = vdwg.mxu0
    %v3654 = vadd.f32 %v3583, %v3615
    %v3655 = vadd.f32 %v3584, %v3617
    %v3656 = vadd.f32 %v3585, %v3620
    %v3657 = vadd.f32 %v3586, %v3622
    %v3658 = vadd.f32 %v3587, %v3625
    %v3659 = vadd.f32 %v3588, %v3627
    %v3660 = vadd.f32 %v3589, %v3630
    %v3661 = vadd.f32 %v3590, %v3632
    %v3662 = vadd.f32 %v3591, %v3635
    %v3663 = vadd.f32 %v3592, %v3637
    %v3664 = vadd.f32 %v3593, %v3640
    %v3665 = vadd.f32 %v3594, %v3642
    %v3666 = vadd.f32 %v3595, %v3645
    %v3667 = vadd.f32 %v3596, %v3647
    %v3668 = vadd.f32 %v3597, %v3650
    %v3669 = vadd.f32 %v3598, %v3652
    %v3670 = vxor.u32 %v3654, 2147483648
    %v3671 = vxor.u32 %v3655, 2147483648
    %v3672 = vxor.u32 %v3656, 2147483648
    %v3673 = vxor.u32 %v3657, 2147483648
    %v3674 = vmul.f32 %v3670, 1.442695
    %v3675 = vpow.pop %v3674
    %v3676 = vmul.f32 %v3671, 1.442695
    %v3677 = vpow.pop %v3676
    %v3678 = vmul.f32 %v3672, 1.442695
    %v3679 = vpow.pop %v3678
    %v3680 = vmul.f32 %v3673, 1.442695
    %v3681 = vpow.pop %v3680
    %v3682 = vadd.f32 %v3675, 1.0
    %v3683 = vadd.f32 %v3677, 1.0
    %v3684 = vadd.f32 %v3679, 1.0
    %v3685 = vadd.f32 %v3681, 1.0
    %v3686 = vrcp.pop %v3682
    %v3687 = vmul.f32 %v3682, %v3686
    %v3688 = vsub.f32 1.0, %v3687
    %v3689 = vmul.f32 %v3686, %v3688
    %v3690 = vadd.f32 %v3686, %v3689
    %vm3691 = vweird.f32 %v3682
    %vm3692 = vweird.f32 %v3686
    %vm3693 = vmor %vm3691, %vm3692
    %v3694 = vsel %vm3693, %v3686, %v3690
    %v3695 = vand.u32 2147483647, %v3682
    %vm3696 = vcmp.eq.f32.partialorder %v3695, 8.507059e+37
    %v3697 = vand.u32 %v3682, 2147483648
    %v3698 = vor.u32 1.1754944e-38, %v3697
    %v3699 = vsel %vm3696, %v3698, %v3694
    %v3700 = vmul.f32 1.0, %v3699
    %v3701 = vrcp.pop %v3683
    %v3702 = vmul.f32 %v3683, %v3701
    %v3703 = vsub.f32 1.0, %v3702
    %v3704 = vmul.f32 %v3701, %v3703
    %v3705 = vadd.f32 %v3701, %v3704
    %vm3706 = vweird.f32 %v3683
    %vm3707 = vweird.f32 %v3701
    %vm3708 = vmor %vm3706, %vm3707
    %v3709 = vsel %vm3708, %v3701, %v3705
    %v3710 = vand.u32 2147483647, %v3683
    %vm3711 = vcmp.eq.f32.partialorder %v3710, 8.507059e+37
    %v3712 = vand.u32 %v3683, 2147483648
    %v3713 = vor.u32 1.1754944e-38, %v3712
    %v3714 = vsel %vm3711, %v3713, %v3709
    %v3715 = vmul.f32 1.0, %v3714
    %v3716 = vrcp.pop %v3684
    %v3717 = vmul.f32 %v3684, %v3716
    %v3718 = vsub.f32 1.0, %v3717
    %v3719 = vmul.f32 %v3716, %v3718
    %v3720 = vadd.f32 %v3716, %v3719
    %vm3721 = vweird.f32 %v3684
    %vm3722 = vweird.f32 %v3716
    %vm3723 = vmor %vm3721, %vm3722
    %v3724 = vsel %vm3723, %v3716, %v3720
    %v3725 = vand.u32 2147483647, %v3684
    %vm3726 = vcmp.eq.f32.partialorder %v3725, 8.507059e+37
    %v3727 = vand.u32 %v3684, 2147483648
    %v3728 = vor.u32 1.1754944e-38, %v3727
    %v3729 = vsel %vm3726, %v3728, %v3724
    %v3730 = vmul.f32 1.0, %v3729
    %v3731 = vrcp.pop %v3685
    %v3732 = vmul.f32 %v3685, %v3731
    %v3733 = vsub.f32 1.0, %v3732
    %v3734 = vmul.f32 %v3731, %v3733
    %v3735 = vadd.f32 %v3731, %v3734
    %vm3736 = vweird.f32 %v3685
    %vm3737 = vweird.f32 %v3731
    %vm3738 = vmor %vm3736, %vm3737
    %v3739 = vsel %vm3738, %v3731, %v3735
    %v3740 = vand.u32 2147483647, %v3685
    %vm3741 = vcmp.eq.f32.partialorder %v3740, 8.507059e+37
    %v3742 = vand.u32 %v3685, 2147483648
    %v3743 = vor.u32 1.1754944e-38, %v3742
    %v3744 = vsel %vm3741, %v3743, %v3739
    %v3745 = vmul.f32 1.0, %v3744
    %v3746 = vxor.u32 %v3658, 2147483648
    %v3747 = vxor.u32 %v3659, 2147483648
    %v3748 = vxor.u32 %v3660, 2147483648
    %v3749 = vxor.u32 %v3661, 2147483648
    %v3750 = vmul.f32 %v3746, 1.442695
    %v3751 = vpow.pop %v3750
    %v3752 = vmul.f32 %v3747, 1.442695
    %v3753 = vpow.pop %v3752
    %v3754 = vmul.f32 %v3748, 1.442695
    %v3755 = vpow.pop %v3754
    %v3756 = vmul.f32 %v3749, 1.442695
    %v3757 = vpow.pop %v3756
    %v3758 = vadd.f32 %v3751, 1.0
    %v3759 = vadd.f32 %v3753, 1.0
    %v3760 = vadd.f32 %v3755, 1.0
    %v3761 = vadd.f32 %v3757, 1.0
    %v3762 = vrcp.pop %v3758
    %v3763 = vmul.f32 %v3758, %v3762
    %v3764 = vsub.f32 1.0, %v3763
    %v3765 = vmul.f32 %v3762, %v3764
    %v3766 = vadd.f32 %v3762, %v3765
    %vm3767 = vweird.f32 %v3758
    %vm3768 = vweird.f32 %v3762
    %vm3769 = vmor %vm3767, %vm3768
    %v3770 = vsel %vm3769, %v3762, %v3766
    %v3771 = vand.u32 2147483647, %v3758
    %vm3772 = vcmp.eq.f32.partialorder %v3771, 8.507059e+37
    %v3773 = vand.u32 %v3758, 2147483648
    %v3774 = vor.u32 1.1754944e-38, %v3773
    %v3775 = vsel %vm3772, %v3774, %v3770
    %v3776 = vmul.f32 1.0, %v3775
    %v3777 = vrcp.pop %v3759
    %v3778 = vmul.f32 %v3759, %v3777
    %v3779 = vsub.f32 1.0, %v3778
    %v3780 = vmul.f32 %v3777, %v3779
    %v3781 = vadd.f32 %v3777, %v3780
    %vm3782 = vweird.f32 %v3759
    %vm3783 = vweird.f32 %v3777
    %vm3784 = vmor %vm3782, %vm3783
    %v3785 = vsel %vm3784, %v3777, %v3781
    %v3786 = vand.u32 2147483647, %v3759
    %vm3787 = vcmp.eq.f32.partialorder %v3786, 8.507059e+37
    %v3788 = vand.u32 %v3759, 2147483648
    %v3789 = vor.u32 1.1754944e-38, %v3788
    %v3790 = vsel %vm3787, %v3789, %v3785
    %v3791 = vmul.f32 1.0, %v3790
    %v3792 = vrcp.pop %v3760
    %v3793 = vmul.f32 %v3760, %v3792
    %v3794 = vsub.f32 1.0, %v3793
    %v3795 = vmul.f32 %v3792, %v3794
    %v3796 = vadd.f32 %v3792, %v3795
    %vm3797 = vweird.f32 %v3760
    %vm3798 = vweird.f32 %v3792
    %vm3799 = vmor %vm3797, %vm3798
    %v3800 = vsel %vm3799, %v3792, %v3796
    %v3801 = vand.u32 2147483647, %v3760
    %vm3802 = vcmp.eq.f32.partialorder %v3801, 8.507059e+37
    %v3803 = vand.u32 %v3760, 2147483648
    %v3804 = vor.u32 1.1754944e-38, %v3803
    %v3805 = vsel %vm3802, %v3804, %v3800
    %v3806 = vmul.f32 1.0, %v3805
    %v3807 = vrcp.pop %v3761
    %v3808 = vmul.f32 %v3761, %v3807
    %v3809 = vsub.f32 1.0, %v3808
    %v3810 = vmul.f32 %v3807, %v3809
    %v3811 = vadd.f32 %v3807, %v3810
    %vm3812 = vweird.f32 %v3761
    %vm3813 = vweird.f32 %v3807
    %vm3814 = vmor %vm3812, %vm3813
    %v3815 = vsel %vm3814, %v3807, %v3811
    %v3816 = vand.u32 2147483647, %v3761
    %vm3817 = vcmp.eq.f32.partialorder %v3816, 8.507059e+37
    %v3818 = vand.u32 %v3761, 2147483648
    %v3819 = vor.u32 1.1754944e-38, %v3818
    %v3820 = vsel %vm3817, %v3819, %v3815
    %v3821 = vmul.f32 1.0, %v3820
    %v3822 = vtanh.pop %v3662
    %v3823 = vtanh.pop %v3663
    %v3824 = vtanh.pop %v3664
    %v3825 = vtanh.pop %v3665
    %v3826 = vxor.u32 %v3666, 2147483648
    %v3827 = vxor.u32 %v3667, 2147483648
    %v3828 = vxor.u32 %v3668, 2147483648
    %v3829 = vxor.u32 %v3669, 2147483648
    %v3830 = vmul.f32 %v3826, 1.442695
    %v3831 = vpow.pop %v3830
    %v3832 = vmul.f32 %v3827, 1.442695
    %v3833 = vpow.pop %v3832
    %v3834 = vmul.f32 %v3828, 1.442695
    %v3835 = vpow.pop %v3834
    %v3836 = vmul.f32 %v3829, 1.442695
    %v3837 = vpow.pop %v3836
    %v3838 = vadd.f32 %v3831, 1.0
    %v3839 = vadd.f32 %v3833, 1.0
    %v3840 = vadd.f32 %v3835, 1.0
    %v3841 = vadd.f32 %v3837, 1.0
    %v3842 = vrcp.pop %v3838
    %v3843 = vmul.f32 %v3838, %v3842
    %v3844 = vsub.f32 1.0, %v3843
    %v3845 = vmul.f32 %v3842, %v3844
    %v3846 = vadd.f32 %v3842, %v3845
    %vm3847 = vweird.f32 %v3838
    %vm3848 = vweird.f32 %v3842
    %vm3849 = vmor %vm3847, %vm3848
    %v3850 = vsel %vm3849, %v3842, %v3846
    %v3851 = vand.u32 2147483647, %v3838
    %vm3852 = vcmp.eq.f32.partialorder %v3851, 8.507059e+37
    %v3853 = vand.u32 %v3838, 2147483648
    %v3854 = vor.u32 1.1754944e-38, %v3853
    %v3855 = vsel %vm3852, %v3854, %v3850
    %v3856 = vmul.f32 1.0, %v3855
    %v3857 = vrcp.pop %v3839
    %v3858 = vmul.f32 %v3839, %v3857
    %v3859 = vsub.f32 1.0, %v3858
    %v3860 = vmul.f32 %v3857, %v3859
    %v3861 = vadd.f32 %v3857, %v3860
    %vm3862 = vweird.f32 %v3839
    %vm3863 = vweird.f32 %v3857
    %vm3864 = vmor %vm3862, %vm3863
    %v3865 = vsel %vm3864, %v3857, %v3861
    %v3866 = vand.u32 2147483647, %v3839
    %vm3867 = vcmp.eq.f32.partialorder %v3866, 8.507059e+37
    %v3868 = vand.u32 %v3839, 2147483648
    %v3869 = vor.u32 1.1754944e-38, %v3868
    %v3870 = vsel %vm3867, %v3869, %v3865
    %v3871 = vmul.f32 1.0, %v3870
    %v3872 = vrcp.pop %v3840
    %v3873 = vmul.f32 %v3840, %v3872
    %v3874 = vsub.f32 1.0, %v3873
    %v3875 = vmul.f32 %v3872, %v3874
    %v3876 = vadd.f32 %v3872, %v3875
    %vm3877 = vweird.f32 %v3840
    %vm3878 = vweird.f32 %v3872
    %vm3879 = vmor %vm3877, %vm3878
    %v3880 = vsel %vm3879, %v3872, %v3876
    %v3881 = vand.u32 2147483647, %v3840
    %vm3882 = vcmp.eq.f32.partialorder %v3881, 8.507059e+37
    %v3883 = vand.u32 %v3840, 2147483648
    %v3884 = vor.u32 1.1754944e-38, %v3883
    %v3885 = vsel %vm3882, %v3884, %v3880
    %v3886 = vmul.f32 1.0, %v3885
    %v3887 = vrcp.pop %v3841
    %v3888 = vmul.f32 %v3841, %v3887
    %v3889 = vsub.f32 1.0, %v3888
    %v3890 = vmul.f32 %v3887, %v3889
    %v3891 = vadd.f32 %v3887, %v3890
    %vm3892 = vweird.f32 %v3841
    %vm3893 = vweird.f32 %v3887
    %vm3894 = vmor %vm3892, %vm3893
    %v3895 = vsel %vm3894, %v3887, %v3891
    %v3896 = vand.u32 2147483647, %v3841
    %vm3897 = vcmp.eq.f32.partialorder %v3896, 8.507059e+37
    %v3898 = vand.u32 %v3841, 2147483648
    %v3899 = vor.u32 1.1754944e-38, %v3898
    %v3900 = vsel %vm3897, %v3899, %v3895
    %v3901 = vmul.f32 1.0, %v3900
    %v3902 = vld [vmem:[#allocation5] sm:$0xff]
    %v3903 = vld [vmem:[#allocation5 + $0x8] sm:$0xff]
    %v3904 = vld [vmem:[#allocation5 + $0x10] sm:$0xff]
    %v3905 = vld [vmem:[#allocation5 + $0x18] sm:$0xff]
    %v3906 = vmul.f32 %v3776, %v3902
    %v3907 = vmul.f32 %v3791, %v3903
    %v3908 = vmul.f32 %v3806, %v3904
    %v3909 = vmul.f32 %v3821, %v3905
    %v3910 = vmul.f32 %v3700, %v3822
    %v3911 = vmul.f32 %v3715, %v3823
    %v3912 = vmul.f32 %v3730, %v3824
    %v3913 = vmul.f32 %v3745, %v3825
    %v3914 = vadd.f32 %v3906, %v3910
    %v3915 = vadd.f32 %v3907, %v3911
    %v3916 = vadd.f32 %v3908, %v3912
    %v3917 = vadd.f32 %v3909, %v3913
    %v3918 = vtanh.pop %v3914
    %v3919 = vtanh.pop %v3915
    %v3920 = vtanh.pop %v3916
    %v3921 = vtanh.pop %v3917
    %v3922 = vmul.f32 %v3856, %v3918
    %v3923 = vmul.f32 %v3871, %v3919
    %v3924 = vmul.f32 %v3886, %v3920
    %v3925 = vmul.f32 %v3901, %v3921
    %3926 = vst [vmem:[#allocation5] sm:$0xff] %v3914
    %3927 = vst [vmem:[#allocation5 + $0x8] sm:$0xff] %v3915
    %3928 = vst [vmem:[#allocation5 + $0x10] sm:$0xff] %v3916
    %3929 = vst [vmem:[#allocation5 + $0x18] sm:$0xff] %v3917
    %3930 = vst [vmem:[#allocation4] sm:$0xff] %v3922
    %3931 = vst [vmem:[#allocation4 + $0x8] sm:$0xff] %v3923
    %3932 = vst [vmem:[#allocation4 + $0x10] sm:$0xff] %v3924
    %3933 = vst [vmem:[#allocation4 + $0x18] sm:$0xff] %v3925
    %v3934 = vpack.c.bf16 %v3572, %v3571
    %v3935 = vpack.c.bf16 %v3574, %v3573
    %v3936 = vpack.c.bf16 %v3923, %v3922
    %v3937 = vpack.c.bf16 %v3925, %v3924
    %3938 = vmatpush.bf16.msra.mxu0 0
    %3939 = vmatpush.bf16.msra.mxu0 0
    %3940 = vmatpush.bf16.msra.mxu0 0
    %3941 = vmatpush.bf16.msra.mxu0 0
    %3942 = vmatpush.bf16.msra.mxu0 0
    %3943 = vmatpush.bf16.msra.mxu0 0
    %3944 = vmatpush.bf16.msra.mxu0 %v3935
    %3945 = vmatpush.bf16.msra.mxu0 %v3934
    %3946 = vmatmul.bf16.gmra.mxu0 %v2410
    %v3947 = vpop.f32.mrf.mxu0
    %v3948 = vadd.f32 %v324, %v3947
    %v3949 = vpop.f32.mrf.mxu0
    %v3950 = vadd.f32 %v329, %v3949
    %3951 = vmatmul.bf16.gmra.mxu0 %v2413
    %v3952 = vpop.f32.mrf.mxu0
    %v3953 = vadd.f32 %v334, %v3952
    %v3954 = vpop.f32.mrf.mxu0
    %v3955 = vadd.f32 %v339, %v3954
    %3956 = vdwg.mxu0
    %s3957 = scalar_lea.vmem [#allocation8], 64
    %3958 = vst [vmem:[%s3957] sm:$0xff] %v3948
    %3959 = vst [vmem:[%s3957 + $0x8] sm:$0xff] %v3950
    %3960 = vst [vmem:[%s3957 + $0x10] sm:$0xff] %v3953
    %3961 = vst [vmem:[%s3957 + $0x18] sm:$0xff] %v3955
    %3962 = vmatpush.bf16.msra.mxu0 0
    %3963 = vmatpush.bf16.msra.mxu0 0
    %3964 = vmatpush.bf16.msra.mxu0 0
    %3965 = vmatpush.bf16.msra.mxu0 0
    %3966 = vmatpush.bf16.msra.mxu0 0
    %3967 = vmatpush.bf16.msra.mxu0 0
    %3968 = vmatpush.bf16.msra.mxu0 %v3937
    %3969 = vmatpush.bf16.msra.mxu0 %v3936
    %3970 = vmatmul.bf16.gmra.mxu0 %v2449
    %v3971 = vpop.f32.mrf.mxu0
    %v3972 = vadd.f32 %v324, %v3971
    %v3973 = vpop.f32.mrf.mxu0
    %v3974 = vadd.f32 %v329, %v3973
    %3975 = vmatmul.bf16.gmra.mxu0 %v2452
    %v3976 = vpop.f32.mrf.mxu0
    %v3977 = vadd.f32 %v334, %v3976
    %v3978 = vpop.f32.mrf.mxu0
    %v3979 = vadd.f32 %v339, %v3978
    %3980 = vdwg.mxu0
    %s3981 = scalar_lea.vmem [#allocation8], 160
    %3982 = vst [vmem:[%s3981] sm:$0xff] %v3972
    %3983 = vst [vmem:[%s3981 + $0x8] sm:$0xff] %v3974
    %3984 = vst [vmem:[%s3981 + $0x10] sm:$0xff] %v3977
    %3985 = vst [vmem:[%s3981 + $0x18] sm:$0xff] %v3979
    %v3986 = vld [vmem:[%s933] sm:$0xff]
    %v3987 = vld [vmem:[%s933 + $0x8] sm:$0xff]
    %v3988 = vld [vmem:[%s933 + $0x10] sm:$0xff]
    %v3989 = vld [vmem:[%s933 + $0x18] sm:$0xff]
    %v3990 = vld [vmem:[%s933 + $0x20] sm:$0xff]
    %v3991 = vld [vmem:[%s933 + $0x28] sm:$0xff]
    %v3992 = vld [vmem:[%s933 + $0x30] sm:$0xff]
    %v3993 = vld [vmem:[%s933 + $0x38] sm:$0xff]
    %v3994 = vld [vmem:[%s933 + $0x40] sm:$0xff]
    %v3995 = vld [vmem:[%s933 + $0x48] sm:$0xff]
    %v3996 = vld [vmem:[%s933 + $0x50] sm:$0xff]
    %v3997 = vld [vmem:[%s933 + $0x58] sm:$0xff]
    %v3998 = vld [vmem:[%s933 + $0x60] sm:$0xff]
    %v3999 = vld [vmem:[%s933 + $0x68] sm:$0xff]
    %v4000 = vld [vmem:[%s933 + $0x70] sm:$0xff]
    %v4001 = vld [vmem:[%s933 + $0x78] sm:$0xff]
    %v4002 = vld [vmem:[#allocation2] sm:$0xff]
    %v4003 = vld [vmem:[#allocation2 + $0x8] sm:$0xff]
    %v4004 = vld [vmem:[#allocation2 + $0x10] sm:$0xff]
    %v4005 = vld [vmem:[#allocation2 + $0x18] sm:$0xff]
    %v4006 = vpack.c.bf16 %v4003, %v4002
    %v4007 = vpack.c.bf16 %v4005, %v4004
    %4008 = vmatpush.bf16.msra.mxu0 0
    %4009 = vmatpush.bf16.msra.mxu0 0
    %4010 = vmatpush.bf16.msra.mxu0 0
    %4011 = vmatpush.bf16.msra.mxu0 0
    %4012 = vmatpush.bf16.msra.mxu0 0
    %4013 = vmatpush.bf16.msra.mxu0 0
    %4014 = vmatpush.bf16.msra.mxu0 %v4007
    %4015 = vmatpush.bf16.msra.mxu0 %v4006
    %4016 = vmatmul.bf16.gmra.mxu0 %v1628
    %v4017 = vpop.f32.mrf.mxu0
    %v4018 = vadd.f32 0.0, %v4017
    %v4019 = vpop.f32.mrf.mxu0
    %v4020 = vadd.f32 0.0, %v4019
    %4021 = vmatmul.bf16.gmra.mxu0 %v1631
    %v4022 = vpop.f32.mrf.mxu0
    %v4023 = vadd.f32 0.0, %v4022
    %v4024 = vpop.f32.mrf.mxu0
    %v4025 = vadd.f32 0.0, %v4024
    %4026 = vmatmul.bf16.gmra.mxu0 %v1634
    %v4027 = vpop.f32.mrf.mxu0
    %v4028 = vadd.f32 0.0, %v4027
    %v4029 = vpop.f32.mrf.mxu0
    %v4030 = vadd.f32 0.0, %v4029
    %4031 = vmatmul.bf16.gmra.mxu0 %v1637
    %v4032 = vpop.f32.mrf.mxu0
    %v4033 = vadd.f32 0.0, %v4032
    %v4034 = vpop.f32.mrf.mxu0
    %v4035 = vadd.f32 0.0, %v4034
    %4036 = vmatmul.bf16.gmra.mxu0 %v1640
    %v4037 = vpop.f32.mrf.mxu0
    %v4038 = vadd.f32 0.0, %v4037
    %v4039 = vpop.f32.mrf.mxu0
    %v4040 = vadd.f32 0.0, %v4039
    %4041 = vmatmul.bf16.gmra.mxu0 %v1643
    %v4042 = vpop.f32.mrf.mxu0
    %v4043 = vadd.f32 0.0, %v4042
    %v4044 = vpop.f32.mrf.mxu0
    %v4045 = vadd.f32 0.0, %v4044
    %4046 = vmatmul.bf16.gmra.mxu0 %v1646
    %v4047 = vpop.f32.mrf.mxu0
    %v4048 = vadd.f32 0.0, %v4047
    %v4049 = vpop.f32.mrf.mxu0
    %v4050 = vadd.f32 0.0, %v4049
    %4051 = vmatmul.bf16.gmra.mxu0 %v1649
    %v4052 = vpop.f32.mrf.mxu0
    %v4053 = vadd.f32 0.0, %v4052
    %v4054 = vpop.f32.mrf.mxu0
    %v4055 = vadd.f32 0.0, %v4054
    %4056 = vdwg.mxu0
    %v4057 = vadd.f32 %v3986, %v4018
    %v4058 = vadd.f32 %v3987, %v4020
    %v4059 = vadd.f32 %v3988, %v4023
    %v4060 = vadd.f32 %v3989, %v4025
    %v4061 = vadd.f32 %v3990, %v4028
    %v4062 = vadd.f32 %v3991, %v4030
    %v4063 = vadd.f32 %v3992, %v4033
    %v4064 = vadd.f32 %v3993, %v4035
    %v4065 = vadd.f32 %v3994, %v4038
    %v4066 = vadd.f32 %v3995, %v4040
    %v4067 = vadd.f32 %v3996, %v4043
    %v4068 = vadd.f32 %v3997, %v4045
    %v4069 = vadd.f32 %v3998, %v4048
    %v4070 = vadd.f32 %v3999, %v4050
    %v4071 = vadd.f32 %v4000, %v4053
    %v4072 = vadd.f32 %v4001, %v4055
    %v4073 = vxor.u32 %v4057, 2147483648
    %v4074 = vxor.u32 %v4058, 2147483648
    %v4075 = vxor.u32 %v4059, 2147483648
    %v4076 = vxor.u32 %v4060, 2147483648
    %v4077 = vmul.f32 %v4073, 1.442695
    %v4078 = vpow.pop %v4077
    %v4079 = vmul.f32 %v4074, 1.442695
    %v4080 = vpow.pop %v4079
    %v4081 = vmul.f32 %v4075, 1.442695
    %v4082 = vpow.pop %v4081
    %v4083 = vmul.f32 %v4076, 1.442695
    %v4084 = vpow.pop %v4083
    %v4085 = vadd.f32 %v4078, 1.0
    %v4086 = vadd.f32 %v4080, 1.0
    %v4087 = vadd.f32 %v4082, 1.0
    %v4088 = vadd.f32 %v4084, 1.0
    %v4089 = vrcp.pop %v4085
    %v4090 = vmul.f32 %v4085, %v4089
    %v4091 = vsub.f32 1.0, %v4090
    %v4092 = vmul.f32 %v4089, %v4091
    %v4093 = vadd.f32 %v4089, %v4092
    %vm4094 = vweird.f32 %v4085
    %vm4095 = vweird.f32 %v4089
    %vm4096 = vmor %vm4094, %vm4095
    %v4097 = vsel %vm4096, %v4089, %v4093
    %v4098 = vand.u32 2147483647, %v4085
    %vm4099 = vcmp.eq.f32.partialorder %v4098, 8.507059e+37
    %v4100 = vand.u32 %v4085, 2147483648
    %v4101 = vor.u32 1.1754944e-38, %v4100
    %v4102 = vsel %vm4099, %v4101, %v4097
    %v4103 = vmul.f32 1.0, %v4102
    %v4104 = vrcp.pop %v4086
    %v4105 = vmul.f32 %v4086, %v4104
    %v4106 = vsub.f32 1.0, %v4105
    %v4107 = vmul.f32 %v4104, %v4106
    %v4108 = vadd.f32 %v4104, %v4107
    %vm4109 = vweird.f32 %v4086
    %vm4110 = vweird.f32 %v4104
    %vm4111 = vmor %vm4109, %vm4110
    %v4112 = vsel %vm4111, %v4104, %v4108
    %v4113 = vand.u32 2147483647, %v4086
    %vm4114 = vcmp.eq.f32.partialorder %v4113, 8.507059e+37
    %v4115 = vand.u32 %v4086, 2147483648
    %v4116 = vor.u32 1.1754944e-38, %v4115
    %v4117 = vsel %vm4114, %v4116, %v4112
    %v4118 = vmul.f32 1.0, %v4117
    %v4119 = vrcp.pop %v4087
    %v4120 = vmul.f32 %v4087, %v4119
    %v4121 = vsub.f32 1.0, %v4120
    %v4122 = vmul.f32 %v4119, %v4121
    %v4123 = vadd.f32 %v4119, %v4122
    %vm4124 = vweird.f32 %v4087
    %vm4125 = vweird.f32 %v4119
    %vm4126 = vmor %vm4124, %vm4125
    %v4127 = vsel %vm4126, %v4119, %v4123
    %v4128 = vand.u32 2147483647, %v4087
    %vm4129 = vcmp.eq.f32.partialorder %v4128, 8.507059e+37
    %v4130 = vand.u32 %v4087, 2147483648
    %v4131 = vor.u32 1.1754944e-38, %v4130
    %v4132 = vsel %vm4129, %v4131, %v4127
    %v4133 = vmul.f32 1.0, %v4132
    %v4134 = vrcp.pop %v4088
    %v4135 = vmul.f32 %v4088, %v4134
    %v4136 = vsub.f32 1.0, %v4135
    %v4137 = vmul.f32 %v4134, %v4136
    %v4138 = vadd.f32 %v4134, %v4137
    %vm4139 = vweird.f32 %v4088
    %vm4140 = vweird.f32 %v4134
    %vm4141 = vmor %vm4139, %vm4140
    %v4142 = vsel %vm4141, %v4134, %v4138
    %v4143 = vand.u32 2147483647, %v4088
    %vm4144 = vcmp.eq.f32.partialorder %v4143, 8.507059e+37
    %v4145 = vand.u32 %v4088, 2147483648
    %v4146 = vor.u32 1.1754944e-38, %v4145
    %v4147 = vsel %vm4144, %v4146, %v4142
    %v4148 = vmul.f32 1.0, %v4147
    %v4149 = vxor.u32 %v4061, 2147483648
    %v4150 = vxor.u32 %v4062, 2147483648
    %v4151 = vxor.u32 %v4063, 2147483648
    %v4152 = vxor.u32 %v4064, 2147483648
    %v4153 = vmul.f32 %v4149, 1.442695
    %v4154 = vpow.pop %v4153
    %v4155 = vmul.f32 %v4150, 1.442695
    %v4156 = vpow.pop %v4155
    %v4157 = vmul.f32 %v4151, 1.442695
    %v4158 = vpow.pop %v4157
    %v4159 = vmul.f32 %v4152, 1.442695
    %v4160 = vpow.pop %v4159
    %v4161 = vadd.f32 %v4154, 1.0
    %v4162 = vadd.f32 %v4156, 1.0
    %v4163 = vadd.f32 %v4158, 1.0
    %v4164 = vadd.f32 %v4160, 1.0
    %v4165 = vrcp.pop %v4161
    %v4166 = vmul.f32 %v4161, %v4165
    %v4167 = vsub.f32 1.0, %v4166
    %v4168 = vmul.f32 %v4165, %v4167
    %v4169 = vadd.f32 %v4165, %v4168
    %vm4170 = vweird.f32 %v4161
    %vm4171 = vweird.f32 %v4165
    %vm4172 = vmor %vm4170, %vm4171
    %v4173 = vsel %vm4172, %v4165, %v4169
    %v4174 = vand.u32 2147483647, %v4161
    %vm4175 = vcmp.eq.f32.partialorder %v4174, 8.507059e+37
    %v4176 = vand.u32 %v4161, 2147483648
    %v4177 = vor.u32 1.1754944e-38, %v4176
    %v4178 = vsel %vm4175, %v4177, %v4173
    %v4179 = vmul.f32 1.0, %v4178
    %v4180 = vrcp.pop %v4162
    %v4181 = vmul.f32 %v4162, %v4180
    %v4182 = vsub.f32 1.0, %v4181
    %v4183 = vmul.f32 %v4180, %v4182
    %v4184 = vadd.f32 %v4180, %v4183
    %vm4185 = vweird.f32 %v4162
    %vm4186 = vweird.f32 %v4180
    %vm4187 = vmor %vm4185, %vm4186
    %v4188 = vsel %vm4187, %v4180, %v4184
    %v4189 = vand.u32 2147483647, %v4162
    %vm4190 = vcmp.eq.f32.partialorder %v4189, 8.507059e+37
    %v4191 = vand.u32 %v4162, 2147483648
    %v4192 = vor.u32 1.1754944e-38, %v4191
    %v4193 = vsel %vm4190, %v4192, %v4188
    %v4194 = vmul.f32 1.0, %v4193
    %v4195 = vrcp.pop %v4163
    %v4196 = vmul.f32 %v4163, %v4195
    %v4197 = vsub.f32 1.0, %v4196
    %v4198 = vmul.f32 %v4195, %v4197
    %v4199 = vadd.f32 %v4195, %v4198
    %vm4200 = vweird.f32 %v4163
    %vm4201 = vweird.f32 %v4195
    %vm4202 = vmor %vm4200, %vm4201
    %v4203 = vsel %vm4202, %v4195, %v4199
    %v4204 = vand.u32 2147483647, %v4163
    %vm4205 = vcmp.eq.f32.partialorder %v4204, 8.507059e+37
    %v4206 = vand.u32 %v4163, 2147483648
    %v4207 = vor.u32 1.1754944e-38, %v4206
    %v4208 = vsel %vm4205, %v4207, %v4203
    %v4209 = vmul.f32 1.0, %v4208
    %v4210 = vrcp.pop %v4164
    %v4211 = vmul.f32 %v4164, %v4210
    %v4212 = vsub.f32 1.0, %v4211
    %v4213 = vmul.f32 %v4210, %v4212
    %v4214 = vadd.f32 %v4210, %v4213
    %vm4215 = vweird.f32 %v4164
    %vm4216 = vweird.f32 %v4210
    %vm4217 = vmor %vm4215, %vm4216
    %v4218 = vsel %vm4217, %v4210, %v4214
    %v4219 = vand.u32 2147483647, %v4164
    %vm4220 = vcmp.eq.f32.partialorder %v4219, 8.507059e+37
    %v4221 = vand.u32 %v4164, 2147483648
    %v4222 = vor.u32 1.1754944e-38, %v4221
    %v4223 = vsel %vm4220, %v4222, %v4218
    %v4224 = vmul.f32 1.0, %v4223
    %v4225 = vtanh.pop %v4065
    %v4226 = vtanh.pop %v4066
    %v4227 = vtanh.pop %v4067
    %v4228 = vtanh.pop %v4068
    %v4229 = vxor.u32 %v4069, 2147483648
    %v4230 = vxor.u32 %v4070, 2147483648
    %v4231 = vxor.u32 %v4071, 2147483648
    %v4232 = vxor.u32 %v4072, 2147483648
    %v4233 = vmul.f32 %v4229, 1.442695
    %v4234 = vpow.pop %v4233
    %v4235 = vmul.f32 %v4230, 1.442695
    %v4236 = vpow.pop %v4235
    %v4237 = vmul.f32 %v4231, 1.442695
    %v4238 = vpow.pop %v4237
    %v4239 = vmul.f32 %v4232, 1.442695
    %v4240 = vpow.pop %v4239
    %v4241 = vadd.f32 %v4234, 1.0
    %v4242 = vadd.f32 %v4236, 1.0
    %v4243 = vadd.f32 %v4238, 1.0
    %v4244 = vadd.f32 %v4240, 1.0
    %v4245 = vrcp.pop %v4241
    %v4246 = vmul.f32 %v4241, %v4245
    %v4247 = vsub.f32 1.0, %v4246
    %v4248 = vmul.f32 %v4245, %v4247
    %v4249 = vadd.f32 %v4245, %v4248
    %vm4250 = vweird.f32 %v4241
    %vm4251 = vweird.f32 %v4245
    %vm4252 = vmor %vm4250, %vm4251
    %v4253 = vsel %vm4252, %v4245, %v4249
    %v4254 = vand.u32 2147483647, %v4241
    %vm4255 = vcmp.eq.f32.partialorder %v4254, 8.507059e+37
    %v4256 = vand.u32 %v4241, 2147483648
    %v4257 = vor.u32 1.1754944e-38, %v4256
    %v4258 = vsel %vm4255, %v4257, %v4253
    %v4259 = vmul.f32 1.0, %v4258
    %v4260 = vrcp.pop %v4242
    %v4261 = vmul.f32 %v4242, %v4260
    %v4262 = vsub.f32 1.0, %v4261
    %v4263 = vmul.f32 %v4260, %v4262
    %v4264 = vadd.f32 %v4260, %v4263
    %vm4265 = vweird.f32 %v4242
    %vm4266 = vweird.f32 %v4260
    %vm4267 = vmor %vm4265, %vm4266
    %v4268 = vsel %vm4267, %v4260, %v4264
    %v4269 = vand.u32 2147483647, %v4242
    %vm4270 = vcmp.eq.f32.partialorder %v4269, 8.507059e+37
    %v4271 = vand.u32 %v4242, 2147483648
    %v4272 = vor.u32 1.1754944e-38, %v4271
    %v4273 = vsel %vm4270, %v4272, %v4268
    %v4274 = vmul.f32 1.0, %v4273
    %v4275 = vrcp.pop %v4243
    %v4276 = vmul.f32 %v4243, %v4275
    %v4277 = vsub.f32 1.0, %v4276
    %v4278 = vmul.f32 %v4275, %v4277
    %v4279 = vadd.f32 %v4275, %v4278
    %vm4280 = vweird.f32 %v4243
    %vm4281 = vweird.f32 %v4275
    %vm4282 = vmor %vm4280, %vm4281
    %v4283 = vsel %vm4282, %v4275, %v4279
    %v4284 = vand.u32 2147483647, %v4243
    %vm4285 = vcmp.eq.f32.partialorder %v4284, 8.507059e+37
    %v4286 = vand.u32 %v4243, 2147483648
    %v4287 = vor.u32 1.1754944e-38, %v4286
    %v4288 = vsel %vm4285, %v4287, %v4283
    %v4289 = vmul.f32 1.0, %v4288
    %v4290 = vrcp.pop %v4244
    %v4291 = vmul.f32 %v4244, %v4290
    %v4292 = vsub.f32 1.0, %v4291
    %v4293 = vmul.f32 %v4290, %v4292
    %v4294 = vadd.f32 %v4290, %v4293
    %vm4295 = vweird.f32 %v4244
    %vm4296 = vweird.f32 %v4290
    %vm4297 = vmor %vm4295, %vm4296
    %v4298 = vsel %vm4297, %v4290, %v4294
    %v4299 = vand.u32 2147483647, %v4244
    %vm4300 = vcmp.eq.f32.partialorder %v4299, 8.507059e+37
    %v4301 = vand.u32 %v4244, 2147483648
    %v4302 = vor.u32 1.1754944e-38, %v4301
    %v4303 = vsel %vm4300, %v4302, %v4298
    %v4304 = vmul.f32 1.0, %v4303
    %v4305 = vld [vmem:[#allocation3] sm:$0xff]
    %v4306 = vld [vmem:[#allocation3 + $0x8] sm:$0xff]
    %v4307 = vld [vmem:[#allocation3 + $0x10] sm:$0xff]
    %v4308 = vld [vmem:[#allocation3 + $0x18] sm:$0xff]
    %v4309 = vmul.f32 %v4179, %v4305
    %v4310 = vmul.f32 %v4194, %v4306
    %v4311 = vmul.f32 %v4209, %v4307
    %v4312 = vmul.f32 %v4224, %v4308
    %v4313 = vmul.f32 %v4103, %v4225
    %v4314 = vmul.f32 %v4118, %v4226
    %v4315 = vmul.f32 %v4133, %v4227
    %v4316 = vmul.f32 %v4148, %v4228
    %v4317 = vadd.f32 %v4309, %v4313
    %v4318 = vadd.f32 %v4310, %v4314
    %v4319 = vadd.f32 %v4311, %v4315
    %v4320 = vadd.f32 %v4312, %v4316
    %v4321 = vtanh.pop %v4317
    %v4322 = vtanh.pop %v4318
    %v4323 = vtanh.pop %v4319
    %v4324 = vtanh.pop %v4320
    %v4325 = vmul.f32 %v4259, %v4321
    %v4326 = vmul.f32 %v4274, %v4322
    %v4327 = vmul.f32 %v4289, %v4323
    %v4328 = vmul.f32 %v4304, %v4324
    %4329 = vst [vmem:[#allocation3] sm:$0xff] %v4317
    %4330 = vst [vmem:[#allocation3 + $0x8] sm:$0xff] %v4318
    %4331 = vst [vmem:[#allocation3 + $0x10] sm:$0xff] %v4319
    %4332 = vst [vmem:[#allocation3 + $0x18] sm:$0xff] %v4320
    %4333 = vst [vmem:[#allocation2] sm:$0xff] %v4325
    %4334 = vst [vmem:[#allocation2 + $0x8] sm:$0xff] %v4326
    %4335 = vst [vmem:[#allocation2 + $0x10] sm:$0xff] %v4327
    %4336 = vst [vmem:[#allocation2 + $0x18] sm:$0xff] %v4328
    %v4337 = vld [vmem:[%s1136] sm:$0xff]
    %v4338 = vld [vmem:[%s1136 + $0x8] sm:$0xff]
    %v4339 = vld [vmem:[%s1136 + $0x10] sm:$0xff]
    %v4340 = vld [vmem:[%s1136 + $0x18] sm:$0xff]
    %v4341 = vld [vmem:[%s1136 + $0x20] sm:$0xff]
    %v4342 = vld [vmem:[%s1136 + $0x28] sm:$0xff]
    %v4343 = vld [vmem:[%s1136 + $0x30] sm:$0xff]
    %v4344 = vld [vmem:[%s1136 + $0x38] sm:$0xff]
    %v4345 = vld [vmem:[%s1136 + $0x40] sm:$0xff]
    %v4346 = vld [vmem:[%s1136 + $0x48] sm:$0xff]
    %v4347 = vld [vmem:[%s1136 + $0x50] sm:$0xff]
    %v4348 = vld [vmem:[%s1136 + $0x58] sm:$0xff]
    %v4349 = vld [vmem:[%s1136 + $0x60] sm:$0xff]
    %v4350 = vld [vmem:[%s1136 + $0x68] sm:$0xff]
    %v4351 = vld [vmem:[%s1136 + $0x70] sm:$0xff]
    %v4352 = vld [vmem:[%s1136 + $0x78] sm:$0xff]
    %v4353 = vld [vmem:[#allocation4] sm:$0xff]
    %v4354 = vld [vmem:[#allocation4 + $0x8] sm:$0xff]
    %v4355 = vld [vmem:[#allocation4 + $0x10] sm:$0xff]
    %v4356 = vld [vmem:[#allocation4 + $0x18] sm:$0xff]
    %v4357 = vpack.c.bf16 %v4354, %v4353
    %v4358 = vpack.c.bf16 %v4356, %v4355
    %4359 = vmatpush.bf16.msra.mxu0 0
    %4360 = vmatpush.bf16.msra.mxu0 0
    %4361 = vmatpush.bf16.msra.mxu0 0
    %4362 = vmatpush.bf16.msra.mxu0 0
    %4363 = vmatpush.bf16.msra.mxu0 0
    %4364 = vmatpush.bf16.msra.mxu0 0
    %4365 = vmatpush.bf16.msra.mxu0 %v4358
    %4366 = vmatpush.bf16.msra.mxu0 %v4357
    %4367 = vmatmul.bf16.gmra.mxu0 %v2043
    %v4368 = vpop.f32.mrf.mxu0
    %v4369 = vadd.f32 0.0, %v4368
    %v4370 = vpop.f32.mrf.mxu0
    %v4371 = vadd.f32 0.0, %v4370
    %4372 = vmatmul.bf16.gmra.mxu0 %v2046
    %v4373 = vpop.f32.mrf.mxu0
    %v4374 = vadd.f32 0.0, %v4373
    %v4375 = vpop.f32.mrf.mxu0
    %v4376 = vadd.f32 0.0, %v4375
    %4377 = vmatmul.bf16.gmra.mxu0 %v2049
    %v4378 = vpop.f32.mrf.mxu0
    %v4379 = vadd.f32 0.0, %v4378
    %v4380 = vpop.f32.mrf.mxu0
    %v4381 = vadd.f32 0.0, %v4380
    %4382 = vmatmul.bf16.gmra.mxu0 %v2052
    %v4383 = vpop.f32.mrf.mxu0
    %v4384 = vadd.f32 0.0, %v4383
    %v4385 = vpop.f32.mrf.mxu0
    %v4386 = vadd.f32 0.0, %v4385
    %4387 = vmatmul.bf16.gmra.mxu0 %v2055
    %v4388 = vpop.f32.mrf.mxu0
    %v4389 = vadd.f32 0.0, %v4388
    %v4390 = vpop.f32.mrf.mxu0
    %v4391 = vadd.f32 0.0, %v4390
    %4392 = vmatmul.bf16.gmra.mxu0 %v2058
    %v4393 = vpop.f32.mrf.mxu0
    %v4394 = vadd.f32 0.0, %v4393
    %v4395 = vpop.f32.mrf.mxu0
    %v4396 = vadd.f32 0.0, %v4395
    %4397 = vmatmul.bf16.gmra.mxu0 %v2061
    %v4398 = vpop.f32.mrf.mxu0
    %v4399 = vadd.f32 0.0, %v4398
    %v4400 = vpop.f32.mrf.mxu0
    %v4401 = vadd.f32 0.0, %v4400
    %4402 = vmatmul.bf16.gmra.mxu0 %v2064
    %v4403 = vpop.f32.mrf.mxu0
    %v4404 = vadd.f32 0.0, %v4403
    %v4405 = vpop.f32.mrf.mxu0
    %v4406 = vadd.f32 0.0, %v4405
    %4407 = vdwg.mxu0
    %v4408 = vadd.f32 %v4337, %v4369
    %v4409 = vadd.f32 %v4338, %v4371
    %v4410 = vadd.f32 %v4339, %v4374
    %v4411 = vadd.f32 %v4340, %v4376
    %v4412 = vadd.f32 %v4341, %v4379
    %v4413 = vadd.f32 %v4342, %v4381
    %v4414 = vadd.f32 %v4343, %v4384
    %v4415 = vadd.f32 %v4344, %v4386
    %v4416 = vadd.f32 %v4345, %v4389
    %v4417 = vadd.f32 %v4346, %v4391
    %v4418 = vadd.f32 %v4347, %v4394
    %v4419 = vadd.f32 %v4348, %v4396
    %v4420 = vadd.f32 %v4349, %v4399
    %v4421 = vadd.f32 %v4350, %v4401
    %v4422 = vadd.f32 %v4351, %v4404
    %v4423 = vadd.f32 %v4352, %v4406
    %v4424 = vxor.u32 %v4408, 2147483648
    %v4425 = vxor.u32 %v4409, 2147483648
    %v4426 = vxor.u32 %v4410, 2147483648
    %v4427 = vxor.u32 %v4411, 2147483648
    %v4428 = vmul.f32 %v4424, 1.442695
    %v4429 = vpow.pop %v4428
    %v4430 = vmul.f32 %v4425, 1.442695
    %v4431 = vpow.pop %v4430
    %v4432 = vmul.f32 %v4426, 1.442695
    %v4433 = vpow.pop %v4432
    %v4434 = vmul.f32 %v4427, 1.442695
    %v4435 = vpow.pop %v4434
    %v4436 = vadd.f32 %v4429, 1.0
    %v4437 = vadd.f32 %v4431, 1.0
    %v4438 = vadd.f32 %v4433, 1.0
    %v4439 = vadd.f32 %v4435, 1.0
    %v4440 = vrcp.pop %v4436
    %v4441 = vmul.f32 %v4436, %v4440
    %v4442 = vsub.f32 1.0, %v4441
    %v4443 = vmul.f32 %v4440, %v4442
    %v4444 = vadd.f32 %v4440, %v4443
    %vm4445 = vweird.f32 %v4436
    %vm4446 = vweird.f32 %v4440
    %vm4447 = vmor %vm4445, %vm4446
    %v4448 = vsel %vm4447, %v4440, %v4444
    %v4449 = vand.u32 2147483647, %v4436
    %vm4450 = vcmp.eq.f32.partialorder %v4449, 8.507059e+37
    %v4451 = vand.u32 %v4436, 2147483648
    %v4452 = vor.u32 1.1754944e-38, %v4451
    %v4453 = vsel %vm4450, %v4452, %v4448
    %v4454 = vmul.f32 1.0, %v4453
    %v4455 = vrcp.pop %v4437
    %v4456 = vmul.f32 %v4437, %v4455
    %v4457 = vsub.f32 1.0, %v4456
    %v4458 = vmul.f32 %v4455, %v4457
    %v4459 = vadd.f32 %v4455, %v4458
    %vm4460 = vweird.f32 %v4437
    %vm4461 = vweird.f32 %v4455
    %vm4462 = vmor %vm4460, %vm4461
    %v4463 = vsel %vm4462, %v4455, %v4459
    %v4464 = vand.u32 2147483647, %v4437
    %vm4465 = vcmp.eq.f32.partialorder %v4464, 8.507059e+37
    %v4466 = vand.u32 %v4437, 2147483648
    %v4467 = vor.u32 1.1754944e-38, %v4466
    %v4468 = vsel %vm4465, %v4467, %v4463
    %v4469 = vmul.f32 1.0, %v4468
    %v4470 = vrcp.pop %v4438
    %v4471 = vmul.f32 %v4438, %v4470
    %v4472 = vsub.f32 1.0, %v4471
    %v4473 = vmul.f32 %v4470, %v4472
    %v4474 = vadd.f32 %v4470, %v4473
    %vm4475 = vweird.f32 %v4438
    %vm4476 = vweird.f32 %v4470
    %vm4477 = vmor %vm4475, %vm4476
    %v4478 = vsel %vm4477, %v4470, %v4474
    %v4479 = vand.u32 2147483647, %v4438
    %vm4480 = vcmp.eq.f32.partialorder %v4479, 8.507059e+37
    %v4481 = vand.u32 %v4438, 2147483648
    %v4482 = vor.u32 1.1754944e-38, %v4481
    %v4483 = vsel %vm4480, %v4482, %v4478
    %v4484 = vmul.f32 1.0, %v4483
    %v4485 = vrcp.pop %v4439
    %v4486 = vmul.f32 %v4439, %v4485
    %v4487 = vsub.f32 1.0, %v4486
    %v4488 = vmul.f32 %v4485, %v4487
    %v4489 = vadd.f32 %v4485, %v4488
    %vm4490 = vweird.f32 %v4439
    %vm4491 = vweird.f32 %v4485
    %vm4492 = vmor %vm4490, %vm4491
    %v4493 = vsel %vm4492, %v4485, %v4489
    %v4494 = vand.u32 2147483647, %v4439
    %vm4495 = vcmp.eq.f32.partialorder %v4494, 8.507059e+37
    %v4496 = vand.u32 %v4439, 2147483648
    %v4497 = vor.u32 1.1754944e-38, %v4496
    %v4498 = vsel %vm4495, %v4497, %v4493
    %v4499 = vmul.f32 1.0, %v4498
    %v4500 = vxor.u32 %v4412, 2147483648
    %v4501 = vxor.u32 %v4413, 2147483648
    %v4502 = vxor.u32 %v4414, 2147483648
    %v4503 = vxor.u32 %v4415, 2147483648
    %v4504 = vmul.f32 %v4500, 1.442695
    %v4505 = vpow.pop %v4504
    %v4506 = vmul.f32 %v4501, 1.442695
    %v4507 = vpow.pop %v4506
    %v4508 = vmul.f32 %v4502, 1.442695
    %v4509 = vpow.pop %v4508
    %v4510 = vmul.f32 %v4503, 1.442695
    %v4511 = vpow.pop %v4510
    %v4512 = vadd.f32 %v4505, 1.0
    %v4513 = vadd.f32 %v4507, 1.0
    %v4514 = vadd.f32 %v4509, 1.0
    %v4515 = vadd.f32 %v4511, 1.0
    %v4516 = vrcp.pop %v4512
    %v4517 = vmul.f32 %v4512, %v4516
    %v4518 = vsub.f32 1.0, %v4517
    %v4519 = vmul.f32 %v4516, %v4518
    %v4520 = vadd.f32 %v4516, %v4519
    %vm4521 = vweird.f32 %v4512
    %vm4522 = vweird.f32 %v4516
    %vm4523 = vmor %vm4521, %vm4522
    %v4524 = vsel %vm4523, %v4516, %v4520
    %v4525 = vand.u32 2147483647, %v4512
    %vm4526 = vcmp.eq.f32.partialorder %v4525, 8.507059e+37
    %v4527 = vand.u32 %v4512, 2147483648
    %v4528 = vor.u32 1.1754944e-38, %v4527
    %v4529 = vsel %vm4526, %v4528, %v4524
    %v4530 = vmul.f32 1.0, %v4529
    %v4531 = vrcp.pop %v4513
    %v4532 = vmul.f32 %v4513, %v4531
    %v4533 = vsub.f32 1.0, %v4532
    %v4534 = vmul.f32 %v4531, %v4533
    %v4535 = vadd.f32 %v4531, %v4534
    %vm4536 = vweird.f32 %v4513
    %vm4537 = vweird.f32 %v4531
    %vm4538 = vmor %vm4536, %vm4537
    %v4539 = vsel %vm4538, %v4531, %v4535
    %v4540 = vand.u32 2147483647, %v4513
    %vm4541 = vcmp.eq.f32.partialorder %v4540, 8.507059e+37
    %v4542 = vand.u32 %v4513, 2147483648
    %v4543 = vor.u32 1.1754944e-38, %v4542
    %v4544 = vsel %vm4541, %v4543, %v4539
    %v4545 = vmul.f32 1.0, %v4544
    %v4546 = vrcp.pop %v4514
    %v4547 = vmul.f32 %v4514, %v4546
    %v4548 = vsub.f32 1.0, %v4547
    %v4549 = vmul.f32 %v4546, %v4548
    %v4550 = vadd.f32 %v4546, %v4549
    %vm4551 = vweird.f32 %v4514
    %vm4552 = vweird.f32 %v4546
    %vm4553 = vmor %vm4551, %vm4552
    %v4554 = vsel %vm4553, %v4546, %v4550
    %v4555 = vand.u32 2147483647, %v4514
    %vm4556 = vcmp.eq.f32.partialorder %v4555, 8.507059e+37
    %v4557 = vand.u32 %v4514, 2147483648
    %v4558 = vor.u32 1.1754944e-38, %v4557
    %v4559 = vsel %vm4556, %v4558, %v4554
    %v4560 = vmul.f32 1.0, %v4559
    %v4561 = vrcp.pop %v4515
    %v4562 = vmul.f32 %v4515, %v4561
    %v4563 = vsub.f32 1.0, %v4562
    %v4564 = vmul.f32 %v4561, %v4563
    %v4565 = vadd.f32 %v4561, %v4564
    %vm4566 = vweird.f32 %v4515
    %vm4567 = vweird.f32 %v4561
    %vm4568 = vmor %vm4566, %vm4567
    %v4569 = vsel %vm4568, %v4561, %v4565
    %v4570 = vand.u32 2147483647, %v4515
    %vm4571 = vcmp.eq.f32.partialorder %v4570, 8.507059e+37
    %v4572 = vand.u32 %v4515, 2147483648
    %v4573 = vor.u32 1.1754944e-38, %v4572
    %v4574 = vsel %vm4571, %v4573, %v4569
    %v4575 = vmul.f32 1.0, %v4574
    %v4576 = vtanh.pop %v4416
    %v4577 = vtanh.pop %v4417
    %v4578 = vtanh.pop %v4418
    %v4579 = vtanh.pop %v4419
    %v4580 = vxor.u32 %v4420, 2147483648
    %v4581 = vxor.u32 %v4421, 2147483648
    %v4582 = vxor.u32 %v4422, 2147483648
    %v4583 = vxor.u32 %v4423, 2147483648
    %v4584 = vmul.f32 %v4580, 1.442695
    %v4585 = vpow.pop %v4584
    %v4586 = vmul.f32 %v4581, 1.442695
    %v4587 = vpow.pop %v4586
    %v4588 = vmul.f32 %v4582, 1.442695
    %v4589 = vpow.pop %v4588
    %v4590 = vmul.f32 %v4583, 1.442695
    %v4591 = vpow.pop %v4590
    %v4592 = vadd.f32 %v4585, 1.0
    %v4593 = vadd.f32 %v4587, 1.0
    %v4594 = vadd.f32 %v4589, 1.0
    %v4595 = vadd.f32 %v4591, 1.0
    %v4596 = vrcp.pop %v4592
    %v4597 = vmul.f32 %v4592, %v4596
    %v4598 = vsub.f32 1.0, %v4597
    %v4599 = vmul.f32 %v4596, %v4598
    %v4600 = vadd.f32 %v4596, %v4599
    %vm4601 = vweird.f32 %v4592
    %vm4602 = vweird.f32 %v4596
    %vm4603 = vmor %vm4601, %vm4602
    %v4604 = vsel %vm4603, %v4596, %v4600
    %v4605 = vand.u32 2147483647, %v4592
    %vm4606 = vcmp.eq.f32.partialorder %v4605, 8.507059e+37
    %v4607 = vand.u32 %v4592, 2147483648
    %v4608 = vor.u32 1.1754944e-38, %v4607
    %v4609 = vsel %vm4606, %v4608, %v4604
    %v4610 = vmul.f32 1.0, %v4609
    %v4611 = vrcp.pop %v4593
    %v4612 = vmul.f32 %v4593, %v4611
    %v4613 = vsub.f32 1.0, %v4612
    %v4614 = vmul.f32 %v4611, %v4613
    %v4615 = vadd.f32 %v4611, %v4614
    %vm4616 = vweird.f32 %v4593
    %vm4617 = vweird.f32 %v4611
    %vm4618 = vmor %vm4616, %vm4617
    %v4619 = vsel %vm4618, %v4611, %v4615
    %v4620 = vand.u32 2147483647, %v4593
    %vm4621 = vcmp.eq.f32.partialorder %v4620, 8.507059e+37
    %v4622 = vand.u32 %v4593, 2147483648
    %v4623 = vor.u32 1.1754944e-38, %v4622
    %v4624 = vsel %vm4621, %v4623, %v4619
    %v4625 = vmul.f32 1.0, %v4624
    %v4626 = vrcp.pop %v4594
    %v4627 = vmul.f32 %v4594, %v4626
    %v4628 = vsub.f32 1.0, %v4627
    %v4629 = vmul.f32 %v4626, %v4628
    %v4630 = vadd.f32 %v4626, %v4629
    %vm4631 = vweird.f32 %v4594
    %vm4632 = vweird.f32 %v4626
    %vm4633 = vmor %vm4631, %vm4632
    %v4634 = vsel %vm4633, %v4626, %v4630
    %v4635 = vand.u32 2147483647, %v4594
    %vm4636 = vcmp.eq.f32.partialorder %v4635, 8.507059e+37
    %v4637 = vand.u32 %v4594, 2147483648
    %v4638 = vor.u32 1.1754944e-38, %v4637
    %v4639 = vsel %vm4636, %v4638, %v4634
    %v4640 = vmul.f32 1.0, %v4639
    %v4641 = vrcp.pop %v4595
    %v4642 = vmul.f32 %v4595, %v4641
    %v4643 = vsub.f32 1.0, %v4642
    %v4644 = vmul.f32 %v4641, %v4643
    %v4645 = vadd.f32 %v4641, %v4644
    %vm4646 = vweird.f32 %v4595
    %vm4647 = vweird.f32 %v4641
    %vm4648 = vmor %vm4646, %vm4647
    %v4649 = vsel %vm4648, %v4641, %v4645
    %v4650 = vand.u32 2147483647, %v4595
    %vm4651 = vcmp.eq.f32.partialorder %v4650, 8.507059e+37
    %v4652 = vand.u32 %v4595, 2147483648
    %v4653 = vor.u32 1.1754944e-38, %v4652
    %v4654 = vsel %vm4651, %v4653, %v4649
    %v4655 = vmul.f32 1.0, %v4654
    %v4656 = vld [vmem:[#allocation5] sm:$0xff]
    %v4657 = vld [vmem:[#allocation5 + $0x8] sm:$0xff]
    %v4658 = vld [vmem:[#allocation5 + $0x10] sm:$0xff]
    %v4659 = vld [vmem:[#allocation5 + $0x18] sm:$0xff]
    %v4660 = vmul.f32 %v4530, %v4656
    %v4661 = vmul.f32 %v4545, %v4657
    %v4662 = vmul.f32 %v4560, %v4658
    %v4663 = vmul.f32 %v4575, %v4659
    %v4664 = vmul.f32 %v4454, %v4576
    %v4665 = vmul.f32 %v4469, %v4577
    %v4666 = vmul.f32 %v4484, %v4578
    %v4667 = vmul.f32 %v4499, %v4579
    %v4668 = vadd.f32 %v4660, %v4664
    %v4669 = vadd.f32 %v4661, %v4665
    %v4670 = vadd.f32 %v4662, %v4666
    %v4671 = vadd.f32 %v4663, %v4667
    %v4672 = vtanh.pop %v4668
    %v4673 = vtanh.pop %v4669
    %v4674 = vtanh.pop %v4670
    %v4675 = vtanh.pop %v4671
    %v4676 = vmul.f32 %v4610, %v4672
    %v4677 = vmul.f32 %v4625, %v4673
    %v4678 = vmul.f32 %v4640, %v4674
    %v4679 = vmul.f32 %v4655, %v4675
    %4680 = vst [vmem:[#allocation5] sm:$0xff] %v4668
    %4681 = vst [vmem:[#allocation5 + $0x8] sm:$0xff] %v4669
    %4682 = vst [vmem:[#allocation5 + $0x10] sm:$0xff] %v4670
    %4683 = vst [vmem:[#allocation5 + $0x18] sm:$0xff] %v4671
    %4684 = vst [vmem:[#allocation4] sm:$0xff] %v4676
    %4685 = vst [vmem:[#allocation4 + $0x8] sm:$0xff] %v4677
    %4686 = vst [vmem:[#allocation4 + $0x10] sm:$0xff] %v4678
    %4687 = vst [vmem:[#allocation4 + $0x18] sm:$0xff] %v4679
    %v4688 = vpack.c.bf16 %v4326, %v4325
    %v4689 = vpack.c.bf16 %v4328, %v4327
    %v4690 = vpack.c.bf16 %v4677, %v4676
    %v4691 = vpack.c.bf16 %v4679, %v4678
    %4692 = vmatpush.bf16.msra.mxu0 0
    %4693 = vmatpush.bf16.msra.mxu0 0
    %4694 = vmatpush.bf16.msra.mxu0 0
    %4695 = vmatpush.bf16.msra.mxu0 0
    %4696 = vmatpush.bf16.msra.mxu0 0
    %4697 = vmatpush.bf16.msra.mxu0 0
    %4698 = vmatpush.bf16.msra.mxu0 %v4689
    %4699 = vmatpush.bf16.msra.mxu0 %v4688
    %4700 = vmatmul.bf16.gmra.mxu0 %v2410
    %v4701 = vpop.f32.mrf.mxu0
    %v4702 = vadd.f32 %v324, %v4701
    %v4703 = vpop.f32.mrf.mxu0
    %v4704 = vadd.f32 %v329, %v4703
    %4705 = vmatmul.bf16.gmra.mxu0 %v2413
    %v4706 = vpop.f32.mrf.mxu0
    %v4707 = vadd.f32 %v334, %v4706
    %v4708 = vpop.f32.mrf.mxu0
    %v4709 = vadd.f32 %v339, %v4708
    %4710 = vdwg.mxu0
    %s4711 = scalar_lea.vmem [#allocation8], 96
    %4712 = vst [vmem:[%s4711] sm:$0xff] %v4702
    %4713 = vst [vmem:[%s4711 + $0x8] sm:$0xff] %v4704
    %4714 = vst [vmem:[%s4711 + $0x10] sm:$0xff] %v4707
    %4715 = vst [vmem:[%s4711 + $0x18] sm:$0xff] %v4709
    %4716 = vmatpush.bf16.msra.mxu0 0
    %4717 = vmatpush.bf16.msra.mxu0 0
    %4718 = vmatpush.bf16.msra.mxu0 0
    %4719 = vmatpush.bf16.msra.mxu0 0
    %4720 = vmatpush.bf16.msra.mxu0 0
    %4721 = vmatpush.bf16.msra.mxu0 0
    %4722 = vmatpush.bf16.msra.mxu0 %v4691
    %4723 = vmatpush.bf16.msra.mxu0 %v4690
    %4724 = vmatmul.bf16.gmra.mxu0 %v2449
    %v4725 = vpop.f32.mrf.mxu0
    %v4726 = vadd.f32 %v324, %v4725
    %v4727 = vpop.f32.mrf.mxu0
    %v4728 = vadd.f32 %v329, %v4727
    %4729 = vmatmul.bf16.gmra.mxu0 %v2452
    %v4730 = vpop.f32.mrf.mxu0
    %v4731 = vadd.f32 %v334, %v4730
    %v4732 = vpop.f32.mrf.mxu0
    %v4733 = vadd.f32 %v339, %v4732
    %4734 = vdwg.mxu0
    %s4735 = scalar_lea.vmem [#allocation8], 128
    %4736 = vst [vmem:[%s4735] sm:$0xff] %v4726
    %4737 = vst [vmem:[%s4735 + $0x8] sm:$0xff] %v4728
    %4738 = vst [vmem:[%s4735 + $0x10] sm:$0xff] %v4731
    %4739 = vst [vmem:[%s4735 + $0x18] sm:$0xff] %v4733
    %v4740 = vld [vmem:[%s1070] sm:$0xff]
    %v4741 = vld [vmem:[%s1070 + $0x8] sm:$0xff]
    %v4742 = vld [vmem:[%s1070 + $0x10] sm:$0xff]
    %v4743 = vld [vmem:[%s1070 + $0x18] sm:$0xff]
    %v4744 = vld [vmem:[%s1070 + $0x20] sm:$0xff]
    %v4745 = vld [vmem:[%s1070 + $0x28] sm:$0xff]
    %v4746 = vld [vmem:[%s1070 + $0x30] sm:$0xff]
    %v4747 = vld [vmem:[%s1070 + $0x38] sm:$0xff]
    %v4748 = vld [vmem:[%s1070 + $0x40] sm:$0xff]
    %v4749 = vld [vmem:[%s1070 + $0x48] sm:$0xff]
    %v4750 = vld [vmem:[%s1070 + $0x50] sm:$0xff]
    %v4751 = vld [vmem:[%s1070 + $0x58] sm:$0xff]
    %v4752 = vld [vmem:[%s1070 + $0x60] sm:$0xff]
    %v4753 = vld [vmem:[%s1070 + $0x68] sm:$0xff]
    %v4754 = vld [vmem:[%s1070 + $0x70] sm:$0xff]
    %v4755 = vld [vmem:[%s1070 + $0x78] sm:$0xff]
    %v4756 = vld [vmem:[#allocation2] sm:$0xff]
    %v4757 = vld [vmem:[#allocation2 + $0x8] sm:$0xff]
    %v4758 = vld [vmem:[#allocation2 + $0x10] sm:$0xff]
    %v4759 = vld [vmem:[#allocation2 + $0x18] sm:$0xff]
    %v4760 = vpack.c.bf16 %v4757, %v4756
    %v4761 = vpack.c.bf16 %v4759, %v4758
    %4762 = vmatpush.bf16.msra.mxu0 0
    %4763 = vmatpush.bf16.msra.mxu0 0
    %4764 = vmatpush.bf16.msra.mxu0 0
    %4765 = vmatpush.bf16.msra.mxu0 0
    %4766 = vmatpush.bf16.msra.mxu0 0
    %4767 = vmatpush.bf16.msra.mxu0 0
    %4768 = vmatpush.bf16.msra.mxu0 %v4761
    %4769 = vmatpush.bf16.msra.mxu0 %v4760
    %4770 = vmatmul.bf16.gmra.mxu0 %v1628
    %v4771 = vpop.f32.mrf.mxu0
    %v4772 = vadd.f32 0.0, %v4771
    %v4773 = vpop.f32.mrf.mxu0
    %v4774 = vadd.f32 0.0, %v4773
    %4775 = vmatmul.bf16.gmra.mxu0 %v1631
    %v4776 = vpop.f32.mrf.mxu0
    %v4777 = vadd.f32 0.0, %v4776
    %v4778 = vpop.f32.mrf.mxu0
    %v4779 = vadd.f32 0.0, %v4778
    %4780 = vmatmul.bf16.gmra.mxu0 %v1634
    %v4781 = vpop.f32.mrf.mxu0
    %v4782 = vadd.f32 0.0, %v4781
    %v4783 = vpop.f32.mrf.mxu0
    %v4784 = vadd.f32 0.0, %v4783
    %4785 = vmatmul.bf16.gmra.mxu0 %v1637
    %v4786 = vpop.f32.mrf.mxu0
    %v4787 = vadd.f32 0.0, %v4786
    %v4788 = vpop.f32.mrf.mxu0
    %v4789 = vadd.f32 0.0, %v4788
    %4790 = vmatmul.bf16.gmra.mxu0 %v1640
    %v4791 = vpop.f32.mrf.mxu0
    %v4792 = vadd.f32 0.0, %v4791
    %v4793 = vpop.f32.mrf.mxu0
    %v4794 = vadd.f32 0.0, %v4793
    %4795 = vmatmul.bf16.gmra.mxu0 %v1643
    %v4796 = vpop.f32.mrf.mxu0
    %v4797 = vadd.f32 0.0, %v4796
    %v4798 = vpop.f32.mrf.mxu0
    %v4799 = vadd.f32 0.0, %v4798
    %4800 = vmatmul.bf16.gmra.mxu0 %v1646
    %v4801 = vpop.f32.mrf.mxu0
    %v4802 = vadd.f32 0.0, %v4801
    %v4803 = vpop.f32.mrf.mxu0
    %v4804 = vadd.f32 0.0, %v4803
    %4805 = vmatmul.bf16.gmra.mxu0 %v1649
    %v4806 = vpop.f32.mrf.mxu0
    %v4807 = vadd.f32 0.0, %v4806
    %v4808 = vpop.f32.mrf.mxu0
    %v4809 = vadd.f32 0.0, %v4808
    %4810 = vdwg.mxu0
    %v4811 = vadd.f32 %v4740, %v4772
    %v4812 = vadd.f32 %v4741, %v4774
    %v4813 = vadd.f32 %v4742, %v4777
    %v4814 = vadd.f32 %v4743, %v4779
    %v4815 = vadd.f32 %v4744, %v4782
    %v4816 = vadd.f32 %v4745, %v4784
    %v4817 = vadd.f32 %v4746, %v4787
    %v4818 = vadd.f32 %v4747, %v4789
    %v4819 = vadd.f32 %v4748, %v4792
    %v4820 = vadd.f32 %v4749, %v4794
    %v4821 = vadd.f32 %v4750, %v4797
    %v4822 = vadd.f32 %v4751, %v4799
    %v4823 = vadd.f32 %v4752, %v4802
    %v4824 = vadd.f32 %v4753, %v4804
    %v4825 = vadd.f32 %v4754, %v4807
    %v4826 = vadd.f32 %v4755, %v4809
    %v4827 = vxor.u32 %v4811, 2147483648
    %v4828 = vxor.u32 %v4812, 2147483648
    %v4829 = vxor.u32 %v4813, 2147483648
    %v4830 = vxor.u32 %v4814, 2147483648
    %v4831 = vmul.f32 %v4827, 1.442695
    %v4832 = vpow.pop %v4831
    %v4833 = vmul.f32 %v4828, 1.442695
    %v4834 = vpow.pop %v4833
    %v4835 = vmul.f32 %v4829, 1.442695
    %v4836 = vpow.pop %v4835
    %v4837 = vmul.f32 %v4830, 1.442695
    %v4838 = vpow.pop %v4837
    %v4839 = vadd.f32 %v4832, 1.0
    %v4840 = vadd.f32 %v4834, 1.0
    %v4841 = vadd.f32 %v4836, 1.0
    %v4842 = vadd.f32 %v4838, 1.0
    %v4843 = vrcp.pop %v4839
    %v4844 = vmul.f32 %v4839, %v4843
    %v4845 = vsub.f32 1.0, %v4844
    %v4846 = vmul.f32 %v4843, %v4845
    %v4847 = vadd.f32 %v4843, %v4846
    %vm4848 = vweird.f32 %v4839
    %vm4849 = vweird.f32 %v4843
    %vm4850 = vmor %vm4848, %vm4849
    %v4851 = vsel %vm4850, %v4843, %v4847
    %v4852 = vand.u32 2147483647, %v4839
    %vm4853 = vcmp.eq.f32.partialorder %v4852, 8.507059e+37
    %v4854 = vand.u32 %v4839, 2147483648
    %v4855 = vor.u32 1.1754944e-38, %v4854
    %v4856 = vsel %vm4853, %v4855, %v4851
    %v4857 = vmul.f32 1.0, %v4856
    %v4858 = vrcp.pop %v4840
    %v4859 = vmul.f32 %v4840, %v4858
    %v4860 = vsub.f32 1.0, %v4859
    %v4861 = vmul.f32 %v4858, %v4860
    %v4862 = vadd.f32 %v4858, %v4861
    %vm4863 = vweird.f32 %v4840
    %vm4864 = vweird.f32 %v4858
    %vm4865 = vmor %vm4863, %vm4864
    %v4866 = vsel %vm4865, %v4858, %v4862
    %v4867 = vand.u32 2147483647, %v4840
    %vm4868 = vcmp.eq.f32.partialorder %v4867, 8.507059e+37
    %v4869 = vand.u32 %v4840, 2147483648
    %v4870 = vor.u32 1.1754944e-38, %v4869
    %v4871 = vsel %vm4868, %v4870, %v4866
    %v4872 = vmul.f32 1.0, %v4871
    %v4873 = vrcp.pop %v4841
    %v4874 = vmul.f32 %v4841, %v4873
    %v4875 = vsub.f32 1.0, %v4874
    %v4876 = vmul.f32 %v4873, %v4875
    %v4877 = vadd.f32 %v4873, %v4876
    %vm4878 = vweird.f32 %v4841
    %vm4879 = vweird.f32 %v4873
    %vm4880 = vmor %vm4878, %vm4879
    %v4881 = vsel %vm4880, %v4873, %v4877
    %v4882 = vand.u32 2147483647, %v4841
    %vm4883 = vcmp.eq.f32.partialorder %v4882, 8.507059e+37
    %v4884 = vand.u32 %v4841, 2147483648
    %v4885 = vor.u32 1.1754944e-38, %v4884
    %v4886 = vsel %vm4883, %v4885, %v4881
    %v4887 = vmul.f32 1.0, %v4886
    %v4888 = vrcp.pop %v4842
    %v4889 = vmul.f32 %v4842, %v4888
    %v4890 = vsub.f32 1.0, %v4889
    %v4891 = vmul.f32 %v4888, %v4890
    %v4892 = vadd.f32 %v4888, %v4891
    %vm4893 = vweird.f32 %v4842
    %vm4894 = vweird.f32 %v4888
    %vm4895 = vmor %vm4893, %vm4894
    %v4896 = vsel %vm4895, %v4888, %v4892
    %v4897 = vand.u32 2147483647, %v4842
    %vm4898 = vcmp.eq.f32.partialorder %v4897, 8.507059e+37
    %v4899 = vand.u32 %v4842, 2147483648
    %v4900 = vor.u32 1.1754944e-38, %v4899
    %v4901 = vsel %vm4898, %v4900, %v4896
    %v4902 = vmul.f32 1.0, %v4901
    %v4903 = vxor.u32 %v4815, 2147483648
    %v4904 = vxor.u32 %v4816, 2147483648
    %v4905 = vxor.u32 %v4817, 2147483648
    %v4906 = vxor.u32 %v4818, 2147483648
    %v4907 = vmul.f32 %v4903, 1.442695
    %v4908 = vpow.pop %v4907
    %v4909 = vmul.f32 %v4904, 1.442695
    %v4910 = vpow.pop %v4909
    %v4911 = vmul.f32 %v4905, 1.442695
    %v4912 = vpow.pop %v4911
    %v4913 = vmul.f32 %v4906, 1.442695
    %v4914 = vpow.pop %v4913
    %v4915 = vadd.f32 %v4908, 1.0
    %v4916 = vadd.f32 %v4910, 1.0
    %v4917 = vadd.f32 %v4912, 1.0
    %v4918 = vadd.f32 %v4914, 1.0
    %v4919 = vrcp.pop %v4915
    %v4920 = vmul.f32 %v4915, %v4919
    %v4921 = vsub.f32 1.0, %v4920
    %v4922 = vmul.f32 %v4919, %v4921
    %v4923 = vadd.f32 %v4919, %v4922
    %vm4924 = vweird.f32 %v4915
    %vm4925 = vweird.f32 %v4919
    %vm4926 = vmor %vm4924, %vm4925
    %v4927 = vsel %vm4926, %v4919, %v4923
    %v4928 = vand.u32 2147483647, %v4915
    %vm4929 = vcmp.eq.f32.partialorder %v4928, 8.507059e+37
    %v4930 = vand.u32 %v4915, 2147483648
    %v4931 = vor.u32 1.1754944e-38, %v4930
    %v4932 = vsel %vm4929, %v4931, %v4927
    %v4933 = vmul.f32 1.0, %v4932
    %v4934 = vrcp.pop %v4916
    %v4935 = vmul.f32 %v4916, %v4934
    %v4936 = vsub.f32 1.0, %v4935
    %v4937 = vmul.f32 %v4934, %v4936
    %v4938 = vadd.f32 %v4934, %v4937
    %vm4939 = vweird.f32 %v4916
    %vm4940 = vweird.f32 %v4934
    %vm4941 = vmor %vm4939, %vm4940
    %v4942 = vsel %vm4941, %v4934, %v4938
    %v4943 = vand.u32 2147483647, %v4916
    %vm4944 = vcmp.eq.f32.partialorder %v4943, 8.507059e+37
    %v4945 = vand.u32 %v4916, 2147483648
    %v4946 = vor.u32 1.1754944e-38, %v4945
    %v4947 = vsel %vm4944, %v4946, %v4942
    %v4948 = vmul.f32 1.0, %v4947
    %v4949 = vrcp.pop %v4917
    %v4950 = vmul.f32 %v4917, %v4949
    %v4951 = vsub.f32 1.0, %v4950
    %v4952 = vmul.f32 %v4949, %v4951
    %v4953 = vadd.f32 %v4949, %v4952
    %vm4954 = vweird.f32 %v4917
    %vm4955 = vweird.f32 %v4949
    %vm4956 = vmor %vm4954, %vm4955
    %v4957 = vsel %vm4956, %v4949, %v4953
    %v4958 = vand.u32 2147483647, %v4917
    %vm4959 = vcmp.eq.f32.partialorder %v4958, 8.507059e+37
    %v4960 = vand.u32 %v4917, 2147483648
    %v4961 = vor.u32 1.1754944e-38, %v4960
    %v4962 = vsel %vm4959, %v4961, %v4957
    %v4963 = vmul.f32 1.0, %v4962
    %v4964 = vrcp.pop %v4918
    %v4965 = vmul.f32 %v4918, %v4964
    %v4966 = vsub.f32 1.0, %v4965
    %v4967 = vmul.f32 %v4964, %v4966
    %v4968 = vadd.f32 %v4964, %v4967
    %vm4969 = vweird.f32 %v4918
    %vm4970 = vweird.f32 %v4964
    %vm4971 = vmor %vm4969, %vm4970
    %v4972 = vsel %vm4971, %v4964, %v4968
    %v4973 = vand.u32 2147483647, %v4918
    %vm4974 = vcmp.eq.f32.partialorder %v4973, 8.507059e+37
    %v4975 = vand.u32 %v4918, 2147483648
    %v4976 = vor.u32 1.1754944e-38, %v4975
    %v4977 = vsel %vm4974, %v4976, %v4972
    %v4978 = vmul.f32 1.0, %v4977
    %v4979 = vtanh.pop %v4819
    %v4980 = vtanh.pop %v4820
    %v4981 = vtanh.pop %v4821
    %v4982 = vtanh.pop %v4822
    %v4983 = vxor.u32 %v4823, 2147483648
    %v4984 = vxor.u32 %v4824, 2147483648
    %v4985 = vxor.u32 %v4825, 2147483648
    %v4986 = vxor.u32 %v4826, 2147483648
    %v4987 = vmul.f32 %v4983, 1.442695
    %v4988 = vpow.pop %v4987
    %v4989 = vmul.f32 %v4984, 1.442695
    %v4990 = vpow.pop %v4989
    %v4991 = vmul.f32 %v4985, 1.442695
    %v4992 = vpow.pop %v4991
    %v4993 = vmul.f32 %v4986, 1.442695
    %v4994 = vpow.pop %v4993
    %v4995 = vadd.f32 %v4988, 1.0
    %v4996 = vadd.f32 %v4990, 1.0
    %v4997 = vadd.f32 %v4992, 1.0
    %v4998 = vadd.f32 %v4994, 1.0
    %v4999 = vrcp.pop %v4995
    %v5000 = vmul.f32 %v4995, %v4999
    %v5001 = vsub.f32 1.0, %v5000
    %v5002 = vmul.f32 %v4999, %v5001
    %v5003 = vadd.f32 %v4999, %v5002
    %vm5004 = vweird.f32 %v4995
    %vm5005 = vweird.f32 %v4999
    %vm5006 = vmor %vm5004, %vm5005
    %v5007 = vsel %vm5006, %v4999, %v5003
    %v5008 = vand.u32 2147483647, %v4995
    %vm5009 = vcmp.eq.f32.partialorder %v5008, 8.507059e+37
    %v5010 = vand.u32 %v4995, 2147483648
    %v5011 = vor.u32 1.1754944e-38, %v5010
    %v5012 = vsel %vm5009, %v5011, %v5007
    %v5013 = vmul.f32 1.0, %v5012
    %v5014 = vrcp.pop %v4996
    %v5015 = vmul.f32 %v4996, %v5014
    %v5016 = vsub.f32 1.0, %v5015
    %v5017 = vmul.f32 %v5014, %v5016
    %v5018 = vadd.f32 %v5014, %v5017
    %vm5019 = vweird.f32 %v4996
    %vm5020 = vweird.f32 %v5014
    %vm5021 = vmor %vm5019, %vm5020
    %v5022 = vsel %vm5021, %v5014, %v5018
    %v5023 = vand.u32 2147483647, %v4996
    %vm5024 = vcmp.eq.f32.partialorder %v5023, 8.507059e+37
    %v5025 = vand.u32 %v4996, 2147483648
    %v5026 = vor.u32 1.1754944e-38, %v5025
    %v5027 = vsel %vm5024, %v5026, %v5022
    %v5028 = vmul.f32 1.0, %v5027
    %v5029 = vrcp.pop %v4997
    %v5030 = vmul.f32 %v4997, %v5029
    %v5031 = vsub.f32 1.0, %v5030
    %v5032 = vmul.f32 %v5029, %v5031
    %v5033 = vadd.f32 %v5029, %v5032
    %vm5034 = vweird.f32 %v4997
    %vm5035 = vweird.f32 %v5029
    %vm5036 = vmor %vm5034, %vm5035
    %v5037 = vsel %vm5036, %v5029, %v5033
    %v5038 = vand.u32 2147483647, %v4997
    %vm5039 = vcmp.eq.f32.partialorder %v5038, 8.507059e+37
    %v5040 = vand.u32 %v4997, 2147483648
    %v5041 = vor.u32 1.1754944e-38, %v5040
    %v5042 = vsel %vm5039, %v5041, %v5037
    %v5043 = vmul.f32 1.0, %v5042
    %v5044 = vrcp.pop %v4998
    %v5045 = vmul.f32 %v4998, %v5044
    %v5046 = vsub.f32 1.0, %v5045
    %v5047 = vmul.f32 %v5044, %v5046
    %v5048 = vadd.f32 %v5044, %v5047
    %vm5049 = vweird.f32 %v4998
    %vm5050 = vweird.f32 %v5044
    %vm5051 = vmor %vm5049, %vm5050
    %v5052 = vsel %vm5051, %v5044, %v5048
    %v5053 = vand.u32 2147483647, %v4998
    %vm5054 = vcmp.eq.f32.partialorder %v5053, 8.507059e+37
    %v5055 = vand.u32 %v4998, 2147483648
    %v5056 = vor.u32 1.1754944e-38, %v5055
    %v5057 = vsel %vm5054, %v5056, %v5052
    %v5058 = vmul.f32 1.0, %v5057
    %v5059 = vld [vmem:[#allocation3] sm:$0xff]
    %v5060 = vld [vmem:[#allocation3 + $0x8] sm:$0xff]
    %v5061 = vld [vmem:[#allocation3 + $0x10] sm:$0xff]
    %v5062 = vld [vmem:[#allocation3 + $0x18] sm:$0xff]
    %v5063 = vmul.f32 %v4933, %v5059
    %v5064 = vmul.f32 %v4948, %v5060
    %v5065 = vmul.f32 %v4963, %v5061
    %v5066 = vmul.f32 %v4978, %v5062
    %v5067 = vmul.f32 %v4857, %v4979
    %v5068 = vmul.f32 %v4872, %v4980
    %v5069 = vmul.f32 %v4887, %v4981
    %v5070 = vmul.f32 %v4902, %v4982
    %v5071 = vadd.f32 %v5063, %v5067
    %v5072 = vadd.f32 %v5064, %v5068
    %v5073 = vadd.f32 %v5065, %v5069
    %v5074 = vadd.f32 %v5066, %v5070
    %v5075 = vtanh.pop %v5071
    %v5076 = vtanh.pop %v5072
    %v5077 = vtanh.pop %v5073
    %v5078 = vtanh.pop %v5074
    %v5079 = vmul.f32 %v5013, %v5075
    %v5080 = vmul.f32 %v5028, %v5076
    %v5081 = vmul.f32 %v5043, %v5077
    %v5082 = vmul.f32 %v5058, %v5078
    %5083 = vst [vmem:[#allocation3] sm:$0xff] %v5071
    %5084 = vst [vmem:[#allocation3 + $0x8] sm:$0xff] %v5072
    %5085 = vst [vmem:[#allocation3 + $0x10] sm:$0xff] %v5073
    %5086 = vst [vmem:[#allocation3 + $0x18] sm:$0xff] %v5074
    %5087 = vst [vmem:[#allocation2] sm:$0xff] %v5079
    %5088 = vst [vmem:[#allocation2 + $0x8] sm:$0xff] %v5080
    %5089 = vst [vmem:[#allocation2 + $0x10] sm:$0xff] %v5081
    %5090 = vst [vmem:[#allocation2 + $0x18] sm:$0xff] %v5082
    %v5091 = vld [vmem:[%s999] sm:$0xff]
    %v5092 = vld [vmem:[%s999 + $0x8] sm:$0xff]
    %v5093 = vld [vmem:[%s999 + $0x10] sm:$0xff]
    %v5094 = vld [vmem:[%s999 + $0x18] sm:$0xff]
    %v5095 = vld [vmem:[%s999 + $0x20] sm:$0xff]
    %v5096 = vld [vmem:[%s999 + $0x28] sm:$0xff]
    %v5097 = vld [vmem:[%s999 + $0x30] sm:$0xff]
    %v5098 = vld [vmem:[%s999 + $0x38] sm:$0xff]
    %v5099 = vld [vmem:[%s999 + $0x40] sm:$0xff]
    %v5100 = vld [vmem:[%s999 + $0x48] sm:$0xff]
    %v5101 = vld [vmem:[%s999 + $0x50] sm:$0xff]
    %v5102 = vld [vmem:[%s999 + $0x58] sm:$0xff]
    %v5103 = vld [vmem:[%s999 + $0x60] sm:$0xff]
    %v5104 = vld [vmem:[%s999 + $0x68] sm:$0xff]
    %v5105 = vld [vmem:[%s999 + $0x70] sm:$0xff]
    %v5106 = vld [vmem:[%s999 + $0x78] sm:$0xff]
    %v5107 = vld [vmem:[#allocation4] sm:$0xff]
    %v5108 = vld [vmem:[#allocation4 + $0x8] sm:$0xff]
    %v5109 = vld [vmem:[#allocation4 + $0x10] sm:$0xff]
    %v5110 = vld [vmem:[#allocation4 + $0x18] sm:$0xff]
    %v5111 = vpack.c.bf16 %v5108, %v5107
    %v5112 = vpack.c.bf16 %v5110, %v5109
    %5113 = vmatpush.bf16.msra.mxu0 0
    %5114 = vmatpush.bf16.msra.mxu0 0
    %5115 = vmatpush.bf16.msra.mxu0 0
    %5116 = vmatpush.bf16.msra.mxu0 0
    %5117 = vmatpush.bf16.msra.mxu0 0
    %5118 = vmatpush.bf16.msra.mxu0 0
    %5119 = vmatpush.bf16.msra.mxu0 %v5112
    %5120 = vmatpush.bf16.msra.mxu0 %v5111
    %5121 = vmatmul.bf16.gmra.mxu0 %v2043
    %v5122 = vpop.f32.mrf.mxu0
    %v5123 = vadd.f32 0.0, %v5122
    %v5124 = vpop.f32.mrf.mxu0
    %v5125 = vadd.f32 0.0, %v5124
    %5126 = vmatmul.bf16.gmra.mxu0 %v2046
    %v5127 = vpop.f32.mrf.mxu0
    %v5128 = vadd.f32 0.0, %v5127
    %v5129 = vpop.f32.mrf.mxu0
    %v5130 = vadd.f32 0.0, %v5129
    %5131 = vmatmul.bf16.gmra.mxu0 %v2049
    %v5132 = vpop.f32.mrf.mxu0
    %v5133 = vadd.f32 0.0, %v5132
    %v5134 = vpop.f32.mrf.mxu0
    %v5135 = vadd.f32 0.0, %v5134
    %5136 = vmatmul.bf16.gmra.mxu0 %v2052
    %v5137 = vpop.f32.mrf.mxu0
    %v5138 = vadd.f32 0.0, %v5137
    %v5139 = vpop.f32.mrf.mxu0
    %v5140 = vadd.f32 0.0, %v5139
    %5141 = vmatmul.bf16.gmra.mxu0 %v2055
    %v5142 = vpop.f32.mrf.mxu0
    %v5143 = vadd.f32 0.0, %v5142
    %v5144 = vpop.f32.mrf.mxu0
    %v5145 = vadd.f32 0.0, %v5144
    %5146 = vmatmul.bf16.gmra.mxu0 %v2058
    %v5147 = vpop.f32.mrf.mxu0
    %v5148 = vadd.f32 0.0, %v5147
    %v5149 = vpop.f32.mrf.mxu0
    %v5150 = vadd.f32 0.0, %v5149
    %5151 = vmatmul.bf16.gmra.mxu0 %v2061
    %v5152 = vpop.f32.mrf.mxu0
    %v5153 = vadd.f32 0.0, %v5152
    %v5154 = vpop.f32.mrf.mxu0
    %v5155 = vadd.f32 0.0, %v5154
    %5156 = vmatmul.bf16.gmra.mxu0 %v2064
    %v5157 = vpop.f32.mrf.mxu0
    %v5158 = vadd.f32 0.0, %v5157
    %v5159 = vpop.f32.mrf.mxu0
    %v5160 = vadd.f32 0.0, %v5159
    %5161 = vdwg.mxu0
    %v5162 = vadd.f32 %v5091, %v5123
    %v5163 = vadd.f32 %v5092, %v5125
    %v5164 = vadd.f32 %v5093, %v5128
    %v5165 = vadd.f32 %v5094, %v5130
    %v5166 = vadd.f32 %v5095, %v5133
    %v5167 = vadd.f32 %v5096, %v5135
    %v5168 = vadd.f32 %v5097, %v5138
    %v5169 = vadd.f32 %v5098, %v5140
    %v5170 = vadd.f32 %v5099, %v5143
    %v5171 = vadd.f32 %v5100, %v5145
    %v5172 = vadd.f32 %v5101, %v5148
    %v5173 = vadd.f32 %v5102, %v5150
    %v5174 = vadd.f32 %v5103, %v5153
    %v5175 = vadd.f32 %v5104, %v5155
    %v5176 = vadd.f32 %v5105, %v5158
    %v5177 = vadd.f32 %v5106, %v5160
    %v5178 = vxor.u32 %v5162, 2147483648
    %v5179 = vxor.u32 %v5163, 2147483648
    %v5180 = vxor.u32 %v5164, 2147483648
    %v5181 = vxor.u32 %v5165, 2147483648
    %v5182 = vmul.f32 %v5178, 1.442695
    %v5183 = vpow.pop %v5182
    %v5184 = vmul.f32 %v5179, 1.442695
    %v5185 = vpow.pop %v5184
    %v5186 = vmul.f32 %v5180, 1.442695
    %v5187 = vpow.pop %v5186
    %v5188 = vmul.f32 %v5181, 1.442695
    %v5189 = vpow.pop %v5188
    %v5190 = vadd.f32 %v5183, 1.0
    %v5191 = vadd.f32 %v5185, 1.0
    %v5192 = vadd.f32 %v5187, 1.0
    %v5193 = vadd.f32 %v5189, 1.0
    %v5194 = vrcp.pop %v5190
    %v5195 = vmul.f32 %v5190, %v5194
    %v5196 = vsub.f32 1.0, %v5195
    %v5197 = vmul.f32 %v5194, %v5196
    %v5198 = vadd.f32 %v5194, %v5197
    %vm5199 = vweird.f32 %v5190
    %vm5200 = vweird.f32 %v5194
    %vm5201 = vmor %vm5199, %vm5200
    %v5202 = vsel %vm5201, %v5194, %v5198
    %v5203 = vand.u32 2147483647, %v5190
    %vm5204 = vcmp.eq.f32.partialorder %v5203, 8.507059e+37
    %v5205 = vand.u32 %v5190, 2147483648
    %v5206 = vor.u32 1.1754944e-38, %v5205
    %v5207 = vsel %vm5204, %v5206, %v5202
    %v5208 = vmul.f32 1.0, %v5207
    %v5209 = vrcp.pop %v5191
    %v5210 = vmul.f32 %v5191, %v5209
    %v5211 = vsub.f32 1.0, %v5210
    %v5212 = vmul.f32 %v5209, %v5211
    %v5213 = vadd.f32 %v5209, %v5212
    %vm5214 = vweird.f32 %v5191
    %vm5215 = vweird.f32 %v5209
    %vm5216 = vmor %vm5214, %vm5215
    %v5217 = vsel %vm5216, %v5209, %v5213
    %v5218 = vand.u32 2147483647, %v5191
    %vm5219 = vcmp.eq.f32.partialorder %v5218, 8.507059e+37
    %v5220 = vand.u32 %v5191, 2147483648
    %v5221 = vor.u32 1.1754944e-38, %v5220
    %v5222 = vsel %vm5219, %v5221, %v5217
    %v5223 = vmul.f32 1.0, %v5222
    %v5224 = vrcp.pop %v5192
    %v5225 = vmul.f32 %v5192, %v5224
    %v5226 = vsub.f32 1.0, %v5225
    %v5227 = vmul.f32 %v5224, %v5226
    %v5228 = vadd.f32 %v5224, %v5227
    %vm5229 = vweird.f32 %v5192
    %vm5230 = vweird.f32 %v5224
    %vm5231 = vmor %vm5229, %vm5230
    %v5232 = vsel %vm5231, %v5224, %v5228
    %v5233 = vand.u32 2147483647, %v5192
    %vm5234 = vcmp.eq.f32.partialorder %v5233, 8.507059e+37
    %v5235 = vand.u32 %v5192, 2147483648
    %v5236 = vor.u32 1.1754944e-38, %v5235
    %v5237 = vsel %vm5234, %v5236, %v5232
    %v5238 = vmul.f32 1.0, %v5237
    %v5239 = vrcp.pop %v5193
    %v5240 = vmul.f32 %v5193, %v5239
    %v5241 = vsub.f32 1.0, %v5240
    %v5242 = vmul.f32 %v5239, %v5241
    %v5243 = vadd.f32 %v5239, %v5242
    %vm5244 = vweird.f32 %v5193
    %vm5245 = vweird.f32 %v5239
    %vm5246 = vmor %vm5244, %vm5245
    %v5247 = vsel %vm5246, %v5239, %v5243
    %v5248 = vand.u32 2147483647, %v5193
    %vm5249 = vcmp.eq.f32.partialorder %v5248, 8.507059e+37
    %v5250 = vand.u32 %v5193, 2147483648
    %v5251 = vor.u32 1.1754944e-38, %v5250
    %v5252 = vsel %vm5249, %v5251, %v5247
    %v5253 = vmul.f32 1.0, %v5252
    %v5254 = vxor.u32 %v5166, 2147483648
    %v5255 = vxor.u32 %v5167, 2147483648
    %v5256 = vxor.u32 %v5168, 2147483648
    %v5257 = vxor.u32 %v5169, 2147483648
    %v5258 = vmul.f32 %v5254, 1.442695
    %v5259 = vpow.pop %v5258
    %v5260 = vmul.f32 %v5255, 1.442695
    %v5261 = vpow.pop %v5260
    %v5262 = vmul.f32 %v5256, 1.442695
    %v5263 = vpow.pop %v5262
    %v5264 = vmul.f32 %v5257, 1.442695
    %v5265 = vpow.pop %v5264
    %v5266 = vadd.f32 %v5259, 1.0
    %v5267 = vadd.f32 %v5261, 1.0
    %v5268 = vadd.f32 %v5263, 1.0
    %v5269 = vadd.f32 %v5265, 1.0
    %v5270 = vrcp.pop %v5266
    %v5271 = vmul.f32 %v5266, %v5270
    %v5272 = vsub.f32 1.0, %v5271
    %v5273 = vmul.f32 %v5270, %v5272
    %v5274 = vadd.f32 %v5270, %v5273
    %vm5275 = vweird.f32 %v5266
    %vm5276 = vweird.f32 %v5270
    %vm5277 = vmor %vm5275, %vm5276
    %v5278 = vsel %vm5277, %v5270, %v5274
    %v5279 = vand.u32 2147483647, %v5266
    %vm5280 = vcmp.eq.f32.partialorder %v5279, 8.507059e+37
    %v5281 = vand.u32 %v5266, 2147483648
    %v5282 = vor.u32 1.1754944e-38, %v5281
    %v5283 = vsel %vm5280, %v5282, %v5278
    %v5284 = vmul.f32 1.0, %v5283
    %v5285 = vrcp.pop %v5267
    %v5286 = vmul.f32 %v5267, %v5285
    %v5287 = vsub.f32 1.0, %v5286
    %v5288 = vmul.f32 %v5285, %v5287
    %v5289 = vadd.f32 %v5285, %v5288
    %vm5290 = vweird.f32 %v5267
    %vm5291 = vweird.f32 %v5285
    %vm5292 = vmor %vm5290, %vm5291
    %v5293 = vsel %vm5292, %v5285, %v5289
    %v5294 = vand.u32 2147483647, %v5267
    %vm5295 = vcmp.eq.f32.partialorder %v5294, 8.507059e+37
    %v5296 = vand.u32 %v5267, 2147483648
    %v5297 = vor.u32 1.1754944e-38, %v5296
    %v5298 = vsel %vm5295, %v5297, %v5293
    %v5299 = vmul.f32 1.0, %v5298
    %v5300 = vrcp.pop %v5268
    %v5301 = vmul.f32 %v5268, %v5300
    %v5302 = vsub.f32 1.0, %v5301
    %v5303 = vmul.f32 %v5300, %v5302
    %v5304 = vadd.f32 %v5300, %v5303
    %vm5305 = vweird.f32 %v5268
    %vm5306 = vweird.f32 %v5300
    %vm5307 = vmor %vm5305, %vm5306
    %v5308 = vsel %vm5307, %v5300, %v5304
    %v5309 = vand.u32 2147483647, %v5268
    %vm5310 = vcmp.eq.f32.partialorder %v5309, 8.507059e+37
    %v5311 = vand.u32 %v5268, 2147483648
    %v5312 = vor.u32 1.1754944e-38, %v5311
    %v5313 = vsel %vm5310, %v5312, %v5308
    %v5314 = vmul.f32 1.0, %v5313
    %v5315 = vrcp.pop %v5269
    %v5316 = vmul.f32 %v5269, %v5315
    %v5317 = vsub.f32 1.0, %v5316
    %v5318 = vmul.f32 %v5315, %v5317
    %v5319 = vadd.f32 %v5315, %v5318
    %vm5320 = vweird.f32 %v5269
    %vm5321 = vweird.f32 %v5315
    %vm5322 = vmor %vm5320, %vm5321
    %v5323 = vsel %vm5322, %v5315, %v5319
    %v5324 = vand.u32 2147483647, %v5269
    %vm5325 = vcmp.eq.f32.partialorder %v5324, 8.507059e+37
    %v5326 = vand.u32 %v5269, 2147483648
    %v5327 = vor.u32 1.1754944e-38, %v5326
    %v5328 = vsel %vm5325, %v5327, %v5323
    %v5329 = vmul.f32 1.0, %v5328
    %v5330 = vtanh.pop %v5170
    %v5331 = vtanh.pop %v5171
    %v5332 = vtanh.pop %v5172
    %v5333 = vtanh.pop %v5173
    %v5334 = vxor.u32 %v5174, 2147483648
    %v5335 = vxor.u32 %v5175, 2147483648
    %v5336 = vxor.u32 %v5176, 2147483648
    %v5337 = vxor.u32 %v5177, 2147483648
    %v5338 = vmul.f32 %v5334, 1.442695
    %v5339 = vpow.pop %v5338
    %v5340 = vmul.f32 %v5335, 1.442695
    %v5341 = vpow.pop %v5340
    %v5342 = vmul.f32 %v5336, 1.442695
    %v5343 = vpow.pop %v5342
    %v5344 = vmul.f32 %v5337, 1.442695
    %v5345 = vpow.pop %v5344
    %v5346 = vadd.f32 %v5339, 1.0
    %v5347 = vadd.f32 %v5341, 1.0
    %v5348 = vadd.f32 %v5343, 1.0
    %v5349 = vadd.f32 %v5345, 1.0
    %v5350 = vrcp.pop %v5346
    %v5351 = vmul.f32 %v5346, %v5350
    %v5352 = vsub.f32 1.0, %v5351
    %v5353 = vmul.f32 %v5350, %v5352
    %v5354 = vadd.f32 %v5350, %v5353
    %vm5355 = vweird.f32 %v5346
    %vm5356 = vweird.f32 %v5350
    %vm5357 = vmor %vm5355, %vm5356
    %v5358 = vsel %vm5357, %v5350, %v5354
    %v5359 = vand.u32 2147483647, %v5346
    %vm5360 = vcmp.eq.f32.partialorder %v5359, 8.507059e+37
    %v5361 = vand.u32 %v5346, 2147483648
    %v5362 = vor.u32 1.1754944e-38, %v5361
    %v5363 = vsel %vm5360, %v5362, %v5358
    %v5364 = vmul.f32 1.0, %v5363
    %v5365 = vrcp.pop %v5347
    %v5366 = vmul.f32 %v5347, %v5365
    %v5367 = vsub.f32 1.0, %v5366
    %v5368 = vmul.f32 %v5365, %v5367
    %v5369 = vadd.f32 %v5365, %v5368
    %vm5370 = vweird.f32 %v5347
    %vm5371 = vweird.f32 %v5365
    %vm5372 = vmor %vm5370, %vm5371
    %v5373 = vsel %vm5372, %v5365, %v5369
    %v5374 = vand.u32 2147483647, %v5347
    %vm5375 = vcmp.eq.f32.partialorder %v5374, 8.507059e+37
    %v5376 = vand.u32 %v5347, 2147483648
    %v5377 = vor.u32 1.1754944e-38, %v5376
    %v5378 = vsel %vm5375, %v5377, %v5373
    %v5379 = vmul.f32 1.0, %v5378
    %v5380 = vrcp.pop %v5348
    %v5381 = vmul.f32 %v5348, %v5380
    %v5382 = vsub.f32 1.0, %v5381
    %v5383 = vmul.f32 %v5380, %v5382
    %v5384 = vadd.f32 %v5380, %v5383
    %vm5385 = vweird.f32 %v5348
    %vm5386 = vweird.f32 %v5380
    %vm5387 = vmor %vm5385, %vm5386
    %v5388 = vsel %vm5387, %v5380, %v5384
    %v5389 = vand.u32 2147483647, %v5348
    %vm5390 = vcmp.eq.f32.partialorder %v5389, 8.507059e+37
    %v5391 = vand.u32 %v5348, 2147483648
    %v5392 = vor.u32 1.1754944e-38, %v5391
    %v5393 = vsel %vm5390, %v5392, %v5388
    %v5394 = vmul.f32 1.0, %v5393
    %v5395 = vrcp.pop %v5349
    %v5396 = vmul.f32 %v5349, %v5395
    %v5397 = vsub.f32 1.0, %v5396
    %v5398 = vmul.f32 %v5395, %v5397
    %v5399 = vadd.f32 %v5395, %v5398
    %vm5400 = vweird.f32 %v5349
    %vm5401 = vweird.f32 %v5395
    %vm5402 = vmor %vm5400, %vm5401
    %v5403 = vsel %vm5402, %v5395, %v5399
    %v5404 = vand.u32 2147483647, %v5349
    %vm5405 = vcmp.eq.f32.partialorder %v5404, 8.507059e+37
    %v5406 = vand.u32 %v5349, 2147483648
    %v5407 = vor.u32 1.1754944e-38, %v5406
    %v5408 = vsel %vm5405, %v5407, %v5403
    %v5409 = vmul.f32 1.0, %v5408
    %v5410 = vld [vmem:[#allocation5] sm:$0xff]
    %v5411 = vld [vmem:[#allocation5 + $0x8] sm:$0xff]
    %v5412 = vld [vmem:[#allocation5 + $0x10] sm:$0xff]
    %v5413 = vld [vmem:[#allocation5 + $0x18] sm:$0xff]
    %v5414 = vmul.f32 %v5284, %v5410
    %v5415 = vmul.f32 %v5299, %v5411
    %v5416 = vmul.f32 %v5314, %v5412
    %v5417 = vmul.f32 %v5329, %v5413
    %v5418 = vmul.f32 %v5208, %v5330
    %v5419 = vmul.f32 %v5223, %v5331
    %v5420 = vmul.f32 %v5238, %v5332
    %v5421 = vmul.f32 %v5253, %v5333
    %v5422 = vadd.f32 %v5414, %v5418
    %v5423 = vadd.f32 %v5415, %v5419
    %v5424 = vadd.f32 %v5416, %v5420
    %v5425 = vadd.f32 %v5417, %v5421
    %v5426 = vtanh.pop %v5422
    %v5427 = vtanh.pop %v5423
    %v5428 = vtanh.pop %v5424
    %v5429 = vtanh.pop %v5425
    %v5430 = vmul.f32 %v5364, %v5426
    %v5431 = vmul.f32 %v5379, %v5427
    %v5432 = vmul.f32 %v5394, %v5428
    %v5433 = vmul.f32 %v5409, %v5429
    %5434 = vst [vmem:[#allocation5] sm:$0xff] %v5422
    %5435 = vst [vmem:[#allocation5 + $0x8] sm:$0xff] %v5423
    %5436 = vst [vmem:[#allocation5 + $0x10] sm:$0xff] %v5424
    %5437 = vst [vmem:[#allocation5 + $0x18] sm:$0xff] %v5425
    %5438 = vst [vmem:[#allocation4] sm:$0xff] %v5430
    %5439 = vst [vmem:[#allocation4 + $0x8] sm:$0xff] %v5431
    %5440 = vst [vmem:[#allocation4 + $0x10] sm:$0xff] %v5432
    %5441 = vst [vmem:[#allocation4 + $0x18] sm:$0xff] %v5433
    %v5442 = vpack.c.bf16 %v5080, %v5079
    %v5443 = vpack.c.bf16 %v5082, %v5081
    %5444 = vmatpush.bf16.msra.mxu0 0
    %5445 = vmatpush.bf16.msra.mxu0 0
    %5446 = vmatpush.bf16.msra.mxu0 0
    %5447 = vmatpush.bf16.msra.mxu0 0
    %5448 = vmatpush.bf16.msra.mxu0 0
    %5449 = vmatpush.bf16.msra.mxu0 0
    %5450 = vmatpush.bf16.msra.mxu0 %v5443
    %5451 = vmatpush.bf16.msra.mxu0 %v5442
    %5452 = vmatmul.bf16.gmra.mxu0 %v2410
    %v5453 = vpop.f32.mrf.mxu0
    %v5454 = vadd.f32 0.0, %v5453
    %v5455 = vpop.f32.mrf.mxu0
    %v5456 = vadd.f32 0.0, %v5455
    %5457 = vmatmul.bf16.gmra.mxu0 %v2413
    %v5458 = vpop.f32.mrf.mxu0
    %v5459 = vadd.f32 0.0, %v5458
    %v5460 = vpop.f32.mrf.mxu0
    %v5461 = vadd.f32 0.0, %v5460
    %5462 = vdwg.mxu0
    %v5463 = vpack.c.bf16 %v5431, %v5430
    %v5464 = vpack.c.bf16 %v5433, %v5432
    %5465 = vmatpush.bf16.msra.mxu0 0
    %5466 = vmatpush.bf16.msra.mxu0 0
    %5467 = vmatpush.bf16.msra.mxu0 0
    %5468 = vmatpush.bf16.msra.mxu0 0
    %5469 = vmatpush.bf16.msra.mxu0 0
    %5470 = vmatpush.bf16.msra.mxu0 0
    %5471 = vmatpush.bf16.msra.mxu0 %v5464
    %5472 = vmatpush.bf16.msra.mxu0 %v5463
    %5473 = vmatmul.bf16.gmra.mxu0 %v2449
    %v5474 = vpop.f32.mrf.mxu0
    %v5475 = vadd.f32 0.0, %v5474
    %v5476 = vpop.f32.mrf.mxu0
    %v5477 = vadd.f32 0.0, %v5476
    %5478 = vmatmul.bf16.gmra.mxu0 %v2452
    %v5479 = vpop.f32.mrf.mxu0
    %v5480 = vadd.f32 0.0, %v5479
    %v5481 = vpop.f32.mrf.mxu0
    %v5482 = vadd.f32 0.0, %v5481
    %5483 = vdwg.mxu0
    %v5484 = vld [vmem:[%s4735] sm:$0xff]
    %v5485 = vld [vmem:[%s4735 + $0x8] sm:$0xff]
    %v5486 = vld [vmem:[%s4735 + $0x10] sm:$0xff]
    %v5487 = vld [vmem:[%s4735 + $0x18] sm:$0xff]
    %v5488 = vadd.f32 %v5484, %v5454
    %v5489 = vadd.f32 %v5485, %v5456
    %v5490 = vadd.f32 %v5486, %v5459
    %v5491 = vadd.f32 %v5487, %v5461
    %5492 = vst [vmem:[%s4735] sm:$0xff] %v5488
    %5493 = vst [vmem:[%s4735 + $0x8] sm:$0xff] %v5489
    %5494 = vst [vmem:[%s4735 + $0x10] sm:$0xff] %v5490
    %5495 = vst [vmem:[%s4735 + $0x18] sm:$0xff] %v5491
    %v5496 = vld [vmem:[%s4711] sm:$0xff]
    %v5497 = vld [vmem:[%s4711 + $0x8] sm:$0xff]
    %v5498 = vld [vmem:[%s4711 + $0x10] sm:$0xff]
    %v5499 = vld [vmem:[%s4711 + $0x18] sm:$0xff]
    %v5500 = vadd.f32 %v5496, %v5475
    %v5501 = vadd.f32 %v5497, %v5477
    %v5502 = vadd.f32 %v5498, %v5480
    %v5503 = vadd.f32 %v5499, %v5482
    %5504 = vst [vmem:[%s4711] sm:$0xff] %v5500
    %5505 = vst [vmem:[%s4711 + $0x8] sm:$0xff] %v5501
    %5506 = vst [vmem:[%s4711 + $0x10] sm:$0xff] %v5502
    %5507 = vst [vmem:[%s4711 + $0x18] sm:$0xff] %v5503
    %v5508 = vld [vmem:[%s1207] sm:$0xff]
    %v5509 = vld [vmem:[%s1207 + $0x8] sm:$0xff]
    %v5510 = vld [vmem:[%s1207 + $0x10] sm:$0xff]
    %v5511 = vld [vmem:[%s1207 + $0x18] sm:$0xff]
    %v5512 = vld [vmem:[%s1207 + $0x20] sm:$0xff]
    %v5513 = vld [vmem:[%s1207 + $0x28] sm:$0xff]
    %v5514 = vld [vmem:[%s1207 + $0x30] sm:$0xff]
    %v5515 = vld [vmem:[%s1207 + $0x38] sm:$0xff]
    %v5516 = vld [vmem:[%s1207 + $0x40] sm:$0xff]
    %v5517 = vld [vmem:[%s1207 + $0x48] sm:$0xff]
    %v5518 = vld [vmem:[%s1207 + $0x50] sm:$0xff]
    %v5519 = vld [vmem:[%s1207 + $0x58] sm:$0xff]
    %v5520 = vld [vmem:[%s1207 + $0x60] sm:$0xff]
    %v5521 = vld [vmem:[%s1207 + $0x68] sm:$0xff]
    %v5522 = vld [vmem:[%s1207 + $0x70] sm:$0xff]
    %v5523 = vld [vmem:[%s1207 + $0x78] sm:$0xff]
    %v5524 = vld [vmem:[#allocation2] sm:$0xff]
    %v5525 = vld [vmem:[#allocation2 + $0x8] sm:$0xff]
    %v5526 = vld [vmem:[#allocation2 + $0x10] sm:$0xff]
    %v5527 = vld [vmem:[#allocation2 + $0x18] sm:$0xff]
    %v5528 = vpack.c.bf16 %v5525, %v5524
    %v5529 = vpack.c.bf16 %v5527, %v5526
    %5530 = vmatpush.bf16.msra.mxu0 0
    %5531 = vmatpush.bf16.msra.mxu0 0
    %5532 = vmatpush.bf16.msra.mxu0 0
    %5533 = vmatpush.bf16.msra.mxu0 0
    %5534 = vmatpush.bf16.msra.mxu0 0
    %5535 = vmatpush.bf16.msra.mxu0 0
    %5536 = vmatpush.bf16.msra.mxu0 %v5529
    %5537 = vmatpush.bf16.msra.mxu0 %v5528
    %5538 = vmatmul.bf16.gmra.mxu0 %v1628
    %v5539 = vpop.f32.mrf.mxu0
    %v5540 = vadd.f32 0.0, %v5539
    %v5541 = vpop.f32.mrf.mxu0
    %v5542 = vadd.f32 0.0, %v5541
    %5543 = vmatmul.bf16.gmra.mxu0 %v1631
    %v5544 = vpop.f32.mrf.mxu0
    %v5545 = vadd.f32 0.0, %v5544
    %v5546 = vpop.f32.mrf.mxu0
    %v5547 = vadd.f32 0.0, %v5546
    %5548 = vmatmul.bf16.gmra.mxu0 %v1634
    %v5549 = vpop.f32.mrf.mxu0
    %v5550 = vadd.f32 0.0, %v5549
    %v5551 = vpop.f32.mrf.mxu0
    %v5552 = vadd.f32 0.0, %v5551
    %5553 = vmatmul.bf16.gmra.mxu0 %v1637
    %v5554 = vpop.f32.mrf.mxu0
    %v5555 = vadd.f32 0.0, %v5554
    %v5556 = vpop.f32.mrf.mxu0
    %v5557 = vadd.f32 0.0, %v5556
    %5558 = vmatmul.bf16.gmra.mxu0 %v1640
    %v5559 = vpop.f32.mrf.mxu0
    %v5560 = vadd.f32 0.0, %v5559
    %v5561 = vpop.f32.mrf.mxu0
    %v5562 = vadd.f32 0.0, %v5561
    %5563 = vmatmul.bf16.gmra.mxu0 %v1643
    %v5564 = vpop.f32.mrf.mxu0
    %v5565 = vadd.f32 0.0, %v5564
    %v5566 = vpop.f32.mrf.mxu0
    %v5567 = vadd.f32 0.0, %v5566
    %5568 = vmatmul.bf16.gmra.mxu0 %v1646
    %v5569 = vpop.f32.mrf.mxu0
    %v5570 = vadd.f32 0.0, %v5569
    %v5571 = vpop.f32.mrf.mxu0
    %v5572 = vadd.f32 0.0, %v5571
    %5573 = vmatmul.bf16.gmra.mxu0 %v1649
    %v5574 = vpop.f32.mrf.mxu0
    %v5575 = vadd.f32 0.0, %v5574
    %v5576 = vpop.f32.mrf.mxu0
    %v5577 = vadd.f32 0.0, %v5576
    %5578 = vdwg.mxu0
    %v5579 = vadd.f32 %v5508, %v5540
    %v5580 = vadd.f32 %v5509, %v5542
    %v5581 = vadd.f32 %v5510, %v5545
    %v5582 = vadd.f32 %v5511, %v5547
    %v5583 = vadd.f32 %v5512, %v5550
    %v5584 = vadd.f32 %v5513, %v5552
    %v5585 = vadd.f32 %v5514, %v5555
    %v5586 = vadd.f32 %v5515, %v5557
    %v5587 = vadd.f32 %v5516, %v5560
    %v5588 = vadd.f32 %v5517, %v5562
    %v5589 = vadd.f32 %v5518, %v5565
    %v5590 = vadd.f32 %v5519, %v5567
    %v5591 = vadd.f32 %v5520, %v5570
    %v5592 = vadd.f32 %v5521, %v5572
    %v5593 = vadd.f32 %v5522, %v5575
    %v5594 = vadd.f32 %v5523, %v5577
    %v5595 = vxor.u32 %v5579, 2147483648
    %v5596 = vxor.u32 %v5580, 2147483648
    %v5597 = vxor.u32 %v5581, 2147483648
    %v5598 = vxor.u32 %v5582, 2147483648
    %v5599 = vmul.f32 %v5595, 1.442695
    %v5600 = vpow.pop %v5599
    %v5601 = vmul.f32 %v5596, 1.442695
    %v5602 = vpow.pop %v5601
    %v5603 = vmul.f32 %v5597, 1.442695
    %v5604 = vpow.pop %v5603
    %v5605 = vmul.f32 %v5598, 1.442695
    %v5606 = vpow.pop %v5605
    %v5607 = vadd.f32 %v5600, 1.0
    %v5608 = vadd.f32 %v5602, 1.0
    %v5609 = vadd.f32 %v5604, 1.0
    %v5610 = vadd.f32 %v5606, 1.0
    %v5611 = vrcp.pop %v5607
    %v5612 = vmul.f32 %v5607, %v5611
    %v5613 = vsub.f32 1.0, %v5612
    %v5614 = vmul.f32 %v5611, %v5613
    %v5615 = vadd.f32 %v5611, %v5614
    %vm5616 = vweird.f32 %v5607
    %vm5617 = vweird.f32 %v5611
    %vm5618 = vmor %vm5616, %vm5617
    %v5619 = vsel %vm5618, %v5611, %v5615
    %v5620 = vand.u32 2147483647, %v5607
    %vm5621 = vcmp.eq.f32.partialorder %v5620, 8.507059e+37
    %v5622 = vand.u32 %v5607, 2147483648
    %v5623 = vor.u32 1.1754944e-38, %v5622
    %v5624 = vsel %vm5621, %v5623, %v5619
    %v5625 = vmul.f32 1.0, %v5624
    %v5626 = vrcp.pop %v5608
    %v5627 = vmul.f32 %v5608, %v5626
    %v5628 = vsub.f32 1.0, %v5627
    %v5629 = vmul.f32 %v5626, %v5628
    %v5630 = vadd.f32 %v5626, %v5629
    %vm5631 = vweird.f32 %v5608
    %vm5632 = vweird.f32 %v5626
    %vm5633 = vmor %vm5631, %vm5632
    %v5634 = vsel %vm5633, %v5626, %v5630
    %v5635 = vand.u32 2147483647, %v5608
    %vm5636 = vcmp.eq.f32.partialorder %v5635, 8.507059e+37
    %v5637 = vand.u32 %v5608, 2147483648
    %v5638 = vor.u32 1.1754944e-38, %v5637
    %v5639 = vsel %vm5636, %v5638, %v5634
    %v5640 = vmul.f32 1.0, %v5639
    %v5641 = vrcp.pop %v5609
    %v5642 = vmul.f32 %v5609, %v5641
    %v5643 = vsub.f32 1.0, %v5642
    %v5644 = vmul.f32 %v5641, %v5643
    %v5645 = vadd.f32 %v5641, %v5644
    %vm5646 = vweird.f32 %v5609
    %vm5647 = vweird.f32 %v5641
    %vm5648 = vmor %vm5646, %vm5647
    %v5649 = vsel %vm5648, %v5641, %v5645
    %v5650 = vand.u32 2147483647, %v5609
    %vm5651 = vcmp.eq.f32.partialorder %v5650, 8.507059e+37
    %v5652 = vand.u32 %v5609, 2147483648
    %v5653 = vor.u32 1.1754944e-38, %v5652
    %v5654 = vsel %vm5651, %v5653, %v5649
    %v5655 = vmul.f32 1.0, %v5654
    %v5656 = vrcp.pop %v5610
    %v5657 = vmul.f32 %v5610, %v5656
    %v5658 = vsub.f32 1.0, %v5657
    %v5659 = vmul.f32 %v5656, %v5658
    %v5660 = vadd.f32 %v5656, %v5659
    %vm5661 = vweird.f32 %v5610
    %vm5662 = vweird.f32 %v5656
    %vm5663 = vmor %vm5661, %vm5662
    %v5664 = vsel %vm5663, %v5656, %v5660
    %v5665 = vand.u32 2147483647, %v5610
    %vm5666 = vcmp.eq.f32.partialorder %v5665, 8.507059e+37
    %v5667 = vand.u32 %v5610, 2147483648
    %v5668 = vor.u32 1.1754944e-38, %v5667
    %v5669 = vsel %vm5666, %v5668, %v5664
    %v5670 = vmul.f32 1.0, %v5669
    %v5671 = vxor.u32 %v5583, 2147483648
    %v5672 = vxor.u32 %v5584, 2147483648
    %v5673 = vxor.u32 %v5585, 2147483648
    %v5674 = vxor.u32 %v5586, 2147483648
    %v5675 = vmul.f32 %v5671, 1.442695
    %v5676 = vpow.pop %v5675
    %v5677 = vmul.f32 %v5672, 1.442695
    %v5678 = vpow.pop %v5677
    %v5679 = vmul.f32 %v5673, 1.442695
    %v5680 = vpow.pop %v5679
    %v5681 = vmul.f32 %v5674, 1.442695
    %v5682 = vpow.pop %v5681
    %v5683 = vadd.f32 %v5676, 1.0
    %v5684 = vadd.f32 %v5678, 1.0
    %v5685 = vadd.f32 %v5680, 1.0
    %v5686 = vadd.f32 %v5682, 1.0
    %v5687 = vrcp.pop %v5683
    %v5688 = vmul.f32 %v5683, %v5687
    %v5689 = vsub.f32 1.0, %v5688
    %v5690 = vmul.f32 %v5687, %v5689
    %v5691 = vadd.f32 %v5687, %v5690
    %vm5692 = vweird.f32 %v5683
    %vm5693 = vweird.f32 %v5687
    %vm5694 = vmor %vm5692, %vm5693
    %v5695 = vsel %vm5694, %v5687, %v5691
    %v5696 = vand.u32 2147483647, %v5683
    %vm5697 = vcmp.eq.f32.partialorder %v5696, 8.507059e+37
    %v5698 = vand.u32 %v5683, 2147483648
    %v5699 = vor.u32 1.1754944e-38, %v5698
    %v5700 = vsel %vm5697, %v5699, %v5695
    %v5701 = vmul.f32 1.0, %v5700
    %v5702 = vrcp.pop %v5684
    %v5703 = vmul.f32 %v5684, %v5702
    %v5704 = vsub.f32 1.0, %v5703
    %v5705 = vmul.f32 %v5702, %v5704
    %v5706 = vadd.f32 %v5702, %v5705
    %vm5707 = vweird.f32 %v5684
    %vm5708 = vweird.f32 %v5702
    %vm5709 = vmor %vm5707, %vm5708
    %v5710 = vsel %vm5709, %v5702, %v5706
    %v5711 = vand.u32 2147483647, %v5684
    %vm5712 = vcmp.eq.f32.partialorder %v5711, 8.507059e+37
    %v5713 = vand.u32 %v5684, 2147483648
    %v5714 = vor.u32 1.1754944e-38, %v5713
    %v5715 = vsel %vm5712, %v5714, %v5710
    %v5716 = vmul.f32 1.0, %v5715
    %v5717 = vrcp.pop %v5685
    %v5718 = vmul.f32 %v5685, %v5717
    %v5719 = vsub.f32 1.0, %v5718
    %v5720 = vmul.f32 %v5717, %v5719
    %v5721 = vadd.f32 %v5717, %v5720
    %vm5722 = vweird.f32 %v5685
    %vm5723 = vweird.f32 %v5717
    %vm5724 = vmor %vm5722, %vm5723
    %v5725 = vsel %vm5724, %v5717, %v5721
    %v5726 = vand.u32 2147483647, %v5685
    %vm5727 = vcmp.eq.f32.partialorder %v5726, 8.507059e+37
    %v5728 = vand.u32 %v5685, 2147483648
    %v5729 = vor.u32 1.1754944e-38, %v5728
    %v5730 = vsel %vm5727, %v5729, %v5725
    %v5731 = vmul.f32 1.0, %v5730
    %v5732 = vrcp.pop %v5686
    %v5733 = vmul.f32 %v5686, %v5732
    %v5734 = vsub.f32 1.0, %v5733
    %v5735 = vmul.f32 %v5732, %v5734
    %v5736 = vadd.f32 %v5732, %v5735
    %vm5737 = vweird.f32 %v5686
    %vm5738 = vweird.f32 %v5732
    %vm5739 = vmor %vm5737, %vm5738
    %v5740 = vsel %vm5739, %v5732, %v5736
    %v5741 = vand.u32 2147483647, %v5686
    %vm5742 = vcmp.eq.f32.partialorder %v5741, 8.507059e+37
    %v5743 = vand.u32 %v5686, 2147483648
    %v5744 = vor.u32 1.1754944e-38, %v5743
    %v5745 = vsel %vm5742, %v5744, %v5740
    %v5746 = vmul.f32 1.0, %v5745
    %v5747 = vtanh.pop %v5587
    %v5748 = vtanh.pop %v5588
    %v5749 = vtanh.pop %v5589
    %v5750 = vtanh.pop %v5590
    %v5751 = vxor.u32 %v5591, 2147483648
    %v5752 = vxor.u32 %v5592, 2147483648
    %v5753 = vxor.u32 %v5593, 2147483648
    %v5754 = vxor.u32 %v5594, 2147483648
    %v5755 = vmul.f32 %v5751, 1.442695
    %v5756 = vpow.pop %v5755
    %v5757 = vmul.f32 %v5752, 1.442695
    %v5758 = vpow.pop %v5757
    %v5759 = vmul.f32 %v5753, 1.442695
    %v5760 = vpow.pop %v5759
    %v5761 = vmul.f32 %v5754, 1.442695
    %v5762 = vpow.pop %v5761
    %v5763 = vadd.f32 %v5756, 1.0
    %v5764 = vadd.f32 %v5758, 1.0
    %v5765 = vadd.f32 %v5760, 1.0
    %v5766 = vadd.f32 %v5762, 1.0
    %v5767 = vrcp.pop %v5763
    %v5768 = vmul.f32 %v5763, %v5767
    %v5769 = vsub.f32 1.0, %v5768
    %v5770 = vmul.f32 %v5767, %v5769
    %v5771 = vadd.f32 %v5767, %v5770
    %vm5772 = vweird.f32 %v5763
    %vm5773 = vweird.f32 %v5767
    %vm5774 = vmor %vm5772, %vm5773
    %v5775 = vsel %vm5774, %v5767, %v5771
    %v5776 = vand.u32 2147483647, %v5763
    %vm5777 = vcmp.eq.f32.partialorder %v5776, 8.507059e+37
    %v5778 = vand.u32 %v5763, 2147483648
    %v5779 = vor.u32 1.1754944e-38, %v5778
    %v5780 = vsel %vm5777, %v5779, %v5775
    %v5781 = vmul.f32 1.0, %v5780
    %v5782 = vrcp.pop %v5764
    %v5783 = vmul.f32 %v5764, %v5782
    %v5784 = vsub.f32 1.0, %v5783
    %v5785 = vmul.f32 %v5782, %v5784
    %v5786 = vadd.f32 %v5782, %v5785
    %vm5787 = vweird.f32 %v5764
    %vm5788 = vweird.f32 %v5782
    %vm5789 = vmor %vm5787, %vm5788
    %v5790 = vsel %vm5789, %v5782, %v5786
    %v5791 = vand.u32 2147483647, %v5764
    %vm5792 = vcmp.eq.f32.partialorder %v5791, 8.507059e+37
    %v5793 = vand.u32 %v5764, 2147483648
    %v5794 = vor.u32 1.1754944e-38, %v5793
    %v5795 = vsel %vm5792, %v5794, %v5790
    %v5796 = vmul.f32 1.0, %v5795
    %v5797 = vrcp.pop %v5765
    %v5798 = vmul.f32 %v5765, %v5797
    %v5799 = vsub.f32 1.0, %v5798
    %v5800 = vmul.f32 %v5797, %v5799
    %v5801 = vadd.f32 %v5797, %v5800
    %vm5802 = vweird.f32 %v5765
    %vm5803 = vweird.f32 %v5797
    %vm5804 = vmor %vm5802, %vm5803
    %v5805 = vsel %vm5804, %v5797, %v5801
    %v5806 = vand.u32 2147483647, %v5765
    %vm5807 = vcmp.eq.f32.partialorder %v5806, 8.507059e+37
    %v5808 = vand.u32 %v5765, 2147483648
    %v5809 = vor.u32 1.1754944e-38, %v5808
    %v5810 = vsel %vm5807, %v5809, %v5805
    %v5811 = vmul.f32 1.0, %v5810
    %v5812 = vrcp.pop %v5766
    %v5813 = vmul.f32 %v5766, %v5812
    %v5814 = vsub.f32 1.0, %v5813
    %v5815 = vmul.f32 %v5812, %v5814
    %v5816 = vadd.f32 %v5812, %v5815
    %vm5817 = vweird.f32 %v5766
    %vm5818 = vweird.f32 %v5812
    %vm5819 = vmor %vm5817, %vm5818
    %v5820 = vsel %vm5819, %v5812, %v5816
    %v5821 = vand.u32 2147483647, %v5766
    %vm5822 = vcmp.eq.f32.partialorder %v5821, 8.507059e+37
    %v5823 = vand.u32 %v5766, 2147483648
    %v5824 = vor.u32 1.1754944e-38, %v5823
    %v5825 = vsel %vm5822, %v5824, %v5820
    %v5826 = vmul.f32 1.0, %v5825
    %v5827 = vld [vmem:[#allocation3] sm:$0xff]
    %v5828 = vld [vmem:[#allocation3 + $0x8] sm:$0xff]
    %v5829 = vld [vmem:[#allocation3 + $0x10] sm:$0xff]
    %v5830 = vld [vmem:[#allocation3 + $0x18] sm:$0xff]
    %v5831 = vmul.f32 %v5701, %v5827
    %v5832 = vmul.f32 %v5716, %v5828
    %v5833 = vmul.f32 %v5731, %v5829
    %v5834 = vmul.f32 %v5746, %v5830
    %v5835 = vmul.f32 %v5625, %v5747
    %v5836 = vmul.f32 %v5640, %v5748
    %v5837 = vmul.f32 %v5655, %v5749
    %v5838 = vmul.f32 %v5670, %v5750
    %v5839 = vadd.f32 %v5831, %v5835
    %v5840 = vadd.f32 %v5832, %v5836
    %v5841 = vadd.f32 %v5833, %v5837
    %v5842 = vadd.f32 %v5834, %v5838
    %v5843 = vtanh.pop %v5839
    %v5844 = vtanh.pop %v5840
    %v5845 = vtanh.pop %v5841
    %v5846 = vtanh.pop %v5842
    %v5847 = vmul.f32 %v5781, %v5843
    %v5848 = vmul.f32 %v5796, %v5844
    %v5849 = vmul.f32 %v5811, %v5845
    %v5850 = vmul.f32 %v5826, %v5846
    %5851 = vst [vmem:[#allocation3] sm:$0xff] %v5839
    %5852 = vst [vmem:[#allocation3 + $0x8] sm:$0xff] %v5840
    %5853 = vst [vmem:[#allocation3 + $0x10] sm:$0xff] %v5841
    %5854 = vst [vmem:[#allocation3 + $0x18] sm:$0xff] %v5842
    %5855 = vst [vmem:[#allocation2] sm:$0xff] %v5847
    %5856 = vst [vmem:[#allocation2 + $0x8] sm:$0xff] %v5848
    %5857 = vst [vmem:[#allocation2 + $0x10] sm:$0xff] %v5849
    %5858 = vst [vmem:[#allocation2 + $0x18] sm:$0xff] %v5850
    %v5859 = vld [vmem:[%s862] sm:$0xff]
    %v5860 = vld [vmem:[%s862 + $0x8] sm:$0xff]
    %v5861 = vld [vmem:[%s862 + $0x10] sm:$0xff]
    %v5862 = vld [vmem:[%s862 + $0x18] sm:$0xff]
    %v5863 = vld [vmem:[%s862 + $0x20] sm:$0xff]
    %v5864 = vld [vmem:[%s862 + $0x28] sm:$0xff]
    %v5865 = vld [vmem:[%s862 + $0x30] sm:$0xff]
    %v5866 = vld [vmem:[%s862 + $0x38] sm:$0xff]
    %v5867 = vld [vmem:[%s862 + $0x40] sm:$0xff]
    %v5868 = vld [vmem:[%s862 + $0x48] sm:$0xff]
    %v5869 = vld [vmem:[%s862 + $0x50] sm:$0xff]
    %v5870 = vld [vmem:[%s862 + $0x58] sm:$0xff]
    %v5871 = vld [vmem:[%s862 + $0x60] sm:$0xff]
    %v5872 = vld [vmem:[%s862 + $0x68] sm:$0xff]
    %v5873 = vld [vmem:[%s862 + $0x70] sm:$0xff]
    %v5874 = vld [vmem:[%s862 + $0x78] sm:$0xff]
    %v5875 = vld [vmem:[#allocation4] sm:$0xff]
    %v5876 = vld [vmem:[#allocation4 + $0x8] sm:$0xff]
    %v5877 = vld [vmem:[#allocation4 + $0x10] sm:$0xff]
    %v5878 = vld [vmem:[#allocation4 + $0x18] sm:$0xff]
    %v5879 = vpack.c.bf16 %v5876, %v5875
    %v5880 = vpack.c.bf16 %v5878, %v5877
    %5881 = vmatpush.bf16.msra.mxu0 0
    %5882 = vmatpush.bf16.msra.mxu0 0
    %5883 = vmatpush.bf16.msra.mxu0 0
    %5884 = vmatpush.bf16.msra.mxu0 0
    %5885 = vmatpush.bf16.msra.mxu0 0
    %5886 = vmatpush.bf16.msra.mxu0 0
    %5887 = vmatpush.bf16.msra.mxu0 %v5880
    %5888 = vmatpush.bf16.msra.mxu0 %v5879
    %5889 = vmatmul.bf16.gmra.mxu0 %v2043
    %v5890 = vpop.f32.mrf.mxu0
    %v5891 = vadd.f32 0.0, %v5890
    %v5892 = vpop.f32.mrf.mxu0
    %v5893 = vadd.f32 0.0, %v5892
    %5894 = vmatmul.bf16.gmra.mxu0 %v2046
    %v5895 = vpop.f32.mrf.mxu0
    %v5896 = vadd.f32 0.0, %v5895
    %v5897 = vpop.f32.mrf.mxu0
    %v5898 = vadd.f32 0.0, %v5897
    %5899 = vmatmul.bf16.gmra.mxu0 %v2049
    %v5900 = vpop.f32.mrf.mxu0
    %v5901 = vadd.f32 0.0, %v5900
    %v5902 = vpop.f32.mrf.mxu0
    %v5903 = vadd.f32 0.0, %v5902
    %5904 = vmatmul.bf16.gmra.mxu0 %v2052
    %v5905 = vpop.f32.mrf.mxu0
    %v5906 = vadd.f32 0.0, %v5905
    %v5907 = vpop.f32.mrf.mxu0
    %v5908 = vadd.f32 0.0, %v5907
    %5909 = vmatmul.bf16.gmra.mxu0 %v2055
    %v5910 = vpop.f32.mrf.mxu0
    %v5911 = vadd.f32 0.0, %v5910
    %v5912 = vpop.f32.mrf.mxu0
    %v5913 = vadd.f32 0.0, %v5912
    %5914 = vmatmul.bf16.gmra.mxu0 %v2058
    %v5915 = vpop.f32.mrf.mxu0
    %v5916 = vadd.f32 0.0, %v5915
    %v5917 = vpop.f32.mrf.mxu0
    %v5918 = vadd.f32 0.0, %v5917
    %5919 = vmatmul.bf16.gmra.mxu0 %v2061
    %v5920 = vpop.f32.mrf.mxu0
    %v5921 = vadd.f32 0.0, %v5920
    %v5922 = vpop.f32.mrf.mxu0
    %v5923 = vadd.f32 0.0, %v5922
    %5924 = vmatmul.bf16.gmra.mxu0 %v2064
    %v5925 = vpop.f32.mrf.mxu0
    %v5926 = vadd.f32 0.0, %v5925
    %v5927 = vpop.f32.mrf.mxu0
    %v5928 = vadd.f32 0.0, %v5927
    %5929 = vdwg.mxu0
    %v5930 = vadd.f32 %v5859, %v5891
    %v5931 = vadd.f32 %v5860, %v5893
    %v5932 = vadd.f32 %v5861, %v5896
    %v5933 = vadd.f32 %v5862, %v5898
    %v5934 = vadd.f32 %v5863, %v5901
    %v5935 = vadd.f32 %v5864, %v5903
    %v5936 = vadd.f32 %v5865, %v5906
    %v5937 = vadd.f32 %v5866, %v5908
    %v5938 = vadd.f32 %v5867, %v5911
    %v5939 = vadd.f32 %v5868, %v5913
    %v5940 = vadd.f32 %v5869, %v5916
    %v5941 = vadd.f32 %v5870, %v5918
    %v5942 = vadd.f32 %v5871, %v5921
    %v5943 = vadd.f32 %v5872, %v5923
    %v5944 = vadd.f32 %v5873, %v5926
    %v5945 = vadd.f32 %v5874, %v5928
    %v5946 = vxor.u32 %v5930, 2147483648
    %v5947 = vxor.u32 %v5931, 2147483648
    %v5948 = vxor.u32 %v5932, 2147483648
    %v5949 = vxor.u32 %v5933, 2147483648
    %v5950 = vmul.f32 %v5946, 1.442695
    %v5951 = vpow.pop %v5950
    %v5952 = vmul.f32 %v5947, 1.442695
    %v5953 = vpow.pop %v5952
    %v5954 = vmul.f32 %v5948, 1.442695
    %v5955 = vpow.pop %v5954
    %v5956 = vmul.f32 %v5949, 1.442695
    %v5957 = vpow.pop %v5956
    %v5958 = vadd.f32 %v5951, 1.0
    %v5959 = vadd.f32 %v5953, 1.0
    %v5960 = vadd.f32 %v5955, 1.0
    %v5961 = vadd.f32 %v5957, 1.0
    %v5962 = vrcp.pop %v5958
    %v5963 = vmul.f32 %v5958, %v5962
    %v5964 = vsub.f32 1.0, %v5963
    %v5965 = vmul.f32 %v5962, %v5964
    %v5966 = vadd.f32 %v5962, %v5965
    %vm5967 = vweird.f32 %v5958
    %vm5968 = vweird.f32 %v5962
    %vm5969 = vmor %vm5967, %vm5968
    %v5970 = vsel %vm5969, %v5962, %v5966
    %v5971 = vand.u32 2147483647, %v5958
    %vm5972 = vcmp.eq.f32.partialorder %v5971, 8.507059e+37
    %v5973 = vand.u32 %v5958, 2147483648
    %v5974 = vor.u32 1.1754944e-38, %v5973
    %v5975 = vsel %vm5972, %v5974, %v5970
    %v5976 = vmul.f32 1.0, %v5975
    %v5977 = vrcp.pop %v5959
    %v5978 = vmul.f32 %v5959, %v5977
    %v5979 = vsub.f32 1.0, %v5978
    %v5980 = vmul.f32 %v5977, %v5979
    %v5981 = vadd.f32 %v5977, %v5980
    %vm5982 = vweird.f32 %v5959
    %vm5983 = vweird.f32 %v5977
    %vm5984 = vmor %vm5982, %vm5983
    %v5985 = vsel %vm5984, %v5977, %v5981
    %v5986 = vand.u32 2147483647, %v5959
    %vm5987 = vcmp.eq.f32.partialorder %v5986, 8.507059e+37
    %v5988 = vand.u32 %v5959, 2147483648
    %v5989 = vor.u32 1.1754944e-38, %v5988
    %v5990 = vsel %vm5987, %v5989, %v5985
    %v5991 = vmul.f32 1.0, %v5990
    %v5992 = vrcp.pop %v5960
    %v5993 = vmul.f32 %v5960, %v5992
    %v5994 = vsub.f32 1.0, %v5993
    %v5995 = vmul.f32 %v5992, %v5994
    %v5996 = vadd.f32 %v5992, %v5995
    %vm5997 = vweird.f32 %v5960
    %vm5998 = vweird.f32 %v5992
    %vm5999 = vmor %vm5997, %vm5998
    %v6000 = vsel %vm5999, %v5992, %v5996
    %v6001 = vand.u32 2147483647, %v5960
    %vm6002 = vcmp.eq.f32.partialorder %v6001, 8.507059e+37
    %v6003 = vand.u32 %v5960, 2147483648
    %v6004 = vor.u32 1.1754944e-38, %v6003
    %v6005 = vsel %vm6002, %v6004, %v6000
    %v6006 = vmul.f32 1.0, %v6005
    %v6007 = vrcp.pop %v5961
    %v6008 = vmul.f32 %v5961, %v6007
    %v6009 = vsub.f32 1.0, %v6008
    %v6010 = vmul.f32 %v6007, %v6009
    %v6011 = vadd.f32 %v6007, %v6010
    %vm6012 = vweird.f32 %v5961
    %vm6013 = vweird.f32 %v6007
    %vm6014 = vmor %vm6012, %vm6013
    %v6015 = vsel %vm6014, %v6007, %v6011
    %v6016 = vand.u32 2147483647, %v5961
    %vm6017 = vcmp.eq.f32.partialorder %v6016, 8.507059e+37
    %v6018 = vand.u32 %v5961, 2147483648
    %v6019 = vor.u32 1.1754944e-38, %v6018
    %v6020 = vsel %vm6017, %v6019, %v6015
    %v6021 = vmul.f32 1.0, %v6020
    %v6022 = vxor.u32 %v5934, 2147483648
    %v6023 = vxor.u32 %v5935, 2147483648
    %v6024 = vxor.u32 %v5936, 2147483648
    %v6025 = vxor.u32 %v5937, 2147483648
    %v6026 = vmul.f32 %v6022, 1.442695
    %v6027 = vpow.pop %v6026
    %v6028 = vmul.f32 %v6023, 1.442695
    %v6029 = vpow.pop %v6028
    %v6030 = vmul.f32 %v6024, 1.442695
    %v6031 = vpow.pop %v6030
    %v6032 = vmul.f32 %v6025, 1.442695
    %v6033 = vpow.pop %v6032
    %v6034 = vadd.f32 %v6027, 1.0
    %v6035 = vadd.f32 %v6029, 1.0
    %v6036 = vadd.f32 %v6031, 1.0
    %v6037 = vadd.f32 %v6033, 1.0
    %v6038 = vrcp.pop %v6034
    %v6039 = vmul.f32 %v6034, %v6038
    %v6040 = vsub.f32 1.0, %v6039
    %v6041 = vmul.f32 %v6038, %v6040
    %v6042 = vadd.f32 %v6038, %v6041
    %vm6043 = vweird.f32 %v6034
    %vm6044 = vweird.f32 %v6038
    %vm6045 = vmor %vm6043, %vm6044
    %v6046 = vsel %vm6045, %v6038, %v6042
    %v6047 = vand.u32 2147483647, %v6034
    %vm6048 = vcmp.eq.f32.partialorder %v6047, 8.507059e+37
    %v6049 = vand.u32 %v6034, 2147483648
    %v6050 = vor.u32 1.1754944e-38, %v6049
    %v6051 = vsel %vm6048, %v6050, %v6046
    %v6052 = vmul.f32 1.0, %v6051
    %v6053 = vrcp.pop %v6035
    %v6054 = vmul.f32 %v6035, %v6053
    %v6055 = vsub.f32 1.0, %v6054
    %v6056 = vmul.f32 %v6053, %v6055
    %v6057 = vadd.f32 %v6053, %v6056
    %vm6058 = vweird.f32 %v6035
    %vm6059 = vweird.f32 %v6053
    %vm6060 = vmor %vm6058, %vm6059
    %v6061 = vsel %vm6060, %v6053, %v6057
    %v6062 = vand.u32 2147483647, %v6035
    %vm6063 = vcmp.eq.f32.partialorder %v6062, 8.507059e+37
    %v6064 = vand.u32 %v6035, 2147483648
    %v6065 = vor.u32 1.1754944e-38, %v6064
    %v6066 = vsel %vm6063, %v6065, %v6061
    %v6067 = vmul.f32 1.0, %v6066
    %v6068 = vrcp.pop %v6036
    %v6069 = vmul.f32 %v6036, %v6068
    %v6070 = vsub.f32 1.0, %v6069
    %v6071 = vmul.f32 %v6068, %v6070
    %v6072 = vadd.f32 %v6068, %v6071
    %vm6073 = vweird.f32 %v6036
    %vm6074 = vweird.f32 %v6068
    %vm6075 = vmor %vm6073, %vm6074
    %v6076 = vsel %vm6075, %v6068, %v6072
    %v6077 = vand.u32 2147483647, %v6036
    %vm6078 = vcmp.eq.f32.partialorder %v6077, 8.507059e+37
    %v6079 = vand.u32 %v6036, 2147483648
    %v6080 = vor.u32 1.1754944e-38, %v6079
    %v6081 = vsel %vm6078, %v6080, %v6076
    %v6082 = vmul.f32 1.0, %v6081
    %v6083 = vrcp.pop %v6037
    %v6084 = vmul.f32 %v6037, %v6083
    %v6085 = vsub.f32 1.0, %v6084
    %v6086 = vmul.f32 %v6083, %v6085
    %v6087 = vadd.f32 %v6083, %v6086
    %vm6088 = vweird.f32 %v6037
    %vm6089 = vweird.f32 %v6083
    %vm6090 = vmor %vm6088, %vm6089
    %v6091 = vsel %vm6090, %v6083, %v6087
    %v6092 = vand.u32 2147483647, %v6037
    %vm6093 = vcmp.eq.f32.partialorder %v6092, 8.507059e+37
    %v6094 = vand.u32 %v6037, 2147483648
    %v6095 = vor.u32 1.1754944e-38, %v6094
    %v6096 = vsel %vm6093, %v6095, %v6091
    %v6097 = vmul.f32 1.0, %v6096
    %v6098 = vtanh.pop %v5938
    %v6099 = vtanh.pop %v5939
    %v6100 = vtanh.pop %v5940
    %v6101 = vtanh.pop %v5941
    %v6102 = vxor.u32 %v5942, 2147483648
    %v6103 = vxor.u32 %v5943, 2147483648
    %v6104 = vxor.u32 %v5944, 2147483648
    %v6105 = vxor.u32 %v5945, 2147483648
    %v6106 = vmul.f32 %v6102, 1.442695
    %v6107 = vpow.pop %v6106
    %v6108 = vmul.f32 %v6103, 1.442695
    %v6109 = vpow.pop %v6108
    %v6110 = vmul.f32 %v6104, 1.442695
    %v6111 = vpow.pop %v6110
    %v6112 = vmul.f32 %v6105, 1.442695
    %v6113 = vpow.pop %v6112
    %v6114 = vadd.f32 %v6107, 1.0
    %v6115 = vadd.f32 %v6109, 1.0
    %v6116 = vadd.f32 %v6111, 1.0
    %v6117 = vadd.f32 %v6113, 1.0
    %v6118 = vrcp.pop %v6114
    %v6119 = vmul.f32 %v6114, %v6118
    %v6120 = vsub.f32 1.0, %v6119
    %v6121 = vmul.f32 %v6118, %v6120
    %v6122 = vadd.f32 %v6118, %v6121
    %vm6123 = vweird.f32 %v6114
    %vm6124 = vweird.f32 %v6118
    %vm6125 = vmor %vm6123, %vm6124
    %v6126 = vsel %vm6125, %v6118, %v6122
    %v6127 = vand.u32 2147483647, %v6114
    %vm6128 = vcmp.eq.f32.partialorder %v6127, 8.507059e+37
    %v6129 = vand.u32 %v6114, 2147483648
    %v6130 = vor.u32 1.1754944e-38, %v6129
    %v6131 = vsel %vm6128, %v6130, %v6126
    %v6132 = vmul.f32 1.0, %v6131
    %v6133 = vrcp.pop %v6115
    %v6134 = vmul.f32 %v6115, %v6133
    %v6135 = vsub.f32 1.0, %v6134
    %v6136 = vmul.f32 %v6133, %v6135
    %v6137 = vadd.f32 %v6133, %v6136
    %vm6138 = vweird.f32 %v6115
    %vm6139 = vweird.f32 %v6133
    %vm6140 = vmor %vm6138, %vm6139
    %v6141 = vsel %vm6140, %v6133, %v6137
    %v6142 = vand.u32 2147483647, %v6115
    %vm6143 = vcmp.eq.f32.partialorder %v6142, 8.507059e+37
    %v6144 = vand.u32 %v6115, 2147483648
    %v6145 = vor.u32 1.1754944e-38, %v6144
    %v6146 = vsel %vm6143, %v6145, %v6141
    %v6147 = vmul.f32 1.0, %v6146
    %v6148 = vrcp.pop %v6116
    %v6149 = vmul.f32 %v6116, %v6148
    %v6150 = vsub.f32 1.0, %v6149
    %v6151 = vmul.f32 %v6148, %v6150
    %v6152 = vadd.f32 %v6148, %v6151
    %vm6153 = vweird.f32 %v6116
    %vm6154 = vweird.f32 %v6148
    %vm6155 = vmor %vm6153, %vm6154
    %v6156 = vsel %vm6155, %v6148, %v6152
    %v6157 = vand.u32 2147483647, %v6116
    %vm6158 = vcmp.eq.f32.partialorder %v6157, 8.507059e+37
    %v6159 = vand.u32 %v6116, 2147483648
    %v6160 = vor.u32 1.1754944e-38, %v6159
    %v6161 = vsel %vm6158, %v6160, %v6156
    %v6162 = vmul.f32 1.0, %v6161
    %v6163 = vrcp.pop %v6117
    %v6164 = vmul.f32 %v6117, %v6163
    %v6165 = vsub.f32 1.0, %v6164
    %v6166 = vmul.f32 %v6163, %v6165
    %v6167 = vadd.f32 %v6163, %v6166
    %vm6168 = vweird.f32 %v6117
    %vm6169 = vweird.f32 %v6163
    %vm6170 = vmor %vm6168, %vm6169
    %v6171 = vsel %vm6170, %v6163, %v6167
    %v6172 = vand.u32 2147483647, %v6117
    %vm6173 = vcmp.eq.f32.partialorder %v6172, 8.507059e+37
    %v6174 = vand.u32 %v6117, 2147483648
    %v6175 = vor.u32 1.1754944e-38, %v6174
    %v6176 = vsel %vm6173, %v6175, %v6171
    %v6177 = vmul.f32 1.0, %v6176
    %v6178 = vld [vmem:[#allocation5] sm:$0xff]
    %v6179 = vld [vmem:[#allocation5 + $0x8] sm:$0xff]
    %v6180 = vld [vmem:[#allocation5 + $0x10] sm:$0xff]
    %v6181 = vld [vmem:[#allocation5 + $0x18] sm:$0xff]
    %v6182 = vmul.f32 %v6052, %v6178
    %v6183 = vmul.f32 %v6067, %v6179
    %v6184 = vmul.f32 %v6082, %v6180
    %v6185 = vmul.f32 %v6097, %v6181
    %v6186 = vmul.f32 %v5976, %v6098
    %v6187 = vmul.f32 %v5991, %v6099
    %v6188 = vmul.f32 %v6006, %v6100
    %v6189 = vmul.f32 %v6021, %v6101
    %v6190 = vadd.f32 %v6182, %v6186
    %v6191 = vadd.f32 %v6183, %v6187
    %v6192 = vadd.f32 %v6184, %v6188
    %v6193 = vadd.f32 %v6185, %v6189
    %v6194 = vtanh.pop %v6190
    %v6195 = vtanh.pop %v6191
    %v6196 = vtanh.pop %v6192
    %v6197 = vtanh.pop %v6193
    %v6198 = vmul.f32 %v6132, %v6194
    %v6199 = vmul.f32 %v6147, %v6195
    %v6200 = vmul.f32 %v6162, %v6196
    %v6201 = vmul.f32 %v6177, %v6197
    %6202 = vst [vmem:[#allocation5] sm:$0xff] %v6190
    %6203 = vst [vmem:[#allocation5 + $0x8] sm:$0xff] %v6191
    %6204 = vst [vmem:[#allocation5 + $0x10] sm:$0xff] %v6192
    %6205 = vst [vmem:[#allocation5 + $0x18] sm:$0xff] %v6193
    %6206 = vst [vmem:[#allocation4] sm:$0xff] %v6198
    %6207 = vst [vmem:[#allocation4 + $0x8] sm:$0xff] %v6199
    %6208 = vst [vmem:[#allocation4 + $0x10] sm:$0xff] %v6200
    %6209 = vst [vmem:[#allocation4 + $0x18] sm:$0xff] %v6201
    %v6210 = vpack.c.bf16 %v5848, %v5847
    %v6211 = vpack.c.bf16 %v5850, %v5849
    %6212 = vmatpush.bf16.msra.mxu0 0
    %6213 = vmatpush.bf16.msra.mxu0 0
    %6214 = vmatpush.bf16.msra.mxu0 0
    %6215 = vmatpush.bf16.msra.mxu0 0
    %6216 = vmatpush.bf16.msra.mxu0 0
    %6217 = vmatpush.bf16.msra.mxu0 0
    %6218 = vmatpush.bf16.msra.mxu0 %v6211
    %6219 = vmatpush.bf16.msra.mxu0 %v6210
    %6220 = vmatmul.bf16.gmra.mxu0 %v2410
    %v6221 = vpop.f32.mrf.mxu0
    %v6222 = vadd.f32 0.0, %v6221
    %v6223 = vpop.f32.mrf.mxu0
    %v6224 = vadd.f32 0.0, %v6223
    %6225 = vmatmul.bf16.gmra.mxu0 %v2413
    %v6226 = vpop.f32.mrf.mxu0
    %v6227 = vadd.f32 0.0, %v6226
    %v6228 = vpop.f32.mrf.mxu0
    %v6229 = vadd.f32 0.0, %v6228
    %6230 = vdwg.mxu0
    %v6231 = vpack.c.bf16 %v6199, %v6198
    %v6232 = vpack.c.bf16 %v6201, %v6200
    %6233 = vmatpush.bf16.msra.mxu0 0
    %6234 = vmatpush.bf16.msra.mxu0 0
    %6235 = vmatpush.bf16.msra.mxu0 0
    %6236 = vmatpush.bf16.msra.mxu0 0
    %6237 = vmatpush.bf16.msra.mxu0 0
    %6238 = vmatpush.bf16.msra.mxu0 0
    %6239 = vmatpush.bf16.msra.mxu0 %v6232
    %6240 = vmatpush.bf16.msra.mxu0 %v6231
    %6241 = vmatmul.bf16.gmra.mxu0 %v2449
    %v6242 = vpop.f32.mrf.mxu0
    %v6243 = vadd.f32 0.0, %v6242
    %v6244 = vpop.f32.mrf.mxu0
    %v6245 = vadd.f32 0.0, %v6244
    %6246 = vmatmul.bf16.gmra.mxu0 %v2452
    %v6247 = vpop.f32.mrf.mxu0
    %v6248 = vadd.f32 0.0, %v6247
    %v6249 = vpop.f32.mrf.mxu0
    %v6250 = vadd.f32 0.0, %v6249
    %6251 = vdwg.mxu0
    %v6252 = vld [vmem:[%s3981] sm:$0xff]
    %v6253 = vld [vmem:[%s3981 + $0x8] sm:$0xff]
    %v6254 = vld [vmem:[%s3981 + $0x10] sm:$0xff]
    %v6255 = vld [vmem:[%s3981 + $0x18] sm:$0xff]
    %v6256 = vadd.f32 %v6252, %v6222
    %v6257 = vadd.f32 %v6253, %v6224
    %v6258 = vadd.f32 %v6254, %v6227
    %v6259 = vadd.f32 %v6255, %v6229
    %6260 = vst [vmem:[%s3981] sm:$0xff] %v6256
    %6261 = vst [vmem:[%s3981 + $0x8] sm:$0xff] %v6257
    %6262 = vst [vmem:[%s3981 + $0x10] sm:$0xff] %v6258
    %6263 = vst [vmem:[%s3981 + $0x18] sm:$0xff] %v6259
    %v6264 = vld [vmem:[%s3957] sm:$0xff]
    %v6265 = vld [vmem:[%s3957 + $0x8] sm:$0xff]
    %v6266 = vld [vmem:[%s3957 + $0x10] sm:$0xff]
    %v6267 = vld [vmem:[%s3957 + $0x18] sm:$0xff]
    %v6268 = vadd.f32 %v6264, %v6243
    %v6269 = vadd.f32 %v6265, %v6245
    %v6270 = vadd.f32 %v6266, %v6248
    %v6271 = vadd.f32 %v6267, %v6250
    %6272 = vst [vmem:[%s3957] sm:$0xff] %v6268
    %6273 = vst [vmem:[%s3957 + $0x8] sm:$0xff] %v6269
    %6274 = vst [vmem:[%s3957 + $0x10] sm:$0xff] %v6270
    %6275 = vst [vmem:[%s3957 + $0x18] sm:$0xff] %v6271
    %v6276 = vld [vmem:[%s1344] sm:$0xff]
    %v6277 = vld [vmem:[%s1344 + $0x8] sm:$0xff]
    %v6278 = vld [vmem:[%s1344 + $0x10] sm:$0xff]
    %v6279 = vld [vmem:[%s1344 + $0x18] sm:$0xff]
    %v6280 = vld [vmem:[%s1344 + $0x20] sm:$0xff]
    %v6281 = vld [vmem:[%s1344 + $0x28] sm:$0xff]
    %v6282 = vld [vmem:[%s1344 + $0x30] sm:$0xff]
    %v6283 = vld [vmem:[%s1344 + $0x38] sm:$0xff]
    %v6284 = vld [vmem:[%s1344 + $0x40] sm:$0xff]
    %v6285 = vld [vmem:[%s1344 + $0x48] sm:$0xff]
    %v6286 = vld [vmem:[%s1344 + $0x50] sm:$0xff]
    %v6287 = vld [vmem:[%s1344 + $0x58] sm:$0xff]
    %v6288 = vld [vmem:[%s1344 + $0x60] sm:$0xff]
    %v6289 = vld [vmem:[%s1344 + $0x68] sm:$0xff]
    %v6290 = vld [vmem:[%s1344 + $0x70] sm:$0xff]
    %v6291 = vld [vmem:[%s1344 + $0x78] sm:$0xff]
    %v6292 = vld [vmem:[#allocation2] sm:$0xff]
    %v6293 = vld [vmem:[#allocation2 + $0x8] sm:$0xff]
    %v6294 = vld [vmem:[#allocation2 + $0x10] sm:$0xff]
    %v6295 = vld [vmem:[#allocation2 + $0x18] sm:$0xff]
    %v6296 = vpack.c.bf16 %v6293, %v6292
    %v6297 = vpack.c.bf16 %v6295, %v6294
    %6298 = vmatpush.bf16.msra.mxu0 0
    %6299 = vmatpush.bf16.msra.mxu0 0
    %6300 = vmatpush.bf16.msra.mxu0 0
    %6301 = vmatpush.bf16.msra.mxu0 0
    %6302 = vmatpush.bf16.msra.mxu0 0
    %6303 = vmatpush.bf16.msra.mxu0 0
    %6304 = vmatpush.bf16.msra.mxu0 %v6297
    %6305 = vmatpush.bf16.msra.mxu0 %v6296
    %6306 = vmatmul.bf16.gmra.mxu0 %v1628
    %v6307 = vpop.f32.mrf.mxu0
    %v6308 = vadd.f32 0.0, %v6307
    %v6309 = vpop.f32.mrf.mxu0
    %v6310 = vadd.f32 0.0, %v6309
    %6311 = vmatmul.bf16.gmra.mxu0 %v1631
    %v6312 = vpop.f32.mrf.mxu0
    %v6313 = vadd.f32 0.0, %v6312
    %v6314 = vpop.f32.mrf.mxu0
    %v6315 = vadd.f32 0.0, %v6314
    %6316 = vmatmul.bf16.gmra.mxu0 %v1634
    %v6317 = vpop.f32.mrf.mxu0
    %v6318 = vadd.f32 0.0, %v6317
    %v6319 = vpop.f32.mrf.mxu0
    %v6320 = vadd.f32 0.0, %v6319
    %6321 = vmatmul.bf16.gmra.mxu0 %v1637
    %v6322 = vpop.f32.mrf.mxu0
    %v6323 = vadd.f32 0.0, %v6322
    %v6324 = vpop.f32.mrf.mxu0
    %v6325 = vadd.f32 0.0, %v6324
    %6326 = vmatmul.bf16.gmra.mxu0 %v1640
    %v6327 = vpop.f32.mrf.mxu0
    %v6328 = vadd.f32 0.0, %v6327
    %v6329 = vpop.f32.mrf.mxu0
    %v6330 = vadd.f32 0.0, %v6329
    %6331 = vmatmul.bf16.gmra.mxu0 %v1643
    %v6332 = vpop.f32.mrf.mxu0
    %v6333 = vadd.f32 0.0, %v6332
    %v6334 = vpop.f32.mrf.mxu0
    %v6335 = vadd.f32 0.0, %v6334
    %6336 = vmatmul.bf16.gmra.mxu0 %v1646
    %v6337 = vpop.f32.mrf.mxu0
    %v6338 = vadd.f32 0.0, %v6337
    %v6339 = vpop.f32.mrf.mxu0
    %v6340 = vadd.f32 0.0, %v6339
    %6341 = vmatmul.bf16.gmra.mxu0 %v1649
    %v6342 = vpop.f32.mrf.mxu0
    %v6343 = vadd.f32 0.0, %v6342
    %v6344 = vpop.f32.mrf.mxu0
    %v6345 = vadd.f32 0.0, %v6344
    %6346 = vdwg.mxu0
    %v6347 = vadd.f32 %v6276, %v6308
    %v6348 = vadd.f32 %v6277, %v6310
    %v6349 = vadd.f32 %v6278, %v6313
    %v6350 = vadd.f32 %v6279, %v6315
    %v6351 = vadd.f32 %v6280, %v6318
    %v6352 = vadd.f32 %v6281, %v6320
    %v6353 = vadd.f32 %v6282, %v6323
    %v6354 = vadd.f32 %v6283, %v6325
    %v6355 = vadd.f32 %v6284, %v6328
    %v6356 = vadd.f32 %v6285, %v6330
    %v6357 = vadd.f32 %v6286, %v6333
    %v6358 = vadd.f32 %v6287, %v6335
    %v6359 = vadd.f32 %v6288, %v6338
    %v6360 = vadd.f32 %v6289, %v6340
    %v6361 = vadd.f32 %v6290, %v6343
    %v6362 = vadd.f32 %v6291, %v6345
    %v6363 = vxor.u32 %v6347, 2147483648
    %v6364 = vxor.u32 %v6348, 2147483648
    %v6365 = vxor.u32 %v6349, 2147483648
    %v6366 = vxor.u32 %v6350, 2147483648
    %v6367 = vmul.f32 %v6363, 1.442695
    %v6368 = vpow.pop %v6367
    %v6369 = vmul.f32 %v6364, 1.442695
    %v6370 = vpow.pop %v6369
    %v6371 = vmul.f32 %v6365, 1.442695
    %v6372 = vpow.pop %v6371
    %v6373 = vmul.f32 %v6366, 1.442695
    %v6374 = vpow.pop %v6373
    %v6375 = vadd.f32 %v6368, 1.0
    %v6376 = vadd.f32 %v6370, 1.0
    %v6377 = vadd.f32 %v6372, 1.0
    %v6378 = vadd.f32 %v6374, 1.0
    %v6379 = vrcp.pop %v6375
    %v6380 = vmul.f32 %v6375, %v6379
    %v6381 = vsub.f32 1.0, %v6380
    %v6382 = vmul.f32 %v6379, %v6381
    %v6383 = vadd.f32 %v6379, %v6382
    %vm6384 = vweird.f32 %v6375
    %vm6385 = vweird.f32 %v6379
    %vm6386 = vmor %vm6384, %vm6385
    %v6387 = vsel %vm6386, %v6379, %v6383
    %v6388 = vand.u32 2147483647, %v6375
    %vm6389 = vcmp.eq.f32.partialorder %v6388, 8.507059e+37
    %v6390 = vand.u32 %v6375, 2147483648
    %v6391 = vor.u32 1.1754944e-38, %v6390
    %v6392 = vsel %vm6389, %v6391, %v6387
    %v6393 = vmul.f32 1.0, %v6392
    %v6394 = vrcp.pop %v6376
    %v6395 = vmul.f32 %v6376, %v6394
    %v6396 = vsub.f32 1.0, %v6395
    %v6397 = vmul.f32 %v6394, %v6396
    %v6398 = vadd.f32 %v6394, %v6397
    %vm6399 = vweird.f32 %v6376
    %vm6400 = vweird.f32 %v6394
    %vm6401 = vmor %vm6399, %vm6400
    %v6402 = vsel %vm6401, %v6394, %v6398
    %v6403 = vand.u32 2147483647, %v6376
    %vm6404 = vcmp.eq.f32.partialorder %v6403, 8.507059e+37
    %v6405 = vand.u32 %v6376, 2147483648
    %v6406 = vor.u32 1.1754944e-38, %v6405
    %v6407 = vsel %vm6404, %v6406, %v6402
    %v6408 = vmul.f32 1.0, %v6407
    %v6409 = vrcp.pop %v6377
    %v6410 = vmul.f32 %v6377, %v6409
    %v6411 = vsub.f32 1.0, %v6410
    %v6412 = vmul.f32 %v6409, %v6411
    %v6413 = vadd.f32 %v6409, %v6412
    %vm6414 = vweird.f32 %v6377
    %vm6415 = vweird.f32 %v6409
    %vm6416 = vmor %vm6414, %vm6415
    %v6417 = vsel %vm6416, %v6409, %v6413
    %v6418 = vand.u32 2147483647, %v6377
    %vm6419 = vcmp.eq.f32.partialorder %v6418, 8.507059e+37
    %v6420 = vand.u32 %v6377, 2147483648
    %v6421 = vor.u32 1.1754944e-38, %v6420
    %v6422 = vsel %vm6419, %v6421, %v6417
    %v6423 = vmul.f32 1.0, %v6422
    %v6424 = vrcp.pop %v6378
    %v6425 = vmul.f32 %v6378, %v6424
    %v6426 = vsub.f32 1.0, %v6425
    %v6427 = vmul.f32 %v6424, %v6426
    %v6428 = vadd.f32 %v6424, %v6427
    %vm6429 = vweird.f32 %v6378
    %vm6430 = vweird.f32 %v6424
    %vm6431 = vmor %vm6429, %vm6430
    %v6432 = vsel %vm6431, %v6424, %v6428
    %v6433 = vand.u32 2147483647, %v6378
    %vm6434 = vcmp.eq.f32.partialorder %v6433, 8.507059e+37
    %v6435 = vand.u32 %v6378, 2147483648
    %v6436 = vor.u32 1.1754944e-38, %v6435
    %v6437 = vsel %vm6434, %v6436, %v6432
    %v6438 = vmul.f32 1.0, %v6437
    %v6439 = vxor.u32 %v6351, 2147483648
    %v6440 = vxor.u32 %v6352, 2147483648
    %v6441 = vxor.u32 %v6353, 2147483648
    %v6442 = vxor.u32 %v6354, 2147483648
    %v6443 = vmul.f32 %v6439, 1.442695
    %v6444 = vpow.pop %v6443
    %v6445 = vmul.f32 %v6440, 1.442695
    %v6446 = vpow.pop %v6445
    %v6447 = vmul.f32 %v6441, 1.442695
    %v6448 = vpow.pop %v6447
    %v6449 = vmul.f32 %v6442, 1.442695
    %v6450 = vpow.pop %v6449
    %v6451 = vadd.f32 %v6444, 1.0
    %v6452 = vadd.f32 %v6446, 1.0
    %v6453 = vadd.f32 %v6448, 1.0
    %v6454 = vadd.f32 %v6450, 1.0
    %v6455 = vrcp.pop %v6451
    %v6456 = vmul.f32 %v6451, %v6455
    %v6457 = vsub.f32 1.0, %v6456
    %v6458 = vmul.f32 %v6455, %v6457
    %v6459 = vadd.f32 %v6455, %v6458
    %vm6460 = vweird.f32 %v6451
    %vm6461 = vweird.f32 %v6455
    %vm6462 = vmor %vm6460, %vm6461
    %v6463 = vsel %vm6462, %v6455, %v6459
    %v6464 = vand.u32 2147483647, %v6451
    %vm6465 = vcmp.eq.f32.partialorder %v6464, 8.507059e+37
    %v6466 = vand.u32 %v6451, 2147483648
    %v6467 = vor.u32 1.1754944e-38, %v6466
    %v6468 = vsel %vm6465, %v6467, %v6463
    %v6469 = vmul.f32 1.0, %v6468
    %v6470 = vrcp.pop %v6452
    %v6471 = vmul.f32 %v6452, %v6470
    %v6472 = vsub.f32 1.0, %v6471
    %v6473 = vmul.f32 %v6470, %v6472
    %v6474 = vadd.f32 %v6470, %v6473
    %vm6475 = vweird.f32 %v6452
    %vm6476 = vweird.f32 %v6470
    %vm6477 = vmor %vm6475, %vm6476
    %v6478 = vsel %vm6477, %v6470, %v6474
    %v6479 = vand.u32 2147483647, %v6452
    %vm6480 = vcmp.eq.f32.partialorder %v6479, 8.507059e+37
    %v6481 = vand.u32 %v6452, 2147483648
    %v6482 = vor.u32 1.1754944e-38, %v6481
    %v6483 = vsel %vm6480, %v6482, %v6478
    %v6484 = vmul.f32 1.0, %v6483
    %v6485 = vrcp.pop %v6453
    %v6486 = vmul.f32 %v6453, %v6485
    %v6487 = vsub.f32 1.0, %v6486
    %v6488 = vmul.f32 %v6485, %v6487
    %v6489 = vadd.f32 %v6485, %v6488
    %vm6490 = vweird.f32 %v6453
    %vm6491 = vweird.f32 %v6485
    %vm6492 = vmor %vm6490, %vm6491
    %v6493 = vsel %vm6492, %v6485, %v6489
    %v6494 = vand.u32 2147483647, %v6453
    %vm6495 = vcmp.eq.f32.partialorder %v6494, 8.507059e+37
    %v6496 = vand.u32 %v6453, 2147483648
    %v6497 = vor.u32 1.1754944e-38, %v6496
    %v6498 = vsel %vm6495, %v6497, %v6493
    %v6499 = vmul.f32 1.0, %v6498
    %v6500 = vrcp.pop %v6454
    %v6501 = vmul.f32 %v6454, %v6500
    %v6502 = vsub.f32 1.0, %v6501
    %v6503 = vmul.f32 %v6500, %v6502
    %v6504 = vadd.f32 %v6500, %v6503
    %vm6505 = vweird.f32 %v6454
    %vm6506 = vweird.f32 %v6500
    %vm6507 = vmor %vm6505, %vm6506
    %v6508 = vsel %vm6507, %v6500, %v6504
    %v6509 = vand.u32 2147483647, %v6454
    %vm6510 = vcmp.eq.f32.partialorder %v6509, 8.507059e+37
    %v6511 = vand.u32 %v6454, 2147483648
    %v6512 = vor.u32 1.1754944e-38, %v6511
    %v6513 = vsel %vm6510, %v6512, %v6508
    %v6514 = vmul.f32 1.0, %v6513
    %v6515 = vtanh.pop %v6355
    %v6516 = vtanh.pop %v6356
    %v6517 = vtanh.pop %v6357
    %v6518 = vtanh.pop %v6358
    %v6519 = vxor.u32 %v6359, 2147483648
    %v6520 = vxor.u32 %v6360, 2147483648
    %v6521 = vxor.u32 %v6361, 2147483648
    %v6522 = vxor.u32 %v6362, 2147483648
    %v6523 = vmul.f32 %v6519, 1.442695
    %v6524 = vpow.pop %v6523
    %v6525 = vmul.f32 %v6520, 1.442695
    %v6526 = vpow.pop %v6525
    %v6527 = vmul.f32 %v6521, 1.442695
    %v6528 = vpow.pop %v6527
    %v6529 = vmul.f32 %v6522, 1.442695
    %v6530 = vpow.pop %v6529
    %v6531 = vadd.f32 %v6524, 1.0
    %v6532 = vadd.f32 %v6526, 1.0
    %v6533 = vadd.f32 %v6528, 1.0
    %v6534 = vadd.f32 %v6530, 1.0
    %v6535 = vrcp.pop %v6531
    %v6536 = vmul.f32 %v6531, %v6535
    %v6537 = vsub.f32 1.0, %v6536
    %v6538 = vmul.f32 %v6535, %v6537
    %v6539 = vadd.f32 %v6535, %v6538
    %vm6540 = vweird.f32 %v6531
    %vm6541 = vweird.f32 %v6535
    %vm6542 = vmor %vm6540, %vm6541
    %v6543 = vsel %vm6542, %v6535, %v6539
    %v6544 = vand.u32 2147483647, %v6531
    %vm6545 = vcmp.eq.f32.partialorder %v6544, 8.507059e+37
    %v6546 = vand.u32 %v6531, 2147483648
    %v6547 = vor.u32 1.1754944e-38, %v6546
    %v6548 = vsel %vm6545, %v6547, %v6543
    %v6549 = vmul.f32 1.0, %v6548
    %v6550 = vrcp.pop %v6532
    %v6551 = vmul.f32 %v6532, %v6550
    %v6552 = vsub.f32 1.0, %v6551
    %v6553 = vmul.f32 %v6550, %v6552
    %v6554 = vadd.f32 %v6550, %v6553
    %vm6555 = vweird.f32 %v6532
    %vm6556 = vweird.f32 %v6550
    %vm6557 = vmor %vm6555, %vm6556
    %v6558 = vsel %vm6557, %v6550, %v6554
    %v6559 = vand.u32 2147483647, %v6532
    %vm6560 = vcmp.eq.f32.partialorder %v6559, 8.507059e+37
    %v6561 = vand.u32 %v6532, 2147483648
    %v6562 = vor.u32 1.1754944e-38, %v6561
    %v6563 = vsel %vm6560, %v6562, %v6558
    %v6564 = vmul.f32 1.0, %v6563
    %v6565 = vrcp.pop %v6533
    %v6566 = vmul.f32 %v6533, %v6565
    %v6567 = vsub.f32 1.0, %v6566
    %v6568 = vmul.f32 %v6565, %v6567
    %v6569 = vadd.f32 %v6565, %v6568
    %vm6570 = vweird.f32 %v6533
    %vm6571 = vweird.f32 %v6565
    %vm6572 = vmor %vm6570, %vm6571
    %v6573 = vsel %vm6572, %v6565, %v6569
    %v6574 = vand.u32 2147483647, %v6533
    %vm6575 = vcmp.eq.f32.partialorder %v6574, 8.507059e+37
    %v6576 = vand.u32 %v6533, 2147483648
    %v6577 = vor.u32 1.1754944e-38, %v6576
    %v6578 = vsel %vm6575, %v6577, %v6573
    %v6579 = vmul.f32 1.0, %v6578
    %v6580 = vrcp.pop %v6534
    %v6581 = vmul.f32 %v6534, %v6580
    %v6582 = vsub.f32 1.0, %v6581
    %v6583 = vmul.f32 %v6580, %v6582
    %v6584 = vadd.f32 %v6580, %v6583
    %vm6585 = vweird.f32 %v6534
    %vm6586 = vweird.f32 %v6580
    %vm6587 = vmor %vm6585, %vm6586
    %v6588 = vsel %vm6587, %v6580, %v6584
    %v6589 = vand.u32 2147483647, %v6534
    %vm6590 = vcmp.eq.f32.partialorder %v6589, 8.507059e+37
    %v6591 = vand.u32 %v6534, 2147483648
    %v6592 = vor.u32 1.1754944e-38, %v6591
    %v6593 = vsel %vm6590, %v6592, %v6588
    %v6594 = vmul.f32 1.0, %v6593
    %v6595 = vld [vmem:[#allocation3] sm:$0xff]
    %v6596 = vld [vmem:[#allocation3 + $0x8] sm:$0xff]
    %v6597 = vld [vmem:[#allocation3 + $0x10] sm:$0xff]
    %v6598 = vld [vmem:[#allocation3 + $0x18] sm:$0xff]
    %v6599 = vmul.f32 %v6469, %v6595
    %v6600 = vmul.f32 %v6484, %v6596
    %v6601 = vmul.f32 %v6499, %v6597
    %v6602 = vmul.f32 %v6514, %v6598
    %v6603 = vmul.f32 %v6393, %v6515
    %v6604 = vmul.f32 %v6408, %v6516
    %v6605 = vmul.f32 %v6423, %v6517
    %v6606 = vmul.f32 %v6438, %v6518
    %v6607 = vadd.f32 %v6599, %v6603
    %v6608 = vadd.f32 %v6600, %v6604
    %v6609 = vadd.f32 %v6601, %v6605
    %v6610 = vadd.f32 %v6602, %v6606
    %v6611 = vtanh.pop %v6607
    %v6612 = vtanh.pop %v6608
    %v6613 = vtanh.pop %v6609
    %v6614 = vtanh.pop %v6610
    %v6615 = vmul.f32 %v6549, %v6611
    %v6616 = vmul.f32 %v6564, %v6612
    %v6617 = vmul.f32 %v6579, %v6613
    %v6618 = vmul.f32 %v6594, %v6614
    %6619 = vst [vmem:[#allocation3] sm:$0xff] %v6607
    %6620 = vst [vmem:[#allocation3 + $0x8] sm:$0xff] %v6608
    %6621 = vst [vmem:[#allocation3 + $0x10] sm:$0xff] %v6609
    %6622 = vst [vmem:[#allocation3 + $0x18] sm:$0xff] %v6610
    %6623 = vst [vmem:[#allocation2] sm:$0xff] %v6615
    %6624 = vst [vmem:[#allocation2 + $0x8] sm:$0xff] %v6616
    %6625 = vst [vmem:[#allocation2 + $0x10] sm:$0xff] %v6617
    %6626 = vst [vmem:[#allocation2 + $0x18] sm:$0xff] %v6618
    %v6627 = vld [vmem:[%s725] sm:$0xff]
    %v6628 = vld [vmem:[%s725 + $0x8] sm:$0xff]
    %v6629 = vld [vmem:[%s725 + $0x10] sm:$0xff]
    %v6630 = vld [vmem:[%s725 + $0x18] sm:$0xff]
    %v6631 = vld [vmem:[%s725 + $0x20] sm:$0xff]
    %v6632 = vld [vmem:[%s725 + $0x28] sm:$0xff]
    %v6633 = vld [vmem:[%s725 + $0x30] sm:$0xff]
    %v6634 = vld [vmem:[%s725 + $0x38] sm:$0xff]
    %v6635 = vld [vmem:[%s725 + $0x40] sm:$0xff]
    %v6636 = vld [vmem:[%s725 + $0x48] sm:$0xff]
    %v6637 = vld [vmem:[%s725 + $0x50] sm:$0xff]
    %v6638 = vld [vmem:[%s725 + $0x58] sm:$0xff]
    %v6639 = vld [vmem:[%s725 + $0x60] sm:$0xff]
    %v6640 = vld [vmem:[%s725 + $0x68] sm:$0xff]
    %v6641 = vld [vmem:[%s725 + $0x70] sm:$0xff]
    %v6642 = vld [vmem:[%s725 + $0x78] sm:$0xff]
    %v6643 = vld [vmem:[#allocation4] sm:$0xff]
    %v6644 = vld [vmem:[#allocation4 + $0x8] sm:$0xff]
    %v6645 = vld [vmem:[#allocation4 + $0x10] sm:$0xff]
    %v6646 = vld [vmem:[#allocation4 + $0x18] sm:$0xff]
    %v6647 = vpack.c.bf16 %v6644, %v6643
    %v6648 = vpack.c.bf16 %v6646, %v6645
    %6649 = vmatpush.bf16.msra.mxu0 0
    %6650 = vmatpush.bf16.msra.mxu0 0
    %6651 = vmatpush.bf16.msra.mxu0 0
    %6652 = vmatpush.bf16.msra.mxu0 0
    %6653 = vmatpush.bf16.msra.mxu0 0
    %6654 = vmatpush.bf16.msra.mxu0 0
    %6655 = vmatpush.bf16.msra.mxu0 %v6648
    %6656 = vmatpush.bf16.msra.mxu0 %v6647
    %6657 = vmatmul.bf16.gmra.mxu0 %v2043
    %v6658 = vpop.f32.mrf.mxu0
    %v6659 = vadd.f32 0.0, %v6658
    %v6660 = vpop.f32.mrf.mxu0
    %v6661 = vadd.f32 0.0, %v6660
    %6662 = vmatmul.bf16.gmra.mxu0 %v2046
    %v6663 = vpop.f32.mrf.mxu0
    %v6664 = vadd.f32 0.0, %v6663
    %v6665 = vpop.f32.mrf.mxu0
    %v6666 = vadd.f32 0.0, %v6665
    %6667 = vmatmul.bf16.gmra.mxu0 %v2049
    %v6668 = vpop.f32.mrf.mxu0
    %v6669 = vadd.f32 0.0, %v6668
    %v6670 = vpop.f32.mrf.mxu0
    %v6671 = vadd.f32 0.0, %v6670
    %6672 = vmatmul.bf16.gmra.mxu0 %v2052
    %v6673 = vpop.f32.mrf.mxu0
    %v6674 = vadd.f32 0.0, %v6673
    %v6675 = vpop.f32.mrf.mxu0
    %v6676 = vadd.f32 0.0, %v6675
    %6677 = vmatmul.bf16.gmra.mxu0 %v2055
    %v6678 = vpop.f32.mrf.mxu0
    %v6679 = vadd.f32 0.0, %v6678
    %v6680 = vpop.f32.mrf.mxu0
    %v6681 = vadd.f32 0.0, %v6680
    %6682 = vmatmul.bf16.gmra.mxu0 %v2058
    %v6683 = vpop.f32.mrf.mxu0
    %v6684 = vadd.f32 0.0, %v6683
    %v6685 = vpop.f32.mrf.mxu0
    %v6686 = vadd.f32 0.0, %v6685
    %6687 = vmatmul.bf16.gmra.mxu0 %v2061
    %v6688 = vpop.f32.mrf.mxu0
    %v6689 = vadd.f32 0.0, %v6688
    %v6690 = vpop.f32.mrf.mxu0
    %v6691 = vadd.f32 0.0, %v6690
    %6692 = vmatmul.bf16.gmra.mxu0 %v2064
    %v6693 = vpop.f32.mrf.mxu0
    %v6694 = vadd.f32 0.0, %v6693
    %v6695 = vpop.f32.mrf.mxu0
    %v6696 = vadd.f32 0.0, %v6695
    %6697 = vdwg.mxu0
    %v6698 = vadd.f32 %v6627, %v6659
    %v6699 = vadd.f32 %v6628, %v6661
    %v6700 = vadd.f32 %v6629, %v6664
    %v6701 = vadd.f32 %v6630, %v6666
    %v6702 = vadd.f32 %v6631, %v6669
    %v6703 = vadd.f32 %v6632, %v6671
    %v6704 = vadd.f32 %v6633, %v6674
    %v6705 = vadd.f32 %v6634, %v6676
    %v6706 = vadd.f32 %v6635, %v6679
    %v6707 = vadd.f32 %v6636, %v6681
    %v6708 = vadd.f32 %v6637, %v6684
    %v6709 = vadd.f32 %v6638, %v6686
    %v6710 = vadd.f32 %v6639, %v6689
    %v6711 = vadd.f32 %v6640, %v6691
    %v6712 = vadd.f32 %v6641, %v6694
    %v6713 = vadd.f32 %v6642, %v6696
    %v6714 = vxor.u32 %v6698, 2147483648
    %v6715 = vxor.u32 %v6699, 2147483648
    %v6716 = vxor.u32 %v6700, 2147483648
    %v6717 = vxor.u32 %v6701, 2147483648
    %v6718 = vmul.f32 %v6714, 1.442695
    %v6719 = vpow.pop %v6718
    %v6720 = vmul.f32 %v6715, 1.442695
    %v6721 = vpow.pop %v6720
    %v6722 = vmul.f32 %v6716, 1.442695
    %v6723 = vpow.pop %v6722
    %v6724 = vmul.f32 %v6717, 1.442695
    %v6725 = vpow.pop %v6724
    %v6726 = vadd.f32 %v6719, 1.0
    %v6727 = vadd.f32 %v6721, 1.0
    %v6728 = vadd.f32 %v6723, 1.0
    %v6729 = vadd.f32 %v6725, 1.0
    %v6730 = vrcp.pop %v6726
    %v6731 = vmul.f32 %v6726, %v6730
    %v6732 = vsub.f32 1.0, %v6731
    %v6733 = vmul.f32 %v6730, %v6732
    %v6734 = vadd.f32 %v6730, %v6733
    %vm6735 = vweird.f32 %v6726
    %vm6736 = vweird.f32 %v6730
    %vm6737 = vmor %vm6735, %vm6736
    %v6738 = vsel %vm6737, %v6730, %v6734
    %v6739 = vand.u32 2147483647, %v6726
    %vm6740 = vcmp.eq.f32.partialorder %v6739, 8.507059e+37
    %v6741 = vand.u32 %v6726, 2147483648
    %v6742 = vor.u32 1.1754944e-38, %v6741
    %v6743 = vsel %vm6740, %v6742, %v6738
    %v6744 = vmul.f32 1.0, %v6743
    %v6745 = vrcp.pop %v6727
    %v6746 = vmul.f32 %v6727, %v6745
    %v6747 = vsub.f32 1.0, %v6746
    %v6748 = vmul.f32 %v6745, %v6747
    %v6749 = vadd.f32 %v6745, %v6748
    %vm6750 = vweird.f32 %v6727
    %vm6751 = vweird.f32 %v6745
    %vm6752 = vmor %vm6750, %vm6751
    %v6753 = vsel %vm6752, %v6745, %v6749
    %v6754 = vand.u32 2147483647, %v6727
    %vm6755 = vcmp.eq.f32.partialorder %v6754, 8.507059e+37
    %v6756 = vand.u32 %v6727, 2147483648
    %v6757 = vor.u32 1.1754944e-38, %v6756
    %v6758 = vsel %vm6755, %v6757, %v6753
    %v6759 = vmul.f32 1.0, %v6758
    %v6760 = vrcp.pop %v6728
    %v6761 = vmul.f32 %v6728, %v6760
    %v6762 = vsub.f32 1.0, %v6761
    %v6763 = vmul.f32 %v6760, %v6762
    %v6764 = vadd.f32 %v6760, %v6763
    %vm6765 = vweird.f32 %v6728
    %vm6766 = vweird.f32 %v6760
    %vm6767 = vmor %vm6765, %vm6766
    %v6768 = vsel %vm6767, %v6760, %v6764
    %v6769 = vand.u32 2147483647, %v6728
    %vm6770 = vcmp.eq.f32.partialorder %v6769, 8.507059e+37
    %v6771 = vand.u32 %v6728, 2147483648
    %v6772 = vor.u32 1.1754944e-38, %v6771
    %v6773 = vsel %vm6770, %v6772, %v6768
    %v6774 = vmul.f32 1.0, %v6773
    %v6775 = vrcp.pop %v6729
    %v6776 = vmul.f32 %v6729, %v6775
    %v6777 = vsub.f32 1.0, %v6776
    %v6778 = vmul.f32 %v6775, %v6777
    %v6779 = vadd.f32 %v6775, %v6778
    %vm6780 = vweird.f32 %v6729
    %vm6781 = vweird.f32 %v6775
    %vm6782 = vmor %vm6780, %vm6781
    %v6783 = vsel %vm6782, %v6775, %v6779
    %v6784 = vand.u32 2147483647, %v6729
    %vm6785 = vcmp.eq.f32.partialorder %v6784, 8.507059e+37
    %v6786 = vand.u32 %v6729, 2147483648
    %v6787 = vor.u32 1.1754944e-38, %v6786
    %v6788 = vsel %vm6785, %v6787, %v6783
    %v6789 = vmul.f32 1.0, %v6788
    %v6790 = vxor.u32 %v6702, 2147483648
    %v6791 = vxor.u32 %v6703, 2147483648
    %v6792 = vxor.u32 %v6704, 2147483648
    %v6793 = vxor.u32 %v6705, 2147483648
    %v6794 = vmul.f32 %v6790, 1.442695
    %v6795 = vpow.pop %v6794
    %v6796 = vmul.f32 %v6791, 1.442695
    %v6797 = vpow.pop %v6796
    %v6798 = vmul.f32 %v6792, 1.442695
    %v6799 = vpow.pop %v6798
    %v6800 = vmul.f32 %v6793, 1.442695
    %v6801 = vpow.pop %v6800
    %v6802 = vadd.f32 %v6795, 1.0
    %v6803 = vadd.f32 %v6797, 1.0
    %v6804 = vadd.f32 %v6799, 1.0
    %v6805 = vadd.f32 %v6801, 1.0
    %v6806 = vrcp.pop %v6802
    %v6807 = vmul.f32 %v6802, %v6806
    %v6808 = vsub.f32 1.0, %v6807
    %v6809 = vmul.f32 %v6806, %v6808
    %v6810 = vadd.f32 %v6806, %v6809
    %vm6811 = vweird.f32 %v6802
    %vm6812 = vweird.f32 %v6806
    %vm6813 = vmor %vm6811, %vm6812
    %v6814 = vsel %vm6813, %v6806, %v6810
    %v6815 = vand.u32 2147483647, %v6802
    %vm6816 = vcmp.eq.f32.partialorder %v6815, 8.507059e+37
    %v6817 = vand.u32 %v6802, 2147483648
    %v6818 = vor.u32 1.1754944e-38, %v6817
    %v6819 = vsel %vm6816, %v6818, %v6814
    %v6820 = vmul.f32 1.0, %v6819
    %v6821 = vrcp.pop %v6803
    %v6822 = vmul.f32 %v6803, %v6821
    %v6823 = vsub.f32 1.0, %v6822
    %v6824 = vmul.f32 %v6821, %v6823
    %v6825 = vadd.f32 %v6821, %v6824
    %vm6826 = vweird.f32 %v6803
    %vm6827 = vweird.f32 %v6821
    %vm6828 = vmor %vm6826, %vm6827
    %v6829 = vsel %vm6828, %v6821, %v6825
    %v6830 = vand.u32 2147483647, %v6803
    %vm6831 = vcmp.eq.f32.partialorder %v6830, 8.507059e+37
    %v6832 = vand.u32 %v6803, 2147483648
    %v6833 = vor.u32 1.1754944e-38, %v6832
    %v6834 = vsel %vm6831, %v6833, %v6829
    %v6835 = vmul.f32 1.0, %v6834
    %v6836 = vrcp.pop %v6804
    %v6837 = vmul.f32 %v6804, %v6836
    %v6838 = vsub.f32 1.0, %v6837
    %v6839 = vmul.f32 %v6836, %v6838
    %v6840 = vadd.f32 %v6836, %v6839
    %vm6841 = vweird.f32 %v6804
    %vm6842 = vweird.f32 %v6836
    %vm6843 = vmor %vm6841, %vm6842
    %v6844 = vsel %vm6843, %v6836, %v6840
    %v6845 = vand.u32 2147483647, %v6804
    %vm6846 = vcmp.eq.f32.partialorder %v6845, 8.507059e+37
    %v6847 = vand.u32 %v6804, 2147483648
    %v6848 = vor.u32 1.1754944e-38, %v6847
    %v6849 = vsel %vm6846, %v6848, %v6844
    %v6850 = vmul.f32 1.0, %v6849
    %v6851 = vrcp.pop %v6805
    %v6852 = vmul.f32 %v6805, %v6851
    %v6853 = vsub.f32 1.0, %v6852
    %v6854 = vmul.f32 %v6851, %v6853
    %v6855 = vadd.f32 %v6851, %v6854
    %vm6856 = vweird.f32 %v6805
    %vm6857 = vweird.f32 %v6851
    %vm6858 = vmor %vm6856, %vm6857
    %v6859 = vsel %vm6858, %v6851, %v6855
    %v6860 = vand.u32 2147483647, %v6805
    %vm6861 = vcmp.eq.f32.partialorder %v6860, 8.507059e+37
    %v6862 = vand.u32 %v6805, 2147483648
    %v6863 = vor.u32 1.1754944e-38, %v6862
    %v6864 = vsel %vm6861, %v6863, %v6859
    %v6865 = vmul.f32 1.0, %v6864
    %v6866 = vtanh.pop %v6706
    %v6867 = vtanh.pop %v6707
    %v6868 = vtanh.pop %v6708
    %v6869 = vtanh.pop %v6709
    %v6870 = vxor.u32 %v6710, 2147483648
    %v6871 = vxor.u32 %v6711, 2147483648
    %v6872 = vxor.u32 %v6712, 2147483648
    %v6873 = vxor.u32 %v6713, 2147483648
    %v6874 = vmul.f32 %v6870, 1.442695
    %v6875 = vpow.pop %v6874
    %v6876 = vmul.f32 %v6871, 1.442695
    %v6877 = vpow.pop %v6876
    %v6878 = vmul.f32 %v6872, 1.442695
    %v6879 = vpow.pop %v6878
    %v6880 = vmul.f32 %v6873, 1.442695
    %v6881 = vpow.pop %v6880
    %v6882 = vadd.f32 %v6875, 1.0
    %v6883 = vadd.f32 %v6877, 1.0
    %v6884 = vadd.f32 %v6879, 1.0
    %v6885 = vadd.f32 %v6881, 1.0
    %v6886 = vrcp.pop %v6882
    %v6887 = vmul.f32 %v6882, %v6886
    %v6888 = vsub.f32 1.0, %v6887
    %v6889 = vmul.f32 %v6886, %v6888
    %v6890 = vadd.f32 %v6886, %v6889
    %vm6891 = vweird.f32 %v6882
    %vm6892 = vweird.f32 %v6886
    %vm6893 = vmor %vm6891, %vm6892
    %v6894 = vsel %vm6893, %v6886, %v6890
    %v6895 = vand.u32 2147483647, %v6882
    %vm6896 = vcmp.eq.f32.partialorder %v6895, 8.507059e+37
    %v6897 = vand.u32 %v6882, 2147483648
    %v6898 = vor.u32 1.1754944e-38, %v6897
    %v6899 = vsel %vm6896, %v6898, %v6894
    %v6900 = vmul.f32 1.0, %v6899
    %v6901 = vrcp.pop %v6883
    %v6902 = vmul.f32 %v6883, %v6901
    %v6903 = vsub.f32 1.0, %v6902
    %v6904 = vmul.f32 %v6901, %v6903
    %v6905 = vadd.f32 %v6901, %v6904
    %vm6906 = vweird.f32 %v6883
    %vm6907 = vweird.f32 %v6901
    %vm6908 = vmor %vm6906, %vm6907
    %v6909 = vsel %vm6908, %v6901, %v6905
    %v6910 = vand.u32 2147483647, %v6883
    %vm6911 = vcmp.eq.f32.partialorder %v6910, 8.507059e+37
    %v6912 = vand.u32 %v6883, 2147483648
    %v6913 = vor.u32 1.1754944e-38, %v6912
    %v6914 = vsel %vm6911, %v6913, %v6909
    %v6915 = vmul.f32 1.0, %v6914
    %v6916 = vrcp.pop %v6884
    %v6917 = vmul.f32 %v6884, %v6916
    %v6918 = vsub.f32 1.0, %v6917
    %v6919 = vmul.f32 %v6916, %v6918
    %v6920 = vadd.f32 %v6916, %v6919
    %vm6921 = vweird.f32 %v6884
    %vm6922 = vweird.f32 %v6916
    %vm6923 = vmor %vm6921, %vm6922
    %v6924 = vsel %vm6923, %v6916, %v6920
    %v6925 = vand.u32 2147483647, %v6884
    %vm6926 = vcmp.eq.f32.partialorder %v6925, 8.507059e+37
    %v6927 = vand.u32 %v6884, 2147483648
    %v6928 = vor.u32 1.1754944e-38, %v6927
    %v6929 = vsel %vm6926, %v6928, %v6924
    %v6930 = vmul.f32 1.0, %v6929
    %v6931 = vrcp.pop %v6885
    %v6932 = vmul.f32 %v6885, %v6931
    %v6933 = vsub.f32 1.0, %v6932
    %v6934 = vmul.f32 %v6931, %v6933
    %v6935 = vadd.f32 %v6931, %v6934
    %vm6936 = vweird.f32 %v6885
    %vm6937 = vweird.f32 %v6931
    %vm6938 = vmor %vm6936, %vm6937
    %v6939 = vsel %vm6938, %v6931, %v6935
    %v6940 = vand.u32 2147483647, %v6885
    %vm6941 = vcmp.eq.f32.partialorder %v6940, 8.507059e+37
    %v6942 = vand.u32 %v6885, 2147483648
    %v6943 = vor.u32 1.1754944e-38, %v6942
    %v6944 = vsel %vm6941, %v6943, %v6939
    %v6945 = vmul.f32 1.0, %v6944
    %v6946 = vld [vmem:[#allocation5] sm:$0xff]
    %v6947 = vld [vmem:[#allocation5 + $0x8] sm:$0xff]
    %v6948 = vld [vmem:[#allocation5 + $0x10] sm:$0xff]
    %v6949 = vld [vmem:[#allocation5 + $0x18] sm:$0xff]
    %v6950 = vmul.f32 %v6820, %v6946
    %v6951 = vmul.f32 %v6835, %v6947
    %v6952 = vmul.f32 %v6850, %v6948
    %v6953 = vmul.f32 %v6865, %v6949
    %v6954 = vmul.f32 %v6744, %v6866
    %v6955 = vmul.f32 %v6759, %v6867
    %v6956 = vmul.f32 %v6774, %v6868
    %v6957 = vmul.f32 %v6789, %v6869
    %v6958 = vadd.f32 %v6950, %v6954
    %v6959 = vadd.f32 %v6951, %v6955
    %v6960 = vadd.f32 %v6952, %v6956
    %v6961 = vadd.f32 %v6953, %v6957
    %v6962 = vtanh.pop %v6958
    %v6963 = vtanh.pop %v6959
    %v6964 = vtanh.pop %v6960
    %v6965 = vtanh.pop %v6961
    %v6966 = vmul.f32 %v6900, %v6962
    %v6967 = vmul.f32 %v6915, %v6963
    %v6968 = vmul.f32 %v6930, %v6964
    %v6969 = vmul.f32 %v6945, %v6965
    %6970 = vst [vmem:[#allocation5] sm:$0xff] %v6958
    %6971 = vst [vmem:[#allocation5 + $0x8] sm:$0xff] %v6959
    %6972 = vst [vmem:[#allocation5 + $0x10] sm:$0xff] %v6960
    %6973 = vst [vmem:[#allocation5 + $0x18] sm:$0xff] %v6961
    %6974 = vst [vmem:[#allocation4] sm:$0xff] %v6966
    %6975 = vst [vmem:[#allocation4 + $0x8] sm:$0xff] %v6967
    %6976 = vst [vmem:[#allocation4 + $0x10] sm:$0xff] %v6968
    %6977 = vst [vmem:[#allocation4 + $0x18] sm:$0xff] %v6969
    %v6978 = vpack.c.bf16 %v6616, %v6615
    %v6979 = vpack.c.bf16 %v6618, %v6617
    %6980 = vmatpush.bf16.msra.mxu0 0
    %6981 = vmatpush.bf16.msra.mxu0 0
    %6982 = vmatpush.bf16.msra.mxu0 0
    %6983 = vmatpush.bf16.msra.mxu0 0
    %6984 = vmatpush.bf16.msra.mxu0 0
    %6985 = vmatpush.bf16.msra.mxu0 0
    %6986 = vmatpush.bf16.msra.mxu0 %v6979
    %6987 = vmatpush.bf16.msra.mxu0 %v6978
    %6988 = vmatmul.bf16.gmra.mxu0 %v2410
    %v6989 = vpop.f32.mrf.mxu0
    %v6990 = vadd.f32 0.0, %v6989
    %v6991 = vpop.f32.mrf.mxu0
    %v6992 = vadd.f32 0.0, %v6991
    %6993 = vmatmul.bf16.gmra.mxu0 %v2413
    %v6994 = vpop.f32.mrf.mxu0
    %v6995 = vadd.f32 0.0, %v6994
    %v6996 = vpop.f32.mrf.mxu0
    %v6997 = vadd.f32 0.0, %v6996
    %6998 = vdwg.mxu0
    %v6999 = vpack.c.bf16 %v6967, %v6966
    %v7000 = vpack.c.bf16 %v6969, %v6968
    %7001 = vmatpush.bf16.msra.mxu0 0
    %7002 = vmatpush.bf16.msra.mxu0 0
    %7003 = vmatpush.bf16.msra.mxu0 0
    %7004 = vmatpush.bf16.msra.mxu0 0
    %7005 = vmatpush.bf16.msra.mxu0 0
    %7006 = vmatpush.bf16.msra.mxu0 0
    %7007 = vmatpush.bf16.msra.mxu0 %v7000
    %7008 = vmatpush.bf16.msra.mxu0 %v6999
    %7009 = vmatmul.bf16.gmra.mxu0 %v2449
    %v7010 = vpop.f32.mrf.mxu0
    %v7011 = vadd.f32 0.0, %v7010
    %v7012 = vpop.f32.mrf.mxu0
    %v7013 = vadd.f32 0.0, %v7012
    %7014 = vmatmul.bf16.gmra.mxu0 %v2452
    %v7015 = vpop.f32.mrf.mxu0
    %v7016 = vadd.f32 0.0, %v7015
    %v7017 = vpop.f32.mrf.mxu0
    %v7018 = vadd.f32 0.0, %v7017
    %7019 = vdwg.mxu0
    %v7020 = vld [vmem:[%s3227] sm:$0xff]
    %v7021 = vld [vmem:[%s3227 + $0x8] sm:$0xff]
    %v7022 = vld [vmem:[%s3227 + $0x10] sm:$0xff]
    %v7023 = vld [vmem:[%s3227 + $0x18] sm:$0xff]
    %v7024 = vadd.f32 %v7020, %v6990
    %v7025 = vadd.f32 %v7021, %v6992
    %v7026 = vadd.f32 %v7022, %v6995
    %v7027 = vadd.f32 %v7023, %v6997
    %7028 = vst [vmem:[%s3227] sm:$0xff] %v7024
    %7029 = vst [vmem:[%s3227 + $0x8] sm:$0xff] %v7025
    %7030 = vst [vmem:[%s3227 + $0x10] sm:$0xff] %v7026
    %7031 = vst [vmem:[%s3227 + $0x18] sm:$0xff] %v7027
    %v7032 = vld [vmem:[%s3203] sm:$0xff]
    %v7033 = vld [vmem:[%s3203 + $0x8] sm:$0xff]
    %v7034 = vld [vmem:[%s3203 + $0x10] sm:$0xff]
    %v7035 = vld [vmem:[%s3203 + $0x18] sm:$0xff]
    %v7036 = vadd.f32 %v7032, %v7011
    %v7037 = vadd.f32 %v7033, %v7013
    %v7038 = vadd.f32 %v7034, %v7016
    %v7039 = vadd.f32 %v7035, %v7018
    %7040 = vst [vmem:[%s3203] sm:$0xff] %v7036
    %7041 = vst [vmem:[%s3203 + $0x8] sm:$0xff] %v7037
    %7042 = vst [vmem:[%s3203 + $0x10] sm:$0xff] %v7038
    %7043 = vst [vmem:[%s3203 + $0x18] sm:$0xff] %v7039
    %v7044 = vld [vmem:[%s1481] sm:$0xff]
    %v7045 = vld [vmem:[%s1481 + $0x8] sm:$0xff]
    %v7046 = vld [vmem:[%s1481 + $0x10] sm:$0xff]
    %v7047 = vld [vmem:[%s1481 + $0x18] sm:$0xff]
    %v7048 = vld [vmem:[%s1481 + $0x20] sm:$0xff]
    %v7049 = vld [vmem:[%s1481 + $0x28] sm:$0xff]
    %v7050 = vld [vmem:[%s1481 + $0x30] sm:$0xff]
    %v7051 = vld [vmem:[%s1481 + $0x38] sm:$0xff]
    %v7052 = vld [vmem:[%s1481 + $0x40] sm:$0xff]
    %v7053 = vld [vmem:[%s1481 + $0x48] sm:$0xff]
    %v7054 = vld [vmem:[%s1481 + $0x50] sm:$0xff]
    %v7055 = vld [vmem:[%s1481 + $0x58] sm:$0xff]
    %v7056 = vld [vmem:[%s1481 + $0x60] sm:$0xff]
    %v7057 = vld [vmem:[%s1481 + $0x68] sm:$0xff]
    %v7058 = vld [vmem:[%s1481 + $0x70] sm:$0xff]
    %v7059 = vld [vmem:[%s1481 + $0x78] sm:$0xff]
    %v7060 = vld [vmem:[#allocation2] sm:$0xff]
    %v7061 = vld [vmem:[#allocation2 + $0x8] sm:$0xff]
    %v7062 = vld [vmem:[#allocation2 + $0x10] sm:$0xff]
    %v7063 = vld [vmem:[#allocation2 + $0x18] sm:$0xff]
    %v7064 = vpack.c.bf16 %v7061, %v7060
    %v7065 = vpack.c.bf16 %v7063, %v7062
    %7066 = vmatpush.bf16.msra.mxu0 0
    %7067 = vmatpush.bf16.msra.mxu0 0
    %7068 = vmatpush.bf16.msra.mxu0 0
    %7069 = vmatpush.bf16.msra.mxu0 0
    %7070 = vmatpush.bf16.msra.mxu0 0
    %7071 = vmatpush.bf16.msra.mxu0 0
    %7072 = vmatpush.bf16.msra.mxu0 %v7065
    %7073 = vmatpush.bf16.msra.mxu0 %v7064
    %7074 = vmatmul.bf16.gmra.mxu0 %v1628
    %v7075 = vpop.f32.mrf.mxu0
    %v7076 = vadd.f32 0.0, %v7075
    %v7077 = vpop.f32.mrf.mxu0
    %v7078 = vadd.f32 0.0, %v7077
    %7079 = vmatmul.bf16.gmra.mxu0 %v1631
    %v7080 = vpop.f32.mrf.mxu0
    %v7081 = vadd.f32 0.0, %v7080
    %v7082 = vpop.f32.mrf.mxu0
    %v7083 = vadd.f32 0.0, %v7082
    %7084 = vmatmul.bf16.gmra.mxu0 %v1634
    %v7085 = vpop.f32.mrf.mxu0
    %v7086 = vadd.f32 0.0, %v7085
    %v7087 = vpop.f32.mrf.mxu0
    %v7088 = vadd.f32 0.0, %v7087
    %7089 = vmatmul.bf16.gmra.mxu0 %v1637
    %v7090 = vpop.f32.mrf.mxu0
    %v7091 = vadd.f32 0.0, %v7090
    %v7092 = vpop.f32.mrf.mxu0
    %v7093 = vadd.f32 0.0, %v7092
    %7094 = vmatmul.bf16.gmra.mxu0 %v1640
    %v7095 = vpop.f32.mrf.mxu0
    %v7096 = vadd.f32 0.0, %v7095
    %v7097 = vpop.f32.mrf.mxu0
    %v7098 = vadd.f32 0.0, %v7097
    %7099 = vmatmul.bf16.gmra.mxu0 %v1643
    %v7100 = vpop.f32.mrf.mxu0
    %v7101 = vadd.f32 0.0, %v7100
    %v7102 = vpop.f32.mrf.mxu0
    %v7103 = vadd.f32 0.0, %v7102
    %7104 = vmatmul.bf16.gmra.mxu0 %v1646
    %v7105 = vpop.f32.mrf.mxu0
    %v7106 = vadd.f32 0.0, %v7105
    %v7107 = vpop.f32.mrf.mxu0
    %v7108 = vadd.f32 0.0, %v7107
    %7109 = vmatmul.bf16.gmra.mxu0 %v1649
    %v7110 = vpop.f32.mrf.mxu0
    %v7111 = vadd.f32 0.0, %v7110
    %v7112 = vpop.f32.mrf.mxu0
    %v7113 = vadd.f32 0.0, %v7112
    %7114 = vdwg.mxu0
    %v7115 = vadd.f32 %v7044, %v7076
    %v7116 = vadd.f32 %v7045, %v7078
    %v7117 = vadd.f32 %v7046, %v7081
    %v7118 = vadd.f32 %v7047, %v7083
    %v7119 = vadd.f32 %v7048, %v7086
    %v7120 = vadd.f32 %v7049, %v7088
    %v7121 = vadd.f32 %v7050, %v7091
    %v7122 = vadd.f32 %v7051, %v7093
    %v7123 = vadd.f32 %v7052, %v7096
    %v7124 = vadd.f32 %v7053, %v7098
    %v7125 = vadd.f32 %v7054, %v7101
    %v7126 = vadd.f32 %v7055, %v7103
    %v7127 = vadd.f32 %v7056, %v7106
    %v7128 = vadd.f32 %v7057, %v7108
    %v7129 = vadd.f32 %v7058, %v7111
    %v7130 = vadd.f32 %v7059, %v7113
    %v7131 = vxor.u32 %v7115, 2147483648
    %v7132 = vxor.u32 %v7116, 2147483648
    %v7133 = vxor.u32 %v7117, 2147483648
    %v7134 = vxor.u32 %v7118, 2147483648
    %v7135 = vmul.f32 %v7131, 1.442695
    %v7136 = vpow.pop %v7135
    %v7137 = vmul.f32 %v7132, 1.442695
    %v7138 = vpow.pop %v7137
    %v7139 = vmul.f32 %v7133, 1.442695
    %v7140 = vpow.pop %v7139
    %v7141 = vmul.f32 %v7134, 1.442695
    %v7142 = vpow.pop %v7141
    %v7143 = vadd.f32 %v7136, 1.0
    %v7144 = vadd.f32 %v7138, 1.0
    %v7145 = vadd.f32 %v7140, 1.0
    %v7146 = vadd.f32 %v7142, 1.0
    %v7147 = vrcp.pop %v7143
    %v7148 = vmul.f32 %v7143, %v7147
    %v7149 = vsub.f32 1.0, %v7148
    %v7150 = vmul.f32 %v7147, %v7149
    %v7151 = vadd.f32 %v7147, %v7150
    %vm7152 = vweird.f32 %v7143
    %vm7153 = vweird.f32 %v7147
    %vm7154 = vmor %vm7152, %vm7153
    %v7155 = vsel %vm7154, %v7147, %v7151
    %v7156 = vand.u32 2147483647, %v7143
    %vm7157 = vcmp.eq.f32.partialorder %v7156, 8.507059e+37
    %v7158 = vand.u32 %v7143, 2147483648
    %v7159 = vor.u32 1.1754944e-38, %v7158
    %v7160 = vsel %vm7157, %v7159, %v7155
    %v7161 = vmul.f32 1.0, %v7160
    %v7162 = vrcp.pop %v7144
    %v7163 = vmul.f32 %v7144, %v7162
    %v7164 = vsub.f32 1.0, %v7163
    %v7165 = vmul.f32 %v7162, %v7164
    %v7166 = vadd.f32 %v7162, %v7165
    %vm7167 = vweird.f32 %v7144
    %vm7168 = vweird.f32 %v7162
    %vm7169 = vmor %vm7167, %vm7168
    %v7170 = vsel %vm7169, %v7162, %v7166
    %v7171 = vand.u32 2147483647, %v7144
    %vm7172 = vcmp.eq.f32.partialorder %v7171, 8.507059e+37
    %v7173 = vand.u32 %v7144, 2147483648
    %v7174 = vor.u32 1.1754944e-38, %v7173
    %v7175 = vsel %vm7172, %v7174, %v7170
    %v7176 = vmul.f32 1.0, %v7175
    %v7177 = vrcp.pop %v7145
    %v7178 = vmul.f32 %v7145, %v7177
    %v7179 = vsub.f32 1.0, %v7178
    %v7180 = vmul.f32 %v7177, %v7179
    %v7181 = vadd.f32 %v7177, %v7180
    %vm7182 = vweird.f32 %v7145
    %vm7183 = vweird.f32 %v7177
    %vm7184 = vmor %vm7182, %vm7183
    %v7185 = vsel %vm7184, %v7177, %v7181
    %v7186 = vand.u32 2147483647, %v7145
    %vm7187 = vcmp.eq.f32.partialorder %v7186, 8.507059e+37
    %v7188 = vand.u32 %v7145, 2147483648
    %v7189 = vor.u32 1.1754944e-38, %v7188
    %v7190 = vsel %vm7187, %v7189, %v7185
    %v7191 = vmul.f32 1.0, %v7190
    %v7192 = vrcp.pop %v7146
    %v7193 = vmul.f32 %v7146, %v7192
    %v7194 = vsub.f32 1.0, %v7193
    %v7195 = vmul.f32 %v7192, %v7194
    %v7196 = vadd.f32 %v7192, %v7195
    %vm7197 = vweird.f32 %v7146
    %vm7198 = vweird.f32 %v7192
    %vm7199 = vmor %vm7197, %vm7198
    %v7200 = vsel %vm7199, %v7192, %v7196
    %v7201 = vand.u32 2147483647, %v7146
    %vm7202 = vcmp.eq.f32.partialorder %v7201, 8.507059e+37
    %v7203 = vand.u32 %v7146, 2147483648
    %v7204 = vor.u32 1.1754944e-38, %v7203
    %v7205 = vsel %vm7202, %v7204, %v7200
    %v7206 = vmul.f32 1.0, %v7205
    %v7207 = vxor.u32 %v7119, 2147483648
    %v7208 = vxor.u32 %v7120, 2147483648
    %v7209 = vxor.u32 %v7121, 2147483648
    %v7210 = vxor.u32 %v7122, 2147483648
    %v7211 = vmul.f32 %v7207, 1.442695
    %v7212 = vpow.pop %v7211
    %v7213 = vmul.f32 %v7208, 1.442695
    %v7214 = vpow.pop %v7213
    %v7215 = vmul.f32 %v7209, 1.442695
    %v7216 = vpow.pop %v7215
    %v7217 = vmul.f32 %v7210, 1.442695
    %v7218 = vpow.pop %v7217
    %v7219 = vadd.f32 %v7212, 1.0
    %v7220 = vadd.f32 %v7214, 1.0
    %v7221 = vadd.f32 %v7216, 1.0
    %v7222 = vadd.f32 %v7218, 1.0
    %v7223 = vrcp.pop %v7219
    %v7224 = vmul.f32 %v7219, %v7223
    %v7225 = vsub.f32 1.0, %v7224
    %v7226 = vmul.f32 %v7223, %v7225
    %v7227 = vadd.f32 %v7223, %v7226
    %vm7228 = vweird.f32 %v7219
    %vm7229 = vweird.f32 %v7223
    %vm7230 = vmor %vm7228, %vm7229
    %v7231 = vsel %vm7230, %v7223, %v7227
    %v7232 = vand.u32 2147483647, %v7219
    %vm7233 = vcmp.eq.f32.partialorder %v7232, 8.507059e+37
    %v7234 = vand.u32 %v7219, 2147483648
    %v7235 = vor.u32 1.1754944e-38, %v7234
    %v7236 = vsel %vm7233, %v7235, %v7231
    %v7237 = vmul.f32 1.0, %v7236
    %v7238 = vrcp.pop %v7220
    %v7239 = vmul.f32 %v7220, %v7238
    %v7240 = vsub.f32 1.0, %v7239
    %v7241 = vmul.f32 %v7238, %v7240
    %v7242 = vadd.f32 %v7238, %v7241
    %vm7243 = vweird.f32 %v7220
    %vm7244 = vweird.f32 %v7238
    %vm7245 = vmor %vm7243, %vm7244
    %v7246 = vsel %vm7245, %v7238, %v7242
    %v7247 = vand.u32 2147483647, %v7220
    %vm7248 = vcmp.eq.f32.partialorder %v7247, 8.507059e+37
    %v7249 = vand.u32 %v7220, 2147483648
    %v7250 = vor.u32 1.1754944e-38, %v7249
    %v7251 = vsel %vm7248, %v7250, %v7246
    %v7252 = vmul.f32 1.0, %v7251
    %v7253 = vrcp.pop %v7221
    %v7254 = vmul.f32 %v7221, %v7253
    %v7255 = vsub.f32 1.0, %v7254
    %v7256 = vmul.f32 %v7253, %v7255
    %v7257 = vadd.f32 %v7253, %v7256
    %vm7258 = vweird.f32 %v7221
    %vm7259 = vweird.f32 %v7253
    %vm7260 = vmor %vm7258, %vm7259
    %v7261 = vsel %vm7260, %v7253, %v7257
    %v7262 = vand.u32 2147483647, %v7221
    %vm7263 = vcmp.eq.f32.partialorder %v7262, 8.507059e+37
    %v7264 = vand.u32 %v7221, 2147483648
    %v7265 = vor.u32 1.1754944e-38, %v7264
    %v7266 = vsel %vm7263, %v7265, %v7261
    %v7267 = vmul.f32 1.0, %v7266
    %v7268 = vrcp.pop %v7222
    %v7269 = vmul.f32 %v7222, %v7268
    %v7270 = vsub.f32 1.0, %v7269
    %v7271 = vmul.f32 %v7268, %v7270
    %v7272 = vadd.f32 %v7268, %v7271
    %vm7273 = vweird.f32 %v7222
    %vm7274 = vweird.f32 %v7268
    %vm7275 = vmor %vm7273, %vm7274
    %v7276 = vsel %vm7275, %v7268, %v7272
    %v7277 = vand.u32 2147483647, %v7222
    %vm7278 = vcmp.eq.f32.partialorder %v7277, 8.507059e+37
    %v7279 = vand.u32 %v7222, 2147483648
    %v7280 = vor.u32 1.1754944e-38, %v7279
    %v7281 = vsel %vm7278, %v7280, %v7276
    %v7282 = vmul.f32 1.0, %v7281
    %v7283 = vtanh.pop %v7123
    %v7284 = vtanh.pop %v7124
    %v7285 = vtanh.pop %v7125
    %v7286 = vtanh.pop %v7126
    %v7287 = vxor.u32 %v7127, 2147483648
    %v7288 = vxor.u32 %v7128, 2147483648
    %v7289 = vxor.u32 %v7129, 2147483648
    %v7290 = vxor.u32 %v7130, 2147483648
    %v7291 = vmul.f32 %v7287, 1.442695
    %v7292 = vpow.pop %v7291
    %v7293 = vmul.f32 %v7288, 1.442695
    %v7294 = vpow.pop %v7293
    %v7295 = vmul.f32 %v7289, 1.442695
    %v7296 = vpow.pop %v7295
    %v7297 = vmul.f32 %v7290, 1.442695
    %v7298 = vpow.pop %v7297
    %v7299 = vadd.f32 %v7292, 1.0
    %v7300 = vadd.f32 %v7294, 1.0
    %v7301 = vadd.f32 %v7296, 1.0
    %v7302 = vadd.f32 %v7298, 1.0
    %v7303 = vrcp.pop %v7299
    %v7304 = vmul.f32 %v7299, %v7303
    %v7305 = vsub.f32 1.0, %v7304
    %v7306 = vmul.f32 %v7303, %v7305
    %v7307 = vadd.f32 %v7303, %v7306
    %vm7308 = vweird.f32 %v7299
    %vm7309 = vweird.f32 %v7303
    %vm7310 = vmor %vm7308, %vm7309
    %v7311 = vsel %vm7310, %v7303, %v7307
    %v7312 = vand.u32 2147483647, %v7299
    %vm7313 = vcmp.eq.f32.partialorder %v7312, 8.507059e+37
    %v7314 = vand.u32 %v7299, 2147483648
    %v7315 = vor.u32 1.1754944e-38, %v7314
    %v7316 = vsel %vm7313, %v7315, %v7311
    %v7317 = vmul.f32 1.0, %v7316
    %v7318 = vrcp.pop %v7300
    %v7319 = vmul.f32 %v7300, %v7318
    %v7320 = vsub.f32 1.0, %v7319
    %v7321 = vmul.f32 %v7318, %v7320
    %v7322 = vadd.f32 %v7318, %v7321
    %vm7323 = vweird.f32 %v7300
    %vm7324 = vweird.f32 %v7318
    %vm7325 = vmor %vm7323, %vm7324
    %v7326 = vsel %vm7325, %v7318, %v7322
    %v7327 = vand.u32 2147483647, %v7300
    %vm7328 = vcmp.eq.f32.partialorder %v7327, 8.507059e+37
    %v7329 = vand.u32 %v7300, 2147483648
    %v7330 = vor.u32 1.1754944e-38, %v7329
    %v7331 = vsel %vm7328, %v7330, %v7326
    %v7332 = vmul.f32 1.0, %v7331
    %v7333 = vrcp.pop %v7301
    %v7334 = vmul.f32 %v7301, %v7333
    %v7335 = vsub.f32 1.0, %v7334
    %v7336 = vmul.f32 %v7333, %v7335
    %v7337 = vadd.f32 %v7333, %v7336
    %vm7338 = vweird.f32 %v7301
    %vm7339 = vweird.f32 %v7333
    %vm7340 = vmor %vm7338, %vm7339
    %v7341 = vsel %vm7340, %v7333, %v7337
    %v7342 = vand.u32 2147483647, %v7301
    %vm7343 = vcmp.eq.f32.partialorder %v7342, 8.507059e+37
    %v7344 = vand.u32 %v7301, 2147483648
    %v7345 = vor.u32 1.1754944e-38, %v7344
    %v7346 = vsel %vm7343, %v7345, %v7341
    %v7347 = vmul.f32 1.0, %v7346
    %v7348 = vrcp.pop %v7302
    %v7349 = vmul.f32 %v7302, %v7348
    %v7350 = vsub.f32 1.0, %v7349
    %v7351 = vmul.f32 %v7348, %v7350
    %v7352 = vadd.f32 %v7348, %v7351
    %vm7353 = vweird.f32 %v7302
    %vm7354 = vweird.f32 %v7348
    %vm7355 = vmor %vm7353, %vm7354
    %v7356 = vsel %vm7355, %v7348, %v7352
    %v7357 = vand.u32 2147483647, %v7302
    %vm7358 = vcmp.eq.f32.partialorder %v7357, 8.507059e+37
    %v7359 = vand.u32 %v7302, 2147483648
    %v7360 = vor.u32 1.1754944e-38, %v7359
    %v7361 = vsel %vm7358, %v7360, %v7356
    %v7362 = vmul.f32 1.0, %v7361
    %v7363 = vld [vmem:[#allocation3] sm:$0xff]
    %v7364 = vld [vmem:[#allocation3 + $0x8] sm:$0xff]
    %v7365 = vld [vmem:[#allocation3 + $0x10] sm:$0xff]
    %v7366 = vld [vmem:[#allocation3 + $0x18] sm:$0xff]
    %v7367 = vmul.f32 %v7237, %v7363
    %v7368 = vmul.f32 %v7252, %v7364
    %v7369 = vmul.f32 %v7267, %v7365
    %v7370 = vmul.f32 %v7282, %v7366
    %v7371 = vmul.f32 %v7161, %v7283
    %v7372 = vmul.f32 %v7176, %v7284
    %v7373 = vmul.f32 %v7191, %v7285
    %v7374 = vmul.f32 %v7206, %v7286
    %v7375 = vadd.f32 %v7367, %v7371
    %v7376 = vadd.f32 %v7368, %v7372
    %v7377 = vadd.f32 %v7369, %v7373
    %v7378 = vadd.f32 %v7370, %v7374
    %v7379 = vtanh.pop %v7375
    %v7380 = vtanh.pop %v7376
    %v7381 = vtanh.pop %v7377
    %v7382 = vtanh.pop %v7378
    %v7383 = vmul.f32 %v7317, %v7379
    %v7384 = vmul.f32 %v7332, %v7380
    %v7385 = vmul.f32 %v7347, %v7381
    %v7386 = vmul.f32 %v7362, %v7382
    %7387 = vst [vmem:[#allocation3] sm:$0xff] %v7375
    %7388 = vst [vmem:[#allocation3 + $0x8] sm:$0xff] %v7376
    %7389 = vst [vmem:[#allocation3 + $0x10] sm:$0xff] %v7377
    %7390 = vst [vmem:[#allocation3 + $0x18] sm:$0xff] %v7378
    %7391 = vst [vmem:[#allocation2] sm:$0xff] %v7383
    %7392 = vst [vmem:[#allocation2 + $0x8] sm:$0xff] %v7384
    %7393 = vst [vmem:[#allocation2 + $0x10] sm:$0xff] %v7385
    %7394 = vst [vmem:[#allocation2 + $0x18] sm:$0xff] %v7386
    %v7395 = vld [vmem:[#allocation7] sm:$0xff]
    %v7396 = vld [vmem:[#allocation7 + $0x8] sm:$0xff]
    %v7397 = vld [vmem:[#allocation7 + $0x10] sm:$0xff]
    %v7398 = vld [vmem:[#allocation7 + $0x18] sm:$0xff]
    %v7399 = vld [vmem:[#allocation7 + $0x20] sm:$0xff]
    %v7400 = vld [vmem:[#allocation7 + $0x28] sm:$0xff]
    %v7401 = vld [vmem:[#allocation7 + $0x30] sm:$0xff]
    %v7402 = vld [vmem:[#allocation7 + $0x38] sm:$0xff]
    %v7403 = vld [vmem:[#allocation7 + $0x40] sm:$0xff]
    %v7404 = vld [vmem:[#allocation7 + $0x48] sm:$0xff]
    %v7405 = vld [vmem:[#allocation7 + $0x50] sm:$0xff]
    %v7406 = vld [vmem:[#allocation7 + $0x58] sm:$0xff]
    %v7407 = vld [vmem:[#allocation7 + $0x60] sm:$0xff]
    %v7408 = vld [vmem:[#allocation7 + $0x68] sm:$0xff]
    %v7409 = vld [vmem:[#allocation7 + $0x70] sm:$0xff]
    %v7410 = vld [vmem:[#allocation7 + $0x78] sm:$0xff]
    %v7411 = vld [vmem:[#allocation4] sm:$0xff]
    %v7412 = vld [vmem:[#allocation4 + $0x8] sm:$0xff]
    %v7413 = vld [vmem:[#allocation4 + $0x10] sm:$0xff]
    %v7414 = vld [vmem:[#allocation4 + $0x18] sm:$0xff]
    %v7415 = vpack.c.bf16 %v7412, %v7411
    %v7416 = vpack.c.bf16 %v7414, %v7413
    %7417 = vmatpush.bf16.msra.mxu0 0
    %7418 = vmatpush.bf16.msra.mxu0 0
    %7419 = vmatpush.bf16.msra.mxu0 0
    %7420 = vmatpush.bf16.msra.mxu0 0
    %7421 = vmatpush.bf16.msra.mxu0 0
    %7422 = vmatpush.bf16.msra.mxu0 0
    %7423 = vmatpush.bf16.msra.mxu0 %v7416
    %7424 = vmatpush.bf16.msra.mxu0 %v7415
    %7425 = vmatmul.bf16.gmra.mxu0 %v2043
    %v7426 = vpop.f32.mrf.mxu0
    %v7427 = vadd.f32 0.0, %v7426
    %v7428 = vpop.f32.mrf.mxu0
    %v7429 = vadd.f32 0.0, %v7428
    %7430 = vmatmul.bf16.gmra.mxu0 %v2046
    %v7431 = vpop.f32.mrf.mxu0
    %v7432 = vadd.f32 0.0, %v7431
    %v7433 = vpop.f32.mrf.mxu0
    %v7434 = vadd.f32 0.0, %v7433
    %7435 = vmatmul.bf16.gmra.mxu0 %v2049
    %v7436 = vpop.f32.mrf.mxu0
    %v7437 = vadd.f32 0.0, %v7436
    %v7438 = vpop.f32.mrf.mxu0
    %v7439 = vadd.f32 0.0, %v7438
    %7440 = vmatmul.bf16.gmra.mxu0 %v2052
    %v7441 = vpop.f32.mrf.mxu0
    %v7442 = vadd.f32 0.0, %v7441
    %v7443 = vpop.f32.mrf.mxu0
    %v7444 = vadd.f32 0.0, %v7443
    %7445 = vmatmul.bf16.gmra.mxu0 %v2055
    %v7446 = vpop.f32.mrf.mxu0
    %v7447 = vadd.f32 0.0, %v7446
    %v7448 = vpop.f32.mrf.mxu0
    %v7449 = vadd.f32 0.0, %v7448
    %7450 = vmatmul.bf16.gmra.mxu0 %v2058
    %v7451 = vpop.f32.mrf.mxu0
    %v7452 = vadd.f32 0.0, %v7451
    %v7453 = vpop.f32.mrf.mxu0
    %v7454 = vadd.f32 0.0, %v7453
    %7455 = vmatmul.bf16.gmra.mxu0 %v2061
    %v7456 = vpop.f32.mrf.mxu0
    %v7457 = vadd.f32 0.0, %v7456
    %v7458 = vpop.f32.mrf.mxu0
    %v7459 = vadd.f32 0.0, %v7458
    %7460 = vmatmul.bf16.gmra.mxu0 %v2064
    %v7461 = vpop.f32.mrf.mxu0
    %v7462 = vadd.f32 0.0, %v7461
    %v7463 = vpop.f32.mrf.mxu0
    %v7464 = vadd.f32 0.0, %v7463
    %7465 = vdwg.mxu0
    %v7466 = vadd.f32 %v7395, %v7427
    %v7467 = vadd.f32 %v7396, %v7429
    %v7468 = vadd.f32 %v7397, %v7432
    %v7469 = vadd.f32 %v7398, %v7434
    %v7470 = vadd.f32 %v7399, %v7437
    %v7471 = vadd.f32 %v7400, %v7439
    %v7472 = vadd.f32 %v7401, %v7442
    %v7473 = vadd.f32 %v7402, %v7444
    %v7474 = vadd.f32 %v7403, %v7447
    %v7475 = vadd.f32 %v7404, %v7449
    %v7476 = vadd.f32 %v7405, %v7452
    %v7477 = vadd.f32 %v7406, %v7454
    %v7478 = vadd.f32 %v7407, %v7457
    %v7479 = vadd.f32 %v7408, %v7459
    %v7480 = vadd.f32 %v7409, %v7462
    %v7481 = vadd.f32 %v7410, %v7464
    %v7482 = vxor.u32 %v7466, 2147483648
    %v7483 = vxor.u32 %v7467, 2147483648
    %v7484 = vxor.u32 %v7468, 2147483648
    %v7485 = vxor.u32 %v7469, 2147483648
    %v7486 = vmul.f32 %v7482, 1.442695
    %v7487 = vpow.pop %v7486
    %v7488 = vmul.f32 %v7483, 1.442695
    %v7489 = vpow.pop %v7488
    %v7490 = vmul.f32 %v7484, 1.442695
    %v7491 = vpow.pop %v7490
    %v7492 = vmul.f32 %v7485, 1.442695
    %v7493 = vpow.pop %v7492
    %v7494 = vadd.f32 %v7487, 1.0
    %v7495 = vadd.f32 %v7489, 1.0
    %v7496 = vadd.f32 %v7491, 1.0
    %v7497 = vadd.f32 %v7493, 1.0
    %v7498 = vrcp.pop %v7494
    %v7499 = vmul.f32 %v7494, %v7498
    %v7500 = vsub.f32 1.0, %v7499
    %v7501 = vmul.f32 %v7498, %v7500
    %v7502 = vadd.f32 %v7498, %v7501
    %vm7503 = vweird.f32 %v7494
    %vm7504 = vweird.f32 %v7498
    %vm7505 = vmor %vm7503, %vm7504
    %v7506 = vsel %vm7505, %v7498, %v7502
    %v7507 = vand.u32 2147483647, %v7494
    %vm7508 = vcmp.eq.f32.partialorder %v7507, 8.507059e+37
    %v7509 = vand.u32 %v7494, 2147483648
    %v7510 = vor.u32 1.1754944e-38, %v7509
    %v7511 = vsel %vm7508, %v7510, %v7506
    %v7512 = vmul.f32 1.0, %v7511
    %v7513 = vrcp.pop %v7495
    %v7514 = vmul.f32 %v7495, %v7513
    %v7515 = vsub.f32 1.0, %v7514
    %v7516 = vmul.f32 %v7513, %v7515
    %v7517 = vadd.f32 %v7513, %v7516
    %vm7518 = vweird.f32 %v7495
    %vm7519 = vweird.f32 %v7513
    %vm7520 = vmor %vm7518, %vm7519
    %v7521 = vsel %vm7520, %v7513, %v7517
    %v7522 = vand.u32 2147483647, %v7495
    %vm7523 = vcmp.eq.f32.partialorder %v7522, 8.507059e+37
    %v7524 = vand.u32 %v7495, 2147483648
    %v7525 = vor.u32 1.1754944e-38, %v7524
    %v7526 = vsel %vm7523, %v7525, %v7521
    %v7527 = vmul.f32 1.0, %v7526
    %v7528 = vrcp.pop %v7496
    %v7529 = vmul.f32 %v7496, %v7528
    %v7530 = vsub.f32 1.0, %v7529
    %v7531 = vmul.f32 %v7528, %v7530
    %v7532 = vadd.f32 %v7528, %v7531
    %vm7533 = vweird.f32 %v7496
    %vm7534 = vweird.f32 %v7528
    %vm7535 = vmor %vm7533, %vm7534
    %v7536 = vsel %vm7535, %v7528, %v7532
    %v7537 = vand.u32 2147483647, %v7496
    %vm7538 = vcmp.eq.f32.partialorder %v7537, 8.507059e+37
    %v7539 = vand.u32 %v7496, 2147483648
    %v7540 = vor.u32 1.1754944e-38, %v7539
    %v7541 = vsel %vm7538, %v7540, %v7536
    %v7542 = vmul.f32 1.0, %v7541
    %v7543 = vrcp.pop %v7497
    %v7544 = vmul.f32 %v7497, %v7543
    %v7545 = vsub.f32 1.0, %v7544
    %v7546 = vmul.f32 %v7543, %v7545
    %v7547 = vadd.f32 %v7543, %v7546
    %vm7548 = vweird.f32 %v7497
    %vm7549 = vweird.f32 %v7543
    %vm7550 = vmor %vm7548, %vm7549
    %v7551 = vsel %vm7550, %v7543, %v7547
    %v7552 = vand.u32 2147483647, %v7497
    %vm7553 = vcmp.eq.f32.partialorder %v7552, 8.507059e+37
    %v7554 = vand.u32 %v7497, 2147483648
    %v7555 = vor.u32 1.1754944e-38, %v7554
    %v7556 = vsel %vm7553, %v7555, %v7551
    %v7557 = vmul.f32 1.0, %v7556
    %v7558 = vxor.u32 %v7470, 2147483648
    %v7559 = vxor.u32 %v7471, 2147483648
    %v7560 = vxor.u32 %v7472, 2147483648
    %v7561 = vxor.u32 %v7473, 2147483648
    %v7562 = vmul.f32 %v7558, 1.442695
    %v7563 = vpow.pop %v7562
    %v7564 = vmul.f32 %v7559, 1.442695
    %v7565 = vpow.pop %v7564
    %v7566 = vmul.f32 %v7560, 1.442695
    %v7567 = vpow.pop %v7566
    %v7568 = vmul.f32 %v7561, 1.442695
    %v7569 = vpow.pop %v7568
    %v7570 = vadd.f32 %v7563, 1.0
    %v7571 = vadd.f32 %v7565, 1.0
    %v7572 = vadd.f32 %v7567, 1.0
    %v7573 = vadd.f32 %v7569, 1.0
    %v7574 = vrcp.pop %v7570
    %v7575 = vmul.f32 %v7570, %v7574
    %v7576 = vsub.f32 1.0, %v7575
    %v7577 = vmul.f32 %v7574, %v7576
    %v7578 = vadd.f32 %v7574, %v7577
    %vm7579 = vweird.f32 %v7570
    %vm7580 = vweird.f32 %v7574
    %vm7581 = vmor %vm7579, %vm7580
    %v7582 = vsel %vm7581, %v7574, %v7578
    %v7583 = vand.u32 2147483647, %v7570
    %vm7584 = vcmp.eq.f32.partialorder %v7583, 8.507059e+37
    %v7585 = vand.u32 %v7570, 2147483648
    %v7586 = vor.u32 1.1754944e-38, %v7585
    %v7587 = vsel %vm7584, %v7586, %v7582
    %v7588 = vmul.f32 1.0, %v7587
    %v7589 = vrcp.pop %v7571
    %v7590 = vmul.f32 %v7571, %v7589
    %v7591 = vsub.f32 1.0, %v7590
    %v7592 = vmul.f32 %v7589, %v7591
    %v7593 = vadd.f32 %v7589, %v7592
    %vm7594 = vweird.f32 %v7571
    %vm7595 = vweird.f32 %v7589
    %vm7596 = vmor %vm7594, %vm7595
    %v7597 = vsel %vm7596, %v7589, %v7593
    %v7598 = vand.u32 2147483647, %v7571
    %vm7599 = vcmp.eq.f32.partialorder %v7598, 8.507059e+37
    %v7600 = vand.u32 %v7571, 2147483648
    %v7601 = vor.u32 1.1754944e-38, %v7600
    %v7602 = vsel %vm7599, %v7601, %v7597
    %v7603 = vmul.f32 1.0, %v7602
    %v7604 = vrcp.pop %v7572
    %v7605 = vmul.f32 %v7572, %v7604
    %v7606 = vsub.f32 1.0, %v7605
    %v7607 = vmul.f32 %v7604, %v7606
    %v7608 = vadd.f32 %v7604, %v7607
    %vm7609 = vweird.f32 %v7572
    %vm7610 = vweird.f32 %v7604
    %vm7611 = vmor %vm7609, %vm7610
    %v7612 = vsel %vm7611, %v7604, %v7608
    %v7613 = vand.u32 2147483647, %v7572
    %vm7614 = vcmp.eq.f32.partialorder %v7613, 8.507059e+37
    %v7615 = vand.u32 %v7572, 2147483648
    %v7616 = vor.u32 1.1754944e-38, %v7615
    %v7617 = vsel %vm7614, %v7616, %v7612
    %v7618 = vmul.f32 1.0, %v7617
    %v7619 = vrcp.pop %v7573
    %v7620 = vmul.f32 %v7573, %v7619
    %v7621 = vsub.f32 1.0, %v7620
    %v7622 = vmul.f32 %v7619, %v7621
    %v7623 = vadd.f32 %v7619, %v7622
    %vm7624 = vweird.f32 %v7573
    %vm7625 = vweird.f32 %v7619
    %vm7626 = vmor %vm7624, %vm7625
    %v7627 = vsel %vm7626, %v7619, %v7623
    %v7628 = vand.u32 2147483647, %v7573
    %vm7629 = vcmp.eq.f32.partialorder %v7628, 8.507059e+37
    %v7630 = vand.u32 %v7573, 2147483648
    %v7631 = vor.u32 1.1754944e-38, %v7630
    %v7632 = vsel %vm7629, %v7631, %v7627
    %v7633 = vmul.f32 1.0, %v7632
    %v7634 = vtanh.pop %v7474
    %v7635 = vtanh.pop %v7475
    %v7636 = vtanh.pop %v7476
    %v7637 = vtanh.pop %v7477
    %v7638 = vxor.u32 %v7478, 2147483648
    %v7639 = vxor.u32 %v7479, 2147483648
    %v7640 = vxor.u32 %v7480, 2147483648
    %v7641 = vxor.u32 %v7481, 2147483648
    %v7642 = vmul.f32 %v7638, 1.442695
    %v7643 = vpow.pop %v7642
    %v7644 = vmul.f32 %v7639, 1.442695
    %v7645 = vpow.pop %v7644
    %v7646 = vmul.f32 %v7640, 1.442695
    %v7647 = vpow.pop %v7646
    %v7648 = vmul.f32 %v7641, 1.442695
    %v7649 = vpow.pop %v7648
    %v7650 = vadd.f32 %v7643, 1.0
    %v7651 = vadd.f32 %v7645, 1.0
    %v7652 = vadd.f32 %v7647, 1.0
    %v7653 = vadd.f32 %v7649, 1.0
    %v7654 = vrcp.pop %v7650
    %v7655 = vmul.f32 %v7650, %v7654
    %v7656 = vsub.f32 1.0, %v7655
    %v7657 = vmul.f32 %v7654, %v7656
    %v7658 = vadd.f32 %v7654, %v7657
    %vm7659 = vweird.f32 %v7650
    %vm7660 = vweird.f32 %v7654
    %vm7661 = vmor %vm7659, %vm7660
    %v7662 = vsel %vm7661, %v7654, %v7658
    %v7663 = vand.u32 2147483647, %v7650
    %vm7664 = vcmp.eq.f32.partialorder %v7663, 8.507059e+37
    %v7665 = vand.u32 %v7650, 2147483648
    %v7666 = vor.u32 1.1754944e-38, %v7665
    %v7667 = vsel %vm7664, %v7666, %v7662
    %v7668 = vmul.f32 1.0, %v7667
    %v7669 = vrcp.pop %v7651
    %v7670 = vmul.f32 %v7651, %v7669
    %v7671 = vsub.f32 1.0, %v7670
    %v7672 = vmul.f32 %v7669, %v7671
    %v7673 = vadd.f32 %v7669, %v7672
    %vm7674 = vweird.f32 %v7651
    %vm7675 = vweird.f32 %v7669
    %vm7676 = vmor %vm7674, %vm7675
    %v7677 = vsel %vm7676, %v7669, %v7673
    %v7678 = vand.u32 2147483647, %v7651
    %vm7679 = vcmp.eq.f32.partialorder %v7678, 8.507059e+37
    %v7680 = vand.u32 %v7651, 2147483648
    %v7681 = vor.u32 1.1754944e-38, %v7680
    %v7682 = vsel %vm7679, %v7681, %v7677
    %v7683 = vmul.f32 1.0, %v7682
    %v7684 = vrcp.pop %v7652
    %v7685 = vmul.f32 %v7652, %v7684
    %v7686 = vsub.f32 1.0, %v7685
    %v7687 = vmul.f32 %v7684, %v7686
    %v7688 = vadd.f32 %v7684, %v7687
    %vm7689 = vweird.f32 %v7652
    %vm7690 = vweird.f32 %v7684
    %vm7691 = vmor %vm7689, %vm7690
    %v7692 = vsel %vm7691, %v7684, %v7688
    %v7693 = vand.u32 2147483647, %v7652
    %vm7694 = vcmp.eq.f32.partialorder %v7693, 8.507059e+37
    %v7695 = vand.u32 %v7652, 2147483648
    %v7696 = vor.u32 1.1754944e-38, %v7695
    %v7697 = vsel %vm7694, %v7696, %v7692
    %v7698 = vmul.f32 1.0, %v7697
    %v7699 = vrcp.pop %v7653
    %v7700 = vmul.f32 %v7653, %v7699
    %v7701 = vsub.f32 1.0, %v7700
    %v7702 = vmul.f32 %v7699, %v7701
    %v7703 = vadd.f32 %v7699, %v7702
    %vm7704 = vweird.f32 %v7653
    %vm7705 = vweird.f32 %v7699
    %vm7706 = vmor %vm7704, %vm7705
    %v7707 = vsel %vm7706, %v7699, %v7703
    %v7708 = vand.u32 2147483647, %v7653
    %vm7709 = vcmp.eq.f32.partialorder %v7708, 8.507059e+37
    %v7710 = vand.u32 %v7653, 2147483648
    %v7711 = vor.u32 1.1754944e-38, %v7710
    %v7712 = vsel %vm7709, %v7711, %v7707
    %v7713 = vmul.f32 1.0, %v7712
    %v7714 = vld [vmem:[#allocation5] sm:$0xff]
    %v7715 = vld [vmem:[#allocation5 + $0x8] sm:$0xff]
    %v7716 = vld [vmem:[#allocation5 + $0x10] sm:$0xff]
    %v7717 = vld [vmem:[#allocation5 + $0x18] sm:$0xff]
    %v7718 = vmul.f32 %v7588, %v7714
    %v7719 = vmul.f32 %v7603, %v7715
    %v7720 = vmul.f32 %v7618, %v7716
    %v7721 = vmul.f32 %v7633, %v7717
    %v7722 = vmul.f32 %v7512, %v7634
    %v7723 = vmul.f32 %v7527, %v7635
    %v7724 = vmul.f32 %v7542, %v7636
    %v7725 = vmul.f32 %v7557, %v7637
    %v7726 = vadd.f32 %v7718, %v7722
    %v7727 = vadd.f32 %v7719, %v7723
    %v7728 = vadd.f32 %v7720, %v7724
    %v7729 = vadd.f32 %v7721, %v7725
    %v7730 = vtanh.pop %v7726
    %v7731 = vtanh.pop %v7727
    %v7732 = vtanh.pop %v7728
    %v7733 = vtanh.pop %v7729
    %v7734 = vmul.f32 %v7668, %v7730
    %v7735 = vmul.f32 %v7683, %v7731
    %v7736 = vmul.f32 %v7698, %v7732
    %v7737 = vmul.f32 %v7713, %v7733
    %7738 = vst [vmem:[#allocation5] sm:$0xff] %v7726
    %7739 = vst [vmem:[#allocation5 + $0x8] sm:$0xff] %v7727
    %7740 = vst [vmem:[#allocation5 + $0x10] sm:$0xff] %v7728
    %7741 = vst [vmem:[#allocation5 + $0x18] sm:$0xff] %v7729
    %7742 = vst [vmem:[#allocation4] sm:$0xff] %v7734
    %7743 = vst [vmem:[#allocation4 + $0x8] sm:$0xff] %v7735
    %7744 = vst [vmem:[#allocation4 + $0x10] sm:$0xff] %v7736
    %7745 = vst [vmem:[#allocation4 + $0x18] sm:$0xff] %v7737
    %v7746 = vpack.c.bf16 %v7384, %v7383
    %v7747 = vpack.c.bf16 %v7386, %v7385
    %7748 = vmatpush.bf16.msra.mxu0 0
    %7749 = vmatpush.bf16.msra.mxu0 0
    %7750 = vmatpush.bf16.msra.mxu0 0
    %7751 = vmatpush.bf16.msra.mxu0 0
    %7752 = vmatpush.bf16.msra.mxu0 0
    %7753 = vmatpush.bf16.msra.mxu0 0
    %7754 = vmatpush.bf16.msra.mxu0 %v7747
    %7755 = vmatpush.bf16.msra.mxu0 %v7746
    %7756 = vmatmul.bf16.gmra.mxu0 %v2410
    %v7757 = vpop.f32.mrf.mxu0
    %v7758 = vadd.f32 0.0, %v7757
    %v7759 = vpop.f32.mrf.mxu0
    %v7760 = vadd.f32 0.0, %v7759
    %7761 = vmatmul.bf16.gmra.mxu0 %v2413
    %v7762 = vpop.f32.mrf.mxu0
    %v7763 = vadd.f32 0.0, %v7762
    %v7764 = vpop.f32.mrf.mxu0
    %v7765 = vadd.f32 0.0, %v7764
    %7766 = vdwg.mxu0
    %v7767 = vpack.c.bf16 %v7735, %v7734
    %v7768 = vpack.c.bf16 %v7737, %v7736
    %7769 = vmatpush.bf16.msra.mxu0 0
    %7770 = vmatpush.bf16.msra.mxu0 0
    %7771 = vmatpush.bf16.msra.mxu0 0
    %7772 = vmatpush.bf16.msra.mxu0 0
    %7773 = vmatpush.bf16.msra.mxu0 0
    %7774 = vmatpush.bf16.msra.mxu0 0
    %7775 = vmatpush.bf16.msra.mxu0 %v7768
    %7776 = vmatpush.bf16.msra.mxu0 %v7767
    %7777 = vmatmul.bf16.gmra.mxu0 %v2449
    %v7778 = vpop.f32.mrf.mxu0
    %v7779 = vadd.f32 0.0, %v7778
    %v7780 = vpop.f32.mrf.mxu0
    %v7781 = vadd.f32 0.0, %v7780
    %7782 = vmatmul.bf16.gmra.mxu0 %v2452
    %v7783 = vpop.f32.mrf.mxu0
    %v7784 = vadd.f32 0.0, %v7783
    %v7785 = vpop.f32.mrf.mxu0
    %v7786 = vadd.f32 0.0, %v7785
    %7787 = vdwg.mxu0
    %v7788 = vld [vmem:[%s2473] sm:$0xff]
    %v7789 = vld [vmem:[%s2473 + $0x8] sm:$0xff]
    %v7790 = vld [vmem:[%s2473 + $0x10] sm:$0xff]
    %v7791 = vld [vmem:[%s2473 + $0x18] sm:$0xff]
    %v7792 = vadd.f32 %v7788, %v7758
    %v7793 = vadd.f32 %v7789, %v7760
    %v7794 = vadd.f32 %v7790, %v7763
    %v7795 = vadd.f32 %v7791, %v7765
    %7796 = vst [vmem:[%s2473] sm:$0xff] %v7792
    %7797 = vst [vmem:[%s2473 + $0x8] sm:$0xff] %v7793
    %7798 = vst [vmem:[%s2473 + $0x10] sm:$0xff] %v7794
    %7799 = vst [vmem:[%s2473 + $0x18] sm:$0xff] %v7795
    %v7800 = vld [vmem:[#allocation8] sm:$0xff]
    %v7801 = vld [vmem:[#allocation8 + $0x8] sm:$0xff]
    %v7802 = vld [vmem:[#allocation8 + $0x10] sm:$0xff]
    %v7803 = vld [vmem:[#allocation8 + $0x18] sm:$0xff]
    %v7804 = vadd.f32 %v7800, %v7779
    %v7805 = vadd.f32 %v7801, %v7781
    %v7806 = vadd.f32 %v7802, %v7784
    %v7807 = vadd.f32 %v7803, %v7786
    %7808 = vst [vmem:[#allocation8] sm:$0xff] %v7804
    %7809 = vst [vmem:[#allocation8 + $0x8] sm:$0xff] %v7805
    %7810 = vst [vmem:[#allocation8 + $0x10] sm:$0xff] %v7806
    %7811 = vst [vmem:[#allocation8 + $0x18] sm:$0xff] %v7807
    // Predicated region
    $region42: #{tpu_custom_call.1} parent=1 // pred_check
      _
    $region43: #{tpu_custom_call.1} parent=1 // pred_check_branch
      %7813 = sbr.rel (0) target = $region45
    $region44: #{tpu_custom_call.1} parent=1 // pred_region
      %7815 = vsyncadd [#allocation9], 0
      %s7816 = sshll.u32 [#allocation8], 4
      %s7817 = int_to_ptr.vmem [resolvable:$true] %s7816
      %s7818 = sshll.u32 %s10, 4
      %s7819 = int_to_ptr.hbm [resolvable:$true] %s7818
      %7824 = dma.vmem_to_hbm [thread:$0]  %s7817, 4096, %s7819, [#allocation9], 128, 128, 8
    $region45: #{tpu_custom_call.1} parent=1 // pred_fallthru
      _
    // Predicated region
    $region46: #{tpu_custom_call.1} parent=1 // pred_check
      _
    $region47: #{tpu_custom_call.1} parent=1 // pred_check_branch
      %7826 = sbr.rel (0) target = $region49
    $region48: #{tpu_custom_call.1} parent=1 // pred_region
      %7828 = dma.done [#allocation9], 4096
    $region49: #{tpu_custom_call.1} parent=1 // pred_fallthru
      _
    %7829 = vsyncpa [#allocation9], 1

</llo_original>
